<compile_context>
chip_gen: v6e
topology: v6e:2x2x1
jax: 0.10.0
libtpu: 0.0.40
codegen_flags: <defaults>
</compile_context>

<pallas_src>
import jax
import jax.numpy as jnp
import numpy as np
from jax.experimental import pallas as pl
from jax.experimental.pallas import tpu as pltpu

FEATURE_FILTER = 32
FILTER_SIZE = 5
LABELS = 3
PAD = FILTER_SIZE // 2                 # 2

C1 = FEATURE_FILTER                    # 32   conv1 output channels
C2 = 2 * FEATURE_FILTER                # 64   conv2 output channels

H_IN = W_IN = 32                       # conv1 spatial
HP1 = H_IN + 2 * PAD                   # 36   padded conv1 input rows/cols
WP1 = W_IN + 2 * PAD                   # 36
P1 = H_IN // 2                         # 16   after pool1 (= conv2 spatial)
HP2 = P1 + 2 * PAD                     # 20   padded conv2 input rows/cols
P2 = P1 // 2                           # 8    after pool2
LIN_IN = C2 * P2 * P2                  # 4096
NPAD = 128                             # lane-padded Linear/logits width

N1 = 2 * P1 * C1                       # 1024 conv1 banded output columns
GCOLS = 8                              # padded input columns per conv2 group
NG = 4                                 # conv2 output-column groups (4 cols each)
K2 = FILTER_SIZE * GCOLS * C1          # 1280 conv2 folded contraction dim
N2 = 2 * 2 * C2                        # 256  conv2 per-group output columns


# ------------------------------------------------------------------- kernel --

def _cnn_kernel(xs1_ref, bw1_ref, b1_ref, w2_ref, b2_ref, w3_ref, bo_ref,
                logits_ref, feat_ref, x2s_ref):
    """Whole CNN forward for one image.

    xs1_ref : [1, 4, 9, 36]  f32   zero-padded image, rows split mod 4
    bw1_ref : [5, 36, 1024]  bf16  conv1 banded weights, cols (j, w', c)
    b1_ref  : [1, 512]       f32   conv1 bias tiled over w'
    w2_ref  : [1280, 256]    bf16  conv2 grouped-banded weights (dy folded in K)
    b2_ref  : [1, 128]       f32   conv2 bias tiled over the pooled column pair
    w3_ref  : [8, 512, 128]  bf16  Linear weights, rows permuted to NHWC order
    bo_ref  : [1, 128]       f32   Linear bias (labels padded to 128 lanes)
    logits  : [1, 1, 128]    f32
    feat    : [1, 8, 512]    f32   pooled conv2 output, NHWC, (w, c) on lanes
    x2s_ref : [2, 10, 640]   f32   scratch: zero-padded conv2 input, rows split
                                   by parity, lanes = padded_col*32 + c_in
    """
    nh = P1 // 2                                        # 8

    # ---- stage 1: conv1(5x5,'same') + bias + ReLU + 2x2 maxpool -------------
    # S[u][t, :] = padded_image[4*t + u, :]   (u = 2*q + i + dy)
    S = [xs1_ref[0, u % 4, u // 4:u // 4 + nh, :] for u in range(8)]
    acc1 = None
    for dy in range(FILTER_SIZE):
        # M = 32 rows ordered (i, q, t): i = pooling-row parity, q = y%2,
        # t = y//2 -> pooled rows land already parity-split for stage 2.
        lhs = jnp.concatenate([S[dy], S[dy + 2], S[dy + 1], S[dy + 3]],
                              axis=0).astype(jnp.bfloat16)            # [32, 36]
        d = jnp.dot(lhs, bw1_ref[dy], preferred_element_type=jnp.float32)
        acc1 = d if acc1 is None else acc1 + d                        # [32,1024]
    m = jnp.maximum(acc1[:P1], acc1[P1:])               # pool over row pair
    m = jnp.maximum(m[:, :P1 * C1], m[:, P1 * C1:])     # pool over column pair
    y1 = jnp.maximum(m + b1_ref[...], 0.0)              # [16,512], rows (y%2,y//2)

    # ---- stage 2 input: zero-padded, row-parity-split activations in VMEM ---
    x2s_ref[...] = jnp.zeros_like(x2s_ref)
    lo = PAD * C1                                       # lane 64
    x2s_ref[0, 1:1 + nh, lo:lo + P1 * C1] = y1[:nh]     # even pool1 rows
    x2s_ref[1, 1:1 + nh, lo:lo + P1 * C1] = y1[nh:]     # odd  pool1 rows

    # ---- stage 2: conv2(5x5,'same') + bias + ReLU + 2x2 maxpool -------------
    feats = []
    for g in range(NG):                                 # 4 output-column groups
        c0 = g * 4 * C1                                 # 128-lane aligned window
        U = [x2s_ref[u % 2, u // 2:u // 2 + nh, c0:c0 + GCOLS * C1]
             for u in range(FILTER_SIZE + 1)]           # 6 distinct row slices
        # K = 1280 ordered (dy, col, c_in); M = 16 rows ordered (i, h').
        lhs = jnp.concatenate(
            [jnp.concatenate([U[dy], U[dy + 1]], axis=0)
             for dy in range(FILTER_SIZE)], axis=1).astype(jnp.bfloat16)
        acc = jnp.dot(lhs, w2_ref[...],
                      preferred_element_type=jnp.float32)             # [16, 256]
        mr = jnp.maximum(acc[:P2], acc[P2:])            # pool over row pair
        mc = jnp.maximum(mr[:, :N2 // 2], mr[:, N2 // 2:])   # pool over col pair
        feats.append(jnp.maximum(mc + b2_ref[...], 0.0))               # [8, 128]
    feat = jnp.concatenate(feats, axis=1)               # [8, 512] = (h', (w, c))
    feat_ref[0] = feat                                  # lane-dense 512 store

    # ---- final Linear on the NHWC-flattened features ------------------------
    featb = feat.astype(jnp.bfloat16)
    logits = bo_ref[...]                                # [1, 128]
    for h in range(P2):
        logits = logits + jnp.dot(featb[h:h + 1, :], w3_ref[h],
                                  preferred_element_type=jnp.float32)
    logits_ref[0] = logits


def _cnn_pallas(xs1, bw1, b1t, w2b, b2t, w3, bo):
    B = xs1.shape[0]
    return pl.pallas_call(
        _cnn_kernel,
        out_shape=(jax.ShapeDtypeStruct((B, 1, NPAD), jnp.float32),
                   jax.ShapeDtypeStruct((B, P2, P2 * C2), jnp.float32)),
        grid_spec=pltpu.PrefetchScalarGridSpec(
            num_scalar_prefetch=0,
            grid=(B,),
            in_specs=[
                pl.BlockSpec((1, 4, HP1 // 4, WP1), lambda b: (b, 0, 0, 0)),
                pl.BlockSpec((FILTER_SIZE, WP1, N1), lambda b: (0, 0, 0)),
                pl.BlockSpec((1, P1 * C1), lambda b: (0, 0)),
                pl.BlockSpec((K2, N2), lambda b: (0, 0)),
                pl.BlockSpec((1, N2 // 2), lambda b: (0, 0)),
                pl.BlockSpec((P2, P2 * C2, NPAD), lambda b: (0, 0, 0)),
                pl.BlockSpec((1, NPAD), lambda b: (0, 0)),
            ],
            out_specs=[
                pl.BlockSpec((1, 1, NPAD), lambda b: (b, 0, 0)),
                pl.BlockSpec((1, P2, P2 * C2), lambda b: (b, 0, 0)),
            ],
            scratch_shapes=[pltpu.VMEM((2, HP2 // 2, HP2 * C1), jnp.float32)],
        ),
        compiler_params=pltpu.CompilerParams(
            dimension_semantics=("parallel",)),
    )(xs1, bw1, b1t, w2b, b2t, w3, bo)


# ----------------------------------------------------------- weight packing --

def _build_banded_conv1(w1_hwio):
    """[5,5,1,32] HWIO -> banded [5, 36, 1024] bf16, columns ordered (j, w', c).

    Column n = j*512 + w'*32 + c is conv output column w = 2*w' + j, channel c;
    row v is the zero-padded input column."""
    k = FILTER_SIZE
    v = jnp.arange(WP1)
    ow = 2 * jnp.arange(P1)[None, :] + jnp.arange(2)[:, None]         # [2, 16]
    dx = v[:, None, None] - ow[None, :, :]                            # [36, 2, 16]
    valid = (dx >= 0) & (dx < k)
    dxc = jnp.clip(dx, 0, k - 1)
    banded = w1_hwio[:, dxc, 0, :]                                    # [5,36,2,16,32]
    banded = jnp.where(valid[None, :, :, :, None], banded, 0.0)
    return banded.reshape(k, WP1, N1).astype(jnp.bfloat16)


def _build_banded_conv2(w2_hwio):
    """[5,5,32,64] HWIO -> grouped-banded [1280, 256] bf16.

    The same matrix serves every group of 4 consecutive conv2 output columns:
      row k = dy*256 + lc*32 + ci  (lc = input column offset inside the group's
                                    8-column window, ci = input channel)
      col n = j*128 + wl*64 + co   (j = pooling column parity, wl = pooled
                                    column inside the group, co = out channel)
      entry = W2[dy, lc - 2*wl - j, ci, co] if that tap index is in [0, 5)."""
    k = FILTER_SIZE
    lc = jnp.arange(GCOLS)[:, None, None]
    jj = jnp.arange(2)[None, :, None]
    wl = jnp.arange(2)[None, None, :]
    dx = lc - 2 * wl - jj                                             # [8, 2, 2]
    valid = (dx >= 0) & (dx < k)
    dxc = jnp.clip(dx, 0, k - 1)
    band = w2_hwio[:, dxc, :, :]                                      # [5,8,2,2,32,64]
    band = jnp.where(valid[None, :, :, :, None, None], band, 0.0)
    band = band.transpose(0, 1, 4, 2, 3, 5)                           # dy,lc,ci,j,wl,co
    return band.reshape(K2, N2).astype(jnp.bfloat16)


def _build_linear_w(w_out_chw):
    """[4096, 3] torch (c,h,w)-flatten rows -> [8, 512, 128] bf16.

    w3[h, w*64 + c, :] = w_out[c*64 + h*8 + w, :]   (labels lane-padded)."""
    hh = jnp.arange(P2)[:, None, None]
    ww = jnp.arange(P2)[None, :, None]
    cc = jnp.arange(C2)[None, None, :]
    rows = (cc * (P2 * P2) + hh * P2 + ww).reshape(P2, P2 * C2)       # [8, 512]
    w3 = w_out_chw[rows]                                              # [8, 512, 3]
    return jnp.pad(w3, ((0, 0), (0, 0), (0, NPAD - LABELS))).astype(jnp.bfloat16)


def init_params(key):
    k1, k2, k3, k4, k5, k6 = jax.random.split(key, 6)

    def u(k, shape, fan_in):
        bound = 1.0 / jnp.sqrt(jnp.float32(fan_in))
        return jax.random.uniform(k, shape, jnp.float32, -bound, bound)

    fan1 = FILTER_SIZE * FILTER_SIZE * 1
    fan2 = FILTER_SIZE * FILTER_SIZE * C1
    fan3 = LIN_IN

    raw = {
        "w1": u(k1, (FILTER_SIZE, FILTER_SIZE, 1, C1), fan1),     # HWIO
        "b1": u(k2, (C1,), fan1),
        "w2": u(k3, (FILTER_SIZE, FILTER_SIZE, C1, C2), fan2),    # HWIO
        "b2": u(k4, (C2,), fan2),
        "w_out": u(k5, (LIN_IN, LABELS), fan3),   # rows in torch (C,H,W) order
        "b_out": u(k6, (LABELS,), fan3),
    }

    # Kernel-friendly packed layouts (one-time, off the forward critical path).
    params = {
        "bw1": _build_banded_conv1(raw["w1"]),                    # [5,36,1024]
        "b1t": jnp.tile(raw["b1"], P1).reshape(1, P1 * C1),       # [1,512]
        "w2b": _build_banded_conv2(raw["w2"]),                    # [1280,256]
        "b2t": jnp.tile(raw["b2"], 2).reshape(1, N2 // 2),        # [1,128]
        "w3": _build_linear_w(raw["w_out"]),                      # [8,512,128]
        "bo": jnp.pad(raw["b_out"], (0, NPAD - LABELS)).reshape(1, NPAD),
    }
    return params, raw


# ------------------------------------------------------------------ forward --

@jax.jit
def cnn_forward(params, x_nchw):
    """x_nchw: [B, 1, 32, 32] f32 -> (logits [B, 3], features [B, 4096])."""
    B = x_nchw.shape[0]
    # Only wrapper glue left: zero-pad + mod-4 row split of the tiny input.
    xp = jnp.pad(x_nchw[:, 0], ((0, 0), (PAD, PAD), (PAD, PAD)))      # [B,36,36]
    xs1 = xp.reshape(B, HP1 // 4, 4, WP1).transpose(0, 2, 1, 3)       # [B,4,9,36]

    logits_p, feat_nhwc = _cnn_pallas(
        xs1, params["bw1"], params["b1t"], params["w2b"], params["b2t"],
        params["w3"], params["bo"])

    logits = logits_p[:, 0, :LABELS]
    # torch-order (C,H,W) flattened features, matching x.view(B,-1) on NCHW.
    feat = feat_nhwc.reshape(B, P2, P2, C2).transpose(0, 3, 1, 2).reshape(B, LIN_IN)
    return logits, feat


# -------------------------------------------------------- pure-JAX reference --

def _reference_forward(raw, x):
    def conv(z, w, b):
        z = jax.lax.conv_general_dilated(
            z, w, window_strides=(1, 1), padding="SAME",
            dimension_numbers=("NCHW", "HWIO", "NCHW"))
        return jax.nn.relu(z + b[None, :, None, None])

    def pool(z):
        return jax.lax.reduce_window(z, -jnp.inf, jax.lax.max,
                                     (1, 1, 2, 2), (1, 1, 2, 2), "VALID")

    z = pool(conv(x, raw["w1"], raw["b1"]))
    z = pool(conv(z, raw["w2"], raw["b2"]))
    feat = z.reshape(z.shape[0], -1)
    return feat @ raw["w_out"] + raw["b_out"], feat


if __name__ == "__main__":
    key = jax.random.PRNGKey(0)
    pkey, xkey = jax.random.split(key)
    params, raw = init_params(pkey)
    # Spatial size must be 32x32 (the Linear expects 64*8*8 features); batch=2.
    x = jax.random.normal(xkey, (2, 1, 32, 32), dtype=jnp.float32)

    logits, feats = cnn_forward(params, x)
    jax.block_until_ready((logits, feats))
    assert logits.shape == (2, LABELS) and feats.shape == (2, LIN_IN)

    # Loose-tolerance check against a plain XLA reference (bf16 MXU operands).
    ref_logits, ref_feats = _reference_forward(raw, x)
    np.testing.assert_allclose(np.asarray(feats), np.asarray(ref_feats),
                               rtol=0.05, atol=0.05)
    np.testing.assert_allclose(np.asarray(logits), np.asarray(ref_logits),
                               rtol=0.05, atol=0.05)
    print("KERNEL_OK")
</pallas_src>

<mosaic_0001>
module attributes {stable_mosaic.version = 11 : i64} {
  func.func @_cnn_kernel(%arg0: i32, %arg1: memref<1x4x9x36xf32, #tpu.memory_space<vmem>>, %arg2: memref<5x36x1024xbf16, #tpu.memory_space<vmem>>, %arg3: memref<1x512xf32, #tpu.memory_space<vmem>>, %arg4: memref<1280x256xbf16, #tpu.memory_space<vmem>>, %arg5: memref<1x128xf32, #tpu.memory_space<vmem>>, %arg6: memref<8x512x128xbf16, #tpu.memory_space<vmem>>, %arg7: memref<1x128xf32, #tpu.memory_space<vmem>>, %arg8: memref<1x1x128xf32, #tpu.memory_space<vmem>>, %arg9: memref<1x8x512xf32, #tpu.memory_space<vmem>>, %arg10: memref<2x10x640xf32, #tpu.memory_space<vmem>>) attributes {dimension_semantics = [#tpu.dimension_semantics<parallel>], iteration_bounds = array<i64: 2>, scalar_prefetch = 0 : i64, scratch_operands = 1 : i64, tpu.core_type = #tpu.core_type<tc>, window_params = [{transform_indices = @transform_0, window_bounds = array<i64: 1, 4, 9, 36>}, {pipeline_mode = #tpu.pipeline_mode<synchronous>, transform_indices = @transform_1, window_bounds = array<i64: 5, 36, 1024>}, {pipeline_mode = #tpu.pipeline_mode<synchronous>, transform_indices = @transform_2, window_bounds = array<i64: 1, 512>}, {pipeline_mode = #tpu.pipeline_mode<synchronous>, transform_indices = @transform_3, window_bounds = array<i64: 1280, 256>}, {pipeline_mode = #tpu.pipeline_mode<synchronous>, transform_indices = @transform_4, window_bounds = array<i64: 1, 128>}, {pipeline_mode = #tpu.pipeline_mode<synchronous>, transform_indices = @transform_5, window_bounds = array<i64: 8, 512, 128>}, {pipeline_mode = #tpu.pipeline_mode<synchronous>, transform_indices = @transform_6, window_bounds = array<i64: 1, 128>}, {transform_indices = @transform_7, window_bounds = array<i64: 1, 1, 128>}, {transform_indices = @transform_8, window_bounds = array<i64: 1, 8, 512>}]} {
    %c0 = arith.constant 0 : index
    %c0_0 = arith.constant 0 : index
    %c0_1 = arith.constant 0 : index
    %c0_2 = arith.constant 0 : index
    %0 = vector.load %arg1[%c0, %c0_0, %c0_1, %c0_2] : memref<1x4x9x36xf32, #tpu.memory_space<vmem>>, vector<1x1x8x36xf32>
    %1 = vector.shape_cast %0 : vector<1x1x8x36xf32> to vector<8x36xf32>
    %c0_3 = arith.constant 0 : index
    %c1 = arith.constant 1 : index
    %c0_4 = arith.constant 0 : index
    %c0_5 = arith.constant 0 : index
    %2 = vector.load %arg1[%c0_3, %c1, %c0_4, %c0_5] : memref<1x4x9x36xf32, #tpu.memory_space<vmem>>, vector<1x1x8x36xf32>
    %3 = vector.shape_cast %2 : vector<1x1x8x36xf32> to vector<8x36xf32>
    %c0_6 = arith.constant 0 : index
    %c2 = arith.constant 2 : index
    %c0_7 = arith.constant 0 : index
    %c0_8 = arith.constant 0 : index
    %4 = vector.load %arg1[%c0_6, %c2, %c0_7, %c0_8] : memref<1x4x9x36xf32, #tpu.memory_space<vmem>>, vector<1x1x8x36xf32>
    %5 = vector.shape_cast %4 : vector<1x1x8x36xf32> to vector<8x36xf32>
    %c0_9 = arith.constant 0 : index
    %c3 = arith.constant 3 : index
    %c0_10 = arith.constant 0 : index
    %c0_11 = arith.constant 0 : index
    %6 = vector.load %arg1[%c0_9, %c3, %c0_10, %c0_11] : memref<1x4x9x36xf32, #tpu.memory_space<vmem>>, vector<1x1x8x36xf32>
    %7 = vector.shape_cast %6 : vector<1x1x8x36xf32> to vector<8x36xf32>
    %c0_12 = arith.constant 0 : index
    %c0_13 = arith.constant 0 : index
    %c1_14 = arith.constant 1 : index
    %c0_15 = arith.constant 0 : index
    %8 = vector.load %arg1[%c0_12, %c0_13, %c1_14, %c0_15] : memref<1x4x9x36xf32, #tpu.memory_space<vmem>>, vector<1x1x8x36xf32>
    %9 = vector.shape_cast %8 : vector<1x1x8x36xf32> to vector<8x36xf32>
    %c0_16 = arith.constant 0 : index
    %c1_17 = arith.constant 1 : index
    %c1_18 = arith.constant 1 : index
    %c0_19 = arith.constant 0 : index
    %10 = vector.load %arg1[%c0_16, %c1_17, %c1_18, %c0_19] : memref<1x4x9x36xf32, #tpu.memory_space<vmem>>, vector<1x1x8x36xf32>
    %11 = vector.shape_cast %10 : vector<1x1x8x36xf32> to vector<8x36xf32>
    %c0_20 = arith.constant 0 : index
    %c2_21 = arith.constant 2 : index
    %c1_22 = arith.constant 1 : index
    %c0_23 = arith.constant 0 : index
    %12 = vector.load %arg1[%c0_20, %c2_21, %c1_22, %c0_23] : memref<1x4x9x36xf32, #tpu.memory_space<vmem>>, vector<1x1x8x36xf32>
    %13 = vector.shape_cast %12 : vector<1x1x8x36xf32> to vector<8x36xf32>
    %c0_24 = arith.constant 0 : index
    %c3_25 = arith.constant 3 : index
    %c1_26 = arith.constant 1 : index
    %c0_27 = arith.constant 0 : index
    %14 = vector.load %arg1[%c0_24, %c3_25, %c1_26, %c0_27] : memref<1x4x9x36xf32, #tpu.memory_space<vmem>>, vector<1x1x8x36xf32>
    %15 = vector.shape_cast %14 : vector<1x1x8x36xf32> to vector<8x36xf32>
    %16 = tpu.concatenate %1, %5, %3, %7 in 0 : vector<8x36xf32>, vector<8x36xf32>, vector<8x36xf32>, vector<8x36xf32> -> vector<32x36xf32>
    %17 = arith.truncf %16 : vector<32x36xf32> to vector<32x36xbf16>
    %c0_28 = arith.constant 0 : index
    %c0_29 = arith.constant 0 : index
    %c0_30 = arith.constant 0 : index
    %18 = vector.load %arg2[%c0_28, %c0_29, %c0_30] : memref<5x36x1024xbf16, #tpu.memory_space<vmem>>, vector<1x36x1024xbf16>
    %19 = vector.shape_cast %18 : vector<1x36x1024xbf16> to vector<36x1024xbf16>
    %cst = arith.constant dense<0.000000e+00> : vector<32x1024xf32>
    %20 = tpu.matmul %17, %19, %cst {dimension_numbers = #tpu.dot_dimension_numbers<[1], [0], [0], [1], [0, 0, 1, 1], [], []>} : vector<32x36xbf16>, vector<36x1024xbf16>, vector<32x1024xf32> -> vector<32x1024xf32>
    %21 = tpu.concatenate %3, %7, %5, %9 in 0 : vector<8x36xf32>, vector<8x36xf32>, vector<8x36xf32>, vector<8x36xf32> -> vector<32x36xf32>
    %22 = arith.truncf %21 : vector<32x36xf32> to vector<32x36xbf16>
    %c1_31 = arith.constant 1 : index
    %c0_32 = arith.constant 0 : index
    %c0_33 = arith.constant 0 : index
    %23 = vector.load %arg2[%c1_31, %c0_32, %c0_33] : memref<5x36x1024xbf16, #tpu.memory_space<vmem>>, vector<1x36x1024xbf16>
    %24 = vector.shape_cast %23 : vector<1x36x1024xbf16> to vector<36x1024xbf16>
    %cst_34 = arith.constant dense<0.000000e+00> : vector<32x1024xf32>
    %25 = tpu.matmul %22, %24, %cst_34 {dimension_numbers = #tpu.dot_dimension_numbers<[1], [0], [0], [1], [0, 0, 1, 1], [], []>} : vector<32x36xbf16>, vector<36x1024xbf16>, vector<32x1024xf32> -> vector<32x1024xf32>
    %26 = arith.addf %20, %25 : vector<32x1024xf32>
    %27 = tpu.concatenate %5, %9, %7, %11 in 0 : vector<8x36xf32>, vector<8x36xf32>, vector<8x36xf32>, vector<8x36xf32> -> vector<32x36xf32>
    %28 = arith.truncf %27 : vector<32x36xf32> to vector<32x36xbf16>
    %c2_35 = arith.constant 2 : index
    %c0_36 = arith.constant 0 : index
    %c0_37 = arith.constant 0 : index
    %29 = vector.load %arg2[%c2_35, %c0_36, %c0_37] : memref<5x36x1024xbf16, #tpu.memory_space<vmem>>, vector<1x36x1024xbf16>
    %30 = vector.shape_cast %29 : vector<1x36x1024xbf16> to vector<36x1024xbf16>
    %cst_38 = arith.constant dense<0.000000e+00> : vector<32x1024xf32>
    %31 = tpu.matmul %28, %30, %cst_38 {dimension_numbers = #tpu.dot_dimension_numbers<[1], [0], [0], [1], [0, 0, 1, 1], [], []>} : vector<32x36xbf16>, vector<36x1024xbf16>, vector<32x1024xf32> -> vector<32x1024xf32>
    %32 = arith.addf %26, %31 : vector<32x1024xf32>
    %33 = tpu.concatenate %7, %11, %9, %13 in 0 : vector<8x36xf32>, vector<8x36xf32>, vector<8x36xf32>, vector<8x36xf32> -> vector<32x36xf32>
    %34 = arith.truncf %33 : vector<32x36xf32> to vector<32x36xbf16>
    %c3_39 = arith.constant 3 : index
    %c0_40 = arith.constant 0 : index
    %c0_41 = arith.constant 0 : index
    %35 = vector.load %arg2[%c3_39, %c0_40, %c0_41] : memref<5x36x1024xbf16, #tpu.memory_space<vmem>>, vector<1x36x1024xbf16>
    %36 = vector.shape_cast %35 : vector<1x36x1024xbf16> to vector<36x1024xbf16>
    %cst_42 = arith.constant dense<0.000000e+00> : vector<32x1024xf32>
    %37 = tpu.matmul %34, %36, %cst_42 {dimension_numbers = #tpu.dot_dimension_numbers<[1], [0], [0], [1], [0, 0, 1, 1], [], []>} : vector<32x36xbf16>, vector<36x1024xbf16>, vector<32x1024xf32> -> vector<32x1024xf32>
    %38 = arith.addf %32, %37 : vector<32x1024xf32>
    %39 = tpu.concatenate %9, %13, %11, %15 in 0 : vector<8x36xf32>, vector<8x36xf32>, vector<8x36xf32>, vector<8x36xf32> -> vector<32x36xf32>
    %40 = arith.truncf %39 : vector<32x36xf32> to vector<32x36xbf16>
    %c4 = arith.constant 4 : index
    %c0_43 = arith.constant 0 : index
    %c0_44 = arith.constant 0 : index
    %41 = vector.load %arg2[%c4, %c0_43, %c0_44] : memref<5x36x1024xbf16, #tpu.memory_space<vmem>>, vector<1x36x1024xbf16>
    %42 = vector.shape_cast %41 : vector<1x36x1024xbf16> to vector<36x1024xbf16>
    %cst_45 = arith.constant dense<0.000000e+00> : vector<32x1024xf32>
    %43 = tpu.matmul %40, %42, %cst_45 {dimension_numbers = #tpu.dot_dimension_numbers<[1], [0], [0], [1], [0, 0, 1, 1], [], []>} : vector<32x36xbf16>, vector<36x1024xbf16>, vector<32x1024xf32> -> vector<32x1024xf32>
    %44 = arith.addf %38, %43 : vector<32x1024xf32>
    %45 = vector.extract_strided_slice %44 {offsets = [0, 0], sizes = [16, 1024], strides = [1, 1]} : vector<32x1024xf32> to vector<16x1024xf32>
    %46 = vector.extract_strided_slice %44 {offsets = [16, 0], sizes = [16, 1024], strides = [1, 1]} : vector<32x1024xf32> to vector<16x1024xf32>
    %47 = arith.maximumf %45, %46 : vector<16x1024xf32>
    %48 = vector.extract_strided_slice %47 {offsets = [0, 0], sizes = [16, 512], strides = [1, 1]} : vector<16x1024xf32> to vector<16x512xf32>
    %49 = vector.extract_strided_slice %47 {offsets = [0, 512], sizes = [16, 512], strides = [1, 1]} : vector<16x1024xf32> to vector<16x512xf32>
    %50 = arith.maximumf %48, %49 : vector<16x512xf32>
    %c0_46 = arith.constant 0 : index
    %c0_47 = arith.constant 0 : index
    %51 = vector.load %arg3[%c0_46, %c0_47] : memref<1x512xf32, #tpu.memory_space<vmem>>, vector<1x512xf32>
    %52 = vector.broadcast %51 : vector<1x512xf32> to vector<16x512xf32>
    %53 = arith.addf %50, %52 : vector<16x512xf32>
    %cst_48 = arith.constant 0.000000e+00 : f32
    %54 = vector.broadcast %cst_48 : f32 to vector<16x512xf32>
    %55 = arith.maximumf %53, %54 : vector<16x512xf32>
    %cst_49 = arith.constant 0.000000e+00 : f32
    %56 = vector.broadcast %cst_49 : f32 to vector<2x10x640xf32>
    %c0_50 = arith.constant 0 : index
    %c0_51 = arith.constant 0 : index
    %c0_52 = arith.constant 0 : index
    %57 = vector.load %arg10[%c0_50, %c0_51, %c0_52] : memref<2x10x640xf32, #tpu.memory_space<vmem>>, vector<2x10x640xf32>
    tpu.vector_store %arg10[%c0_50, %c0_51, %c0_52], %56 {strides = array<i32>} : memref<2x10x640xf32, #tpu.memory_space<vmem>>, vector<2x10x640xf32>,
    %58 = vector.extract_strided_slice %55 {offsets = [0, 0], sizes = [8, 512], strides = [1, 1]} : vector<16x512xf32> to vector<8x512xf32>
    %c0_53 = arith.constant 0 : index
    %c1_54 = arith.constant 1 : index
    %c64 = arith.constant 64 : index
    %59 = vector.load %arg10[%c0_53, %c1_54, %c64] : memref<2x10x640xf32, #tpu.memory_space<vmem>>, vector<1x8x512xf32>
    %60 = vector.shape_cast %59 : vector<1x8x512xf32> to vector<8x512xf32>
    %61 = vector.shape_cast %58 : vector<8x512xf32> to vector<1x8x512xf32>
    tpu.vector_store %arg10[%c0_53, %c1_54, %c64], %61 {strides = array<i32>} : memref<2x10x640xf32, #tpu.memory_space<vmem>>, vector<1x8x512xf32>,
    %62 = vector.extract_strided_slice %55 {offsets = [8, 0], sizes = [8, 512], strides = [1, 1]} : vector<16x512xf32> to vector<8x512xf32>
    %c1_55 = arith.constant 1 : index
    %c1_56 = arith.constant 1 : index
    %c64_57 = arith.constant 64 : index
    %63 = vector.load %arg10[%c1_55, %c1_56, %c64_57] : memref<2x10x640xf32, #tpu.memory_space<vmem>>, vector<1x8x512xf32>
    %64 = vector.shape_cast %63 : vector<1x8x512xf32> to vector<8x512xf32>
    %65 = vector.shape_cast %62 : vector<8x512xf32> to vector<1x8x512xf32>
    tpu.vector_store %arg10[%c1_55, %c1_56, %c64_57], %65 {strides = array<i32>} : memref<2x10x640xf32, #tpu.memory_space<vmem>>, vector<1x8x512xf32>,
    %c0_58 = arith.constant 0 : index
    %c0_59 = arith.constant 0 : index
    %c0_60 = arith.constant 0 : index
    %66 = vector.load %arg10[%c0_58, %c0_59, %c0_60] : memref<2x10x640xf32, #tpu.memory_space<vmem>>, vector<1x8x256xf32>
    %67 = vector.shape_cast %66 : vector<1x8x256xf32> to vector<8x256xf32>
    %c1_61 = arith.constant 1 : index
    %c0_62 = arith.constant 0 : index
    %c0_63 = arith.constant 0 : index
    %68 = vector.load %arg10[%c1_61, %c0_62, %c0_63] : memref<2x10x640xf32, #tpu.memory_space<vmem>>, vector<1x8x256xf32>
    %69 = vector.shape_cast %68 : vector<1x8x256xf32> to vector<8x256xf32>
    %c0_64 = arith.constant 0 : index
    %c1_65 = arith.constant 1 : index
    %c0_66 = arith.constant 0 : index
    %70 = vector.load %arg10[%c0_64, %c1_65, %c0_66] : memref<2x10x640xf32, #tpu.memory_space<vmem>>, vector<1x8x256xf32>
    %71 = vector.shape_cast %70 : vector<1x8x256xf32> to vector<8x256xf32>
    %c1_67 = arith.constant 1 : index
    %c1_68 = arith.constant 1 : index
    %c0_69 = arith.constant 0 : index
    %72 = vector.load %arg10[%c1_67, %c1_68, %c0_69] : memref<2x10x640xf32, #tpu.memory_space<vmem>>, vector<1x8x256xf32>
    %73 = vector.shape_cast %72 : vector<1x8x256xf32> to vector<8x256xf32>
    %c0_70 = arith.constant 0 : index
    %c2_71 = arith.constant 2 : index
    %c0_72 = arith.constant 0 : index
    %74 = vector.load %arg10[%c0_70, %c2_71, %c0_72] : memref<2x10x640xf32, #tpu.memory_space<vmem>>, vector<1x8x256xf32>
    %75 = vector.shape_cast %74 : vector<1x8x256xf32> to vector<8x256xf32>
    %c1_73 = arith.constant 1 : index
    %c2_74 = arith.constant 2 : index
    %c0_75 = arith.constant 0 : index
    %76 = vector.load %arg10[%c1_73, %c2_74, %c0_75] : memref<2x10x640xf32, #tpu.memory_space<vmem>>, vector<1x8x256xf32>
    %77 = vector.shape_cast %76 : vector<1x8x256xf32> to vector<8x256xf32>
    %78 = tpu.concatenate %67, %69 in 0 : vector<8x256xf32>, vector<8x256xf32> -> vector<16x256xf32>
    %79 = tpu.concatenate %69, %71 in 0 : vector<8x256xf32>, vector<8x256xf32> -> vector<16x256xf32>
    %80 = tpu.concatenate %71, %73 in 0 : vector<8x256xf32>, vector<8x256xf32> -> vector<16x256xf32>
    %81 = tpu.concatenate %73, %75 in 0 : vector<8x256xf32>, vector<8x256xf32> -> vector<16x256xf32>
    %82 = tpu.concatenate %75, %77 in 0 : vector<8x256xf32>, vector<8x256xf32> -> vector<16x256xf32>
    %83 = tpu.concatenate %78, %79, %80, %81, %82 in 1 : vector<16x256xf32>, vector<16x256xf32>, vector<16x256xf32>, vector<16x256xf32>, vector<16x256xf32> -> vector<16x1280xf32>
    %84 = arith.truncf %83 : vector<16x1280xf32> to vector<16x1280xbf16>
    %c0_76 = arith.constant 0 : index
    %c0_77 = arith.constant 0 : index
    %85 = vector.load %arg4[%c0_76, %c0_77] : memref<1280x256xbf16, #tpu.memory_space<vmem>>, vector<1280x256xbf16>
    %cst_78 = arith.constant dense<0.000000e+00> : vector<16x256xf32>
    %86 = tpu.matmul %84, %85, %cst_78 {dimension_numbers = #tpu.dot_dimension_numbers<[1], [0], [0], [1], [0, 0, 1, 1], [], []>} : vector<16x1280xbf16>, vector<1280x256xbf16>, vector<16x256xf32> -> vector<16x256xf32>
    %87 = vector.extract_strided_slice %86 {offsets = [0, 0], sizes = [8, 256], strides = [1, 1]} : vector<16x256xf32> to vector<8x256xf32>
    %88 = vector.extract_strided_slice %86 {offsets = [8, 0], sizes = [8, 256], strides = [1, 1]} : vector<16x256xf32> to vector<8x256xf32>
    %89 = arith.maximumf %87, %88 : vector<8x256xf32>
    %90 = vector.extract_strided_slice %89 {offsets = [0, 0], sizes = [8, 128], strides = [1, 1]} : vector<8x256xf32> to vector<8x128xf32>
    %91 = vector.extract_strided_slice %89 {offsets = [0, 128], sizes = [8, 128], strides = [1, 1]} : vector<8x256xf32> to vector<8x128xf32>
    %92 = arith.maximumf %90, %91 : vector<8x128xf32>
    %c0_79 = arith.constant 0 : index
    %c0_80 = arith.constant 0 : index
    %93 = vector.load %arg5[%c0_79, %c0_80] : memref<1x128xf32, #tpu.memory_space<vmem>>, vector<1x128xf32>
    %94 = vector.broadcast %93 : vector<1x128xf32> to vector<8x128xf32>
    %95 = arith.addf %92, %94 : vector<8x128xf32>
    %cst_81 = arith.constant 0.000000e+00 : f32
    %96 = vector.broadcast %cst_81 : f32 to vector<8x128xf32>
    %97 = arith.maximumf %95, %96 : vector<8x128xf32>
    %c0_82 = arith.constant 0 : index
    %c0_83 = arith.constant 0 : index
    %c128 = arith.constant 128 : index
    %98 = vector.load %arg10[%c0_82, %c0_83, %c128] : memref<2x10x640xf32, #tpu.memory_space<vmem>>, vector<1x8x256xf32>
    %99 = vector.shape_cast %98 : vector<1x8x256xf32> to vector<8x256xf32>
    %c1_84 = arith.constant 1 : index
    %c0_85 = arith.constant 0 : index
    %c128_86 = arith.constant 128 : index
    %100 = vector.load %arg10[%c1_84, %c0_85, %c128_86] : memref<2x10x640xf32, #tpu.memory_space<vmem>>, vector<1x8x256xf32>
    %101 = vector.shape_cast %100 : vector<1x8x256xf32> to vector<8x256xf32>
    %c0_87 = arith.constant 0 : index
    %c1_88 = arith.constant 1 : index
    %c128_89 = arith.constant 128 : index
    %102 = vector.load %arg10[%c0_87, %c1_88, %c128_89] : memref<2x10x640xf32, #tpu.memory_space<vmem>>, vector<1x8x256xf32>
    %103 = vector.shape_cast %102 : vector<1x8x256xf32> to vector<8x256xf32>
    %c1_90 = arith.constant 1 : index
    %c1_91 = arith.constant 1 : index
    %c128_92 = arith.constant 128 : index
    %104 = vector.load %arg10[%c1_90, %c1_91, %c128_92] : memref<2x10x640xf32, #tpu.memory_space<vmem>>, vector<1x8x256xf32>
    %105 = vector.shape_cast %104 : vector<1x8x256xf32> to vector<8x256xf32>
    %c0_93 = arith.constant 0 : index
    %c2_94 = arith.constant 2 : index
    %c128_95 = arith.constant 128 : index
    %106 = vector.load %arg10[%c0_93, %c2_94, %c128_95] : memref<2x10x640xf32, #tpu.memory_space<vmem>>, vector<1x8x256xf32>
    %107 = vector.shape_cast %106 : vector<1x8x256xf32> to vector<8x256xf32>
    %c1_96 = arith.constant 1 : index
    %c2_97 = arith.constant 2 : index
    %c128_98 = arith.constant 128 : index
    %108 = vector.load %arg10[%c1_96, %c2_97, %c128_98] : memref<2x10x640xf32, #tpu.memory_space<vmem>>, vector<1x8x256xf32>
    %109 = vector.shape_cast %108 : vector<1x8x256xf32> to vector<8x256xf32>
    %110 = tpu.concatenate %99, %101 in 0 : vector<8x256xf32>, vector<8x256xf32> -> vector<16x256xf32>
    %111 = tpu.concatenate %101, %103 in 0 : vector<8x256xf32>, vector<8x256xf32> -> vector<16x256xf32>
    %112 = tpu.concatenate %103, %105 in 0 : vector<8x256xf32>, vector<8x256xf32> -> vector<16x256xf32>
    %113 = tpu.concatenate %105, %107 in 0 : vector<8x256xf32>, vector<8x256xf32> -> vector<16x256xf32>
    %114 = tpu.concatenate %107, %109 in 0 : vector<8x256xf32>, vector<8x256xf32> -> vector<16x256xf32>
    %115 = tpu.concatenate %110, %111, %112, %113, %114 in 1 : vector<16x256xf32>, vector<16x256xf32>, vector<16x256xf32>, vector<16x256xf32>, vector<16x256xf32> -> vector<16x1280xf32>
    %116 = arith.truncf %115 : vector<16x1280xf32> to vector<16x1280xbf16>
    %c0_99 = arith.constant 0 : index
    %c0_100 = arith.constant 0 : index
    %117 = vector.load %arg4[%c0_99, %c0_100] : memref<1280x256xbf16, #tpu.memory_space<vmem>>, vector<1280x256xbf16>
    %cst_101 = arith.constant dense<0.000000e+00> : vector<16x256xf32>
    %118 = tpu.matmul %116, %117, %cst_101 {dimension_numbers = #tpu.dot_dimension_numbers<[1], [0], [0], [1], [0, 0, 1, 1], [], []>} : vector<16x1280xbf16>, vector<1280x256xbf16>, vector<16x256xf32> -> vector<16x256xf32>
    %119 = vector.extract_strided_slice %118 {offsets = [0, 0], sizes = [8, 256], strides = [1, 1]} : vector<16x256xf32> to vector<8x256xf32>
    %120 = vector.extract_strided_slice %118 {offsets = [8, 0], sizes = [8, 256], strides = [1, 1]} : vector<16x256xf32> to vector<8x256xf32>
    %121 = arith.maximumf %119, %120 : vector<8x256xf32>
    %122 = vector.extract_strided_slice %121 {offsets = [0, 0], sizes = [8, 128], strides = [1, 1]} : vector<8x256xf32> to vector<8x128xf32>
    %123 = vector.extract_strided_slice %121 {offsets = [0, 128], sizes = [8, 128], strides = [1, 1]} : vector<8x256xf32> to vector<8x128xf32>
    %124 = arith.maximumf %122, %123 : vector<8x128xf32>
    %c0_102 = arith.constant 0 : index
    %c0_103 = arith.constant 0 : index
    %125 = vector.load %arg5[%c0_102, %c0_103] : memref<1x128xf32, #tpu.memory_space<vmem>>, vector<1x128xf32>
    %126 = vector.broadcast %125 : vector<1x128xf32> to vector<8x128xf32>
    %127 = arith.addf %124, %126 : vector<8x128xf32>
    %cst_104 = arith.constant 0.000000e+00 : f32
    %128 = vector.broadcast %cst_104 : f32 to vector<8x128xf32>
    %129 = arith.maximumf %127, %128 : vector<8x128xf32>
    %c0_105 = arith.constant 0 : index
    %c0_106 = arith.constant 0 : index
    %c256 = arith.constant 256 : index
    %130 = vector.load %arg10[%c0_105, %c0_106, %c256] : memref<2x10x640xf32, #tpu.memory_space<vmem>>, vector<1x8x256xf32>
    %131 = vector.shape_cast %130 : vector<1x8x256xf32> to vector<8x256xf32>
    %c1_107 = arith.constant 1 : index
    %c0_108 = arith.constant 0 : index
    %c256_109 = arith.constant 256 : index
    %132 = vector.load %arg10[%c1_107, %c0_108, %c256_109] : memref<2x10x640xf32, #tpu.memory_space<vmem>>, vector<1x8x256xf32>
    %133 = vector.shape_cast %132 : vector<1x8x256xf32> to vector<8x256xf32>
    %c0_110 = arith.constant 0 : index
    %c1_111 = arith.constant 1 : index
    %c256_112 = arith.constant 256 : index
    %134 = vector.load %arg10[%c0_110, %c1_111, %c256_112] : memref<2x10x640xf32, #tpu.memory_space<vmem>>, vector<1x8x256xf32>
    %135 = vector.shape_cast %134 : vector<1x8x256xf32> to vector<8x256xf32>
    %c1_113 = arith.constant 1 : index
    %c1_114 = arith.constant 1 : index
    %c256_115 = arith.constant 256 : index
    %136 = vector.load %arg10[%c1_113, %c1_114, %c256_115] : memref<2x10x640xf32, #tpu.memory_space<vmem>>, vector<1x8x256xf32>
    %137 = vector.shape_cast %136 : vector<1x8x256xf32> to vector<8x256xf32>
    %c0_116 = arith.constant 0 : index
    %c2_117 = arith.constant 2 : index
    %c256_118 = arith.constant 256 : index
    %138 = vector.load %arg10[%c0_116, %c2_117, %c256_118] : memref<2x10x640xf32, #tpu.memory_space<vmem>>, vector<1x8x256xf32>
    %139 = vector.shape_cast %138 : vector<1x8x256xf32> to vector<8x256xf32>
    %c1_119 = arith.constant 1 : index
    %c2_120 = arith.constant 2 : index
    %c256_121 = arith.constant 256 : index
    %140 = vector.load %arg10[%c1_119, %c2_120, %c256_121] : memref<2x10x640xf32, #tpu.memory_space<vmem>>, vector<1x8x256xf32>
    %141 = vector.shape_cast %140 : vector<1x8x256xf32> to vector<8x256xf32>
    %142 = tpu.concatenate %131, %133 in 0 : vector<8x256xf32>, vector<8x256xf32> -> vector<16x256xf32>
    %143 = tpu.concatenate %133, %135 in 0 : vector<8x256xf32>, vector<8x256xf32> -> vector<16x256xf32>
    %144 = tpu.concatenate %135, %137 in 0 : vector<8x256xf32>, vector<8x256xf32> -> vector<16x256xf32>
    %145 = tpu.concatenate %137, %139 in 0 : vector<8x256xf32>, vector<8x256xf32> -> vector<16x256xf32>
    %146 = tpu.concatenate %139, %141 in 0 : vector<8x256xf32>, vector<8x256xf32> -> vector<16x256xf32>
    %147 = tpu.concatenate %142, %143, %144, %145, %146 in 1 : vector<16x256xf32>, vector<16x256xf32>, vector<16x256xf32>, vector<16x256xf32>, vector<16x256xf32> -> vector<16x1280xf32>
    %148 = arith.truncf %147 : vector<16x1280xf32> to vector<16x1280xbf16>
    %c0_122 = arith.constant 0 : index
    %c0_123 = arith.constant 0 : index
    %149 = vector.load %arg4[%c0_122, %c0_123] : memref<1280x256xbf16, #tpu.memory_space<vmem>>, vector<1280x256xbf16>
    %cst_124 = arith.constant dense<0.000000e+00> : vector<16x256xf32>
    %150 = tpu.matmul %148, %149, %cst_124 {dimension_numbers = #tpu.dot_dimension_numbers<[1], [0], [0], [1], [0, 0, 1, 1], [], []>} : vector<16x1280xbf16>, vector<1280x256xbf16>, vector<16x256xf32> -> vector<16x256xf32>
    %151 = vector.extract_strided_slice %150 {offsets = [0, 0], sizes = [8, 256], strides = [1, 1]} : vector<16x256xf32> to vector<8x256xf32>
    %152 = vector.extract_strided_slice %150 {offsets = [8, 0], sizes = [8, 256], strides = [1, 1]} : vector<16x256xf32> to vector<8x256xf32>
    %153 = arith.maximumf %151, %152 : vector<8x256xf32>
    %154 = vector.extract_strided_slice %153 {offsets = [0, 0], sizes = [8, 128], strides = [1, 1]} : vector<8x256xf32> to vector<8x128xf32>
    %155 = vector.extract_strided_slice %153 {offsets = [0, 128], sizes = [8, 128], strides = [1, 1]} : vector<8x256xf32> to vector<8x128xf32>
    %156 = arith.maximumf %154, %155 : vector<8x128xf32>
    %c0_125 = arith.constant 0 : index
    %c0_126 = arith.constant 0 : index
    %157 = vector.load %arg5[%c0_125, %c0_126] : memref<1x128xf32, #tpu.memory_space<vmem>>, vector<1x128xf32>
    %158 = vector.broadcast %157 : vector<1x128xf32> to vector<8x128xf32>
    %159 = arith.addf %156, %158 : vector<8x128xf32>
    %cst_127 = arith.constant 0.000000e+00 : f32
    %160 = vector.broadcast %cst_127 : f32 to vector<8x128xf32>
    %161 = arith.maximumf %159, %160 : vector<8x128xf32>
    %c0_128 = arith.constant 0 : index
    %c0_129 = arith.constant 0 : index
    %c384 = arith.constant 384 : index
    %162 = vector.load %arg10[%c0_128, %c0_129, %c384] : memref<2x10x640xf32, #tpu.memory_space<vmem>>, vector<1x8x256xf32>
    %163 = vector.shape_cast %162 : vector<1x8x256xf32> to vector<8x256xf32>
    %c1_130 = arith.constant 1 : index
    %c0_131 = arith.constant 0 : index
    %c384_132 = arith.constant 384 : index
    %164 = vector.load %arg10[%c1_130, %c0_131, %c384_132] : memref<2x10x640xf32, #tpu.memory_space<vmem>>, vector<1x8x256xf32>
    %165 = vector.shape_cast %164 : vector<1x8x256xf32> to vector<8x256xf32>
    %c0_133 = arith.constant 0 : index
    %c1_134 = arith.constant 1 : index
    %c384_135 = arith.constant 384 : index
    %166 = vector.load %arg10[%c0_133, %c1_134, %c384_135] : memref<2x10x640xf32, #tpu.memory_space<vmem>>, vector<1x8x256xf32>
    %167 = vector.shape_cast %166 : vector<1x8x256xf32> to vector<8x256xf32>
    %c1_136 = arith.constant 1 : index
    %c1_137 = arith.constant 1 : index
    %c384_138 = arith.constant 384 : index
    %168 = vector.load %arg10[%c1_136, %c1_137, %c384_138] : memref<2x10x640xf32, #tpu.memory_space<vmem>>, vector<1x8x256xf32>
    %169 = vector.shape_cast %168 : vector<1x8x256xf32> to vector<8x256xf32>
    %c0_139 = arith.constant 0 : index
    %c2_140 = arith.constant 2 : index
    %c384_141 = arith.constant 384 : index
    %170 = vector.load %arg10[%c0_139, %c2_140, %c384_141] : memref<2x10x640xf32, #tpu.memory_space<vmem>>, vector<1x8x256xf32>
    %171 = vector.shape_cast %170 : vector<1x8x256xf32> to vector<8x256xf32>
    %c1_142 = arith.constant 1 : index
    %c2_143 = arith.constant 2 : index
    %c384_144 = arith.constant 384 : index
    %172 = vector.load %arg10[%c1_142, %c2_143, %c384_144] : memref<2x10x640xf32, #tpu.memory_space<vmem>>, vector<1x8x256xf32>
    %173 = vector.shape_cast %172 : vector<1x8x256xf32> to vector<8x256xf32>
    %174 = tpu.concatenate %163, %165 in 0 : vector<8x256xf32>, vector<8x256xf32> -> vector<16x256xf32>
    %175 = tpu.concatenate %165, %167 in 0 : vector<8x256xf32>, vector<8x256xf32> -> vector<16x256xf32>
    %176 = tpu.concatenate %167, %169 in 0 : vector<8x256xf32>, vector<8x256xf32> -> vector<16x256xf32>
    %177 = tpu.concatenate %169, %171 in 0 : vector<8x256xf32>, vector<8x256xf32> -> vector<16x256xf32>
    %178 = tpu.concatenate %171, %173 in 0 : vector<8x256xf32>, vector<8x256xf32> -> vector<16x256xf32>
    %179 = tpu.concatenate %174, %175, %176, %177, %178 in 1 : vector<16x256xf32>, vector<16x256xf32>, vector<16x256xf32>, vector<16x256xf32>, vector<16x256xf32> -> vector<16x1280xf32>
    %180 = arith.truncf %179 : vector<16x1280xf32> to vector<16x1280xbf16>
    %c0_145 = arith.constant 0 : index
    %c0_146 = arith.constant 0 : index
    %181 = vector.load %arg4[%c0_145, %c0_146] : memref<1280x256xbf16, #tpu.memory_space<vmem>>, vector<1280x256xbf16>
    %cst_147 = arith.constant dense<0.000000e+00> : vector<16x256xf32>
    %182 = tpu.matmul %180, %181, %cst_147 {dimension_numbers = #tpu.dot_dimension_numbers<[1], [0], [0], [1], [0, 0, 1, 1], [], []>} : vector<16x1280xbf16>, vector<1280x256xbf16>, vector<16x256xf32> -> vector<16x256xf32>
    %183 = vector.extract_strided_slice %182 {offsets = [0, 0], sizes = [8, 256], strides = [1, 1]} : vector<16x256xf32> to vector<8x256xf32>
    %184 = vector.extract_strided_slice %182 {offsets = [8, 0], sizes = [8, 256], strides = [1, 1]} : vector<16x256xf32> to vector<8x256xf32>
    %185 = arith.maximumf %183, %184 : vector<8x256xf32>
    %186 = vector.extract_strided_slice %185 {offsets = [0, 0], sizes = [8, 128], strides = [1, 1]} : vector<8x256xf32> to vector<8x128xf32>
    %187 = vector.extract_strided_slice %185 {offsets = [0, 128], sizes = [8, 128], strides = [1, 1]} : vector<8x256xf32> to vector<8x128xf32>
    %188 = arith.maximumf %186, %187 : vector<8x128xf32>
    %c0_148 = arith.constant 0 : index
    %c0_149 = arith.constant 0 : index
    %189 = vector.load %arg5[%c0_148, %c0_149] : memref<1x128xf32, #tpu.memory_space<vmem>>, vector<1x128xf32>
    %190 = vector.broadcast %189 : vector<1x128xf32> to vector<8x128xf32>
    %191 = arith.addf %188, %190 : vector<8x128xf32>
    %cst_150 = arith.constant 0.000000e+00 : f32
    %192 = vector.broadcast %cst_150 : f32 to vector<8x128xf32>
    %193 = arith.maximumf %191, %192 : vector<8x128xf32>
    %194 = tpu.concatenate %97, %129, %161, %193 in 1 : vector<8x128xf32>, vector<8x128xf32>, vector<8x128xf32>, vector<8x128xf32> -> vector<8x512xf32>
    %c0_151 = arith.constant 0 : index
    %c0_152 = arith.constant 0 : index
    %c0_153 = arith.constant 0 : index
    %195 = vector.load %arg9[%c0_151, %c0_152, %c0_153] : memref<1x8x512xf32, #tpu.memory_space<vmem>>, vector<1x8x512xf32>
    %196 = vector.shape_cast %195 : vector<1x8x512xf32> to vector<8x512xf32>
    %197 = vector.shape_cast %194 : vector<8x512xf32> to vector<1x8x512xf32>
    tpu.vector_store %arg9[%c0_151, %c0_152, %c0_153], %197 {strides = array<i32>} : memref<1x8x512xf32, #tpu.memory_space<vmem>>, vector<1x8x512xf32>,
    %198 = arith.truncf %194 : vector<8x512xf32> to vector<8x512xbf16>
    %c0_154 = arith.constant 0 : index
    %c0_155 = arith.constant 0 : index
    %199 = vector.load %arg7[%c0_154, %c0_155] : memref<1x128xf32, #tpu.memory_space<vmem>>, vector<1x128xf32>
    %200 = vector.extract_strided_slice %198 {offsets = [0, 0], sizes = [1, 512], strides = [1, 1]} : vector<8x512xbf16> to vector<1x512xbf16>
    %c0_156 = arith.constant 0 : index
    %c0_157 = arith.constant 0 : index
    %c0_158 = arith.constant 0 : index
    %201 = vector.load %arg6[%c0_156, %c0_157, %c0_158] : memref<8x512x128xbf16, #tpu.memory_space<vmem>>, vector<1x512x128xbf16>
    %202 = vector.shape_cast %201 : vector<1x512x128xbf16> to vector<512x128xbf16>
    %cst_159 = arith.constant dense<0.000000e+00> : vector<1x128xf32>
    %203 = tpu.matmul %200, %202, %cst_159 {dimension_numbers = #tpu.dot_dimension_numbers<[1], [0], [0], [1], [0, 0, 1, 1], [], []>} : vector<1x512xbf16>, vector<512x128xbf16>, vector<1x128xf32> -> vector<1x128xf32>
    %204 = arith.addf %199, %203 : vector<1x128xf32>
    %205 = vector.extract_strided_slice %198 {offsets = [1, 0], sizes = [1, 512], strides = [1, 1]} : vector<8x512xbf16> to vector<1x512xbf16>
    %c1_160 = arith.constant 1 : index
    %c0_161 = arith.constant 0 : index
    %c0_162 = arith.constant 0 : index
    %206 = vector.load %arg6[%c1_160, %c0_161, %c0_162] : memref<8x512x128xbf16, #tpu.memory_space<vmem>>, vector<1x512x128xbf16>
    %207 = vector.shape_cast %206 : vector<1x512x128xbf16> to vector<512x128xbf16>
    %cst_163 = arith.constant dense<0.000000e+00> : vector<1x128xf32>
    %208 = tpu.matmul %205, %207, %cst_163 {dimension_numbers = #tpu.dot_dimension_numbers<[1], [0], [0], [1], [0, 0, 1, 1], [], []>} : vector<1x512xbf16>, vector<512x128xbf16>, vector<1x128xf32> -> vector<1x128xf32>
    %209 = arith.addf %204, %208 : vector<1x128xf32>
    %210 = vector.extract_strided_slice %198 {offsets = [2, 0], sizes = [1, 512], strides = [1, 1]} : vector<8x512xbf16> to vector<1x512xbf16>
    %c2_164 = arith.constant 2 : index
    %c0_165 = arith.constant 0 : index
    %c0_166 = arith.constant 0 : index
    %211 = vector.load %arg6[%c2_164, %c0_165, %c0_166] : memref<8x512x128xbf16, #tpu.memory_space<vmem>>, vector<1x512x128xbf16>
    %212 = vector.shape_cast %211 : vector<1x512x128xbf16> to vector<512x128xbf16>
    %cst_167 = arith.constant dense<0.000000e+00> : vector<1x128xf32>
    %213 = tpu.matmul %210, %212, %cst_167 {dimension_numbers = #tpu.dot_dimension_numbers<[1], [0], [0], [1], [0, 0, 1, 1], [], []>} : vector<1x512xbf16>, vector<512x128xbf16>, vector<1x128xf32> -> vector<1x128xf32>
    %214 = arith.addf %209, %213 : vector<1x128xf32>
    %215 = vector.extract_strided_slice %198 {offsets = [3, 0], sizes = [1, 512], strides = [1, 1]} : vector<8x512xbf16> to vector<1x512xbf16>
    %c3_168 = arith.constant 3 : index
    %c0_169 = arith.constant 0 : index
    %c0_170 = arith.constant 0 : index
    %216 = vector.load %arg6[%c3_168, %c0_169, %c0_170] : memref<8x512x128xbf16, #tpu.memory_space<vmem>>, vector<1x512x128xbf16>
    %217 = vector.shape_cast %216 : vector<1x512x128xbf16> to vector<512x128xbf16>
    %cst_171 = arith.constant dense<0.000000e+00> : vector<1x128xf32>
    %218 = tpu.matmul %215, %217, %cst_171 {dimension_numbers = #tpu.dot_dimension_numbers<[1], [0], [0], [1], [0, 0, 1, 1], [], []>} : vector<1x512xbf16>, vector<512x128xbf16>, vector<1x128xf32> -> vector<1x128xf32>
    %219 = arith.addf %214, %218 : vector<1x128xf32>
    %220 = vector.extract_strided_slice %198 {offsets = [4, 0], sizes = [1, 512], strides = [1, 1]} : vector<8x512xbf16> to vector<1x512xbf16>
    %c4_172 = arith.constant 4 : index
    %c0_173 = arith.constant 0 : index
    %c0_174 = arith.constant 0 : index
    %221 = vector.load %arg6[%c4_172, %c0_173, %c0_174] : memref<8x512x128xbf16, #tpu.memory_space<vmem>>, vector<1x512x128xbf16>
    %222 = vector.shape_cast %221 : vector<1x512x128xbf16> to vector<512x128xbf16>
    %cst_175 = arith.constant dense<0.000000e+00> : vector<1x128xf32>
    %223 = tpu.matmul %220, %222, %cst_175 {dimension_numbers = #tpu.dot_dimension_numbers<[1], [0], [0], [1], [0, 0, 1, 1], [], []>} : vector<1x512xbf16>, vector<512x128xbf16>, vector<1x128xf32> -> vector<1x128xf32>
    %224 = arith.addf %219, %223 : vector<1x128xf32>
    %225 = vector.extract_strided_slice %198 {offsets = [5, 0], sizes = [1, 512], strides = [1, 1]} : vector<8x512xbf16> to vector<1x512xbf16>
    %c5 = arith.constant 5 : index
    %c0_176 = arith.constant 0 : index
    %c0_177 = arith.constant 0 : index
    %226 = vector.load %arg6[%c5, %c0_176, %c0_177] : memref<8x512x128xbf16, #tpu.memory_space<vmem>>, vector<1x512x128xbf16>
    %227 = vector.shape_cast %226 : vector<1x512x128xbf16> to vector<512x128xbf16>
    %cst_178 = arith.constant dense<0.000000e+00> : vector<1x128xf32>
    %228 = tpu.matmul %225, %227, %cst_178 {dimension_numbers = #tpu.dot_dimension_numbers<[1], [0], [0], [1], [0, 0, 1, 1], [], []>} : vector<1x512xbf16>, vector<512x128xbf16>, vector<1x128xf32> -> vector<1x128xf32>
    %229 = arith.addf %224, %228 : vector<1x128xf32>
    %230 = vector.extract_strided_slice %198 {offsets = [6, 0], sizes = [1, 512], strides = [1, 1]} : vector<8x512xbf16> to vector<1x512xbf16>
    %c6 = arith.constant 6 : index
    %c0_179 = arith.constant 0 : index
    %c0_180 = arith.constant 0 : index
    %231 = vector.load %arg6[%c6, %c0_179, %c0_180] : memref<8x512x128xbf16, #tpu.memory_space<vmem>>, vector<1x512x128xbf16>
    %232 = vector.shape_cast %231 : vector<1x512x128xbf16> to vector<512x128xbf16>
    %cst_181 = arith.constant dense<0.000000e+00> : vector<1x128xf32>
    %233 = tpu.matmul %230, %232, %cst_181 {dimension_numbers = #tpu.dot_dimension_numbers<[1], [0], [0], [1], [0, 0, 1, 1], [], []>} : vector<1x512xbf16>, vector<512x128xbf16>, vector<1x128xf32> -> vector<1x128xf32>
    %234 = arith.addf %229, %233 : vector<1x128xf32>
    %235 = vector.extract_strided_slice %198 {offsets = [7, 0], sizes = [1, 512], strides = [1, 1]} : vector<8x512xbf16> to vector<1x512xbf16>
    %c7 = arith.constant 7 : index
    %c0_182 = arith.constant 0 : index
    %c0_183 = arith.constant 0 : index
    %236 = vector.load %arg6[%c7, %c0_182, %c0_183] : memref<8x512x128xbf16, #tpu.memory_space<vmem>>, vector<1x512x128xbf16>
    %237 = vector.shape_cast %236 : vector<1x512x128xbf16> to vector<512x128xbf16>
    %cst_184 = arith.constant dense<0.000000e+00> : vector<1x128xf32>
    %238 = tpu.matmul %235, %237, %cst_184 {dimension_numbers = #tpu.dot_dimension_numbers<[1], [0], [0], [1], [0, 0, 1, 1], [], []>} : vector<1x512xbf16>, vector<512x128xbf16>, vector<1x128xf32> -> vector<1x128xf32>
    %239 = arith.addf %234, %238 : vector<1x128xf32>
    %c0_185 = arith.constant 0 : index
    %c0_186 = arith.constant 0 : index
    %c0_187 = arith.constant 0 : index
    %240 = vector.load %arg8[%c0_185, %c0_186, %c0_187] : memref<1x1x128xf32, #tpu.memory_space<vmem>>, vector<1x1x128xf32>
    %241 = vector.shape_cast %240 : vector<1x1x128xf32> to vector<1x128xf32>
    %242 = vector.shape_cast %239 : vector<1x128xf32> to vector<1x1x128xf32>
    tpu.vector_store %arg8[%c0_185, %c0_186, %c0_187], %242 {strides = array<i32>} : memref<1x1x128xf32, #tpu.memory_space<vmem>>, vector<1x1x128xf32>,
    return
  }
  func.func @transform_0(%arg0: i32) -> (i32, i32, i32, i32) {
    %c0_i32 = arith.constant 0 : i32
    %c0_i32_0 = arith.constant 0 : i32
    %c0_i32_1 = arith.constant 0 : i32
    %c0_i32_2 = arith.constant 0 : i32
    return %arg0, %c0_i32, %c0_i32_0, %c0_i32_1 : i32, i32, i32, i32
  }
  func.func @transform_1(%arg0: i32) -> (i32, i32, i32) {
    %c0_i32 = arith.constant 0 : i32
    %c0_i32_0 = arith.constant 0 : i32
    %c0_i32_1 = arith.constant 0 : i32
    %c0_i32_2 = arith.constant 0 : i32
    return %c0_i32, %c0_i32_0, %c0_i32_1 : i32, i32, i32
  }
  func.func @transform_2(%arg0: i32) -> (i32, i32) {
    %c0_i32 = arith.constant 0 : i32
    %c0_i32_0 = arith.constant 0 : i32
    %c0_i32_1 = arith.constant 0 : i32
    return %c0_i32, %c0_i32_0 : i32, i32
  }
  func.func @transform_3(%arg0: i32) -> (i32, i32) {
    %c0_i32 = arith.constant 0 : i32
    %c0_i32_0 = arith.constant 0 : i32
    %c0_i32_1 = arith.constant 0 : i32
    return %c0_i32, %c0_i32_0 : i32, i32
  }
  func.func @transform_4(%arg0: i32) -> (i32, i32) {
    %c0_i32 = arith.constant 0 : i32
    %c0_i32_0 = arith.constant 0 : i32
    %c0_i32_1 = arith.constant 0 : i32
    return %c0_i32, %c0_i32_0 : i32, i32
  }
  func.func @transform_5(%arg0: i32) -> (i32, i32, i32) {
    %c0_i32 = arith.constant 0 : i32
    %c0_i32_0 = arith.constant 0 : i32
    %c0_i32_1 = arith.constant 0 : i32
    %c0_i32_2 = arith.constant 0 : i32
    return %c0_i32, %c0_i32_0, %c0_i32_1 : i32, i32, i32
  }
  func.func @transform_6(%arg0: i32) -> (i32, i32) {
    %c0_i32 = arith.constant 0 : i32
    %c0_i32_0 = arith.constant 0 : i32
    %c0_i32_1 = arith.constant 0 : i32
    return %c0_i32, %c0_i32_0 : i32, i32
  }
  func.func @transform_7(%arg0: i32) -> (i32, i32, i32) {
    %c0_i32 = arith.constant 0 : i32
    %c0_i32_0 = arith.constant 0 : i32
    %c0_i32_1 = arith.constant 0 : i32
    return %arg0, %c0_i32, %c0_i32_0 : i32, i32, i32
  }
  func.func @transform_8(%arg0: i32) -> (i32, i32, i32) {
    %c0_i32 = arith.constant 0 : i32
    %c0_i32_0 = arith.constant 0 : i32
    %c0_i32_1 = arith.constant 0 : i32
    return %arg0, %c0_i32, %c0_i32_0 : i32, i32, i32
  }
}

</mosaic_0001>

<llo_original>
// kernel: cnn_forward.1
$region0: #{cnn_forward.1}
  #allocation0 [shape = 'u32[]', space=smem, size = 0x4, offset = 0x4, fixed_abs, tag = 'smem constant byte address 0x4 - core index']
  #allocation1 [shape = 'u32[144,128]{1,0:T(1,128)}', space=vmem, size = 0x12000, scoped, tag = 'internal scratch']
  #allocation2 [shape = 'f32[2,10,640]{2,1,0:T(8,128)}', space=vmem, size = 0x14000, scoped, tag = 'scratch operand']
  %s0 = inlined_call_operand.vmem [shape: f32[2,4,9,36], index: 0, kind: input, shape index: {}]
  %s1 = inlined_call_operand.hbm [shape: bf16[5,36,1024], index: 1, kind: input, shape index: {}]
  %s2 = inlined_call_operand.vmem [shape: f32[1,512], index: 2, kind: input, shape index: {}]
  %s3 = inlined_call_operand.hbm [shape: bf16[1280,256], index: 3, kind: input, shape index: {}]
  %s4 = inlined_call_operand.vmem [shape: f32[1,128], index: 4, kind: input, shape index: {}]
  %s5 = inlined_call_operand.hbm [shape: bf16[8,512,128], index: 5, kind: input, shape index: {}]
  %s6 = inlined_call_operand.vmem [shape: f32[1,128], index: 6, kind: input, shape index: {}]
  %s7 = inlined_call_operand.hbm [shape: f32[2,1,128], index: 7, kind: output, shape index: {0}]
  %s8 = inlined_call_operand.vmem [shape: f32[2,8,512], index: 8, kind: output, shape index: {1}]
  %9 = xla_tuple %s7, %s8
  %s10 = sld [smem:[#allocation0]]
  $region81: #{cnn_forward.1} parent=0
    _
  %s12 = ssub.s32 1, %s10
  %s13 = scalar_select 0, %s12, %s10
  $region1: #{cnn_forward.1} parent=0
    #allocation3 [shape = 'u8[409600]{0}', space=vmem, size = 0x64000, scoped, tag = 'input window, operand 1, single buffered']
    #allocation4 [shape = 's32[2]{0}', space=sflag, size = 0x8, scoped, tag = 'scoped memory for cnn_forward.1']
    #allocation5 [shape = 's32[2]{0}', space=sflag, size = 0x8, scoped, tag = 'scoped memory for cnn_forward.1']
    #allocation6 [shape = 'u8[655360]{0}', space=vmem, size = 0xa0000, scoped, tag = 'input window, operand 3, single buffered']
    #allocation7 [shape = 's32[1]{0}', space=sflag, size = 0x4, scoped, tag = 'scoped memory for cnn_forward.1']
    #allocation8 [shape = 'u8[1048576]{0}', space=vmem, size = 0x100000, scoped, tag = 'input window, operand 5, single buffered']
    #allocation9 [shape = 'u8[1024]{0}', space=vmem, size = 0x400, scoped, tag = 'output window, operand 0']
    %14 = vsyncpa [#allocation4], 0
    %15 = vsyncpa [#allocation7], 0
    %16 = vsyncpa [#allocation5], 0
    %s17 = scalar_lea.sflag [#allocation5], 1
    %18 = vsyncpa %s17, 0
    loop: start=0, step=1, limit=4
    $region2: #{cnn_forward.1} parent=1 // loop_pre_header
      _
    $region3: #{cnn_forward.1} parent=1 // loop_header
      %s20 = sphi 0, %s24
      %p21 = scmp.ge.s32.totalorder %s20, 4
      %s30 = sphi 0, %s32
      %s33 = sphi 0, %s30
      %s34 = sphi 0, %s33
      %s50 = sphi 0, %s34
      %s54 = sphi 0, %s54
      %s56 = sphi 0, %s54
      %s57 = sphi 0, %s56
      %s71 = sphi 0, %s57
      %s75 = sphi 0, %s75
      %s77 = sphi 0, %s75
      %s78 = sphi 0, %s77
      %s92 = sphi 0, %s78
      %s96 = sphi 0, %s96
      %s98 = sphi 0, %s96
      %s99 = sphi 0, %s98
      %s113 = sphi 0, %s99
      %s117 = sphi 0, %s117
      %s119 = sphi 0, %s117
      %s120 = sphi 0, %s119
      %s134 = sphi 0, %s120
      %s138 = sphi 0, %s138
      %s140 = sphi 0, %s138
      %s141 = sphi 0, %s140
      %s155 = sphi 0, %s141
      %s159 = sphi 0, %s159
      %s161 = sphi 0, %s159
      %s162 = sphi 0, %s161
      %s176 = sphi 0, %s162
      %s182 = sphi 0, %s184
      %s185 = sphi 0, %s182
      %s186 = sphi 0, %s185
      %s202 = sphi 0, %s186
      %s208 = sphi 0, %s210
      %s211 = sphi 0, %s208
      %s212 = sphi 0, %s211
      %s228 = sphi 0, %s212
    $region4: #{cnn_forward.1} parent=1 // loop_header_branch
      %23 = sbr.rel (%p21) target = $region8
    $region5: #{cnn_forward.1} parent=1 // loop_body
      %s25 = ssub.s32 %s20, 1
      %s26 = ssub.s32 %s20, 2
      %s27 = sadd.s32 %s20, 1
      %s28 = ssub.s32 %s20, %s27
      %p29 = scmp.eq.s32.totalorder %s28, 0
      %s31 = sadd.s32 %s30, 1
      %s32 = scalar_select %p29, %s30, %s31
      %p35 = pneg %p29
      %p36 = scmp.eq.s32.totalorder %s20, 1
      %p37 = por %p35, %p36
      %p38 = scmp.ne.s32.totalorder %s30, %s33
      %p39 = scmp.eq.s32.totalorder %s20, 0
      %p40 = por %p38, %p39
      %p41 = scmp.ne.s32.totalorder %s30, %s33
      %p42 = scmp.eq.s32.totalorder %s25, 1
      %p43 = por %p41, %p42
      %p44 = scmp.ne.s32.totalorder %s33, %s34
      %p45 = scmp.eq.s32.totalorder %s25, 0
      %p46 = por %p44, %p45
      %p47 = scmp.ne.s32.totalorder %s33, %s34
      %p48 = scmp.eq.s32.totalorder %s26, 1
      %p49 = por %p47, %p48
      %p51 = scmp.ne.s32.totalorder %s34, %s50
      %p52 = scmp.eq.s32.totalorder %s26, 0
      %p53 = por %p51, %p52
      %s55 = sadd.s32 %s54, 1
      %p58 = scmp.eq.s32.totalorder %s20, 1
      %p59 = scmp.ne.s32.totalorder %s54, %s56
      %p60 = scmp.eq.s32.totalorder %s20, 0
      %p61 = por %p59, %p60
      %p62 = scmp.ne.s32.totalorder %s54, %s56
      %p63 = scmp.eq.s32.totalorder %s25, 1
      %p64 = por %p62, %p63
      %p65 = scmp.ne.s32.totalorder %s56, %s57
      %p66 = scmp.eq.s32.totalorder %s25, 0
      %p67 = por %p65, %p66
      %p68 = scmp.ne.s32.totalorder %s56, %s57
      %p69 = scmp.eq.s32.totalorder %s26, 1
      %p70 = por %p68, %p69
      %p72 = scmp.ne.s32.totalorder %s57, %s71
      %p73 = scmp.eq.s32.totalorder %s26, 0
      %p74 = por %p72, %p73
      %s76 = sadd.s32 %s75, 1
      %p79 = scmp.eq.s32.totalorder %s20, 1
      %p80 = scmp.ne.s32.totalorder %s75, %s77
      %p81 = scmp.eq.s32.totalorder %s20, 0
      %p82 = por %p80, %p81
      %p83 = scmp.ne.s32.totalorder %s75, %s77
      %p84 = scmp.eq.s32.totalorder %s25, 1
      %p85 = por %p83, %p84
      %p86 = scmp.ne.s32.totalorder %s77, %s78
      %p87 = scmp.eq.s32.totalorder %s25, 0
      %p88 = por %p86, %p87
      %p89 = scmp.ne.s32.totalorder %s77, %s78
      %p90 = scmp.eq.s32.totalorder %s26, 1
      %p91 = por %p89, %p90
      %p93 = scmp.ne.s32.totalorder %s78, %s92
      %p94 = scmp.eq.s32.totalorder %s26, 0
      %p95 = por %p93, %p94
      %s97 = sadd.s32 %s96, 1
      %p100 = scmp.eq.s32.totalorder %s20, 1
      %p101 = scmp.ne.s32.totalorder %s96, %s98
      %p102 = scmp.eq.s32.totalorder %s20, 0
      %p103 = por %p101, %p102
      %p104 = scmp.ne.s32.totalorder %s96, %s98
      %p105 = scmp.eq.s32.totalorder %s25, 1
      %p106 = por %p104, %p105
      %p107 = scmp.ne.s32.totalorder %s98, %s99
      %p108 = scmp.eq.s32.totalorder %s25, 0
      %p109 = por %p107, %p108
      %p110 = scmp.ne.s32.totalorder %s98, %s99
      %p111 = scmp.eq.s32.totalorder %s26, 1
      %p112 = por %p110, %p111
      %p114 = scmp.ne.s32.totalorder %s99, %s113
      %p115 = scmp.eq.s32.totalorder %s26, 0
      %p116 = por %p114, %p115
      %s118 = sadd.s32 %s117, 1
      %p121 = scmp.eq.s32.totalorder %s20, 1
      %p122 = scmp.ne.s32.totalorder %s117, %s119
      %p123 = scmp.eq.s32.totalorder %s20, 0
      %p124 = por %p122, %p123
      %p125 = scmp.ne.s32.totalorder %s117, %s119
      %p126 = scmp.eq.s32.totalorder %s25, 1
      %p127 = por %p125, %p126
      %p128 = scmp.ne.s32.totalorder %s119, %s120
      %p129 = scmp.eq.s32.totalorder %s25, 0
      %p130 = por %p128, %p129
      %p131 = scmp.ne.s32.totalorder %s119, %s120
      %p132 = scmp.eq.s32.totalorder %s26, 1
      %p133 = por %p131, %p132
      %p135 = scmp.ne.s32.totalorder %s120, %s134
      %p136 = scmp.eq.s32.totalorder %s26, 0
      %p137 = por %p135, %p136
      %s139 = sadd.s32 %s138, 1
      %p142 = scmp.eq.s32.totalorder %s20, 1
      %p143 = scmp.ne.s32.totalorder %s138, %s140
      %p144 = scmp.eq.s32.totalorder %s20, 0
      %p145 = por %p143, %p144
      %p146 = scmp.ne.s32.totalorder %s138, %s140
      %p147 = scmp.eq.s32.totalorder %s25, 1
      %p148 = por %p146, %p147
      %p149 = scmp.ne.s32.totalorder %s140, %s141
      %p150 = scmp.eq.s32.totalorder %s25, 0
      %p151 = por %p149, %p150
      %p152 = scmp.ne.s32.totalorder %s140, %s141
      %p153 = scmp.eq.s32.totalorder %s26, 1
      %p154 = por %p152, %p153
      %p156 = scmp.ne.s32.totalorder %s141, %s155
      %p157 = scmp.eq.s32.totalorder %s26, 0
      %p158 = por %p156, %p157
      %s160 = sadd.s32 %s159, 1
      %p163 = scmp.eq.s32.totalorder %s20, 1
      %p164 = scmp.ne.s32.totalorder %s159, %s161
      %p165 = scmp.eq.s32.totalorder %s20, 0
      %p166 = por %p164, %p165
      %p167 = scmp.ne.s32.totalorder %s159, %s161
      %p168 = scmp.eq.s32.totalorder %s25, 1
      %p169 = por %p167, %p168
      %p170 = scmp.ne.s32.totalorder %s161, %s162
      %p171 = scmp.eq.s32.totalorder %s25, 0
      %p172 = por %p170, %p171
      %p173 = scmp.ne.s32.totalorder %s161, %s162
      %p174 = scmp.eq.s32.totalorder %s26, 1
      %p175 = por %p173, %p174
      %p177 = scmp.ne.s32.totalorder %s162, %s176
      %p178 = scmp.eq.s32.totalorder %s26, 0
      %p179 = por %p177, %p178
      %s180 = ssub.s32 %s20, %s27
      %p181 = scmp.eq.s32.totalorder %s180, 0
      %s183 = sadd.s32 %s182, 1
      %s184 = scalar_select %p181, %s182, %s183
      %p187 = pneg %p181
      %p188 = scmp.eq.s32.totalorder %s20, 1
      %p189 = por %p187, %p188
      %p190 = scmp.ne.s32.totalorder %s182, %s185
      %p191 = scmp.eq.s32.totalorder %s20, 0
      %p192 = por %p190, %p191
      %p193 = scmp.ne.s32.totalorder %s182, %s185
      %p194 = scmp.eq.s32.totalorder %s25, 1
      %p195 = por %p193, %p194
      %p196 = scmp.ne.s32.totalorder %s185, %s186
      %p197 = scmp.eq.s32.totalorder %s25, 0
      %p198 = por %p196, %p197
      %p199 = scmp.ne.s32.totalorder %s185, %s186
      %p200 = scmp.eq.s32.totalorder %s26, 1
      %p201 = por %p199, %p200
      %p203 = scmp.ne.s32.totalorder %s186, %s202
      %p204 = scmp.eq.s32.totalorder %s26, 0
      %p205 = por %p203, %p204
      %s206 = ssub.s32 %s20, %s27
      %p207 = scmp.eq.s32.totalorder %s206, 0
      %s209 = sadd.s32 %s208, 1
      %s210 = scalar_select %p207, %s208, %s209
      %p213 = pneg %p207
      %p214 = scmp.eq.s32.totalorder %s20, 1
      %p215 = por %p213, %p214
      %p216 = scmp.ne.s32.totalorder %s208, %s211
      %p217 = scmp.eq.s32.totalorder %s20, 0
      %p218 = por %p216, %p217
      %p219 = scmp.ne.s32.totalorder %s208, %s211
      %p220 = scmp.eq.s32.totalorder %s25, 1
      %p221 = por %p219, %p220
      %p222 = scmp.ne.s32.totalorder %s211, %s212
      %p223 = scmp.eq.s32.totalorder %s25, 0
      %p224 = por %p222, %p223
      %p225 = scmp.ne.s32.totalorder %s211, %s212
      %p226 = scmp.eq.s32.totalorder %s26, 1
      %p227 = por %p225, %p226
      %p229 = scmp.ne.s32.totalorder %s212, %s228
      %p230 = scmp.eq.s32.totalorder %s26, 0
      %p231 = por %p229, %p230
      %p232 = scmp.le.s32.totalorder 1, %s20
      %p233 = scmp.lt.s32.totalorder %s20, 3
      %p234 = pnand %p232, %p233
      %p235 = pneg %p234
      // Predicated region
      $region9: #{cnn_forward.1} parent=5 // pred_check
        _
      $region10: #{cnn_forward.1} parent=5 // pred_check_branch
        %237 = sbr.rel (%p234) target = $region12
      $region11: #{cnn_forward.1} parent=5 // pred_region
        %s238 = ssub.s32 %s20, 1
        // Predicated region
        $region13: #{cnn_forward.1} parent=11 // pred_check
          %p239 = pneg %p67
        $region14: #{cnn_forward.1} parent=11 // pred_check_branch
          %241 = sbr.rel (%p239) target = $region16
        $region15: #{cnn_forward.1} parent=11 // pred_region
          %s243 = ssub.s32 12800, 12800
          %244 = vsyncadd [#allocation4], %s243
          %s245 = sshll.u32 [#allocation3], 4
          %s246 = int_to_ptr.vmem [resolvable:$true] %s245
          %251 = dma.hbm_to_vmem [thread:$0]  %s1, 12800, %s246, [#allocation4], 512, 512, 32
        $region16: #{cnn_forward.1} parent=11 // pred_fallthru
          _
        // Predicated region
        $region17: #{cnn_forward.1} parent=11 // pred_check
          %p252 = pneg %p88
        $region18: #{cnn_forward.1} parent=11 // pred_check_branch
          %254 = sbr.rel (%p252) target = $region20
        $region19: #{cnn_forward.1} parent=11 // pred_region
          _
        $region20: #{cnn_forward.1} parent=11 // pred_fallthru
          _
        // Predicated region
        $region21: #{cnn_forward.1} parent=11 // pred_check
          %p255 = pneg %p109
        $region22: #{cnn_forward.1} parent=11 // pred_check_branch
          %257 = sbr.rel (%p255) target = $region24
        $region23: #{cnn_forward.1} parent=11 // pred_region
          %s259 = ssub.s32 20480, 20480
          %260 = vsyncadd [#allocation7], %s259
          %s261 = sshll.u32 [#allocation6], 4
          %s262 = int_to_ptr.vmem [resolvable:$true] %s261
          %267 = dma.hbm_to_vmem [thread:$0]  %s3, 20480, %s262, [#allocation7], 128, 128, 8
        $region24: #{cnn_forward.1} parent=11 // pred_fallthru
          _
        // Predicated region
        $region25: #{cnn_forward.1} parent=11 // pred_check
          %p268 = pneg %p130
        $region26: #{cnn_forward.1} parent=11 // pred_check_branch
          %270 = sbr.rel (%p268) target = $region28
        $region27: #{cnn_forward.1} parent=11 // pred_region
          _
        $region28: #{cnn_forward.1} parent=11 // pred_fallthru
          _
        // Predicated region
        $region29: #{cnn_forward.1} parent=11 // pred_check
          %p271 = pneg %p151
        $region30: #{cnn_forward.1} parent=11 // pred_check_branch
          %273 = sbr.rel (%p271) target = $region32
        $region31: #{cnn_forward.1} parent=11 // pred_region
          %s275 = ssub.s32 32768, 32768
          %276 = vsyncadd [#allocation7], %s275
          %s277 = sshll.u32 [#allocation8], 4
          %s278 = int_to_ptr.vmem [resolvable:$true] %s277
          %283 = dma.hbm_to_vmem [thread:$0]  %s5, 32768, %s278, [#allocation7], 64, 64, 4
        $region32: #{cnn_forward.1} parent=11 // pred_fallthru
          _
        // Predicated region
        $region33: #{cnn_forward.1} parent=11 // pred_check
          %p284 = pneg %p172
        $region34: #{cnn_forward.1} parent=11 // pred_check_branch
          %286 = sbr.rel (%p284) target = $region36
        $region35: #{cnn_forward.1} parent=11 // pred_region
          _
        $region36: #{cnn_forward.1} parent=11 // pred_fallthru
          _
      $region12: #{cnn_forward.1} parent=5 // pred_fallthru
        _
      %p287 = scmp.lt.s32.totalorder %s20, 2
      // Predicated region
      $region37: #{cnn_forward.1} parent=5 // pred_check
        %p288 = pneg %p287
      $region38: #{cnn_forward.1} parent=5 // pred_check_branch
        %290 = sbr.rel (%p288) target = $region40
      $region39: #{cnn_forward.1} parent=5 // pred_region
        // Predicated region
        $region41: #{cnn_forward.1} parent=39 // pred_check
          %p291 = pneg %p40
        $region42: #{cnn_forward.1} parent=39 // pred_check_branch
          %293 = sbr.rel (%p291) target = $region44
        $region43: #{cnn_forward.1} parent=39 // pred_region
          %p294 = scmp.lt.s32.totalorder %s20, 1
          %s295 = scalar_select %p294, %s20, 1
          %s296 = smul.addr %s295, 8
          %s297 = smul.addr %s296, 8
          %s298 = scalar_lea.vmem %s0, %s297
        $region44: #{cnn_forward.1} parent=39 // pred_fallthru
          _
      $region40: #{cnn_forward.1} parent=5 // pred_fallthru
        _
      %p299 = scmp.le.s32.totalorder 1, %s20
      %p300 = scmp.lt.s32.totalorder %s20, 3
      %p301 = pnand %p299, %p300
      %p302 = pneg %p301
      // Predicated region
      $region45: #{cnn_forward.1} parent=5 // pred_check
        _
      $region46: #{cnn_forward.1} parent=5 // pred_check_branch
        %304 = sbr.rel (%p301) target = $region48
      $region47: #{cnn_forward.1} parent=5 // pred_region
        %s305 = ssub.s32 %s20, 1
        // Predicated region
        $region49: #{cnn_forward.1} parent=47 // pred_check
          %p306 = pneg %p67
        $region50: #{cnn_forward.1} parent=47 // pred_check_branch
          %308 = sbr.rel (%p306) target = $region52
        $region51: #{cnn_forward.1} parent=47 // pred_region
          %309 = dma.done [#allocation4], 12800
        $region52: #{cnn_forward.1} parent=47 // pred_fallthru
          _
        // Predicated region
        $region53: #{cnn_forward.1} parent=47 // pred_check
          %p310 = pneg %p109
        $region54: #{cnn_forward.1} parent=47 // pred_check_branch
          %312 = sbr.rel (%p310) target = $region56
        $region55: #{cnn_forward.1} parent=47 // pred_region
          %313 = dma.done [#allocation7], 20480
        $region56: #{cnn_forward.1} parent=47 // pred_fallthru
          _
        // Predicated region
        $region57: #{cnn_forward.1} parent=47 // pred_check
          %p314 = pneg %p151
        $region58: #{cnn_forward.1} parent=47 // pred_check_branch
          %316 = sbr.rel (%p314) target = $region60
        $region59: #{cnn_forward.1} parent=47 // pred_region
          %317 = dma.done [#allocation7], 32768
        $region60: #{cnn_forward.1} parent=47 // pred_fallthru
          _
        %p318 = scmp.lt.s32.totalorder %s25, 1
        %s319 = scalar_select %p318, %s25, 1
        %s320 = smul.addr %s319, 8
        %s321 = smul.addr %s320, 8
        %s322 = scalar_lea.vmem %s0, %s321
        %p323 = pneg %p46
        %p324 = pneg %p43
        %p325 = pneg %p67
        %p326 = pneg %p64
        %p327 = pneg %p88
        %p328 = pneg %p85
        %p329 = pneg %p109
        %p330 = pneg %p106
        %p331 = pneg %p130
        %p332 = pneg %p127
        %p333 = pneg %p151
        %p334 = pneg %p148
        %p335 = pneg %p172
        %p336 = pneg %p169
        %p337 = pneg %p198
        %p338 = pneg %p195
        %s339 = sand.u32 %s185, 1
        %s340 = scalar_lea.sflag [#allocation5], %s339
        %s341 = sand.u32 %s185, 1
        %s342 = scalar_lea.vmem [#allocation9], %s341
        %p343 = pneg %p224
        %p344 = pneg %p221
        %p345 = scmp.lt.s32.totalorder %s25, 1
        %s346 = scalar_select %p345, %s25, 1
        %s347 = smul.addr %s346, 4
        %s348 = smul.addr %s347, 8
        %s349 = scalar_lea.vmem %s8, %s348
        %p350 = scmp.lt.s32.totalorder %s25, 1
        %s351 = scalar_select %p350, %s25, 1
        %s352 = smul.addr %s351, 8
        %s353 = smul.addr %s352, 8
        %s354 = scalar_lea.vmem %s0, %s353
        %p355 = scmp.lt.s32.totalorder %s25, 1
        %s356 = scalar_select %p355, %s25, 1
        %s357 = smul.addr %s356, 4
        %s358 = smul.addr %s357, 8
        %s359 = scalar_lea.vmem %s8, %s358
        %v361 = vld [vmem:[%s354] sm:$0xff]
        %s362 = scalar_lea.vmem %s354, 16
        %v363 = vld [vmem:[%s362] sm:$0xff]
        %s364 = scalar_lea.vmem %s354, 32
        %v365 = vld [vmem:[%s364] sm:$0xff]
        %s366 = scalar_lea.vmem %s354, 48
        %v367 = vld [vmem:[%s366] sm:$0xff]
        %v368 = vld [vmem:[%s354 + $0x1] sm:$0xff]
        %v369 = vld [vmem:[%s362 + $0x1] sm:$0xff]
        %v370 = vld [vmem:[%s364 + $0x1] sm:$0xff]
        %v371 = vld [vmem:[%s366 + $0x1] sm:$0xff]
        %v372 = vpack.c.bf16 %v365, %v361
        %v373 = vpack.c.bf16 %v367, %v363
        %v374 = vld [vmem:[#allocation3] sm:$0xff]
        %v375 = vld [vmem:[#allocation3 + $0x8] sm:$0xff]
        %v376 = vld [vmem:[#allocation3 + $0x10] sm:$0xff]
        %v377 = vld [vmem:[#allocation3 + $0x18] sm:$0xff]
        %v378 = vld [vmem:[#allocation3 + $0x20] sm:$0xff]
        %v379 = vld [vmem:[#allocation3 + $0x28] sm:$0xff]
        %v380 = vld [vmem:[#allocation3 + $0x30] sm:$0xff]
        %v381 = vld [vmem:[#allocation3 + $0x38] sm:$0xff]
        %v382 = vld [vmem:[#allocation3 + $0x40] sm:$0xff]
        %v383 = vld [vmem:[#allocation3 + $0x48] sm:$0xff]
        %v384 = vld [vmem:[#allocation3 + $0x50] sm:$0xff]
        %v385 = vld [vmem:[#allocation3 + $0x58] sm:$0xff]
        %v386 = vld [vmem:[#allocation3 + $0x60] sm:$0xff]
        %v387 = vld [vmem:[#allocation3 + $0x68] sm:$0xff]
        %v388 = vld [vmem:[#allocation3 + $0x70] sm:$0xff]
        %v389 = vld [vmem:[#allocation3 + $0x78] sm:$0xff]
        %v390 = vld [vmem:[#allocation3 + $0x80] sm:$0x33]
        %v391 = vld [vmem:[#allocation3 + $0x88] sm:$0x33]
        %v392 = vld [vmem:[#allocation3 + $0x90] sm:$0x33]
        %v393 = vld [vmem:[#allocation3 + $0x98] sm:$0x33]
        %v394 = vpack.c.bf16 %v368, %v365
        %s395 = scalar_lea.vmem [#allocation3], 160
        %v396 = vld [vmem:[%s395] sm:$0xff]
        %v397 = vld [vmem:[%s395 + $0x8] sm:$0xff]
        %v398 = vld [vmem:[%s395 + $0x10] sm:$0xff]
        %v399 = vld [vmem:[%s395 + $0x18] sm:$0xff]
        %v400 = vld [vmem:[%s395 + $0x20] sm:$0xff]
        %v401 = vld [vmem:[%s395 + $0x28] sm:$0xff]
        %v402 = vld [vmem:[%s395 + $0x30] sm:$0xff]
        %v403 = vld [vmem:[%s395 + $0x38] sm:$0xff]
        %v404 = vld [vmem:[%s395 + $0x40] sm:$0xff]
        %v405 = vld [vmem:[%s395 + $0x48] sm:$0xff]
        %v406 = vld [vmem:[%s395 + $0x50] sm:$0xff]
        %v407 = vld [vmem:[%s395 + $0x58] sm:$0xff]
        %v408 = vld [vmem:[%s395 + $0x60] sm:$0xff]
        %v409 = vld [vmem:[%s395 + $0x68] sm:$0xff]
        %v410 = vld [vmem:[%s395 + $0x70] sm:$0xff]
        %v411 = vld [vmem:[%s395 + $0x78] sm:$0xff]
        %v412 = vld [vmem:[%s395 + $0x80] sm:$0x33]
        %v413 = vld [vmem:[%s395 + $0x88] sm:$0x33]
        %v414 = vld [vmem:[%s395 + $0x90] sm:$0x33]
        %v415 = vld [vmem:[%s395 + $0x98] sm:$0x33]
        %v436 = vunpack.c.l.b16 %v396
        %v437 = vunpack.c.h.b16 %v396
        %v438 = vunpack.c.l.b16 %v397
        %v439 = vunpack.c.h.b16 %v397
        %v440 = vunpack.c.l.b16 %v398
        %v441 = vunpack.c.h.b16 %v398
        %v442 = vunpack.c.l.b16 %v399
        %v443 = vunpack.c.h.b16 %v399
        %v444 = vunpack.c.l.b16 %v400
        %v445 = vunpack.c.h.b16 %v400
        %v446 = vunpack.c.l.b16 %v401
        %v447 = vunpack.c.h.b16 %v401
        %v448 = vunpack.c.l.b16 %v402
        %v449 = vunpack.c.h.b16 %v402
        %v450 = vunpack.c.l.b16 %v403
        %v451 = vunpack.c.h.b16 %v403
        %v452 = vunpack.c.l.b16 %v404
        %v453 = vunpack.c.h.b16 %v404
        %v454 = vunpack.c.l.b16 %v405
        %v455 = vunpack.c.h.b16 %v405
        %v456 = vunpack.c.l.b16 %v406
        %v457 = vunpack.c.h.b16 %v406
        %v458 = vunpack.c.l.b16 %v407
        %v459 = vunpack.c.h.b16 %v407
        %v460 = vunpack.c.l.b16 %v408
        %v461 = vunpack.c.h.b16 %v408
        %v462 = vunpack.c.l.b16 %v409
        %v463 = vunpack.c.h.b16 %v409
        %v464 = vunpack.c.l.b16 %v410
        %v465 = vunpack.c.h.b16 %v410
        %v466 = vunpack.c.l.b16 %v411
        %v467 = vunpack.c.h.b16 %v411
        %v468 = vunpack.c.l.b16 %v412
        %v469 = vunpack.c.h.b16 %v412
        %v470 = vunpack.c.l.b16 %v413
        %v471 = vunpack.c.h.b16 %v413
        %v472 = vunpack.c.l.b16 %v414
        %v473 = vunpack.c.h.b16 %v414
        %v474 = vunpack.c.l.b16 %v415
        %v475 = vunpack.c.h.b16 %v415
        %v476 = vpack.c.b16 %v444, %v436
        %v477 = vpack.c.b16 %v445, %v437
        %v478 = vpack.c.b16 %v446, %v438
        %v479 = vpack.c.b16 %v447, %v439
        %v480 = vpack.c.b16 %v448, %v440
        %v481 = vpack.c.b16 %v449, %v441
        %v482 = vpack.c.b16 %v450, %v442
        %v483 = vpack.c.b16 %v451, %v443
        %v484 = vpack.c.b16 %v460, %v452
        %v485 = vpack.c.b16 %v461, %v453
        %v486 = vpack.c.b16 %v462, %v454
        %v487 = vpack.c.b16 %v463, %v455
        %v488 = vpack.c.b16 %v464, %v456
        %v489 = vpack.c.b16 %v465, %v457
        %v490 = vpack.c.b16 %v466, %v458
        %v491 = vpack.c.b16 %v467, %v459
        %v492 = vpack.c.b16 %v468, %v468
        %v493 = vpack.c.b16 %v469, %v469
        %v494 = vpack.c.b16 %v470, %v470
        %v495 = vpack.c.b16 %v471, %v471
        %v496 = vpack.c.b16 %v472, %v472
        %v497 = vpack.c.b16 %v473, %v473
        %v498 = vpack.c.b16 %v474, %v474
        %v499 = vpack.c.b16 %v475, %v475
        %vm516 = vcmask 293888
        %v518 = vsel %vm516, %v373, 0
        %v521 = vsel %vm516, %v394, 0
        %vm523 = vcmask 1041408
        %v525 = vsel %vm523, %v492, 0
        %v528 = vsel %vm523, %v493, 0
        %v531 = vsel %vm523, %v494, 0
        %v534 = vsel %vm523, %v495, 0
        %v537 = vsel %vm523, %v496, 0
        %v540 = vsel %vm523, %v497, 0
        %v543 = vsel %vm523, %v498, 0
        %v546 = vsel %vm523, %v499, 0
        %548 = vmatprep.subr.bf16.mxu0 0
        %549 = vmatpush1.bf16.msra.mxu0 0
        %550 = vmatprep.subr.bf16.mxu0 0
        %551 = vmatpush1.bf16.msra.mxu0 0
        %552 = vmatprep.subr.bf16.mxu0 0
        %553 = vmatpush1.bf16.msra.mxu0 0
        %554 = vmatprep.subr.bf16.mxu0 0
        %555 = vmatpush1.bf16.msra.mxu0 0
        %556 = vmatprep.subr.bf16.mxu0 0
        %557 = vmatpush1.bf16.msra.mxu0 0
        %558 = vmatprep.subr.bf16.mxu0 %v528
        %559 = vmatpush1.bf16.msra.mxu0 %v525
        %560 = vmatprep.subr.bf16.mxu0 %v485
        %561 = vmatpush1.bf16.msra.mxu0 %v484
        %562 = vmatprep.subr.bf16.mxu0 %v477
        %563 = vmatpush1.bf16.msra.mxu0 %v476
        %564 = vmatprep.subr.bf16.mxu0 0
        %565 = vmatpush2.bf16.msra.mxu0 0
        %566 = vmatprep.subr.bf16.mxu0 0
        %567 = vmatpush2.bf16.msra.mxu0 0
        %568 = vmatprep.subr.bf16.mxu0 0
        %569 = vmatpush2.bf16.msra.mxu0 0
        %570 = vmatprep.subr.bf16.mxu0 0
        %571 = vmatpush2.bf16.msra.mxu0 0
        %572 = vmatprep.subr.bf16.mxu0 0
        %573 = vmatpush2.bf16.msra.mxu0 0
        %574 = vmatprep.subr.bf16.mxu0 0
        %575 = vmatpush2.bf16.msra.mxu0 0
        %576 = vmatprep.subr.bf16.mxu0 0
        %577 = vmatpush2.bf16.msra.mxu0 0
        %578 = vmatprep.subr.bf16.mxu0 0
        %579 = vmatpush2.bf16.msra.mxu0 0
        %580 = vmatprep.mubr.bf16.mxu0 0
        %581 = vmatmul.mubr.bf16.gmra.mxu0 %v518
        %v582 = vpop.f32.mrf.mxu0
        %v583 = vadd.f32 0.0, %v582
        %v584 = vpop.f32.mrf.mxu0
        %v585 = vadd.f32 0.0, %v584
        %v586 = vpop.f32.mrf.mxu0
        %v587 = vadd.f32 0.0, %v586
        %v588 = vpop.f32.mrf.mxu0
        %v589 = vadd.f32 0.0, %v588
        %590 = vmatprep.mubr.bf16.mxu0 0
        %591 = vmatmul.mubr.bf16.gmra.mxu0 %v521
        %v592 = vpop.f32.mrf.mxu0
        %v593 = vadd.f32 0.0, %v592
        %v594 = vpop.f32.mrf.mxu0
        %v595 = vadd.f32 0.0, %v594
        %v596 = vpop.f32.mrf.mxu0
        %v597 = vadd.f32 0.0, %v596
        %v598 = vpop.f32.mrf.mxu0
        %v599 = vadd.f32 0.0, %v598
        %600 = vdwg.mxu0
        %601 = vmatprep.subr.bf16.mxu0 0
        %602 = vmatpush1.bf16.msra.mxu0 0
        %603 = vmatprep.subr.bf16.mxu0 0
        %604 = vmatpush1.bf16.msra.mxu0 0
        %605 = vmatprep.subr.bf16.mxu0 0
        %606 = vmatpush1.bf16.msra.mxu0 0
        %607 = vmatprep.subr.bf16.mxu0 0
        %608 = vmatpush1.bf16.msra.mxu0 0
        %609 = vmatprep.subr.bf16.mxu0 0
        %610 = vmatpush1.bf16.msra.mxu0 0
        %611 = vmatprep.subr.bf16.mxu0 %v534
        %612 = vmatpush1.bf16.msra.mxu0 %v531
        %613 = vmatprep.subr.bf16.mxu0 %v487
        %614 = vmatpush1.bf16.msra.mxu0 %v486
        %615 = vmatprep.subr.bf16.mxu0 %v479
        %616 = vmatpush1.bf16.msra.mxu0 %v478
        %617 = vmatprep.subr.bf16.mxu0 0
        %618 = vmatpush2.bf16.msra.mxu0 0
        %619 = vmatprep.subr.bf16.mxu0 0
        %620 = vmatpush2.bf16.msra.mxu0 0
        %621 = vmatprep.subr.bf16.mxu0 0
        %622 = vmatpush2.bf16.msra.mxu0 0
        %623 = vmatprep.subr.bf16.mxu0 0
        %624 = vmatpush2.bf16.msra.mxu0 0
        %625 = vmatprep.subr.bf16.mxu0 0
        %626 = vmatpush2.bf16.msra.mxu0 0
        %627 = vmatprep.subr.bf16.mxu0 0
        %628 = vmatpush2.bf16.msra.mxu0 0
        %629 = vmatprep.subr.bf16.mxu0 0
        %630 = vmatpush2.bf16.msra.mxu0 0
        %631 = vmatprep.subr.bf16.mxu0 0
        %632 = vmatpush2.bf16.msra.mxu0 0
        %633 = vmatprep.mubr.bf16.mxu0 0
        %634 = vmatmul.mubr.bf16.gmra.mxu0 %v518
        %v635 = vpop.f32.mrf.mxu0
        %v636 = vadd.f32 0.0, %v635
        %v637 = vpop.f32.mrf.mxu0
        %v638 = vadd.f32 0.0, %v637
        %v639 = vpop.f32.mrf.mxu0
        %v640 = vadd.f32 0.0, %v639
        %v641 = vpop.f32.mrf.mxu0
        %v642 = vadd.f32 0.0, %v641
        %643 = vmatprep.mubr.bf16.mxu0 0
        %644 = vmatmul.mubr.bf16.gmra.mxu0 %v521
        %v645 = vpop.f32.mrf.mxu0
        %v646 = vadd.f32 0.0, %v645
        %v647 = vpop.f32.mrf.mxu0
        %v648 = vadd.f32 0.0, %v647
        %v649 = vpop.f32.mrf.mxu0
        %v650 = vadd.f32 0.0, %v649
        %v651 = vpop.f32.mrf.mxu0
        %v652 = vadd.f32 0.0, %v651
        %653 = vdwg.mxu0
        %654 = vmatprep.subr.bf16.mxu0 0
        %655 = vmatpush1.bf16.msra.mxu0 0
        %656 = vmatprep.subr.bf16.mxu0 0
        %657 = vmatpush1.bf16.msra.mxu0 0
        %658 = vmatprep.subr.bf16.mxu0 0
        %659 = vmatpush1.bf16.msra.mxu0 0
        %660 = vmatprep.subr.bf16.mxu0 0
        %661 = vmatpush1.bf16.msra.mxu0 0
        %662 = vmatprep.subr.bf16.mxu0 0
        %663 = vmatpush1.bf16.msra.mxu0 0
        %664 = vmatprep.subr.bf16.mxu0 %v540
        %665 = vmatpush1.bf16.msra.mxu0 %v537
        %666 = vmatprep.subr.bf16.mxu0 %v489
        %667 = vmatpush1.bf16.msra.mxu0 %v488
        %668 = vmatprep.subr.bf16.mxu0 %v481
        %669 = vmatpush1.bf16.msra.mxu0 %v480
        %670 = vmatprep.subr.bf16.mxu0 0
        %671 = vmatpush2.bf16.msra.mxu0 0
        %672 = vmatprep.subr.bf16.mxu0 0
        %673 = vmatpush2.bf16.msra.mxu0 0
        %674 = vmatprep.subr.bf16.mxu0 0
        %675 = vmatpush2.bf16.msra.mxu0 0
        %676 = vmatprep.subr.bf16.mxu0 0
        %677 = vmatpush2.bf16.msra.mxu0 0
        %678 = vmatprep.subr.bf16.mxu0 0
        %679 = vmatpush2.bf16.msra.mxu0 0
        %680 = vmatprep.subr.bf16.mxu0 0
        %681 = vmatpush2.bf16.msra.mxu0 0
        %682 = vmatprep.subr.bf16.mxu0 0
        %683 = vmatpush2.bf16.msra.mxu0 0
        %684 = vmatprep.subr.bf16.mxu0 0
        %685 = vmatpush2.bf16.msra.mxu0 0
        %686 = vmatprep.mubr.bf16.mxu0 0
        %687 = vmatmul.mubr.bf16.gmra.mxu0 %v518
        %v688 = vpop.f32.mrf.mxu0
        %v689 = vadd.f32 0.0, %v688
        %v690 = vpop.f32.mrf.mxu0
        %v691 = vadd.f32 0.0, %v690
        %v692 = vpop.f32.mrf.mxu0
        %v693 = vadd.f32 0.0, %v692
        %v694 = vpop.f32.mrf.mxu0
        %v695 = vadd.f32 0.0, %v694
        %696 = vmatprep.mubr.bf16.mxu0 0
        %697 = vmatmul.mubr.bf16.gmra.mxu0 %v521
        %v698 = vpop.f32.mrf.mxu0
        %v699 = vadd.f32 0.0, %v698
        %v700 = vpop.f32.mrf.mxu0
        %v701 = vadd.f32 0.0, %v700
        %v702 = vpop.f32.mrf.mxu0
        %v703 = vadd.f32 0.0, %v702
        %v704 = vpop.f32.mrf.mxu0
        %v705 = vadd.f32 0.0, %v704
        %706 = vdwg.mxu0
        %707 = vmatprep.subr.bf16.mxu0 0
        %708 = vmatpush1.bf16.msra.mxu0 0
        %709 = vmatprep.subr.bf16.mxu0 0
        %710 = vmatpush1.bf16.msra.mxu0 0
        %711 = vmatprep.subr.bf16.mxu0 0
        %712 = vmatpush1.bf16.msra.mxu0 0
        %713 = vmatprep.subr.bf16.mxu0 0
        %714 = vmatpush1.bf16.msra.mxu0 0
        %715 = vmatprep.subr.bf16.mxu0 0
        %716 = vmatpush1.bf16.msra.mxu0 0
        %717 = vmatprep.subr.bf16.mxu0 %v546
        %718 = vmatpush1.bf16.msra.mxu0 %v543
        %719 = vmatprep.subr.bf16.mxu0 %v491
        %720 = vmatpush1.bf16.msra.mxu0 %v490
        %721 = vmatprep.subr.bf16.mxu0 %v483
        %722 = vmatpush1.bf16.msra.mxu0 %v482
        %723 = vmatprep.subr.bf16.mxu0 0
        %724 = vmatpush2.bf16.msra.mxu0 0
        %725 = vmatprep.subr.bf16.mxu0 0
        %726 = vmatpush2.bf16.msra.mxu0 0
        %727 = vmatprep.subr.bf16.mxu0 0
        %728 = vmatpush2.bf16.msra.mxu0 0
        %729 = vmatprep.subr.bf16.mxu0 0
        %730 = vmatpush2.bf16.msra.mxu0 0
        %731 = vmatprep.subr.bf16.mxu0 0
        %732 = vmatpush2.bf16.msra.mxu0 0
        %733 = vmatprep.subr.bf16.mxu0 0
        %734 = vmatpush2.bf16.msra.mxu0 0
        %735 = vmatprep.subr.bf16.mxu0 0
        %736 = vmatpush2.bf16.msra.mxu0 0
        %737 = vmatprep.subr.bf16.mxu0 0
        %738 = vmatpush2.bf16.msra.mxu0 0
        %739 = vmatprep.mubr.bf16.mxu0 0
        %740 = vmatmul.mubr.bf16.gmra.mxu0 %v518
        %v741 = vpop.f32.mrf.mxu0
        %v742 = vadd.f32 0.0, %v741
        %v743 = vpop.f32.mrf.mxu0
        %v744 = vadd.f32 0.0, %v743
        %v745 = vpop.f32.mrf.mxu0
        %v746 = vadd.f32 0.0, %v745
        %v747 = vpop.f32.mrf.mxu0
        %v748 = vadd.f32 0.0, %v747
        %749 = vmatprep.mubr.bf16.mxu0 0
        %750 = vmatmul.mubr.bf16.gmra.mxu0 %v521
        %v751 = vpop.f32.mrf.mxu0
        %v752 = vadd.f32 0.0, %v751
        %v753 = vpop.f32.mrf.mxu0
        %v754 = vadd.f32 0.0, %v753
        %v755 = vpop.f32.mrf.mxu0
        %v756 = vadd.f32 0.0, %v755
        %v757 = vpop.f32.mrf.mxu0
        %v758 = vadd.f32 0.0, %v757
        %759 = vdwg.mxu0
        %v780 = vunpack.c.l.b16 %v374
        %v781 = vunpack.c.h.b16 %v374
        %v782 = vunpack.c.l.b16 %v375
        %v783 = vunpack.c.h.b16 %v375
        %v784 = vunpack.c.l.b16 %v376
        %v785 = vunpack.c.h.b16 %v376
        %v786 = vunpack.c.l.b16 %v377
        %v787 = vunpack.c.h.b16 %v377
        %v788 = vunpack.c.l.b16 %v378
        %v789 = vunpack.c.h.b16 %v378
        %v790 = vunpack.c.l.b16 %v379
        %v791 = vunpack.c.h.b16 %v379
        %v792 = vunpack.c.l.b16 %v380
        %v793 = vunpack.c.h.b16 %v380
        %v794 = vunpack.c.l.b16 %v381
        %v795 = vunpack.c.h.b16 %v381
        %v796 = vunpack.c.l.b16 %v382
        %v797 = vunpack.c.h.b16 %v382
        %v798 = vunpack.c.l.b16 %v383
        %v799 = vunpack.c.h.b16 %v383
        %v800 = vunpack.c.l.b16 %v384
        %v801 = vunpack.c.h.b16 %v384
        %v802 = vunpack.c.l.b16 %v385
        %v803 = vunpack.c.h.b16 %v385
        %v804 = vunpack.c.l.b16 %v386
        %v805 = vunpack.c.h.b16 %v386
        %v806 = vunpack.c.l.b16 %v387
        %v807 = vunpack.c.h.b16 %v387
        %v808 = vunpack.c.l.b16 %v388
        %v809 = vunpack.c.h.b16 %v388
        %v810 = vunpack.c.l.b16 %v389
        %v811 = vunpack.c.h.b16 %v389
        %v812 = vunpack.c.l.b16 %v390
        %v813 = vunpack.c.h.b16 %v390
        %v814 = vunpack.c.l.b16 %v391
        %v815 = vunpack.c.h.b16 %v391
        %v816 = vunpack.c.l.b16 %v392
        %v817 = vunpack.c.h.b16 %v392
        %v818 = vunpack.c.l.b16 %v393
        %v819 = vunpack.c.h.b16 %v393
        %v820 = vpack.c.b16 %v788, %v780
        %v821 = vpack.c.b16 %v789, %v781
        %v822 = vpack.c.b16 %v790, %v782
        %v823 = vpack.c.b16 %v791, %v783
        %v824 = vpack.c.b16 %v792, %v784
        %v825 = vpack.c.b16 %v793, %v785
        %v826 = vpack.c.b16 %v794, %v786
        %v827 = vpack.c.b16 %v795, %v787
        %v828 = vpack.c.b16 %v804, %v796
        %v829 = vpack.c.b16 %v805, %v797
        %v830 = vpack.c.b16 %v806, %v798
        %v831 = vpack.c.b16 %v807, %v799
        %v832 = vpack.c.b16 %v808, %v800
        %v833 = vpack.c.b16 %v809, %v801
        %v834 = vpack.c.b16 %v810, %v802
        %v835 = vpack.c.b16 %v811, %v803
        %v836 = vpack.c.b16 %v812, %v812
        %v837 = vpack.c.b16 %v813, %v813
        %v838 = vpack.c.b16 %v814, %v814
        %v839 = vpack.c.b16 %v815, %v815
        %v840 = vpack.c.b16 %v816, %v816
        %v841 = vpack.c.b16 %v817, %v817
        %v842 = vpack.c.b16 %v818, %v818
        %v843 = vpack.c.b16 %v819, %v819
        %v861 = vsel %vm516, %v372, 0
        %v864 = vsel %vm523, %v836, 0
        %v867 = vsel %vm523, %v837, 0
        %v870 = vsel %vm523, %v838, 0
        %v873 = vsel %vm523, %v839, 0
        %v876 = vsel %vm523, %v840, 0
        %v879 = vsel %vm523, %v841, 0
        %v882 = vsel %vm523, %v842, 0
        %v885 = vsel %vm523, %v843, 0
        %887 = vmatprep.subr.bf16.mxu0 0
        %888 = vmatpush1.bf16.msra.mxu0 0
        %889 = vmatprep.subr.bf16.mxu0 0
        %890 = vmatpush1.bf16.msra.mxu0 0
        %891 = vmatprep.subr.bf16.mxu0 0
        %892 = vmatpush1.bf16.msra.mxu0 0
        %893 = vmatprep.subr.bf16.mxu0 0
        %894 = vmatpush1.bf16.msra.mxu0 0
        %895 = vmatprep.subr.bf16.mxu0 0
        %896 = vmatpush1.bf16.msra.mxu0 0
        %897 = vmatprep.subr.bf16.mxu0 %v867
        %898 = vmatpush1.bf16.msra.mxu0 %v864
        %899 = vmatprep.subr.bf16.mxu0 %v829
        %900 = vmatpush1.bf16.msra.mxu0 %v828
        %901 = vmatprep.subr.bf16.mxu0 %v821
        %902 = vmatpush1.bf16.msra.mxu0 %v820
        %903 = vmatprep.subr.bf16.mxu0 0
        %904 = vmatpush2.bf16.msra.mxu0 0
        %905 = vmatprep.subr.bf16.mxu0 0
        %906 = vmatpush2.bf16.msra.mxu0 0
        %907 = vmatprep.subr.bf16.mxu0 0
        %908 = vmatpush2.bf16.msra.mxu0 0
        %909 = vmatprep.subr.bf16.mxu0 0
        %910 = vmatpush2.bf16.msra.mxu0 0
        %911 = vmatprep.subr.bf16.mxu0 0
        %912 = vmatpush2.bf16.msra.mxu0 0
        %913 = vmatprep.subr.bf16.mxu0 0
        %914 = vmatpush2.bf16.msra.mxu0 0
        %915 = vmatprep.subr.bf16.mxu0 0
        %916 = vmatpush2.bf16.msra.mxu0 0
        %917 = vmatprep.subr.bf16.mxu0 0
        %918 = vmatpush2.bf16.msra.mxu0 0
        %919 = vmatprep.mubr.bf16.mxu0 0
        %920 = vmatmul.mubr.bf16.gmra.mxu0 %v861
        %v921 = vpop.f32.mrf.mxu0
        %v922 = vadd.f32 %v583, %v921
        %v923 = vpop.f32.mrf.mxu0
        %v924 = vadd.f32 %v585, %v923
        %v925 = vpop.f32.mrf.mxu0
        %v926 = vadd.f32 %v587, %v925
        %v927 = vpop.f32.mrf.mxu0
        %v928 = vadd.f32 %v589, %v927
        %929 = vmatprep.mubr.bf16.mxu0 0
        %930 = vmatmul.mubr.bf16.gmra.mxu0 %v518
        %v931 = vpop.f32.mrf.mxu0
        %v932 = vadd.f32 %v593, %v931
        %v933 = vpop.f32.mrf.mxu0
        %v934 = vadd.f32 %v595, %v933
        %v935 = vpop.f32.mrf.mxu0
        %v936 = vadd.f32 %v597, %v935
        %v937 = vpop.f32.mrf.mxu0
        %v938 = vadd.f32 %v599, %v937
        %939 = vdwg.mxu0
        %940 = vmatprep.subr.bf16.mxu0 0
        %941 = vmatpush1.bf16.msra.mxu0 0
        %942 = vmatprep.subr.bf16.mxu0 0
        %943 = vmatpush1.bf16.msra.mxu0 0
        %944 = vmatprep.subr.bf16.mxu0 0
        %945 = vmatpush1.bf16.msra.mxu0 0
        %946 = vmatprep.subr.bf16.mxu0 0
        %947 = vmatpush1.bf16.msra.mxu0 0
        %948 = vmatprep.subr.bf16.mxu0 0
        %949 = vmatpush1.bf16.msra.mxu0 0
        %950 = vmatprep.subr.bf16.mxu0 %v873
        %951 = vmatpush1.bf16.msra.mxu0 %v870
        %952 = vmatprep.subr.bf16.mxu0 %v831
        %953 = vmatpush1.bf16.msra.mxu0 %v830
        %954 = vmatprep.subr.bf16.mxu0 %v823
        %955 = vmatpush1.bf16.msra.mxu0 %v822
        %956 = vmatprep.subr.bf16.mxu0 0
        %957 = vmatpush2.bf16.msra.mxu0 0
        %958 = vmatprep.subr.bf16.mxu0 0
        %959 = vmatpush2.bf16.msra.mxu0 0
        %960 = vmatprep.subr.bf16.mxu0 0
        %961 = vmatpush2.bf16.msra.mxu0 0
        %962 = vmatprep.subr.bf16.mxu0 0
        %963 = vmatpush2.bf16.msra.mxu0 0
        %964 = vmatprep.subr.bf16.mxu0 0
        %965 = vmatpush2.bf16.msra.mxu0 0
        %966 = vmatprep.subr.bf16.mxu0 0
        %967 = vmatpush2.bf16.msra.mxu0 0
        %968 = vmatprep.subr.bf16.mxu0 0
        %969 = vmatpush2.bf16.msra.mxu0 0
        %970 = vmatprep.subr.bf16.mxu0 0
        %971 = vmatpush2.bf16.msra.mxu0 0
        %972 = vmatprep.mubr.bf16.mxu0 0
        %973 = vmatmul.mubr.bf16.gmra.mxu0 %v861
        %v974 = vpop.f32.mrf.mxu0
        %v975 = vadd.f32 %v636, %v974
        %v976 = vpop.f32.mrf.mxu0
        %v977 = vadd.f32 %v638, %v976
        %v978 = vpop.f32.mrf.mxu0
        %v979 = vadd.f32 %v640, %v978
        %v980 = vpop.f32.mrf.mxu0
        %v981 = vadd.f32 %v642, %v980
        %982 = vmatprep.mubr.bf16.mxu0 0
        %983 = vmatmul.mubr.bf16.gmra.mxu0 %v518
        %v984 = vpop.f32.mrf.mxu0
        %v985 = vadd.f32 %v646, %v984
        %v986 = vpop.f32.mrf.mxu0
        %v987 = vadd.f32 %v648, %v986
        %v988 = vpop.f32.mrf.mxu0
        %v989 = vadd.f32 %v650, %v988
        %v990 = vpop.f32.mrf.mxu0
        %v991 = vadd.f32 %v652, %v990
        %992 = vdwg.mxu0
        %993 = vmatprep.subr.bf16.mxu0 0
        %994 = vmatpush1.bf16.msra.mxu0 0
        %995 = vmatprep.subr.bf16.mxu0 0
        %996 = vmatpush1.bf16.msra.mxu0 0
        %997 = vmatprep.subr.bf16.mxu0 0
        %998 = vmatpush1.bf16.msra.mxu0 0
        %999 = vmatprep.subr.bf16.mxu0 0
        %1000 = vmatpush1.bf16.msra.mxu0 0
        %1001 = vmatprep.subr.bf16.mxu0 0
        %1002 = vmatpush1.bf16.msra.mxu0 0
        %1003 = vmatprep.subr.bf16.mxu0 %v879
        %1004 = vmatpush1.bf16.msra.mxu0 %v876
        %1005 = vmatprep.subr.bf16.mxu0 %v833
        %1006 = vmatpush1.bf16.msra.mxu0 %v832
        %1007 = vmatprep.subr.bf16.mxu0 %v825
        %1008 = vmatpush1.bf16.msra.mxu0 %v824
        %1009 = vmatprep.subr.bf16.mxu0 0
        %1010 = vmatpush2.bf16.msra.mxu0 0
        %1011 = vmatprep.subr.bf16.mxu0 0
        %1012 = vmatpush2.bf16.msra.mxu0 0
        %1013 = vmatprep.subr.bf16.mxu0 0
        %1014 = vmatpush2.bf16.msra.mxu0 0
        %1015 = vmatprep.subr.bf16.mxu0 0
        %1016 = vmatpush2.bf16.msra.mxu0 0
        %1017 = vmatprep.subr.bf16.mxu0 0
        %1018 = vmatpush2.bf16.msra.mxu0 0
        %1019 = vmatprep.subr.bf16.mxu0 0
        %1020 = vmatpush2.bf16.msra.mxu0 0
        %1021 = vmatprep.subr.bf16.mxu0 0
        %1022 = vmatpush2.bf16.msra.mxu0 0
        %1023 = vmatprep.subr.bf16.mxu0 0
        %1024 = vmatpush2.bf16.msra.mxu0 0
        %1025 = vmatprep.mubr.bf16.mxu0 0
        %1026 = vmatmul.mubr.bf16.gmra.mxu0 %v861
        %v1027 = vpop.f32.mrf.mxu0
        %v1028 = vadd.f32 %v689, %v1027
        %v1029 = vpop.f32.mrf.mxu0
        %v1030 = vadd.f32 %v691, %v1029
        %v1031 = vpop.f32.mrf.mxu0
        %v1032 = vadd.f32 %v693, %v1031
        %v1033 = vpop.f32.mrf.mxu0
        %v1034 = vadd.f32 %v695, %v1033
        %1035 = vmatprep.mubr.bf16.mxu0 0
        %1036 = vmatmul.mubr.bf16.gmra.mxu0 %v518
        %v1037 = vpop.f32.mrf.mxu0
        %v1038 = vadd.f32 %v699, %v1037
        %v1039 = vpop.f32.mrf.mxu0
        %v1040 = vadd.f32 %v701, %v1039
        %v1041 = vpop.f32.mrf.mxu0
        %v1042 = vadd.f32 %v703, %v1041
        %v1043 = vpop.f32.mrf.mxu0
        %v1044 = vadd.f32 %v705, %v1043
        %1045 = vdwg.mxu0
        %1046 = vmatprep.subr.bf16.mxu0 0
        %1047 = vmatpush1.bf16.msra.mxu0 0
        %1048 = vmatprep.subr.bf16.mxu0 0
        %1049 = vmatpush1.bf16.msra.mxu0 0
        %1050 = vmatprep.subr.bf16.mxu0 0
        %1051 = vmatpush1.bf16.msra.mxu0 0
        %1052 = vmatprep.subr.bf16.mxu0 0
        %1053 = vmatpush1.bf16.msra.mxu0 0
        %1054 = vmatprep.subr.bf16.mxu0 0
        %1055 = vmatpush1.bf16.msra.mxu0 0
        %1056 = vmatprep.subr.bf16.mxu0 %v885
        %1057 = vmatpush1.bf16.msra.mxu0 %v882
        %1058 = vmatprep.subr.bf16.mxu0 %v835
        %1059 = vmatpush1.bf16.msra.mxu0 %v834
        %1060 = vmatprep.subr.bf16.mxu0 %v827
        %1061 = vmatpush1.bf16.msra.mxu0 %v826
        %1062 = vmatprep.subr.bf16.mxu0 0
        %1063 = vmatpush2.bf16.msra.mxu0 0
        %1064 = vmatprep.subr.bf16.mxu0 0
        %1065 = vmatpush2.bf16.msra.mxu0 0
        %1066 = vmatprep.subr.bf16.mxu0 0
        %1067 = vmatpush2.bf16.msra.mxu0 0
        %1068 = vmatprep.subr.bf16.mxu0 0
        %1069 = vmatpush2.bf16.msra.mxu0 0
        %1070 = vmatprep.subr.bf16.mxu0 0
        %1071 = vmatpush2.bf16.msra.mxu0 0
        %1072 = vmatprep.subr.bf16.mxu0 0
        %1073 = vmatpush2.bf16.msra.mxu0 0
        %1074 = vmatprep.subr.bf16.mxu0 0
        %1075 = vmatpush2.bf16.msra.mxu0 0
        %1076 = vmatprep.subr.bf16.mxu0 0
        %1077 = vmatpush2.bf16.msra.mxu0 0
        %1078 = vmatprep.mubr.bf16.mxu0 0
        %1079 = vmatmul.mubr.bf16.gmra.mxu0 %v861
        %v1080 = vpop.f32.mrf.mxu0
        %v1081 = vadd.f32 %v742, %v1080
        %v1082 = vpop.f32.mrf.mxu0
        %v1083 = vadd.f32 %v744, %v1082
        %v1084 = vpop.f32.mrf.mxu0
        %v1085 = vadd.f32 %v746, %v1084
        %v1086 = vpop.f32.mrf.mxu0
        %v1087 = vadd.f32 %v748, %v1086
        %1088 = vmatprep.mubr.bf16.mxu0 0
        %1089 = vmatmul.mubr.bf16.gmra.mxu0 %v518
        %v1090 = vpop.f32.mrf.mxu0
        %v1091 = vadd.f32 %v752, %v1090
        %v1092 = vpop.f32.mrf.mxu0
        %v1093 = vadd.f32 %v754, %v1092
        %v1094 = vpop.f32.mrf.mxu0
        %v1095 = vadd.f32 %v756, %v1094
        %v1096 = vpop.f32.mrf.mxu0
        %v1097 = vadd.f32 %v758, %v1096
        %1098 = vdwg.mxu0
        %v1099 = vpack.c.bf16 %v369, %v367
        %s1100 = scalar_lea.vmem [#allocation3], 320
        %v1101 = vld [vmem:[%s1100] sm:$0xff]
        %v1102 = vld [vmem:[%s1100 + $0x8] sm:$0xff]
        %v1103 = vld [vmem:[%s1100 + $0x10] sm:$0xff]
        %v1104 = vld [vmem:[%s1100 + $0x18] sm:$0xff]
        %v1105 = vld [vmem:[%s1100 + $0x20] sm:$0xff]
        %v1106 = vld [vmem:[%s1100 + $0x28] sm:$0xff]
        %v1107 = vld [vmem:[%s1100 + $0x30] sm:$0xff]
        %v1108 = vld [vmem:[%s1100 + $0x38] sm:$0xff]
        %v1109 = vld [vmem:[%s1100 + $0x40] sm:$0xff]
        %v1110 = vld [vmem:[%s1100 + $0x48] sm:$0xff]
        %v1111 = vld [vmem:[%s1100 + $0x50] sm:$0xff]
        %v1112 = vld [vmem:[%s1100 + $0x58] sm:$0xff]
        %v1113 = vld [vmem:[%s1100 + $0x60] sm:$0xff]
        %v1114 = vld [vmem:[%s1100 + $0x68] sm:$0xff]
        %v1115 = vld [vmem:[%s1100 + $0x70] sm:$0xff]
        %v1116 = vld [vmem:[%s1100 + $0x78] sm:$0xff]
        %v1117 = vld [vmem:[%s1100 + $0x80] sm:$0x33]
        %v1118 = vld [vmem:[%s1100 + $0x88] sm:$0x33]
        %v1119 = vld [vmem:[%s1100 + $0x90] sm:$0x33]
        %v1120 = vld [vmem:[%s1100 + $0x98] sm:$0x33]
        %v1141 = vunpack.c.l.b16 %v1101
        %v1142 = vunpack.c.h.b16 %v1101
        %v1143 = vunpack.c.l.b16 %v1102
        %v1144 = vunpack.c.h.b16 %v1102
        %v1145 = vunpack.c.l.b16 %v1103
        %v1146 = vunpack.c.h.b16 %v1103
        %v1147 = vunpack.c.l.b16 %v1104
        %v1148 = vunpack.c.h.b16 %v1104
        %v1149 = vunpack.c.l.b16 %v1105
        %v1150 = vunpack.c.h.b16 %v1105
        %v1151 = vunpack.c.l.b16 %v1106
        %v1152 = vunpack.c.h.b16 %v1106
        %v1153 = vunpack.c.l.b16 %v1107
        %v1154 = vunpack.c.h.b16 %v1107
        %v1155 = vunpack.c.l.b16 %v1108
        %v1156 = vunpack.c.h.b16 %v1108
        %v1157 = vunpack.c.l.b16 %v1109
        %v1158 = vunpack.c.h.b16 %v1109
        %v1159 = vunpack.c.l.b16 %v1110
        %v1160 = vunpack.c.h.b16 %v1110
        %v1161 = vunpack.c.l.b16 %v1111
        %v1162 = vunpack.c.h.b16 %v1111
        %v1163 = vunpack.c.l.b16 %v1112
        %v1164 = vunpack.c.h.b16 %v1112
        %v1165 = vunpack.c.l.b16 %v1113
        %v1166 = vunpack.c.h.b16 %v1113
        %v1167 = vunpack.c.l.b16 %v1114
        %v1168 = vunpack.c.h.b16 %v1114
        %v1169 = vunpack.c.l.b16 %v1115
        %v1170 = vunpack.c.h.b16 %v1115
        %v1171 = vunpack.c.l.b16 %v1116
        %v1172 = vunpack.c.h.b16 %v1116
        %v1173 = vunpack.c.l.b16 %v1117
        %v1174 = vunpack.c.h.b16 %v1117
        %v1175 = vunpack.c.l.b16 %v1118
        %v1176 = vunpack.c.h.b16 %v1118
        %v1177 = vunpack.c.l.b16 %v1119
        %v1178 = vunpack.c.h.b16 %v1119
        %v1179 = vunpack.c.l.b16 %v1120
        %v1180 = vunpack.c.h.b16 %v1120
        %v1181 = vpack.c.b16 %v1149, %v1141
        %v1182 = vpack.c.b16 %v1150, %v1142
        %v1183 = vpack.c.b16 %v1151, %v1143
        %v1184 = vpack.c.b16 %v1152, %v1144
        %v1185 = vpack.c.b16 %v1153, %v1145
        %v1186 = vpack.c.b16 %v1154, %v1146
        %v1187 = vpack.c.b16 %v1155, %v1147
        %v1188 = vpack.c.b16 %v1156, %v1148
        %v1189 = vpack.c.b16 %v1165, %v1157
        %v1190 = vpack.c.b16 %v1166, %v1158
        %v1191 = vpack.c.b16 %v1167, %v1159
        %v1192 = vpack.c.b16 %v1168, %v1160
        %v1193 = vpack.c.b16 %v1169, %v1161
        %v1194 = vpack.c.b16 %v1170, %v1162
        %v1195 = vpack.c.b16 %v1171, %v1163
        %v1196 = vpack.c.b16 %v1172, %v1164
        %v1197 = vpack.c.b16 %v1173, %v1173
        %v1198 = vpack.c.b16 %v1174, %v1174
        %v1199 = vpack.c.b16 %v1175, %v1175
        %v1200 = vpack.c.b16 %v1176, %v1176
        %v1201 = vpack.c.b16 %v1177, %v1177
        %v1202 = vpack.c.b16 %v1178, %v1178
        %v1203 = vpack.c.b16 %v1179, %v1179
        %v1204 = vpack.c.b16 %v1180, %v1180
        %v1222 = vsel %vm516, %v1099, 0
        %v1225 = vsel %vm523, %v1197, 0
        %v1228 = vsel %vm523, %v1198, 0
        %v1231 = vsel %vm523, %v1199, 0
        %v1234 = vsel %vm523, %v1200, 0
        %v1237 = vsel %vm523, %v1201, 0
        %v1240 = vsel %vm523, %v1202, 0
        %v1243 = vsel %vm523, %v1203, 0
        %v1246 = vsel %vm523, %v1204, 0
        %1248 = vmatprep.subr.bf16.mxu0 0
        %1249 = vmatpush1.bf16.msra.mxu0 0
        %1250 = vmatprep.subr.bf16.mxu0 0
        %1251 = vmatpush1.bf16.msra.mxu0 0
        %1252 = vmatprep.subr.bf16.mxu0 0
        %1253 = vmatpush1.bf16.msra.mxu0 0
        %1254 = vmatprep.subr.bf16.mxu0 0
        %1255 = vmatpush1.bf16.msra.mxu0 0
        %1256 = vmatprep.subr.bf16.mxu0 0
        %1257 = vmatpush1.bf16.msra.mxu0 0
        %1258 = vmatprep.subr.bf16.mxu0 %v1228
        %1259 = vmatpush1.bf16.msra.mxu0 %v1225
        %1260 = vmatprep.subr.bf16.mxu0 %v1190
        %1261 = vmatpush1.bf16.msra.mxu0 %v1189
        %1262 = vmatprep.subr.bf16.mxu0 %v1182
        %1263 = vmatpush1.bf16.msra.mxu0 %v1181
        %1264 = vmatprep.subr.bf16.mxu0 0
        %1265 = vmatpush2.bf16.msra.mxu0 0
        %1266 = vmatprep.subr.bf16.mxu0 0
        %1267 = vmatpush2.bf16.msra.mxu0 0
        %1268 = vmatprep.subr.bf16.mxu0 0
        %1269 = vmatpush2.bf16.msra.mxu0 0
        %1270 = vmatprep.subr.bf16.mxu0 0
        %1271 = vmatpush2.bf16.msra.mxu0 0
        %1272 = vmatprep.subr.bf16.mxu0 0
        %1273 = vmatpush2.bf16.msra.mxu0 0
        %1274 = vmatprep.subr.bf16.mxu0 0
        %1275 = vmatpush2.bf16.msra.mxu0 0
        %1276 = vmatprep.subr.bf16.mxu0 0
        %1277 = vmatpush2.bf16.msra.mxu0 0
        %1278 = vmatprep.subr.bf16.mxu0 0
        %1279 = vmatpush2.bf16.msra.mxu0 0
        %1280 = vmatprep.mubr.bf16.mxu0 0
        %1281 = vmatmul.mubr.bf16.gmra.mxu0 %v521
        %v1282 = vpop.f32.mrf.mxu0
        %v1283 = vadd.f32 0.0, %v1282
        %v1284 = vpop.f32.mrf.mxu0
        %v1285 = vadd.f32 0.0, %v1284
        %v1286 = vpop.f32.mrf.mxu0
        %v1287 = vadd.f32 0.0, %v1286
        %v1288 = vpop.f32.mrf.mxu0
        %v1289 = vadd.f32 0.0, %v1288
        %1290 = vmatprep.mubr.bf16.mxu0 0
        %1291 = vmatmul.mubr.bf16.gmra.mxu0 %v1222
        %v1292 = vpop.f32.mrf.mxu0
        %v1293 = vadd.f32 0.0, %v1292
        %v1294 = vpop.f32.mrf.mxu0
        %v1295 = vadd.f32 0.0, %v1294
        %v1296 = vpop.f32.mrf.mxu0
        %v1297 = vadd.f32 0.0, %v1296
        %v1298 = vpop.f32.mrf.mxu0
        %v1299 = vadd.f32 0.0, %v1298
        %1300 = vdwg.mxu0
        %1301 = vmatprep.subr.bf16.mxu0 0
        %1302 = vmatpush1.bf16.msra.mxu0 0
        %1303 = vmatprep.subr.bf16.mxu0 0
        %1304 = vmatpush1.bf16.msra.mxu0 0
        %1305 = vmatprep.subr.bf16.mxu0 0
        %1306 = vmatpush1.bf16.msra.mxu0 0
        %1307 = vmatprep.subr.bf16.mxu0 0
        %1308 = vmatpush1.bf16.msra.mxu0 0
        %1309 = vmatprep.subr.bf16.mxu0 0
        %1310 = vmatpush1.bf16.msra.mxu0 0
        %1311 = vmatprep.subr.bf16.mxu0 %v1234
        %1312 = vmatpush1.bf16.msra.mxu0 %v1231
        %1313 = vmatprep.subr.bf16.mxu0 %v1192
        %1314 = vmatpush1.bf16.msra.mxu0 %v1191
        %1315 = vmatprep.subr.bf16.mxu0 %v1184
        %1316 = vmatpush1.bf16.msra.mxu0 %v1183
        %1317 = vmatprep.subr.bf16.mxu0 0
        %1318 = vmatpush2.bf16.msra.mxu0 0
        %1319 = vmatprep.subr.bf16.mxu0 0
        %1320 = vmatpush2.bf16.msra.mxu0 0
        %1321 = vmatprep.subr.bf16.mxu0 0
        %1322 = vmatpush2.bf16.msra.mxu0 0
        %1323 = vmatprep.subr.bf16.mxu0 0
        %1324 = vmatpush2.bf16.msra.mxu0 0
        %1325 = vmatprep.subr.bf16.mxu0 0
        %1326 = vmatpush2.bf16.msra.mxu0 0
        %1327 = vmatprep.subr.bf16.mxu0 0
        %1328 = vmatpush2.bf16.msra.mxu0 0
        %1329 = vmatprep.subr.bf16.mxu0 0
        %1330 = vmatpush2.bf16.msra.mxu0 0
        %1331 = vmatprep.subr.bf16.mxu0 0
        %1332 = vmatpush2.bf16.msra.mxu0 0
        %1333 = vmatprep.mubr.bf16.mxu0 0
        %1334 = vmatmul.mubr.bf16.gmra.mxu0 %v521
        %v1335 = vpop.f32.mrf.mxu0
        %v1336 = vadd.f32 0.0, %v1335
        %v1337 = vpop.f32.mrf.mxu0
        %v1338 = vadd.f32 0.0, %v1337
        %v1339 = vpop.f32.mrf.mxu0
        %v1340 = vadd.f32 0.0, %v1339
        %v1341 = vpop.f32.mrf.mxu0
        %v1342 = vadd.f32 0.0, %v1341
        %1343 = vmatprep.mubr.bf16.mxu0 0
        %1344 = vmatmul.mubr.bf16.gmra.mxu0 %v1222
        %v1345 = vpop.f32.mrf.mxu0
        %v1346 = vadd.f32 0.0, %v1345
        %v1347 = vpop.f32.mrf.mxu0
        %v1348 = vadd.f32 0.0, %v1347
        %v1349 = vpop.f32.mrf.mxu0
        %v1350 = vadd.f32 0.0, %v1349
        %v1351 = vpop.f32.mrf.mxu0
        %v1352 = vadd.f32 0.0, %v1351
        %1353 = vdwg.mxu0
        %1354 = vmatprep.subr.bf16.mxu0 0
        %1355 = vmatpush1.bf16.msra.mxu0 0
        %1356 = vmatprep.subr.bf16.mxu0 0
        %1357 = vmatpush1.bf16.msra.mxu0 0
        %1358 = vmatprep.subr.bf16.mxu0 0
        %1359 = vmatpush1.bf16.msra.mxu0 0
        %1360 = vmatprep.subr.bf16.mxu0 0
        %1361 = vmatpush1.bf16.msra.mxu0 0
        %1362 = vmatprep.subr.bf16.mxu0 0
        %1363 = vmatpush1.bf16.msra.mxu0 0
        %1364 = vmatprep.subr.bf16.mxu0 %v1240
        %1365 = vmatpush1.bf16.msra.mxu0 %v1237
        %1366 = vmatprep.subr.bf16.mxu0 %v1194
        %1367 = vmatpush1.bf16.msra.mxu0 %v1193
        %1368 = vmatprep.subr.bf16.mxu0 %v1186
        %1369 = vmatpush1.bf16.msra.mxu0 %v1185
        %1370 = vmatprep.subr.bf16.mxu0 0
        %1371 = vmatpush2.bf16.msra.mxu0 0
        %1372 = vmatprep.subr.bf16.mxu0 0
        %1373 = vmatpush2.bf16.msra.mxu0 0
        %1374 = vmatprep.subr.bf16.mxu0 0
        %1375 = vmatpush2.bf16.msra.mxu0 0
        %1376 = vmatprep.subr.bf16.mxu0 0
        %1377 = vmatpush2.bf16.msra.mxu0 0
        %1378 = vmatprep.subr.bf16.mxu0 0
        %1379 = vmatpush2.bf16.msra.mxu0 0
        %1380 = vmatprep.subr.bf16.mxu0 0
        %1381 = vmatpush2.bf16.msra.mxu0 0
        %1382 = vmatprep.subr.bf16.mxu0 0
        %1383 = vmatpush2.bf16.msra.mxu0 0
        %1384 = vmatprep.subr.bf16.mxu0 0
        %1385 = vmatpush2.bf16.msra.mxu0 0
        %1386 = vmatprep.mubr.bf16.mxu0 0
        %1387 = vmatmul.mubr.bf16.gmra.mxu0 %v521
        %v1388 = vpop.f32.mrf.mxu0
        %v1389 = vadd.f32 0.0, %v1388
        %v1390 = vpop.f32.mrf.mxu0
        %v1391 = vadd.f32 0.0, %v1390
        %v1392 = vpop.f32.mrf.mxu0
        %v1393 = vadd.f32 0.0, %v1392
        %v1394 = vpop.f32.mrf.mxu0
        %v1395 = vadd.f32 0.0, %v1394
        %1396 = vmatprep.mubr.bf16.mxu0 0
        %1397 = vmatmul.mubr.bf16.gmra.mxu0 %v1222
        %v1398 = vpop.f32.mrf.mxu0
        %v1399 = vadd.f32 0.0, %v1398
        %v1400 = vpop.f32.mrf.mxu0
        %v1401 = vadd.f32 0.0, %v1400
        %v1402 = vpop.f32.mrf.mxu0
        %v1403 = vadd.f32 0.0, %v1402
        %v1404 = vpop.f32.mrf.mxu0
        %v1405 = vadd.f32 0.0, %v1404
        %1406 = vdwg.mxu0
        %1407 = vmatprep.subr.bf16.mxu0 0
        %1408 = vmatpush1.bf16.msra.mxu0 0
        %1409 = vmatprep.subr.bf16.mxu0 0
        %1410 = vmatpush1.bf16.msra.mxu0 0
        %1411 = vmatprep.subr.bf16.mxu0 0
        %1412 = vmatpush1.bf16.msra.mxu0 0
        %1413 = vmatprep.subr.bf16.mxu0 0
        %1414 = vmatpush1.bf16.msra.mxu0 0
        %1415 = vmatprep.subr.bf16.mxu0 0
        %1416 = vmatpush1.bf16.msra.mxu0 0
        %1417 = vmatprep.subr.bf16.mxu0 %v1246
        %1418 = vmatpush1.bf16.msra.mxu0 %v1243
        %1419 = vmatprep.subr.bf16.mxu0 %v1196
        %1420 = vmatpush1.bf16.msra.mxu0 %v1195
        %1421 = vmatprep.subr.bf16.mxu0 %v1188
        %1422 = vmatpush1.bf16.msra.mxu0 %v1187
        %1423 = vmatprep.subr.bf16.mxu0 0
        %1424 = vmatpush2.bf16.msra.mxu0 0
        %1425 = vmatprep.subr.bf16.mxu0 0
        %1426 = vmatpush2.bf16.msra.mxu0 0
        %1427 = vmatprep.subr.bf16.mxu0 0
        %1428 = vmatpush2.bf16.msra.mxu0 0
        %1429 = vmatprep.subr.bf16.mxu0 0
        %1430 = vmatpush2.bf16.msra.mxu0 0
        %1431 = vmatprep.subr.bf16.mxu0 0
        %1432 = vmatpush2.bf16.msra.mxu0 0
        %1433 = vmatprep.subr.bf16.mxu0 0
        %1434 = vmatpush2.bf16.msra.mxu0 0
        %1435 = vmatprep.subr.bf16.mxu0 0
        %1436 = vmatpush2.bf16.msra.mxu0 0
        %1437 = vmatprep.subr.bf16.mxu0 0
        %1438 = vmatpush2.bf16.msra.mxu0 0
        %1439 = vmatprep.mubr.bf16.mxu0 0
        %1440 = vmatmul.mubr.bf16.gmra.mxu0 %v521
        %v1441 = vpop.f32.mrf.mxu0
        %v1442 = vadd.f32 0.0, %v1441
        %v1443 = vpop.f32.mrf.mxu0
        %v1444 = vadd.f32 0.0, %v1443
        %v1445 = vpop.f32.mrf.mxu0
        %v1446 = vadd.f32 0.0, %v1445
        %v1447 = vpop.f32.mrf.mxu0
        %v1448 = vadd.f32 0.0, %v1447
        %1449 = vmatprep.mubr.bf16.mxu0 0
        %1450 = vmatmul.mubr.bf16.gmra.mxu0 %v1222
        %v1451 = vpop.f32.mrf.mxu0
        %v1452 = vadd.f32 0.0, %v1451
        %v1453 = vpop.f32.mrf.mxu0
        %v1454 = vadd.f32 0.0, %v1453
        %v1455 = vpop.f32.mrf.mxu0
        %v1456 = vadd.f32 0.0, %v1455
        %v1457 = vpop.f32.mrf.mxu0
        %v1458 = vadd.f32 0.0, %v1457
        %1459 = vdwg.mxu0
        %v1460 = vadd.f32 %v922, %v1283
        %v1461 = vadd.f32 %v924, %v1285
        %v1462 = vadd.f32 %v975, %v1336
        %v1463 = vadd.f32 %v977, %v1338
        %v1464 = vadd.f32 %v1028, %v1389
        %v1465 = vadd.f32 %v1030, %v1391
        %v1466 = vadd.f32 %v1081, %v1442
        %v1467 = vadd.f32 %v1083, %v1444
        %v1468 = vadd.f32 %v926, %v1287
        %v1469 = vadd.f32 %v928, %v1289
        %v1470 = vadd.f32 %v979, %v1340
        %v1471 = vadd.f32 %v981, %v1342
        %v1472 = vadd.f32 %v1032, %v1393
        %v1473 = vadd.f32 %v1034, %v1395
        %v1474 = vadd.f32 %v1085, %v1446
        %v1475 = vadd.f32 %v1087, %v1448
        %v1476 = vadd.f32 %v932, %v1293
        %v1477 = vadd.f32 %v934, %v1295
        %v1478 = vadd.f32 %v985, %v1346
        %v1479 = vadd.f32 %v987, %v1348
        %v1480 = vadd.f32 %v1038, %v1399
        %v1481 = vadd.f32 %v1040, %v1401
        %v1482 = vadd.f32 %v1091, %v1452
        %v1483 = vadd.f32 %v1093, %v1454
        %v1484 = vadd.f32 %v936, %v1297
        %v1485 = vadd.f32 %v938, %v1299
        %v1486 = vadd.f32 %v989, %v1350
        %v1487 = vadd.f32 %v991, %v1352
        %v1488 = vadd.f32 %v1042, %v1403
        %v1489 = vadd.f32 %v1044, %v1405
        %v1490 = vadd.f32 %v1095, %v1456
        %v1491 = vadd.f32 %v1097, %v1458
        %v1492 = vpack.c.bf16 %v370, %v368
        %s1493 = scalar_lea.vmem [#allocation3], 480
        %v1494 = vld [vmem:[%s1493] sm:$0xff]
        %v1495 = vld [vmem:[%s1493 + $0x8] sm:$0xff]
        %v1496 = vld [vmem:[%s1493 + $0x10] sm:$0xff]
        %v1497 = vld [vmem:[%s1493 + $0x18] sm:$0xff]
        %v1498 = vld [vmem:[%s1493 + $0x20] sm:$0xff]
        %v1499 = vld [vmem:[%s1493 + $0x28] sm:$0xff]
        %v1500 = vld [vmem:[%s1493 + $0x30] sm:$0xff]
        %v1501 = vld [vmem:[%s1493 + $0x38] sm:$0xff]
        %v1502 = vld [vmem:[%s1493 + $0x40] sm:$0xff]
        %v1503 = vld [vmem:[%s1493 + $0x48] sm:$0xff]
        %v1504 = vld [vmem:[%s1493 + $0x50] sm:$0xff]
        %v1505 = vld [vmem:[%s1493 + $0x58] sm:$0xff]
        %v1506 = vld [vmem:[%s1493 + $0x60] sm:$0xff]
        %v1507 = vld [vmem:[%s1493 + $0x68] sm:$0xff]
        %v1508 = vld [vmem:[%s1493 + $0x70] sm:$0xff]
        %v1509 = vld [vmem:[%s1493 + $0x78] sm:$0xff]
        %v1510 = vld [vmem:[%s1493 + $0x80] sm:$0x33]
        %v1511 = vld [vmem:[%s1493 + $0x88] sm:$0x33]
        %v1512 = vld [vmem:[%s1493 + $0x90] sm:$0x33]
        %v1513 = vld [vmem:[%s1493 + $0x98] sm:$0x33]
        %v1534 = vunpack.c.l.b16 %v1494
        %v1535 = vunpack.c.h.b16 %v1494
        %v1536 = vunpack.c.l.b16 %v1495
        %v1537 = vunpack.c.h.b16 %v1495
        %v1538 = vunpack.c.l.b16 %v1496
        %v1539 = vunpack.c.h.b16 %v1496
        %v1540 = vunpack.c.l.b16 %v1497
        %v1541 = vunpack.c.h.b16 %v1497
        %v1542 = vunpack.c.l.b16 %v1498
        %v1543 = vunpack.c.h.b16 %v1498
        %v1544 = vunpack.c.l.b16 %v1499
        %v1545 = vunpack.c.h.b16 %v1499
        %v1546 = vunpack.c.l.b16 %v1500
        %v1547 = vunpack.c.h.b16 %v1500
        %v1548 = vunpack.c.l.b16 %v1501
        %v1549 = vunpack.c.h.b16 %v1501
        %v1550 = vunpack.c.l.b16 %v1502
        %v1551 = vunpack.c.h.b16 %v1502
        %v1552 = vunpack.c.l.b16 %v1503
        %v1553 = vunpack.c.h.b16 %v1503
        %v1554 = vunpack.c.l.b16 %v1504
        %v1555 = vunpack.c.h.b16 %v1504
        %v1556 = vunpack.c.l.b16 %v1505
        %v1557 = vunpack.c.h.b16 %v1505
        %v1558 = vunpack.c.l.b16 %v1506
        %v1559 = vunpack.c.h.b16 %v1506
        %v1560 = vunpack.c.l.b16 %v1507
        %v1561 = vunpack.c.h.b16 %v1507
        %v1562 = vunpack.c.l.b16 %v1508
        %v1563 = vunpack.c.h.b16 %v1508
        %v1564 = vunpack.c.l.b16 %v1509
        %v1565 = vunpack.c.h.b16 %v1509
        %v1566 = vunpack.c.l.b16 %v1510
        %v1567 = vunpack.c.h.b16 %v1510
        %v1568 = vunpack.c.l.b16 %v1511
        %v1569 = vunpack.c.h.b16 %v1511
        %v1570 = vunpack.c.l.b16 %v1512
        %v1571 = vunpack.c.h.b16 %v1512
        %v1572 = vunpack.c.l.b16 %v1513
        %v1573 = vunpack.c.h.b16 %v1513
        %v1574 = vpack.c.b16 %v1542, %v1534
        %v1575 = vpack.c.b16 %v1543, %v1535
        %v1576 = vpack.c.b16 %v1544, %v1536
        %v1577 = vpack.c.b16 %v1545, %v1537
        %v1578 = vpack.c.b16 %v1546, %v1538
        %v1579 = vpack.c.b16 %v1547, %v1539
        %v1580 = vpack.c.b16 %v1548, %v1540
        %v1581 = vpack.c.b16 %v1549, %v1541
        %v1582 = vpack.c.b16 %v1558, %v1550
        %v1583 = vpack.c.b16 %v1559, %v1551
        %v1584 = vpack.c.b16 %v1560, %v1552
        %v1585 = vpack.c.b16 %v1561, %v1553
        %v1586 = vpack.c.b16 %v1562, %v1554
        %v1587 = vpack.c.b16 %v1563, %v1555
        %v1588 = vpack.c.b16 %v1564, %v1556
        %v1589 = vpack.c.b16 %v1565, %v1557
        %v1590 = vpack.c.b16 %v1566, %v1566
        %v1591 = vpack.c.b16 %v1567, %v1567
        %v1592 = vpack.c.b16 %v1568, %v1568
        %v1593 = vpack.c.b16 %v1569, %v1569
        %v1594 = vpack.c.b16 %v1570, %v1570
        %v1595 = vpack.c.b16 %v1571, %v1571
        %v1596 = vpack.c.b16 %v1572, %v1572
        %v1597 = vpack.c.b16 %v1573, %v1573
        %v1615 = vsel %vm516, %v1492, 0
        %v1618 = vsel %vm523, %v1590, 0
        %v1621 = vsel %vm523, %v1591, 0
        %v1624 = vsel %vm523, %v1592, 0
        %v1627 = vsel %vm523, %v1593, 0
        %v1630 = vsel %vm523, %v1594, 0
        %v1633 = vsel %vm523, %v1595, 0
        %v1636 = vsel %vm523, %v1596, 0
        %v1639 = vsel %vm523, %v1597, 0
        %1641 = vmatprep.subr.bf16.mxu0 0
        %1642 = vmatpush1.bf16.msra.mxu0 0
        %1643 = vmatprep.subr.bf16.mxu0 0
        %1644 = vmatpush1.bf16.msra.mxu0 0
        %1645 = vmatprep.subr.bf16.mxu0 0
        %1646 = vmatpush1.bf16.msra.mxu0 0
        %1647 = vmatprep.subr.bf16.mxu0 0
        %1648 = vmatpush1.bf16.msra.mxu0 0
        %1649 = vmatprep.subr.bf16.mxu0 0
        %1650 = vmatpush1.bf16.msra.mxu0 0
        %1651 = vmatprep.subr.bf16.mxu0 %v1621
        %1652 = vmatpush1.bf16.msra.mxu0 %v1618
        %1653 = vmatprep.subr.bf16.mxu0 %v1583
        %1654 = vmatpush1.bf16.msra.mxu0 %v1582
        %1655 = vmatprep.subr.bf16.mxu0 %v1575
        %1656 = vmatpush1.bf16.msra.mxu0 %v1574
        %1657 = vmatprep.subr.bf16.mxu0 0
        %1658 = vmatpush2.bf16.msra.mxu0 0
        %1659 = vmatprep.subr.bf16.mxu0 0
        %1660 = vmatpush2.bf16.msra.mxu0 0
        %1661 = vmatprep.subr.bf16.mxu0 0
        %1662 = vmatpush2.bf16.msra.mxu0 0
        %1663 = vmatprep.subr.bf16.mxu0 0
        %1664 = vmatpush2.bf16.msra.mxu0 0
        %1665 = vmatprep.subr.bf16.mxu0 0
        %1666 = vmatpush2.bf16.msra.mxu0 0
        %1667 = vmatprep.subr.bf16.mxu0 0
        %1668 = vmatpush2.bf16.msra.mxu0 0
        %1669 = vmatprep.subr.bf16.mxu0 0
        %1670 = vmatpush2.bf16.msra.mxu0 0
        %1671 = vmatprep.subr.bf16.mxu0 0
        %1672 = vmatpush2.bf16.msra.mxu0 0
        %1673 = vmatprep.mubr.bf16.mxu0 0
        %1674 = vmatmul.mubr.bf16.gmra.mxu0 %v1222
        %v1675 = vpop.f32.mrf.mxu0
        %v1676 = vadd.f32 0.0, %v1675
        %v1677 = vpop.f32.mrf.mxu0
        %v1678 = vadd.f32 0.0, %v1677
        %v1679 = vpop.f32.mrf.mxu0
        %v1680 = vadd.f32 0.0, %v1679
        %v1681 = vpop.f32.mrf.mxu0
        %v1682 = vadd.f32 0.0, %v1681
        %1683 = vmatprep.mubr.bf16.mxu0 0
        %1684 = vmatmul.mubr.bf16.gmra.mxu0 %v1615
        %v1685 = vpop.f32.mrf.mxu0
        %v1686 = vadd.f32 0.0, %v1685
        %v1687 = vpop.f32.mrf.mxu0
        %v1688 = vadd.f32 0.0, %v1687
        %v1689 = vpop.f32.mrf.mxu0
        %v1690 = vadd.f32 0.0, %v1689
        %v1691 = vpop.f32.mrf.mxu0
        %v1692 = vadd.f32 0.0, %v1691
        %1693 = vdwg.mxu0
        %1694 = vmatprep.subr.bf16.mxu0 0
        %1695 = vmatpush1.bf16.msra.mxu0 0
        %1696 = vmatprep.subr.bf16.mxu0 0
        %1697 = vmatpush1.bf16.msra.mxu0 0
        %1698 = vmatprep.subr.bf16.mxu0 0
        %1699 = vmatpush1.bf16.msra.mxu0 0
        %1700 = vmatprep.subr.bf16.mxu0 0
        %1701 = vmatpush1.bf16.msra.mxu0 0
        %1702 = vmatprep.subr.bf16.mxu0 0
        %1703 = vmatpush1.bf16.msra.mxu0 0
        %1704 = vmatprep.subr.bf16.mxu0 %v1627
        %1705 = vmatpush1.bf16.msra.mxu0 %v1624
        %1706 = vmatprep.subr.bf16.mxu0 %v1585
        %1707 = vmatpush1.bf16.msra.mxu0 %v1584
        %1708 = vmatprep.subr.bf16.mxu0 %v1577
        %1709 = vmatpush1.bf16.msra.mxu0 %v1576
        %1710 = vmatprep.subr.bf16.mxu0 0
        %1711 = vmatpush2.bf16.msra.mxu0 0
        %1712 = vmatprep.subr.bf16.mxu0 0
        %1713 = vmatpush2.bf16.msra.mxu0 0
        %1714 = vmatprep.subr.bf16.mxu0 0
        %1715 = vmatpush2.bf16.msra.mxu0 0
        %1716 = vmatprep.subr.bf16.mxu0 0
        %1717 = vmatpush2.bf16.msra.mxu0 0
        %1718 = vmatprep.subr.bf16.mxu0 0
        %1719 = vmatpush2.bf16.msra.mxu0 0
        %1720 = vmatprep.subr.bf16.mxu0 0
        %1721 = vmatpush2.bf16.msra.mxu0 0
        %1722 = vmatprep.subr.bf16.mxu0 0
        %1723 = vmatpush2.bf16.msra.mxu0 0
        %1724 = vmatprep.subr.bf16.mxu0 0
        %1725 = vmatpush2.bf16.msra.mxu0 0
        %1726 = vmatprep.mubr.bf16.mxu0 0
        %1727 = vmatmul.mubr.bf16.gmra.mxu0 %v1222
        %v1728 = vpop.f32.mrf.mxu0
        %v1729 = vadd.f32 0.0, %v1728
        %v1730 = vpop.f32.mrf.mxu0
        %v1731 = vadd.f32 0.0, %v1730
        %v1732 = vpop.f32.mrf.mxu0
        %v1733 = vadd.f32 0.0, %v1732
        %v1734 = vpop.f32.mrf.mxu0
        %v1735 = vadd.f32 0.0, %v1734
        %1736 = vmatprep.mubr.bf16.mxu0 0
        %1737 = vmatmul.mubr.bf16.gmra.mxu0 %v1615
        %v1738 = vpop.f32.mrf.mxu0
        %v1739 = vadd.f32 0.0, %v1738
        %v1740 = vpop.f32.mrf.mxu0
        %v1741 = vadd.f32 0.0, %v1740
        %v1742 = vpop.f32.mrf.mxu0
        %v1743 = vadd.f32 0.0, %v1742
        %v1744 = vpop.f32.mrf.mxu0
        %v1745 = vadd.f32 0.0, %v1744
        %1746 = vdwg.mxu0
        %1747 = vmatprep.subr.bf16.mxu0 0
        %1748 = vmatpush1.bf16.msra.mxu0 0
        %1749 = vmatprep.subr.bf16.mxu0 0
        %1750 = vmatpush1.bf16.msra.mxu0 0
        %1751 = vmatprep.subr.bf16.mxu0 0
        %1752 = vmatpush1.bf16.msra.mxu0 0
        %1753 = vmatprep.subr.bf16.mxu0 0
        %1754 = vmatpush1.bf16.msra.mxu0 0
        %1755 = vmatprep.subr.bf16.mxu0 0
        %1756 = vmatpush1.bf16.msra.mxu0 0
        %1757 = vmatprep.subr.bf16.mxu0 %v1633
        %1758 = vmatpush1.bf16.msra.mxu0 %v1630
        %1759 = vmatprep.subr.bf16.mxu0 %v1587
        %1760 = vmatpush1.bf16.msra.mxu0 %v1586
        %1761 = vmatprep.subr.bf16.mxu0 %v1579
        %1762 = vmatpush1.bf16.msra.mxu0 %v1578
        %1763 = vmatprep.subr.bf16.mxu0 0
        %1764 = vmatpush2.bf16.msra.mxu0 0
        %1765 = vmatprep.subr.bf16.mxu0 0
        %1766 = vmatpush2.bf16.msra.mxu0 0
        %1767 = vmatprep.subr.bf16.mxu0 0
        %1768 = vmatpush2.bf16.msra.mxu0 0
        %1769 = vmatprep.subr.bf16.mxu0 0
        %1770 = vmatpush2.bf16.msra.mxu0 0
        %1771 = vmatprep.subr.bf16.mxu0 0
        %1772 = vmatpush2.bf16.msra.mxu0 0
        %1773 = vmatprep.subr.bf16.mxu0 0
        %1774 = vmatpush2.bf16.msra.mxu0 0
        %1775 = vmatprep.subr.bf16.mxu0 0
        %1776 = vmatpush2.bf16.msra.mxu0 0
        %1777 = vmatprep.subr.bf16.mxu0 0
        %1778 = vmatpush2.bf16.msra.mxu0 0
        %1779 = vmatprep.mubr.bf16.mxu0 0
        %1780 = vmatmul.mubr.bf16.gmra.mxu0 %v1222
        %v1781 = vpop.f32.mrf.mxu0
        %v1782 = vadd.f32 0.0, %v1781
        %v1783 = vpop.f32.mrf.mxu0
        %v1784 = vadd.f32 0.0, %v1783
        %v1785 = vpop.f32.mrf.mxu0
        %v1786 = vadd.f32 0.0, %v1785
        %v1787 = vpop.f32.mrf.mxu0
        %v1788 = vadd.f32 0.0, %v1787
        %1789 = vmatprep.mubr.bf16.mxu0 0
        %1790 = vmatmul.mubr.bf16.gmra.mxu0 %v1615
        %v1791 = vpop.f32.mrf.mxu0
        %v1792 = vadd.f32 0.0, %v1791
        %v1793 = vpop.f32.mrf.mxu0
        %v1794 = vadd.f32 0.0, %v1793
        %v1795 = vpop.f32.mrf.mxu0
        %v1796 = vadd.f32 0.0, %v1795
        %v1797 = vpop.f32.mrf.mxu0
        %v1798 = vadd.f32 0.0, %v1797
        %1799 = vdwg.mxu0
        %1800 = vmatprep.subr.bf16.mxu0 0
        %1801 = vmatpush1.bf16.msra.mxu0 0
        %1802 = vmatprep.subr.bf16.mxu0 0
        %1803 = vmatpush1.bf16.msra.mxu0 0
        %1804 = vmatprep.subr.bf16.mxu0 0
        %1805 = vmatpush1.bf16.msra.mxu0 0
        %1806 = vmatprep.subr.bf16.mxu0 0
        %1807 = vmatpush1.bf16.msra.mxu0 0
        %1808 = vmatprep.subr.bf16.mxu0 0
        %1809 = vmatpush1.bf16.msra.mxu0 0
        %1810 = vmatprep.subr.bf16.mxu0 %v1639
        %1811 = vmatpush1.bf16.msra.mxu0 %v1636
        %1812 = vmatprep.subr.bf16.mxu0 %v1589
        %1813 = vmatpush1.bf16.msra.mxu0 %v1588
        %1814 = vmatprep.subr.bf16.mxu0 %v1581
        %1815 = vmatpush1.bf16.msra.mxu0 %v1580
        %1816 = vmatprep.subr.bf16.mxu0 0
        %1817 = vmatpush2.bf16.msra.mxu0 0
        %1818 = vmatprep.subr.bf16.mxu0 0
        %1819 = vmatpush2.bf16.msra.mxu0 0
        %1820 = vmatprep.subr.bf16.mxu0 0
        %1821 = vmatpush2.bf16.msra.mxu0 0
        %1822 = vmatprep.subr.bf16.mxu0 0
        %1823 = vmatpush2.bf16.msra.mxu0 0
        %1824 = vmatprep.subr.bf16.mxu0 0
        %1825 = vmatpush2.bf16.msra.mxu0 0
        %1826 = vmatprep.subr.bf16.mxu0 0
        %1827 = vmatpush2.bf16.msra.mxu0 0
        %1828 = vmatprep.subr.bf16.mxu0 0
        %1829 = vmatpush2.bf16.msra.mxu0 0
        %1830 = vmatprep.subr.bf16.mxu0 0
        %1831 = vmatpush2.bf16.msra.mxu0 0
        %1832 = vmatprep.mubr.bf16.mxu0 0
        %1833 = vmatmul.mubr.bf16.gmra.mxu0 %v1222
        %v1834 = vpop.f32.mrf.mxu0
        %v1835 = vadd.f32 0.0, %v1834
        %v1836 = vpop.f32.mrf.mxu0
        %v1837 = vadd.f32 0.0, %v1836
        %v1838 = vpop.f32.mrf.mxu0
        %v1839 = vadd.f32 0.0, %v1838
        %v1840 = vpop.f32.mrf.mxu0
        %v1841 = vadd.f32 0.0, %v1840
        %1842 = vmatprep.mubr.bf16.mxu0 0
        %1843 = vmatmul.mubr.bf16.gmra.mxu0 %v1615
        %v1844 = vpop.f32.mrf.mxu0
        %v1845 = vadd.f32 0.0, %v1844
        %v1846 = vpop.f32.mrf.mxu0
        %v1847 = vadd.f32 0.0, %v1846
        %v1848 = vpop.f32.mrf.mxu0
        %v1849 = vadd.f32 0.0, %v1848
        %v1850 = vpop.f32.mrf.mxu0
        %v1851 = vadd.f32 0.0, %v1850
        %1852 = vdwg.mxu0
        %v1853 = vadd.f32 %v1460, %v1676
        %v1854 = vadd.f32 %v1461, %v1678
        %v1855 = vadd.f32 %v1462, %v1729
        %v1856 = vadd.f32 %v1463, %v1731
        %v1857 = vadd.f32 %v1464, %v1782
        %v1858 = vadd.f32 %v1465, %v1784
        %v1859 = vadd.f32 %v1466, %v1835
        %v1860 = vadd.f32 %v1467, %v1837
        %v1861 = vadd.f32 %v1468, %v1680
        %v1862 = vadd.f32 %v1469, %v1682
        %v1863 = vadd.f32 %v1470, %v1733
        %v1864 = vadd.f32 %v1471, %v1735
        %v1865 = vadd.f32 %v1472, %v1786
        %v1866 = vadd.f32 %v1473, %v1788
        %v1867 = vadd.f32 %v1474, %v1839
        %v1868 = vadd.f32 %v1475, %v1841
        %v1869 = vadd.f32 %v1476, %v1686
        %v1870 = vadd.f32 %v1477, %v1688
        %v1871 = vadd.f32 %v1478, %v1739
        %v1872 = vadd.f32 %v1479, %v1741
        %v1873 = vadd.f32 %v1480, %v1792
        %v1874 = vadd.f32 %v1481, %v1794
        %v1875 = vadd.f32 %v1482, %v1845
        %v1876 = vadd.f32 %v1483, %v1847
        %v1877 = vadd.f32 %v1484, %v1690
        %v1878 = vadd.f32 %v1485, %v1692
        %v1879 = vadd.f32 %v1486, %v1743
        %v1880 = vadd.f32 %v1487, %v1745
        %v1881 = vadd.f32 %v1488, %v1796
        %v1882 = vadd.f32 %v1489, %v1798
        %v1883 = vadd.f32 %v1490, %v1849
        %v1884 = vadd.f32 %v1491, %v1851
        %v1885 = vpack.c.bf16 %v371, %v369
        %s1886 = scalar_lea.vmem [#allocation3], 640
        %v1887 = vld [vmem:[%s1886] sm:$0xff]
        %v1888 = vld [vmem:[%s1886 + $0x8] sm:$0xff]
        %v1889 = vld [vmem:[%s1886 + $0x10] sm:$0xff]
        %v1890 = vld [vmem:[%s1886 + $0x18] sm:$0xff]
        %v1891 = vld [vmem:[%s1886 + $0x20] sm:$0xff]
        %v1892 = vld [vmem:[%s1886 + $0x28] sm:$0xff]
        %v1893 = vld [vmem:[%s1886 + $0x30] sm:$0xff]
        %v1894 = vld [vmem:[%s1886 + $0x38] sm:$0xff]
        %v1895 = vld [vmem:[%s1886 + $0x40] sm:$0xff]
        %v1896 = vld [vmem:[%s1886 + $0x48] sm:$0xff]
        %v1897 = vld [vmem:[%s1886 + $0x50] sm:$0xff]
        %v1898 = vld [vmem:[%s1886 + $0x58] sm:$0xff]
        %v1899 = vld [vmem:[%s1886 + $0x60] sm:$0xff]
        %v1900 = vld [vmem:[%s1886 + $0x68] sm:$0xff]
        %v1901 = vld [vmem:[%s1886 + $0x70] sm:$0xff]
        %v1902 = vld [vmem:[%s1886 + $0x78] sm:$0xff]
        %v1903 = vld [vmem:[%s1886 + $0x80] sm:$0x33]
        %v1904 = vld [vmem:[%s1886 + $0x88] sm:$0x33]
        %v1905 = vld [vmem:[%s1886 + $0x90] sm:$0x33]
        %v1906 = vld [vmem:[%s1886 + $0x98] sm:$0x33]
        %v1927 = vunpack.c.l.b16 %v1887
        %v1928 = vunpack.c.h.b16 %v1887
        %v1929 = vunpack.c.l.b16 %v1888
        %v1930 = vunpack.c.h.b16 %v1888
        %v1931 = vunpack.c.l.b16 %v1889
        %v1932 = vunpack.c.h.b16 %v1889
        %v1933 = vunpack.c.l.b16 %v1890
        %v1934 = vunpack.c.h.b16 %v1890
        %v1935 = vunpack.c.l.b16 %v1891
        %v1936 = vunpack.c.h.b16 %v1891
        %v1937 = vunpack.c.l.b16 %v1892
        %v1938 = vunpack.c.h.b16 %v1892
        %v1939 = vunpack.c.l.b16 %v1893
        %v1940 = vunpack.c.h.b16 %v1893
        %v1941 = vunpack.c.l.b16 %v1894
        %v1942 = vunpack.c.h.b16 %v1894
        %v1943 = vunpack.c.l.b16 %v1895
        %v1944 = vunpack.c.h.b16 %v1895
        %v1945 = vunpack.c.l.b16 %v1896
        %v1946 = vunpack.c.h.b16 %v1896
        %v1947 = vunpack.c.l.b16 %v1897
        %v1948 = vunpack.c.h.b16 %v1897
        %v1949 = vunpack.c.l.b16 %v1898
        %v1950 = vunpack.c.h.b16 %v1898
        %v1951 = vunpack.c.l.b16 %v1899
        %v1952 = vunpack.c.h.b16 %v1899
        %v1953 = vunpack.c.l.b16 %v1900
        %v1954 = vunpack.c.h.b16 %v1900
        %v1955 = vunpack.c.l.b16 %v1901
        %v1956 = vunpack.c.h.b16 %v1901
        %v1957 = vunpack.c.l.b16 %v1902
        %v1958 = vunpack.c.h.b16 %v1902
        %v1959 = vunpack.c.l.b16 %v1903
        %v1960 = vunpack.c.h.b16 %v1903
        %v1961 = vunpack.c.l.b16 %v1904
        %v1962 = vunpack.c.h.b16 %v1904
        %v1963 = vunpack.c.l.b16 %v1905
        %v1964 = vunpack.c.h.b16 %v1905
        %v1965 = vunpack.c.l.b16 %v1906
        %v1966 = vunpack.c.h.b16 %v1906
        %v1967 = vpack.c.b16 %v1935, %v1927
        %v1968 = vpack.c.b16 %v1936, %v1928
        %v1969 = vpack.c.b16 %v1937, %v1929
        %v1970 = vpack.c.b16 %v1938, %v1930
        %v1971 = vpack.c.b16 %v1939, %v1931
        %v1972 = vpack.c.b16 %v1940, %v1932
        %v1973 = vpack.c.b16 %v1941, %v1933
        %v1974 = vpack.c.b16 %v1942, %v1934
        %v1975 = vpack.c.b16 %v1951, %v1943
        %v1976 = vpack.c.b16 %v1952, %v1944
        %v1977 = vpack.c.b16 %v1953, %v1945
        %v1978 = vpack.c.b16 %v1954, %v1946
        %v1979 = vpack.c.b16 %v1955, %v1947
        %v1980 = vpack.c.b16 %v1956, %v1948
        %v1981 = vpack.c.b16 %v1957, %v1949
        %v1982 = vpack.c.b16 %v1958, %v1950
        %v1983 = vpack.c.b16 %v1959, %v1959
        %v1984 = vpack.c.b16 %v1960, %v1960
        %v1985 = vpack.c.b16 %v1961, %v1961
        %v1986 = vpack.c.b16 %v1962, %v1962
        %v1987 = vpack.c.b16 %v1963, %v1963
        %v1988 = vpack.c.b16 %v1964, %v1964
        %v1989 = vpack.c.b16 %v1965, %v1965
        %v1990 = vpack.c.b16 %v1966, %v1966
        %v2008 = vsel %vm516, %v1885, 0
        %v2011 = vsel %vm523, %v1983, 0
        %v2014 = vsel %vm523, %v1984, 0
        %v2017 = vsel %vm523, %v1985, 0
        %v2020 = vsel %vm523, %v1986, 0
        %v2023 = vsel %vm523, %v1987, 0
        %v2026 = vsel %vm523, %v1988, 0
        %v2029 = vsel %vm523, %v1989, 0
        %v2032 = vsel %vm523, %v1990, 0
        %2034 = vmatprep.subr.bf16.mxu0 0
        %2035 = vmatpush1.bf16.msra.mxu0 0
        %2036 = vmatprep.subr.bf16.mxu0 0
        %2037 = vmatpush1.bf16.msra.mxu0 0
        %2038 = vmatprep.subr.bf16.mxu0 0
        %2039 = vmatpush1.bf16.msra.mxu0 0
        %2040 = vmatprep.subr.bf16.mxu0 0
        %2041 = vmatpush1.bf16.msra.mxu0 0
        %2042 = vmatprep.subr.bf16.mxu0 0
        %2043 = vmatpush1.bf16.msra.mxu0 0
        %2044 = vmatprep.subr.bf16.mxu0 %v2014
        %2045 = vmatpush1.bf16.msra.mxu0 %v2011
        %2046 = vmatprep.subr.bf16.mxu0 %v1976
        %2047 = vmatpush1.bf16.msra.mxu0 %v1975
        %2048 = vmatprep.subr.bf16.mxu0 %v1968
        %2049 = vmatpush1.bf16.msra.mxu0 %v1967
        %2050 = vmatprep.subr.bf16.mxu0 0
        %2051 = vmatpush2.bf16.msra.mxu0 0
        %2052 = vmatprep.subr.bf16.mxu0 0
        %2053 = vmatpush2.bf16.msra.mxu0 0
        %2054 = vmatprep.subr.bf16.mxu0 0
        %2055 = vmatpush2.bf16.msra.mxu0 0
        %2056 = vmatprep.subr.bf16.mxu0 0
        %2057 = vmatpush2.bf16.msra.mxu0 0
        %2058 = vmatprep.subr.bf16.mxu0 0
        %2059 = vmatpush2.bf16.msra.mxu0 0
        %2060 = vmatprep.subr.bf16.mxu0 0
        %2061 = vmatpush2.bf16.msra.mxu0 0
        %2062 = vmatprep.subr.bf16.mxu0 0
        %2063 = vmatpush2.bf16.msra.mxu0 0
        %2064 = vmatprep.subr.bf16.mxu0 0
        %2065 = vmatpush2.bf16.msra.mxu0 0
        %2066 = vmatprep.mubr.bf16.mxu0 0
        %2067 = vmatmul.mubr.bf16.gmra.mxu0 %v1615
        %v2068 = vpop.f32.mrf.mxu0
        %v2069 = vadd.f32 0.0, %v2068
        %v2070 = vpop.f32.mrf.mxu0
        %v2071 = vadd.f32 0.0, %v2070
        %v2072 = vpop.f32.mrf.mxu0
        %v2073 = vadd.f32 0.0, %v2072
        %v2074 = vpop.f32.mrf.mxu0
        %v2075 = vadd.f32 0.0, %v2074
        %2076 = vmatprep.mubr.bf16.mxu0 0
        %2077 = vmatmul.mubr.bf16.gmra.mxu0 %v2008
        %v2078 = vpop.f32.mrf.mxu0
        %v2079 = vadd.f32 0.0, %v2078
        %v2080 = vpop.f32.mrf.mxu0
        %v2081 = vadd.f32 0.0, %v2080
        %v2082 = vpop.f32.mrf.mxu0
        %v2083 = vadd.f32 0.0, %v2082
        %v2084 = vpop.f32.mrf.mxu0
        %v2085 = vadd.f32 0.0, %v2084
        %2086 = vdwg.mxu0
        %2087 = vmatprep.subr.bf16.mxu0 0
        %2088 = vmatpush1.bf16.msra.mxu0 0
        %2089 = vmatprep.subr.bf16.mxu0 0
        %2090 = vmatpush1.bf16.msra.mxu0 0
        %2091 = vmatprep.subr.bf16.mxu0 0
        %2092 = vmatpush1.bf16.msra.mxu0 0
        %2093 = vmatprep.subr.bf16.mxu0 0
        %2094 = vmatpush1.bf16.msra.mxu0 0
        %2095 = vmatprep.subr.bf16.mxu0 0
        %2096 = vmatpush1.bf16.msra.mxu0 0
        %2097 = vmatprep.subr.bf16.mxu0 %v2020
        %2098 = vmatpush1.bf16.msra.mxu0 %v2017
        %2099 = vmatprep.subr.bf16.mxu0 %v1978
        %2100 = vmatpush1.bf16.msra.mxu0 %v1977
        %2101 = vmatprep.subr.bf16.mxu0 %v1970
        %2102 = vmatpush1.bf16.msra.mxu0 %v1969
        %2103 = vmatprep.subr.bf16.mxu0 0
        %2104 = vmatpush2.bf16.msra.mxu0 0
        %2105 = vmatprep.subr.bf16.mxu0 0
        %2106 = vmatpush2.bf16.msra.mxu0 0
        %2107 = vmatprep.subr.bf16.mxu0 0
        %2108 = vmatpush2.bf16.msra.mxu0 0
        %2109 = vmatprep.subr.bf16.mxu0 0
        %2110 = vmatpush2.bf16.msra.mxu0 0
        %2111 = vmatprep.subr.bf16.mxu0 0
        %2112 = vmatpush2.bf16.msra.mxu0 0
        %2113 = vmatprep.subr.bf16.mxu0 0
        %2114 = vmatpush2.bf16.msra.mxu0 0
        %2115 = vmatprep.subr.bf16.mxu0 0
        %2116 = vmatpush2.bf16.msra.mxu0 0
        %2117 = vmatprep.subr.bf16.mxu0 0
        %2118 = vmatpush2.bf16.msra.mxu0 0
        %2119 = vmatprep.mubr.bf16.mxu0 0
        %2120 = vmatmul.mubr.bf16.gmra.mxu0 %v1615
        %v2121 = vpop.f32.mrf.mxu0
        %v2122 = vadd.f32 0.0, %v2121
        %v2123 = vpop.f32.mrf.mxu0
        %v2124 = vadd.f32 0.0, %v2123
        %v2125 = vpop.f32.mrf.mxu0
        %v2126 = vadd.f32 0.0, %v2125
        %v2127 = vpop.f32.mrf.mxu0
        %v2128 = vadd.f32 0.0, %v2127
        %2129 = vmatprep.mubr.bf16.mxu0 0
        %2130 = vmatmul.mubr.bf16.gmra.mxu0 %v2008
        %v2131 = vpop.f32.mrf.mxu0
        %v2132 = vadd.f32 0.0, %v2131
        %v2133 = vpop.f32.mrf.mxu0
        %v2134 = vadd.f32 0.0, %v2133
        %v2135 = vpop.f32.mrf.mxu0
        %v2136 = vadd.f32 0.0, %v2135
        %v2137 = vpop.f32.mrf.mxu0
        %v2138 = vadd.f32 0.0, %v2137
        %2139 = vdwg.mxu0
        %2140 = vmatprep.subr.bf16.mxu0 0
        %2141 = vmatpush1.bf16.msra.mxu0 0
        %2142 = vmatprep.subr.bf16.mxu0 0
        %2143 = vmatpush1.bf16.msra.mxu0 0
        %2144 = vmatprep.subr.bf16.mxu0 0
        %2145 = vmatpush1.bf16.msra.mxu0 0
        %2146 = vmatprep.subr.bf16.mxu0 0
        %2147 = vmatpush1.bf16.msra.mxu0 0
        %2148 = vmatprep.subr.bf16.mxu0 0
        %2149 = vmatpush1.bf16.msra.mxu0 0
        %2150 = vmatprep.subr.bf16.mxu0 %v2026
        %2151 = vmatpush1.bf16.msra.mxu0 %v2023
        %2152 = vmatprep.subr.bf16.mxu0 %v1980
        %2153 = vmatpush1.bf16.msra.mxu0 %v1979
        %2154 = vmatprep.subr.bf16.mxu0 %v1972
        %2155 = vmatpush1.bf16.msra.mxu0 %v1971
        %2156 = vmatprep.subr.bf16.mxu0 0
        %2157 = vmatpush2.bf16.msra.mxu0 0
        %2158 = vmatprep.subr.bf16.mxu0 0
        %2159 = vmatpush2.bf16.msra.mxu0 0
        %2160 = vmatprep.subr.bf16.mxu0 0
        %2161 = vmatpush2.bf16.msra.mxu0 0
        %2162 = vmatprep.subr.bf16.mxu0 0
        %2163 = vmatpush2.bf16.msra.mxu0 0
        %2164 = vmatprep.subr.bf16.mxu0 0
        %2165 = vmatpush2.bf16.msra.mxu0 0
        %2166 = vmatprep.subr.bf16.mxu0 0
        %2167 = vmatpush2.bf16.msra.mxu0 0
        %2168 = vmatprep.subr.bf16.mxu0 0
        %2169 = vmatpush2.bf16.msra.mxu0 0
        %2170 = vmatprep.subr.bf16.mxu0 0
        %2171 = vmatpush2.bf16.msra.mxu0 0
        %2172 = vmatprep.mubr.bf16.mxu0 0
        %2173 = vmatmul.mubr.bf16.gmra.mxu0 %v1615
        %v2174 = vpop.f32.mrf.mxu0
        %v2175 = vadd.f32 0.0, %v2174
        %v2176 = vpop.f32.mrf.mxu0
        %v2177 = vadd.f32 0.0, %v2176
        %v2178 = vpop.f32.mrf.mxu0
        %v2179 = vadd.f32 0.0, %v2178
        %v2180 = vpop.f32.mrf.mxu0
        %v2181 = vadd.f32 0.0, %v2180
        %2182 = vmatprep.mubr.bf16.mxu0 0
        %2183 = vmatmul.mubr.bf16.gmra.mxu0 %v2008
        %v2184 = vpop.f32.mrf.mxu0
        %v2185 = vadd.f32 0.0, %v2184
        %v2186 = vpop.f32.mrf.mxu0
        %v2187 = vadd.f32 0.0, %v2186
        %v2188 = vpop.f32.mrf.mxu0
        %v2189 = vadd.f32 0.0, %v2188
        %v2190 = vpop.f32.mrf.mxu0
        %v2191 = vadd.f32 0.0, %v2190
        %2192 = vdwg.mxu0
        %2193 = vmatprep.subr.bf16.mxu0 0
        %2194 = vmatpush1.bf16.msra.mxu0 0
        %2195 = vmatprep.subr.bf16.mxu0 0
        %2196 = vmatpush1.bf16.msra.mxu0 0
        %2197 = vmatprep.subr.bf16.mxu0 0
        %2198 = vmatpush1.bf16.msra.mxu0 0
        %2199 = vmatprep.subr.bf16.mxu0 0
        %2200 = vmatpush1.bf16.msra.mxu0 0
        %2201 = vmatprep.subr.bf16.mxu0 0
        %2202 = vmatpush1.bf16.msra.mxu0 0
        %2203 = vmatprep.subr.bf16.mxu0 %v2032
        %2204 = vmatpush1.bf16.msra.mxu0 %v2029
        %2205 = vmatprep.subr.bf16.mxu0 %v1982
        %2206 = vmatpush1.bf16.msra.mxu0 %v1981
        %2207 = vmatprep.subr.bf16.mxu0 %v1974
        %2208 = vmatpush1.bf16.msra.mxu0 %v1973
        %2209 = vmatprep.subr.bf16.mxu0 0
        %2210 = vmatpush2.bf16.msra.mxu0 0
        %2211 = vmatprep.subr.bf16.mxu0 0
        %2212 = vmatpush2.bf16.msra.mxu0 0
        %2213 = vmatprep.subr.bf16.mxu0 0
        %2214 = vmatpush2.bf16.msra.mxu0 0
        %2215 = vmatprep.subr.bf16.mxu0 0
        %2216 = vmatpush2.bf16.msra.mxu0 0
        %2217 = vmatprep.subr.bf16.mxu0 0
        %2218 = vmatpush2.bf16.msra.mxu0 0
        %2219 = vmatprep.subr.bf16.mxu0 0
        %2220 = vmatpush2.bf16.msra.mxu0 0
        %2221 = vmatprep.subr.bf16.mxu0 0
        %2222 = vmatpush2.bf16.msra.mxu0 0
        %2223 = vmatprep.subr.bf16.mxu0 0
        %2224 = vmatpush2.bf16.msra.mxu0 0
        %2225 = vmatprep.mubr.bf16.mxu0 0
        %2226 = vmatmul.mubr.bf16.gmra.mxu0 %v1615
        %v2227 = vpop.f32.mrf.mxu0
        %v2228 = vadd.f32 0.0, %v2227
        %v2229 = vpop.f32.mrf.mxu0
        %v2230 = vadd.f32 0.0, %v2229
        %v2231 = vpop.f32.mrf.mxu0
        %v2232 = vadd.f32 0.0, %v2231
        %v2233 = vpop.f32.mrf.mxu0
        %v2234 = vadd.f32 0.0, %v2233
        %2235 = vmatprep.mubr.bf16.mxu0 0
        %2236 = vmatmul.mubr.bf16.gmra.mxu0 %v2008
        %v2237 = vpop.f32.mrf.mxu0
        %v2238 = vadd.f32 0.0, %v2237
        %v2239 = vpop.f32.mrf.mxu0
        %v2240 = vadd.f32 0.0, %v2239
        %v2241 = vpop.f32.mrf.mxu0
        %v2242 = vadd.f32 0.0, %v2241
        %v2243 = vpop.f32.mrf.mxu0
        %v2244 = vadd.f32 0.0, %v2243
        %2245 = vdwg.mxu0
        %v2246 = vadd.f32 %v1853, %v2069
        %v2247 = vadd.f32 %v1854, %v2071
        %v2248 = vadd.f32 %v1855, %v2122
        %v2249 = vadd.f32 %v1856, %v2124
        %v2250 = vadd.f32 %v1857, %v2175
        %v2251 = vadd.f32 %v1858, %v2177
        %v2252 = vadd.f32 %v1859, %v2228
        %v2253 = vadd.f32 %v1860, %v2230
        %v2254 = vadd.f32 %v1861, %v2073
        %v2255 = vadd.f32 %v1862, %v2075
        %v2256 = vadd.f32 %v1863, %v2126
        %v2257 = vadd.f32 %v1864, %v2128
        %v2258 = vadd.f32 %v1865, %v2179
        %v2259 = vadd.f32 %v1866, %v2181
        %v2260 = vadd.f32 %v1867, %v2232
        %v2261 = vadd.f32 %v1868, %v2234
        %v2262 = vadd.f32 %v1869, %v2079
        %v2263 = vadd.f32 %v1870, %v2081
        %v2264 = vadd.f32 %v1871, %v2132
        %v2265 = vadd.f32 %v1872, %v2134
        %v2266 = vadd.f32 %v1873, %v2185
        %v2267 = vadd.f32 %v1874, %v2187
        %v2268 = vadd.f32 %v1875, %v2238
        %v2269 = vadd.f32 %v1876, %v2240
        %v2270 = vadd.f32 %v1877, %v2083
        %v2271 = vadd.f32 %v1878, %v2085
        %v2272 = vadd.f32 %v1879, %v2136
        %v2273 = vadd.f32 %v1880, %v2138
        %v2274 = vadd.f32 %v1881, %v2189
        %v2275 = vadd.f32 %v1882, %v2191
        %v2276 = vadd.f32 %v1883, %v2242
        %v2277 = vadd.f32 %v1884, %v2244
        %v2278 = vmax.f32 %v2246, %v2262
        %v2279 = vmax.f32 %v2247, %v2263
        %v2280 = vmax.f32 %v2248, %v2264
        %v2281 = vmax.f32 %v2249, %v2265
        %v2282 = vmax.f32 %v2250, %v2266
        %v2283 = vmax.f32 %v2251, %v2267
        %v2284 = vmax.f32 %v2252, %v2268
        %v2285 = vmax.f32 %v2253, %v2269
        %v2286 = vmax.f32 %v2254, %v2270
        %v2287 = vmax.f32 %v2255, %v2271
        %v2288 = vmax.f32 %v2256, %v2272
        %v2289 = vmax.f32 %v2257, %v2273
        %v2290 = vmax.f32 %v2258, %v2274
        %v2291 = vmax.f32 %v2259, %v2275
        %v2292 = vmax.f32 %v2260, %v2276
        %v2293 = vmax.f32 %v2261, %v2277
        %v2294 = vmax.f32 %v2278, %v2282
        %v2295 = vmax.f32 %v2279, %v2283
        %v2296 = vmax.f32 %v2280, %v2284
        %v2297 = vmax.f32 %v2281, %v2285
        %v2298 = vmax.f32 %v2286, %v2290
        %v2299 = vmax.f32 %v2287, %v2291
        %v2300 = vmax.f32 %v2288, %v2292
        %v2301 = vmax.f32 %v2289, %v2293
        %v2302 = vld [vmem:[%s2] sm:$0xf]
        %v2304 = vlaneseq
        %v2305 = vshrl.u32 %v2304, 7
        %v2306 = vsub.s32 0, %v2305
        %v2307 = vrot.slane %v2302, %v2306
        %v2308 = vlaneseq
        %v2309 = vshrl.u32 %v2308, 7
        %v2310 = vsub.s32 1, %v2309
        %v2311 = vrot.slane %v2302, %v2310
        %v2312 = vlaneseq
        %v2313 = vshrl.u32 %v2312, 7
        %v2314 = vsub.s32 2, %v2313
        %v2315 = vrot.slane %v2302, %v2314
        %v2316 = vlaneseq
        %v2317 = vshrl.u32 %v2316, 7
        %v2318 = vsub.s32 3, %v2317
        %v2319 = vrot.slane %v2302, %v2318
        %v2324 = vadd.f32 %v2294, %v2307
        %v2325 = vadd.f32 %v2295, %v2311
        %v2326 = vadd.f32 %v2296, %v2315
        %v2327 = vadd.f32 %v2297, %v2319
        %v2328 = vadd.f32 %v2298, %v2307
        %v2329 = vadd.f32 %v2299, %v2311
        %v2330 = vadd.f32 %v2300, %v2315
        %v2331 = vadd.f32 %v2301, %v2319
        %v2332 = vmax.f32 %v2324, 0.0
        %v2333 = vmax.f32 %v2325, 0.0
        %v2334 = vmax.f32 %v2326, 0.0
        %v2335 = vmax.f32 %v2327, 0.0
        %v2336 = vmax.f32 %v2328, 0.0
        %v2337 = vmax.f32 %v2329, 0.0
        %v2338 = vmax.f32 %v2330, 0.0
        %v2339 = vmax.f32 %v2331, 0.0
        %2340 = vst [vmem:[#allocation2] sm:$0xff] 0.0
        %2341 = vst [vmem:[#allocation2 + $0x8] sm:$0xff] 0.0
        %2342 = vst [vmem:[#allocation2 + $0x10] sm:$0xff] 0.0
        %2343 = vst [vmem:[#allocation2 + $0x18] sm:$0xff] 0.0
        %2344 = vst [vmem:[#allocation2 + $0x20] sm:$0xff] 0.0
        %2345 = vst [vmem:[#allocation2 + $0x28] sm:$0x3] 0.0
        %2346 = vst [vmem:[#allocation2 + $0x30] sm:$0x3] 0.0
        %2347 = vst [vmem:[#allocation2 + $0x38] sm:$0x3] 0.0
        %2348 = vst [vmem:[#allocation2 + $0x40] sm:$0x3] 0.0
        %2349 = vst [vmem:[#allocation2 + $0x48] sm:$0x3] 0.0
        %2350 = vst [vmem:[#allocation2 + $0x50] sm:$0xff] 0.0
        %2351 = vst [vmem:[#allocation2 + $0x58] sm:$0xff] 0.0
        %2352 = vst [vmem:[#allocation2 + $0x60] sm:$0xff] 0.0
        %2353 = vst [vmem:[#allocation2 + $0x68] sm:$0xff] 0.0
        %2354 = vst [vmem:[#allocation2 + $0x70] sm:$0xff] 0.0
        %2355 = vst [vmem:[#allocation2 + $0x78] sm:$0x3] 0.0
        %2356 = vst [vmem:[#allocation2 + $0x80] sm:$0x3] 0.0
        %2357 = vst [vmem:[#allocation2 + $0x88] sm:$0x3] 0.0
        %2358 = vst [vmem:[#allocation2 + $0x90] sm:$0x3] 0.0
        %2359 = vst [vmem:[#allocation2 + $0x98] sm:$0x3] 0.0
        %v2364 = vrot.slane %v2332, 7
        %v2365 = vrot.slane %v2333, 7
        %v2366 = vrot.slane %v2334, 7
        %v2367 = vrot.slane %v2335, 7
        %2368 = vrot.lane.b32.xlu0 %v2364, 64
        %v2369 = vpop.permute.xlu0 %2368
        %2370 = vrot.lane.b32.xlu0 %v2365, 64
        %v2371 = vpop.permute.xlu0 %2370
        %2372 = vrot.lane.b32.xlu0 %v2366, 64
        %v2373 = vpop.permute.xlu0 %2372
        %2374 = vrot.lane.b32.xlu0 %v2367, 64
        %v2375 = vpop.permute.xlu0 %2374
        %vm2376 = vcmask 523264
        %v2377 = vsel %vm2376, %v2369, %v2371
        %v2378 = vsel %vm2376, %v2371, %v2373
        %v2379 = vsel %vm2376, %v2373, %v2375
        %vm2385 = vcmask 1048065
        %2386 = vst.msk [vmem:[#allocation2] sm:$0xfe] %vm2385, %v2369
        %2387 = vst [vmem:[#allocation2 + $0x8] sm:$0xfe] %v2377
        %2388 = vst [vmem:[#allocation2 + $0x10] sm:$0xfe] %v2378
        %2389 = vst [vmem:[#allocation2 + $0x18] sm:$0xfe] %v2379
        %vm2390 = vcmask 523265
        %2391 = vst.msk [vmem:[#allocation2 + $0x20] sm:$0xfe] %vm2390, %v2375
        %vm2392 = vcmask 1040896
        %2393 = vst.msk [vmem:[#allocation2 + $0x28] sm:$0x1] %vm2392, %v2369
        %2394 = vst [vmem:[#allocation2 + $0x30] sm:$0x1] %v2377
        %2395 = vst [vmem:[#allocation2 + $0x38] sm:$0x1] %v2378
        %2396 = vst [vmem:[#allocation2 + $0x40] sm:$0x1] %v2379
        %vm2397 = vcmask 516096
        %2398 = vst.msk [vmem:[#allocation2 + $0x48] sm:$0x1] %vm2397, %v2375
        %v2403 = vrot.slane %v2336, 7
        %v2404 = vrot.slane %v2337, 7
        %v2405 = vrot.slane %v2338, 7
        %v2406 = vrot.slane %v2339, 7
        %2407 = vrot.lane.b32.xlu0 %v2403, 64
        %v2408 = vpop.permute.xlu0 %2407
        %2409 = vrot.lane.b32.xlu0 %v2404, 64
        %v2410 = vpop.permute.xlu0 %2409
        %2411 = vrot.lane.b32.xlu0 %v2405, 64
        %v2412 = vpop.permute.xlu0 %2411
        %2413 = vrot.lane.b32.xlu0 %v2406, 64
        %v2414 = vpop.permute.xlu0 %2413
        %v2415 = vsel %vm2376, %v2408, %v2410
        %v2416 = vsel %vm2376, %v2410, %v2412
        %v2417 = vsel %vm2376, %v2412, %v2414
        %s2423 = scalar_lea.vmem [#allocation2], 80
        %2424 = vst.msk [vmem:[%s2423] sm:$0xfe] %vm2385, %v2408
        %2425 = vst [vmem:[%s2423 + $0x8] sm:$0xfe] %v2415
        %2426 = vst [vmem:[%s2423 + $0x10] sm:$0xfe] %v2416
        %2427 = vst [vmem:[%s2423 + $0x18] sm:$0xfe] %v2417
        %2428 = vst.msk [vmem:[%s2423 + $0x20] sm:$0xfe] %vm2390, %v2414
        %2429 = vst.msk [vmem:[%s2423 + $0x28] sm:$0x1] %vm2392, %v2408
        %2430 = vst [vmem:[%s2423 + $0x30] sm:$0x1] %v2415
        %2431 = vst [vmem:[%s2423 + $0x38] sm:$0x1] %v2416
        %2432 = vst [vmem:[%s2423 + $0x40] sm:$0x1] %v2417
        %2433 = vst.msk [vmem:[%s2423 + $0x48] sm:$0x1] %vm2397, %v2414
        %v2434 = vld [vmem:[#allocation2] sm:$0xff]
        %v2435 = vld [vmem:[#allocation2 + $0x8] sm:$0xff]
        %v2436 = vld [vmem:[%s2423] sm:$0xff]
        %v2437 = vld [vmem:[%s2423 + $0x8] sm:$0xff]
        %v2438 = vld [vmem:[#allocation2] sm:$0xfe]
        %v2439 = vld [vmem:[#allocation2 + $0x8] sm:$0xfe]
        %v2440 = vld [vmem:[#allocation2 + $0x28] sm:$0x1]
        %v2441 = vld [vmem:[#allocation2 + $0x30] sm:$0x1]
        %v2442 = vld [vmem:[%s2423] sm:$0xfe]
        %v2443 = vld [vmem:[%s2423 + $0x8] sm:$0xfe]
        %v2444 = vld [vmem:[%s2423 + $0x28] sm:$0x1]
        %v2445 = vld [vmem:[%s2423 + $0x30] sm:$0x1]
        %v2446 = vld [vmem:[#allocation2] sm:$0xfc]
        %v2447 = vld [vmem:[#allocation2 + $0x8] sm:$0xfc]
        %v2448 = vld [vmem:[#allocation2 + $0x28] sm:$0x3]
        %v2449 = vld [vmem:[#allocation2 + $0x30] sm:$0x3]
        %v2450 = vld [vmem:[%s2423] sm:$0xfc]
        %v2451 = vld [vmem:[%s2423 + $0x8] sm:$0xfc]
        %v2452 = vld [vmem:[%s2423 + $0x28] sm:$0x3]
        %v2453 = vld [vmem:[%s2423 + $0x30] sm:$0x3]
        %vm2458 = vcmask 1046528
        %v2459 = vrot.slane %v2438, 1
        %v2460 = vrot.slane %v2440, 1
        %v2461 = vsel %vm2458, %v2459, %v2460
        %v2462 = vrot.slane %v2439, 1
        %v2463 = vrot.slane %v2441, 1
        %v2464 = vsel %vm2458, %v2462, %v2463
        %v2471 = vrot.slane %v2442, 1
        %v2472 = vrot.slane %v2444, 1
        %v2473 = vsel %vm2458, %v2471, %v2472
        %v2474 = vrot.slane %v2443, 1
        %v2475 = vrot.slane %v2445, 1
        %v2476 = vsel %vm2458, %v2474, %v2475
        %vm2483 = vcmask 1045504
        %v2484 = vrot.slane %v2446, 2
        %v2485 = vrot.slane %v2448, 2
        %v2486 = vsel %vm2483, %v2484, %v2485
        %v2487 = vrot.slane %v2447, 2
        %v2488 = vrot.slane %v2449, 2
        %v2489 = vsel %vm2483, %v2487, %v2488
        %v2496 = vrot.slane %v2450, 2
        %v2497 = vrot.slane %v2452, 2
        %v2498 = vsel %vm2483, %v2496, %v2497
        %v2499 = vrot.slane %v2451, 2
        %v2500 = vrot.slane %v2453, 2
        %v2501 = vsel %vm2483, %v2499, %v2500
        %v2504 = vpack.c.bf16 %v2436, %v2434
        %v2505 = vpack.c.bf16 %v2437, %v2435
        %v2506 = vpack.c.bf16 %v2461, %v2436
        %v2507 = vpack.c.bf16 %v2464, %v2437
        %v2508 = vpack.c.bf16 %v2473, %v2461
        %v2509 = vpack.c.bf16 %v2476, %v2464
        %v2510 = vpack.c.bf16 %v2486, %v2473
        %v2511 = vpack.c.bf16 %v2489, %v2476
        %v2512 = vpack.c.bf16 %v2498, %v2486
        %v2513 = vpack.c.bf16 %v2501, %v2489
        %v2514 = vld [vmem:[#allocation6] sm:$0xff]
        %v2515 = vld [vmem:[#allocation6 + $0x8] sm:$0xff]
        %v2516 = vld [vmem:[#allocation6 + $0x10] sm:$0xff]
        %v2517 = vld [vmem:[#allocation6 + $0x18] sm:$0xff]
        %v2518 = vld [vmem:[#allocation6 + $0x20] sm:$0xff]
        %v2519 = vld [vmem:[#allocation6 + $0x28] sm:$0xff]
        %v2520 = vld [vmem:[#allocation6 + $0x30] sm:$0xff]
        %v2521 = vld [vmem:[#allocation6 + $0x38] sm:$0xff]
        %v2522 = vld [vmem:[#allocation6 + $0x40] sm:$0xff]
        %v2523 = vld [vmem:[#allocation6 + $0x48] sm:$0xff]
        %v2524 = vld [vmem:[#allocation6 + $0x50] sm:$0xff]
        %v2525 = vld [vmem:[#allocation6 + $0x58] sm:$0xff]
        %v2526 = vld [vmem:[#allocation6 + $0x60] sm:$0xff]
        %v2527 = vld [vmem:[#allocation6 + $0x68] sm:$0xff]
        %v2528 = vld [vmem:[#allocation6 + $0x70] sm:$0xff]
        %v2529 = vld [vmem:[#allocation6 + $0x78] sm:$0xff]
        %v2530 = vld [vmem:[#allocation6 + $0x80] sm:$0xff]
        %v2531 = vld [vmem:[#allocation6 + $0x88] sm:$0xff]
        %v2532 = vld [vmem:[#allocation6 + $0x90] sm:$0xff]
        %v2533 = vld [vmem:[#allocation6 + $0x98] sm:$0xff]
        %v2534 = vld [vmem:[#allocation6 + $0xa0] sm:$0xff]
        %v2535 = vld [vmem:[#allocation6 + $0xa8] sm:$0xff]
        %v2536 = vld [vmem:[#allocation6 + $0xb0] sm:$0xff]
        %v2537 = vld [vmem:[#allocation6 + $0xb8] sm:$0xff]
        %v2538 = vld [vmem:[#allocation6 + $0xc0] sm:$0xff]
        %v2539 = vld [vmem:[#allocation6 + $0xc8] sm:$0xff]
        %v2540 = vld [vmem:[#allocation6 + $0xd0] sm:$0xff]
        %v2541 = vld [vmem:[#allocation6 + $0xd8] sm:$0xff]
        %v2542 = vld [vmem:[#allocation6 + $0xe0] sm:$0xff]
        %v2543 = vld [vmem:[#allocation6 + $0xe8] sm:$0xff]
        %v2544 = vld [vmem:[#allocation6 + $0xf0] sm:$0xff]
        %v2545 = vld [vmem:[#allocation6 + $0xf8] sm:$0xff]
        %v2546 = vld [vmem:[#allocation6 + $0x100] sm:$0xff]
        %v2547 = vld [vmem:[#allocation6 + $0x108] sm:$0xff]
        %v2548 = vld [vmem:[#allocation6 + $0x110] sm:$0xff]
        %v2549 = vld [vmem:[#allocation6 + $0x118] sm:$0xff]
        %v2550 = vld [vmem:[#allocation6 + $0x120] sm:$0xff]
        %v2551 = vld [vmem:[#allocation6 + $0x128] sm:$0xff]
        %v2552 = vld [vmem:[#allocation6 + $0x130] sm:$0xff]
        %v2553 = vld [vmem:[#allocation6 + $0x138] sm:$0xff]
        %v2554 = vld [vmem:[#allocation6 + $0x140] sm:$0xff]
        %v2555 = vld [vmem:[#allocation6 + $0x148] sm:$0xff]
        %v2556 = vld [vmem:[#allocation6 + $0x150] sm:$0xff]
        %v2557 = vld [vmem:[#allocation6 + $0x158] sm:$0xff]
        %v2558 = vld [vmem:[#allocation6 + $0x160] sm:$0xff]
        %v2559 = vld [vmem:[#allocation6 + $0x168] sm:$0xff]
        %v2560 = vld [vmem:[#allocation6 + $0x170] sm:$0xff]
        %v2561 = vld [vmem:[#allocation6 + $0x178] sm:$0xff]
        %v2562 = vld [vmem:[#allocation6 + $0x180] sm:$0xff]
        %v2563 = vld [vmem:[#allocation6 + $0x188] sm:$0xff]
        %v2564 = vld [vmem:[#allocation6 + $0x190] sm:$0xff]
        %v2565 = vld [vmem:[#allocation6 + $0x198] sm:$0xff]
        %v2566 = vld [vmem:[#allocation6 + $0x1a0] sm:$0xff]
        %v2567 = vld [vmem:[#allocation6 + $0x1a8] sm:$0xff]
        %v2568 = vld [vmem:[#allocation6 + $0x1b0] sm:$0xff]
        %v2569 = vld [vmem:[#allocation6 + $0x1b8] sm:$0xff]
        %v2570 = vld [vmem:[#allocation6 + $0x1c0] sm:$0xff]
        %v2571 = vld [vmem:[#allocation6 + $0x1c8] sm:$0xff]
        %v2572 = vld [vmem:[#allocation6 + $0x1d0] sm:$0xff]
        %v2573 = vld [vmem:[#allocation6 + $0x1d8] sm:$0xff]
        %v2574 = vld [vmem:[#allocation6 + $0x1e0] sm:$0xff]
        %v2575 = vld [vmem:[#allocation6 + $0x1e8] sm:$0xff]
        %v2576 = vld [vmem:[#allocation6 + $0x1f0] sm:$0xff]
        %v2577 = vld [vmem:[#allocation6 + $0x1f8] sm:$0xff]
        %v2578 = vld [vmem:[#allocation6 + $0x200] sm:$0xff]
        %v2579 = vld [vmem:[#allocation6 + $0x208] sm:$0xff]
        %v2580 = vld [vmem:[#allocation6 + $0x210] sm:$0xff]
        %v2581 = vld [vmem:[#allocation6 + $0x218] sm:$0xff]
        %v2582 = vld [vmem:[#allocation6 + $0x220] sm:$0xff]
        %v2583 = vld [vmem:[#allocation6 + $0x228] sm:$0xff]
        %v2584 = vld [vmem:[#allocation6 + $0x230] sm:$0xff]
        %v2585 = vld [vmem:[#allocation6 + $0x238] sm:$0xff]
        %v2586 = vld [vmem:[#allocation6 + $0x240] sm:$0xff]
        %v2587 = vld [vmem:[#allocation6 + $0x248] sm:$0xff]
        %v2588 = vld [vmem:[#allocation6 + $0x250] sm:$0xff]
        %v2589 = vld [vmem:[#allocation6 + $0x258] sm:$0xff]
        %v2590 = vld [vmem:[#allocation6 + $0x260] sm:$0xff]
        %v2591 = vld [vmem:[#allocation6 + $0x268] sm:$0xff]
        %v2592 = vld [vmem:[#allocation6 + $0x270] sm:$0xff]
        %v2593 = vld [vmem:[#allocation6 + $0x278] sm:$0xff]
        %v2594 = vld [vmem:[#allocation6 + $0x280] sm:$0xff]
        %v2595 = vld [vmem:[#allocation6 + $0x288] sm:$0xff]
        %v2596 = vld [vmem:[#allocation6 + $0x290] sm:$0xff]
        %v2597 = vld [vmem:[#allocation6 + $0x298] sm:$0xff]
        %v2598 = vld [vmem:[#allocation6 + $0x2a0] sm:$0xff]
        %v2599 = vld [vmem:[#allocation6 + $0x2a8] sm:$0xff]
        %v2600 = vld [vmem:[#allocation6 + $0x2b0] sm:$0xff]
        %v2601 = vld [vmem:[#allocation6 + $0x2b8] sm:$0xff]
        %v2602 = vld [vmem:[#allocation6 + $0x2c0] sm:$0xff]
        %v2603 = vld [vmem:[#allocation6 + $0x2c8] sm:$0xff]
        %v2604 = vld [vmem:[#allocation6 + $0x2d0] sm:$0xff]
        %v2605 = vld [vmem:[#allocation6 + $0x2d8] sm:$0xff]
        %v2606 = vld [vmem:[#allocation6 + $0x2e0] sm:$0xff]
        %v2607 = vld [vmem:[#allocation6 + $0x2e8] sm:$0xff]
        %v2608 = vld [vmem:[#allocation6 + $0x2f0] sm:$0xff]
        %v2609 = vld [vmem:[#allocation6 + $0x2f8] sm:$0xff]
        %v2610 = vld [vmem:[#allocation6 + $0x300] sm:$0xff]
        %v2611 = vld [vmem:[#allocation6 + $0x308] sm:$0xff]
        %v2612 = vld [vmem:[#allocation6 + $0x310] sm:$0xff]
        %v2613 = vld [vmem:[#allocation6 + $0x318] sm:$0xff]
        %v2614 = vld [vmem:[#allocation6 + $0x320] sm:$0xff]
        %v2615 = vld [vmem:[#allocation6 + $0x328] sm:$0xff]
        %v2616 = vld [vmem:[#allocation6 + $0x330] sm:$0xff]
        %v2617 = vld [vmem:[#allocation6 + $0x338] sm:$0xff]
        %v2618 = vld [vmem:[#allocation6 + $0x340] sm:$0xff]
        %v2619 = vld [vmem:[#allocation6 + $0x348] sm:$0xff]
        %v2620 = vld [vmem:[#allocation6 + $0x350] sm:$0xff]
        %v2621 = vld [vmem:[#allocation6 + $0x358] sm:$0xff]
        %v2622 = vld [vmem:[#allocation6 + $0x360] sm:$0xff]
        %v2623 = vld [vmem:[#allocation6 + $0x368] sm:$0xff]
        %v2624 = vld [vmem:[#allocation6 + $0x370] sm:$0xff]
        %v2625 = vld [vmem:[#allocation6 + $0x378] sm:$0xff]
        %v2626 = vld [vmem:[#allocation6 + $0x380] sm:$0xff]
        %v2627 = vld [vmem:[#allocation6 + $0x388] sm:$0xff]
        %v2628 = vld [vmem:[#allocation6 + $0x390] sm:$0xff]
        %v2629 = vld [vmem:[#allocation6 + $0x398] sm:$0xff]
        %v2630 = vld [vmem:[#allocation6 + $0x3a0] sm:$0xff]
        %v2631 = vld [vmem:[#allocation6 + $0x3a8] sm:$0xff]
        %v2632 = vld [vmem:[#allocation6 + $0x3b0] sm:$0xff]
        %v2633 = vld [vmem:[#allocation6 + $0x3b8] sm:$0xff]
        %v2634 = vld [vmem:[#allocation6 + $0x3c0] sm:$0xff]
        %v2635 = vld [vmem:[#allocation6 + $0x3c8] sm:$0xff]
        %v2636 = vld [vmem:[#allocation6 + $0x3d0] sm:$0xff]
        %v2637 = vld [vmem:[#allocation6 + $0x3d8] sm:$0xff]
        %v2638 = vld [vmem:[#allocation6 + $0x3e0] sm:$0xff]
        %v2639 = vld [vmem:[#allocation6 + $0x3e8] sm:$0xff]
        %v2640 = vld [vmem:[#allocation6 + $0x3f0] sm:$0xff]
        %v2641 = vld [vmem:[#allocation6 + $0x3f8] sm:$0xff]
        %v2642 = vld [vmem:[#allocation6 + $0x400] sm:$0xff]
        %v2643 = vld [vmem:[#allocation6 + $0x408] sm:$0xff]
        %v2644 = vld [vmem:[#allocation6 + $0x410] sm:$0xff]
        %v2645 = vld [vmem:[#allocation6 + $0x418] sm:$0xff]
        %v2646 = vld [vmem:[#allocation6 + $0x420] sm:$0xff]
        %v2647 = vld [vmem:[#allocation6 + $0x428] sm:$0xff]
        %v2648 = vld [vmem:[#allocation6 + $0x430] sm:$0xff]
        %v2649 = vld [vmem:[#allocation6 + $0x438] sm:$0xff]
        %v2650 = vld [vmem:[#allocation6 + $0x440] sm:$0xff]
        %v2651 = vld [vmem:[#allocation6 + $0x448] sm:$0xff]
        %v2652 = vld [vmem:[#allocation6 + $0x450] sm:$0xff]
        %v2653 = vld [vmem:[#allocation6 + $0x458] sm:$0xff]
        %v2654 = vld [vmem:[#allocation6 + $0x460] sm:$0xff]
        %v2655 = vld [vmem:[#allocation6 + $0x468] sm:$0xff]
        %v2656 = vld [vmem:[#allocation6 + $0x470] sm:$0xff]
        %v2657 = vld [vmem:[#allocation6 + $0x478] sm:$0xff]
        %v2658 = vld [vmem:[#allocation6 + $0x480] sm:$0xff]
        %v2659 = vld [vmem:[#allocation6 + $0x488] sm:$0xff]
        %v2660 = vld [vmem:[#allocation6 + $0x490] sm:$0xff]
        %v2661 = vld [vmem:[#allocation6 + $0x498] sm:$0xff]
        %v2662 = vld [vmem:[#allocation6 + $0x4a0] sm:$0xff]
        %v2663 = vld [vmem:[#allocation6 + $0x4a8] sm:$0xff]
        %v2664 = vld [vmem:[#allocation6 + $0x4b0] sm:$0xff]
        %v2665 = vld [vmem:[#allocation6 + $0x4b8] sm:$0xff]
        %v2666 = vld [vmem:[#allocation6 + $0x4c0] sm:$0xff]
        %v2667 = vld [vmem:[#allocation6 + $0x4c8] sm:$0xff]
        %v2668 = vld [vmem:[#allocation6 + $0x4d0] sm:$0xff]
        %v2669 = vld [vmem:[#allocation6 + $0x4d8] sm:$0xff]
        %v2670 = vld [vmem:[#allocation6 + $0x4e0] sm:$0xff]
        %v2671 = vld [vmem:[#allocation6 + $0x4e8] sm:$0xff]
        %v2672 = vld [vmem:[#allocation6 + $0x4f0] sm:$0xff]
        %v2673 = vld [vmem:[#allocation6 + $0x4f8] sm:$0xff]
        %v2834 = vunpack.c.l.b16 %v2514
        %v2835 = vunpack.c.h.b16 %v2514
        %v2836 = vunpack.c.l.b16 %v2515
        %v2837 = vunpack.c.h.b16 %v2515
        %v2838 = vunpack.c.l.b16 %v2516
        %v2839 = vunpack.c.h.b16 %v2516
        %v2840 = vunpack.c.l.b16 %v2517
        %v2841 = vunpack.c.h.b16 %v2517
        %v2842 = vunpack.c.l.b16 %v2518
        %v2843 = vunpack.c.h.b16 %v2518
        %v2844 = vunpack.c.l.b16 %v2519
        %v2845 = vunpack.c.h.b16 %v2519
        %v2846 = vunpack.c.l.b16 %v2520
        %v2847 = vunpack.c.h.b16 %v2520
        %v2848 = vunpack.c.l.b16 %v2521
        %v2849 = vunpack.c.h.b16 %v2521
        %v2850 = vunpack.c.l.b16 %v2522
        %v2851 = vunpack.c.h.b16 %v2522
        %v2852 = vunpack.c.l.b16 %v2523
        %v2853 = vunpack.c.h.b16 %v2523
        %v2854 = vunpack.c.l.b16 %v2524
        %v2855 = vunpack.c.h.b16 %v2524
        %v2856 = vunpack.c.l.b16 %v2525
        %v2857 = vunpack.c.h.b16 %v2525
        %v2858 = vunpack.c.l.b16 %v2526
        %v2859 = vunpack.c.h.b16 %v2526
        %v2860 = vunpack.c.l.b16 %v2527
        %v2861 = vunpack.c.h.b16 %v2527
        %v2862 = vunpack.c.l.b16 %v2528
        %v2863 = vunpack.c.h.b16 %v2528
        %v2864 = vunpack.c.l.b16 %v2529
        %v2865 = vunpack.c.h.b16 %v2529
        %v2866 = vunpack.c.l.b16 %v2530
        %v2867 = vunpack.c.h.b16 %v2530
        %v2868 = vunpack.c.l.b16 %v2531
        %v2869 = vunpack.c.h.b16 %v2531
        %v2870 = vunpack.c.l.b16 %v2532
        %v2871 = vunpack.c.h.b16 %v2532
        %v2872 = vunpack.c.l.b16 %v2533
        %v2873 = vunpack.c.h.b16 %v2533
        %v2874 = vunpack.c.l.b16 %v2534
        %v2875 = vunpack.c.h.b16 %v2534
        %v2876 = vunpack.c.l.b16 %v2535
        %v2877 = vunpack.c.h.b16 %v2535
        %v2878 = vunpack.c.l.b16 %v2536
        %v2879 = vunpack.c.h.b16 %v2536
        %v2880 = vunpack.c.l.b16 %v2537
        %v2881 = vunpack.c.h.b16 %v2537
        %v2882 = vunpack.c.l.b16 %v2538
        %v2883 = vunpack.c.h.b16 %v2538
        %v2884 = vunpack.c.l.b16 %v2539
        %v2885 = vunpack.c.h.b16 %v2539
        %v2886 = vunpack.c.l.b16 %v2540
        %v2887 = vunpack.c.h.b16 %v2540
        %v2888 = vunpack.c.l.b16 %v2541
        %v2889 = vunpack.c.h.b16 %v2541
        %v2890 = vunpack.c.l.b16 %v2542
        %v2891 = vunpack.c.h.b16 %v2542
        %v2892 = vunpack.c.l.b16 %v2543
        %v2893 = vunpack.c.h.b16 %v2543
        %v2894 = vunpack.c.l.b16 %v2544
        %v2895 = vunpack.c.h.b16 %v2544
        %v2896 = vunpack.c.l.b16 %v2545
        %v2897 = vunpack.c.h.b16 %v2545
        %v2898 = vunpack.c.l.b16 %v2546
        %v2899 = vunpack.c.h.b16 %v2546
        %v2900 = vunpack.c.l.b16 %v2547
        %v2901 = vunpack.c.h.b16 %v2547
        %v2902 = vunpack.c.l.b16 %v2548
        %v2903 = vunpack.c.h.b16 %v2548
        %v2904 = vunpack.c.l.b16 %v2549
        %v2905 = vunpack.c.h.b16 %v2549
        %v2906 = vunpack.c.l.b16 %v2550
        %v2907 = vunpack.c.h.b16 %v2550
        %v2908 = vunpack.c.l.b16 %v2551
        %v2909 = vunpack.c.h.b16 %v2551
        %v2910 = vunpack.c.l.b16 %v2552
        %v2911 = vunpack.c.h.b16 %v2552
        %v2912 = vunpack.c.l.b16 %v2553
        %v2913 = vunpack.c.h.b16 %v2553
        %v2914 = vunpack.c.l.b16 %v2554
        %v2915 = vunpack.c.h.b16 %v2554
        %v2916 = vunpack.c.l.b16 %v2555
        %v2917 = vunpack.c.h.b16 %v2555
        %v2918 = vunpack.c.l.b16 %v2556
        %v2919 = vunpack.c.h.b16 %v2556
        %v2920 = vunpack.c.l.b16 %v2557
        %v2921 = vunpack.c.h.b16 %v2557
        %v2922 = vunpack.c.l.b16 %v2558
        %v2923 = vunpack.c.h.b16 %v2558
        %v2924 = vunpack.c.l.b16 %v2559
        %v2925 = vunpack.c.h.b16 %v2559
        %v2926 = vunpack.c.l.b16 %v2560
        %v2927 = vunpack.c.h.b16 %v2560
        %v2928 = vunpack.c.l.b16 %v2561
        %v2929 = vunpack.c.h.b16 %v2561
        %v2930 = vunpack.c.l.b16 %v2562
        %v2931 = vunpack.c.h.b16 %v2562
        %v2932 = vunpack.c.l.b16 %v2563
        %v2933 = vunpack.c.h.b16 %v2563
        %v2934 = vunpack.c.l.b16 %v2564
        %v2935 = vunpack.c.h.b16 %v2564
        %v2936 = vunpack.c.l.b16 %v2565
        %v2937 = vunpack.c.h.b16 %v2565
        %v2938 = vunpack.c.l.b16 %v2566
        %v2939 = vunpack.c.h.b16 %v2566
        %v2940 = vunpack.c.l.b16 %v2567
        %v2941 = vunpack.c.h.b16 %v2567
        %v2942 = vunpack.c.l.b16 %v2568
        %v2943 = vunpack.c.h.b16 %v2568
        %v2944 = vunpack.c.l.b16 %v2569
        %v2945 = vunpack.c.h.b16 %v2569
        %v2946 = vunpack.c.l.b16 %v2570
        %v2947 = vunpack.c.h.b16 %v2570
        %v2948 = vunpack.c.l.b16 %v2571
        %v2949 = vunpack.c.h.b16 %v2571
        %v2950 = vunpack.c.l.b16 %v2572
        %v2951 = vunpack.c.h.b16 %v2572
        %v2952 = vunpack.c.l.b16 %v2573
        %v2953 = vunpack.c.h.b16 %v2573
        %v2954 = vunpack.c.l.b16 %v2574
        %v2955 = vunpack.c.h.b16 %v2574
        %v2956 = vunpack.c.l.b16 %v2575
        %v2957 = vunpack.c.h.b16 %v2575
        %v2958 = vunpack.c.l.b16 %v2576
        %v2959 = vunpack.c.h.b16 %v2576
        %v2960 = vunpack.c.l.b16 %v2577
        %v2961 = vunpack.c.h.b16 %v2577
        %v2962 = vunpack.c.l.b16 %v2578
        %v2963 = vunpack.c.h.b16 %v2578
        %v2964 = vunpack.c.l.b16 %v2579
        %v2965 = vunpack.c.h.b16 %v2579
        %v2966 = vunpack.c.l.b16 %v2580
        %v2967 = vunpack.c.h.b16 %v2580
        %v2968 = vunpack.c.l.b16 %v2581
        %v2969 = vunpack.c.h.b16 %v2581
        %v2970 = vunpack.c.l.b16 %v2582
        %v2971 = vunpack.c.h.b16 %v2582
        %v2972 = vunpack.c.l.b16 %v2583
        %v2973 = vunpack.c.h.b16 %v2583
        %v2974 = vunpack.c.l.b16 %v2584
        %v2975 = vunpack.c.h.b16 %v2584
        %v2976 = vunpack.c.l.b16 %v2585
        %v2977 = vunpack.c.h.b16 %v2585
        %v2978 = vunpack.c.l.b16 %v2586
        %v2979 = vunpack.c.h.b16 %v2586
        %v2980 = vunpack.c.l.b16 %v2587
        %v2981 = vunpack.c.h.b16 %v2587
        %v2982 = vunpack.c.l.b16 %v2588
        %v2983 = vunpack.c.h.b16 %v2588
        %v2984 = vunpack.c.l.b16 %v2589
        %v2985 = vunpack.c.h.b16 %v2589
        %v2986 = vunpack.c.l.b16 %v2590
        %v2987 = vunpack.c.h.b16 %v2590
        %v2988 = vunpack.c.l.b16 %v2591
        %v2989 = vunpack.c.h.b16 %v2591
        %v2990 = vunpack.c.l.b16 %v2592
        %v2991 = vunpack.c.h.b16 %v2592
        %v2992 = vunpack.c.l.b16 %v2593
        %v2993 = vunpack.c.h.b16 %v2593
        %v2994 = vunpack.c.l.b16 %v2594
        %v2995 = vunpack.c.h.b16 %v2594
        %v2996 = vunpack.c.l.b16 %v2595
        %v2997 = vunpack.c.h.b16 %v2595
        %v2998 = vunpack.c.l.b16 %v2596
        %v2999 = vunpack.c.h.b16 %v2596
        %v3000 = vunpack.c.l.b16 %v2597
        %v3001 = vunpack.c.h.b16 %v2597
        %v3002 = vunpack.c.l.b16 %v2598
        %v3003 = vunpack.c.h.b16 %v2598
        %v3004 = vunpack.c.l.b16 %v2599
        %v3005 = vunpack.c.h.b16 %v2599
        %v3006 = vunpack.c.l.b16 %v2600
        %v3007 = vunpack.c.h.b16 %v2600
        %v3008 = vunpack.c.l.b16 %v2601
        %v3009 = vunpack.c.h.b16 %v2601
        %v3010 = vunpack.c.l.b16 %v2602
        %v3011 = vunpack.c.h.b16 %v2602
        %v3012 = vunpack.c.l.b16 %v2603
        %v3013 = vunpack.c.h.b16 %v2603
        %v3014 = vunpack.c.l.b16 %v2604
        %v3015 = vunpack.c.h.b16 %v2604
        %v3016 = vunpack.c.l.b16 %v2605
        %v3017 = vunpack.c.h.b16 %v2605
        %v3018 = vunpack.c.l.b16 %v2606
        %v3019 = vunpack.c.h.b16 %v2606
        %v3020 = vunpack.c.l.b16 %v2607
        %v3021 = vunpack.c.h.b16 %v2607
        %v3022 = vunpack.c.l.b16 %v2608
        %v3023 = vunpack.c.h.b16 %v2608
        %v3024 = vunpack.c.l.b16 %v2609
        %v3025 = vunpack.c.h.b16 %v2609
        %v3026 = vunpack.c.l.b16 %v2610
        %v3027 = vunpack.c.h.b16 %v2610
        %v3028 = vunpack.c.l.b16 %v2611
        %v3029 = vunpack.c.h.b16 %v2611
        %v3030 = vunpack.c.l.b16 %v2612
        %v3031 = vunpack.c.h.b16 %v2612
        %v3032 = vunpack.c.l.b16 %v2613
        %v3033 = vunpack.c.h.b16 %v2613
        %v3034 = vunpack.c.l.b16 %v2614
        %v3035 = vunpack.c.h.b16 %v2614
        %v3036 = vunpack.c.l.b16 %v2615
        %v3037 = vunpack.c.h.b16 %v2615
        %v3038 = vunpack.c.l.b16 %v2616
        %v3039 = vunpack.c.h.b16 %v2616
        %v3040 = vunpack.c.l.b16 %v2617
        %v3041 = vunpack.c.h.b16 %v2617
        %v3042 = vunpack.c.l.b16 %v2618
        %v3043 = vunpack.c.h.b16 %v2618
        %v3044 = vunpack.c.l.b16 %v2619
        %v3045 = vunpack.c.h.b16 %v2619
        %v3046 = vunpack.c.l.b16 %v2620
        %v3047 = vunpack.c.h.b16 %v2620
        %v3048 = vunpack.c.l.b16 %v2621
        %v3049 = vunpack.c.h.b16 %v2621
        %v3050 = vunpack.c.l.b16 %v2622
        %v3051 = vunpack.c.h.b16 %v2622
        %v3052 = vunpack.c.l.b16 %v2623
        %v3053 = vunpack.c.h.b16 %v2623
        %v3054 = vunpack.c.l.b16 %v2624
        %v3055 = vunpack.c.h.b16 %v2624
        %v3056 = vunpack.c.l.b16 %v2625
        %v3057 = vunpack.c.h.b16 %v2625
        %v3058 = vunpack.c.l.b16 %v2626
        %v3059 = vunpack.c.h.b16 %v2626
        %v3060 = vunpack.c.l.b16 %v2627
        %v3061 = vunpack.c.h.b16 %v2627
        %v3062 = vunpack.c.l.b16 %v2628
        %v3063 = vunpack.c.h.b16 %v2628
        %v3064 = vunpack.c.l.b16 %v2629
        %v3065 = vunpack.c.h.b16 %v2629
        %v3066 = vunpack.c.l.b16 %v2630
        %v3067 = vunpack.c.h.b16 %v2630
        %v3068 = vunpack.c.l.b16 %v2631
        %v3069 = vunpack.c.h.b16 %v2631
        %v3070 = vunpack.c.l.b16 %v2632
        %v3071 = vunpack.c.h.b16 %v2632
        %v3072 = vunpack.c.l.b16 %v2633
        %v3073 = vunpack.c.h.b16 %v2633
        %v3074 = vunpack.c.l.b16 %v2634
        %v3075 = vunpack.c.h.b16 %v2634
        %v3076 = vunpack.c.l.b16 %v2635
        %v3077 = vunpack.c.h.b16 %v2635
        %v3078 = vunpack.c.l.b16 %v2636
        %v3079 = vunpack.c.h.b16 %v2636
        %v3080 = vunpack.c.l.b16 %v2637
        %v3081 = vunpack.c.h.b16 %v2637
        %v3082 = vunpack.c.l.b16 %v2638
        %v3083 = vunpack.c.h.b16 %v2638
        %v3084 = vunpack.c.l.b16 %v2639
        %v3085 = vunpack.c.h.b16 %v2639
        %v3086 = vunpack.c.l.b16 %v2640
        %v3087 = vunpack.c.h.b16 %v2640
        %v3088 = vunpack.c.l.b16 %v2641
        %v3089 = vunpack.c.h.b16 %v2641
        %v3090 = vunpack.c.l.b16 %v2642
        %v3091 = vunpack.c.h.b16 %v2642
        %v3092 = vunpack.c.l.b16 %v2643
        %v3093 = vunpack.c.h.b16 %v2643
        %v3094 = vunpack.c.l.b16 %v2644
        %v3095 = vunpack.c.h.b16 %v2644
        %v3096 = vunpack.c.l.b16 %v2645
        %v3097 = vunpack.c.h.b16 %v2645
        %v3098 = vunpack.c.l.b16 %v2646
        %v3099 = vunpack.c.h.b16 %v2646
        %v3100 = vunpack.c.l.b16 %v2647
        %v3101 = vunpack.c.h.b16 %v2647
        %v3102 = vunpack.c.l.b16 %v2648
        %v3103 = vunpack.c.h.b16 %v2648
        %v3104 = vunpack.c.l.b16 %v2649
        %v3105 = vunpack.c.h.b16 %v2649
        %v3106 = vunpack.c.l.b16 %v2650
        %v3107 = vunpack.c.h.b16 %v2650
        %v3108 = vunpack.c.l.b16 %v2651
        %v3109 = vunpack.c.h.b16 %v2651
        %v3110 = vunpack.c.l.b16 %v2652
        %v3111 = vunpack.c.h.b16 %v2652
        %v3112 = vunpack.c.l.b16 %v2653
        %v3113 = vunpack.c.h.b16 %v2653
        %v3114 = vunpack.c.l.b16 %v2654
        %v3115 = vunpack.c.h.b16 %v2654
        %v3116 = vunpack.c.l.b16 %v2655
        %v3117 = vunpack.c.h.b16 %v2655
        %v3118 = vunpack.c.l.b16 %v2656
        %v3119 = vunpack.c.h.b16 %v2656
        %v3120 = vunpack.c.l.b16 %v2657
        %v3121 = vunpack.c.h.b16 %v2657
        %v3122 = vunpack.c.l.b16 %v2658
        %v3123 = vunpack.c.h.b16 %v2658
        %v3124 = vunpack.c.l.b16 %v2659
        %v3125 = vunpack.c.h.b16 %v2659
        %v3126 = vunpack.c.l.b16 %v2660
        %v3127 = vunpack.c.h.b16 %v2660
        %v3128 = vunpack.c.l.b16 %v2661
        %v3129 = vunpack.c.h.b16 %v2661
        %v3130 = vunpack.c.l.b16 %v2662
        %v3131 = vunpack.c.h.b16 %v2662
        %v3132 = vunpack.c.l.b16 %v2663
        %v3133 = vunpack.c.h.b16 %v2663
        %v3134 = vunpack.c.l.b16 %v2664
        %v3135 = vunpack.c.h.b16 %v2664
        %v3136 = vunpack.c.l.b16 %v2665
        %v3137 = vunpack.c.h.b16 %v2665
        %v3138 = vunpack.c.l.b16 %v2666
        %v3139 = vunpack.c.h.b16 %v2666
        %v3140 = vunpack.c.l.b16 %v2667
        %v3141 = vunpack.c.h.b16 %v2667
        %v3142 = vunpack.c.l.b16 %v2668
        %v3143 = vunpack.c.h.b16 %v2668
        %v3144 = vunpack.c.l.b16 %v2669
        %v3145 = vunpack.c.h.b16 %v2669
        %v3146 = vunpack.c.l.b16 %v2670
        %v3147 = vunpack.c.h.b16 %v2670
        %v3148 = vunpack.c.l.b16 %v2671
        %v3149 = vunpack.c.h.b16 %v2671
        %v3150 = vunpack.c.l.b16 %v2672
        %v3151 = vunpack.c.h.b16 %v2672
        %v3152 = vunpack.c.l.b16 %v2673
        %v3153 = vunpack.c.h.b16 %v2673
        %v3154 = vpack.c.b16 %v2836, %v2834
        %v3155 = vpack.c.b16 %v2837, %v2835
        %v3156 = vpack.c.b16 %v2840, %v2838
        %v3157 = vpack.c.b16 %v2841, %v2839
        %v3158 = vpack.c.b16 %v2844, %v2842
        %v3159 = vpack.c.b16 %v2845, %v2843
        %v3160 = vpack.c.b16 %v2848, %v2846
        %v3161 = vpack.c.b16 %v2849, %v2847
        %v3162 = vpack.c.b16 %v2852, %v2850
        %v3163 = vpack.c.b16 %v2853, %v2851
        %v3164 = vpack.c.b16 %v2856, %v2854
        %v3165 = vpack.c.b16 %v2857, %v2855
        %v3166 = vpack.c.b16 %v2860, %v2858
        %v3167 = vpack.c.b16 %v2861, %v2859
        %v3168 = vpack.c.b16 %v2864, %v2862
        %v3169 = vpack.c.b16 %v2865, %v2863
        %v3170 = vpack.c.b16 %v2868, %v2866
        %v3171 = vpack.c.b16 %v2869, %v2867
        %v3172 = vpack.c.b16 %v2872, %v2870
        %v3173 = vpack.c.b16 %v2873, %v2871
        %v3174 = vpack.c.b16 %v2876, %v2874
        %v3175 = vpack.c.b16 %v2877, %v2875
        %v3176 = vpack.c.b16 %v2880, %v2878
        %v3177 = vpack.c.b16 %v2881, %v2879
        %v3178 = vpack.c.b16 %v2884, %v2882
        %v3179 = vpack.c.b16 %v2885, %v2883
        %v3180 = vpack.c.b16 %v2888, %v2886
        %v3181 = vpack.c.b16 %v2889, %v2887
        %v3182 = vpack.c.b16 %v2892, %v2890
        %v3183 = vpack.c.b16 %v2893, %v2891
        %v3184 = vpack.c.b16 %v2896, %v2894
        %v3185 = vpack.c.b16 %v2897, %v2895
        %v3186 = vpack.c.b16 %v2900, %v2898
        %v3187 = vpack.c.b16 %v2901, %v2899
        %v3188 = vpack.c.b16 %v2904, %v2902
        %v3189 = vpack.c.b16 %v2905, %v2903
        %v3190 = vpack.c.b16 %v2908, %v2906
        %v3191 = vpack.c.b16 %v2909, %v2907
        %v3192 = vpack.c.b16 %v2912, %v2910
        %v3193 = vpack.c.b16 %v2913, %v2911
        %v3194 = vpack.c.b16 %v2916, %v2914
        %v3195 = vpack.c.b16 %v2917, %v2915
        %v3196 = vpack.c.b16 %v2920, %v2918
        %v3197 = vpack.c.b16 %v2921, %v2919
        %v3198 = vpack.c.b16 %v2924, %v2922
        %v3199 = vpack.c.b16 %v2925, %v2923
        %v3200 = vpack.c.b16 %v2928, %v2926
        %v3201 = vpack.c.b16 %v2929, %v2927
        %v3202 = vpack.c.b16 %v2932, %v2930
        %v3203 = vpack.c.b16 %v2933, %v2931
        %v3204 = vpack.c.b16 %v2936, %v2934
        %v3205 = vpack.c.b16 %v2937, %v2935
        %v3206 = vpack.c.b16 %v2940, %v2938
        %v3207 = vpack.c.b16 %v2941, %v2939
        %v3208 = vpack.c.b16 %v2944, %v2942
        %v3209 = vpack.c.b16 %v2945, %v2943
        %v3210 = vpack.c.b16 %v2948, %v2946
        %v3211 = vpack.c.b16 %v2949, %v2947
        %v3212 = vpack.c.b16 %v2952, %v2950
        %v3213 = vpack.c.b16 %v2953, %v2951
        %v3214 = vpack.c.b16 %v2956, %v2954
        %v3215 = vpack.c.b16 %v2957, %v2955
        %v3216 = vpack.c.b16 %v2960, %v2958
        %v3217 = vpack.c.b16 %v2961, %v2959
        %v3218 = vpack.c.b16 %v2964, %v2962
        %v3219 = vpack.c.b16 %v2965, %v2963
        %v3220 = vpack.c.b16 %v2968, %v2966
        %v3221 = vpack.c.b16 %v2969, %v2967
        %v3222 = vpack.c.b16 %v2972, %v2970
        %v3223 = vpack.c.b16 %v2973, %v2971
        %v3224 = vpack.c.b16 %v2976, %v2974
        %v3225 = vpack.c.b16 %v2977, %v2975
        %v3226 = vpack.c.b16 %v2980, %v2978
        %v3227 = vpack.c.b16 %v2981, %v2979
        %v3228 = vpack.c.b16 %v2984, %v2982
        %v3229 = vpack.c.b16 %v2985, %v2983
        %v3230 = vpack.c.b16 %v2988, %v2986
        %v3231 = vpack.c.b16 %v2989, %v2987
        %v3232 = vpack.c.b16 %v2992, %v2990
        %v3233 = vpack.c.b16 %v2993, %v2991
        %v3234 = vpack.c.b16 %v2996, %v2994
        %v3235 = vpack.c.b16 %v2997, %v2995
        %v3236 = vpack.c.b16 %v3000, %v2998
        %v3237 = vpack.c.b16 %v3001, %v2999
        %v3238 = vpack.c.b16 %v3004, %v3002
        %v3239 = vpack.c.b16 %v3005, %v3003
        %v3240 = vpack.c.b16 %v3008, %v3006
        %v3241 = vpack.c.b16 %v3009, %v3007
        %v3242 = vpack.c.b16 %v3012, %v3010
        %v3243 = vpack.c.b16 %v3013, %v3011
        %v3244 = vpack.c.b16 %v3016, %v3014
        %v3245 = vpack.c.b16 %v3017, %v3015
        %v3246 = vpack.c.b16 %v3020, %v3018
        %v3247 = vpack.c.b16 %v3021, %v3019
        %v3248 = vpack.c.b16 %v3024, %v3022
        %v3249 = vpack.c.b16 %v3025, %v3023
        %v3250 = vpack.c.b16 %v3028, %v3026
        %v3251 = vpack.c.b16 %v3029, %v3027
        %v3252 = vpack.c.b16 %v3032, %v3030
        %v3253 = vpack.c.b16 %v3033, %v3031
        %v3254 = vpack.c.b16 %v3036, %v3034
        %v3255 = vpack.c.b16 %v3037, %v3035
        %v3256 = vpack.c.b16 %v3040, %v3038
        %v3257 = vpack.c.b16 %v3041, %v3039
        %v3258 = vpack.c.b16 %v3044, %v3042
        %v3259 = vpack.c.b16 %v3045, %v3043
        %v3260 = vpack.c.b16 %v3048, %v3046
        %v3261 = vpack.c.b16 %v3049, %v3047
        %v3262 = vpack.c.b16 %v3052, %v3050
        %v3263 = vpack.c.b16 %v3053, %v3051
        %v3264 = vpack.c.b16 %v3056, %v3054
        %v3265 = vpack.c.b16 %v3057, %v3055
        %v3266 = vpack.c.b16 %v3060, %v3058
        %v3267 = vpack.c.b16 %v3061, %v3059
        %v3268 = vpack.c.b16 %v3064, %v3062
        %v3269 = vpack.c.b16 %v3065, %v3063
        %v3270 = vpack.c.b16 %v3068, %v3066
        %v3271 = vpack.c.b16 %v3069, %v3067
        %v3272 = vpack.c.b16 %v3072, %v3070
        %v3273 = vpack.c.b16 %v3073, %v3071
        %v3274 = vpack.c.b16 %v3076, %v3074
        %v3275 = vpack.c.b16 %v3077, %v3075
        %v3276 = vpack.c.b16 %v3080, %v3078
        %v3277 = vpack.c.b16 %v3081, %v3079
        %v3278 = vpack.c.b16 %v3084, %v3082
        %v3279 = vpack.c.b16 %v3085, %v3083
        %v3280 = vpack.c.b16 %v3088, %v3086
        %v3281 = vpack.c.b16 %v3089, %v3087
        %v3282 = vpack.c.b16 %v3092, %v3090
        %v3283 = vpack.c.b16 %v3093, %v3091
        %v3284 = vpack.c.b16 %v3096, %v3094
        %v3285 = vpack.c.b16 %v3097, %v3095
        %v3286 = vpack.c.b16 %v3100, %v3098
        %v3287 = vpack.c.b16 %v3101, %v3099
        %v3288 = vpack.c.b16 %v3104, %v3102
        %v3289 = vpack.c.b16 %v3105, %v3103
        %v3290 = vpack.c.b16 %v3108, %v3106
        %v3291 = vpack.c.b16 %v3109, %v3107
        %v3292 = vpack.c.b16 %v3112, %v3110
        %v3293 = vpack.c.b16 %v3113, %v3111
        %v3294 = vpack.c.b16 %v3116, %v3114
        %v3295 = vpack.c.b16 %v3117, %v3115
        %v3296 = vpack.c.b16 %v3120, %v3118
        %v3297 = vpack.c.b16 %v3121, %v3119
        %v3298 = vpack.c.b16 %v3124, %v3122
        %v3299 = vpack.c.b16 %v3125, %v3123
        %v3300 = vpack.c.b16 %v3128, %v3126
        %v3301 = vpack.c.b16 %v3129, %v3127
        %v3302 = vpack.c.b16 %v3132, %v3130
        %v3303 = vpack.c.b16 %v3133, %v3131
        %v3304 = vpack.c.b16 %v3136, %v3134
        %v3305 = vpack.c.b16 %v3137, %v3135
        %v3306 = vpack.c.b16 %v3140, %v3138
        %v3307 = vpack.c.b16 %v3141, %v3139
        %v3308 = vpack.c.b16 %v3144, %v3142
        %v3309 = vpack.c.b16 %v3145, %v3143
        %v3310 = vpack.c.b16 %v3148, %v3146
        %v3311 = vpack.c.b16 %v3149, %v3147
        %v3312 = vpack.c.b16 %v3152, %v3150
        %v3313 = vpack.c.b16 %v3153, %v3151
        %3474 = vmatprep.subr.bf16.mxu0 %v3169
        %3475 = vmatpush1.bf16.msra.mxu0 %v3168
        %3476 = vmatprep.subr.bf16.mxu0 %v3167
        %3477 = vmatpush1.bf16.msra.mxu0 %v3166
        %3478 = vmatprep.subr.bf16.mxu0 %v3165
        %3479 = vmatpush1.bf16.msra.mxu0 %v3164
        %3480 = vmatprep.subr.bf16.mxu0 %v3163
        %3481 = vmatpush1.bf16.msra.mxu0 %v3162
        %3482 = vmatprep.subr.bf16.mxu0 %v3161
        %3483 = vmatpush1.bf16.msra.mxu0 %v3160
        %3484 = vmatprep.subr.bf16.mxu0 %v3159
        %3485 = vmatpush1.bf16.msra.mxu0 %v3158
        %3486 = vmatprep.subr.bf16.mxu0 %v3157
        %3487 = vmatpush1.bf16.msra.mxu0 %v3156
        %3488 = vmatprep.subr.bf16.mxu0 %v3155
        %3489 = vmatpush1.bf16.msra.mxu0 %v3154
        %3490 = vmatprep.subr.bf16.mxu0 %v3185
        %3491 = vmatpush2.bf16.msra.mxu0 %v3184
        %3492 = vmatprep.subr.bf16.mxu0 %v3183
        %3493 = vmatpush2.bf16.msra.mxu0 %v3182
        %3494 = vmatprep.subr.bf16.mxu0 %v3181
        %3495 = vmatpush2.bf16.msra.mxu0 %v3180
        %3496 = vmatprep.subr.bf16.mxu0 %v3179
        %3497 = vmatpush2.bf16.msra.mxu0 %v3178
        %3498 = vmatprep.subr.bf16.mxu0 %v3177
        %3499 = vmatpush2.bf16.msra.mxu0 %v3176
        %3500 = vmatprep.subr.bf16.mxu0 %v3175
        %3501 = vmatpush2.bf16.msra.mxu0 %v3174
        %3502 = vmatprep.subr.bf16.mxu0 %v3173
        %3503 = vmatpush2.bf16.msra.mxu0 %v3172
        %3504 = vmatprep.subr.bf16.mxu0 %v3171
        %3505 = vmatpush2.bf16.msra.mxu0 %v3170
        %3506 = vmatprep.mubr.bf16.mxu0 %v2505
        %3507 = vmatmul.mubr.bf16.gmra.mxu0 %v2504
        %v3508 = vpop.f32.mrf.mxu0
        %v3509 = vadd.f32 0.0, %v3508
        %v3510 = vpop.f32.mrf.mxu0
        %v3511 = vadd.f32 0.0, %v3510
        %v3512 = vpop.f32.mrf.mxu0
        %v3513 = vadd.f32 0.0, %v3512
        %v3514 = vpop.f32.mrf.mxu0
        %v3515 = vadd.f32 0.0, %v3514
        %3516 = vdwg.mxu0
        %3517 = vmatprep.subr.bf16.mxu0 %v3201
        %3518 = vmatpush1.bf16.msra.mxu0 %v3200
        %3519 = vmatprep.subr.bf16.mxu0 %v3199
        %3520 = vmatpush1.bf16.msra.mxu0 %v3198
        %3521 = vmatprep.subr.bf16.mxu0 %v3197
        %3522 = vmatpush1.bf16.msra.mxu0 %v3196
        %3523 = vmatprep.subr.bf16.mxu0 %v3195
        %3524 = vmatpush1.bf16.msra.mxu0 %v3194
        %3525 = vmatprep.subr.bf16.mxu0 %v3193
        %3526 = vmatpush1.bf16.msra.mxu0 %v3192
        %3527 = vmatprep.subr.bf16.mxu0 %v3191
        %3528 = vmatpush1.bf16.msra.mxu0 %v3190
        %3529 = vmatprep.subr.bf16.mxu0 %v3189
        %3530 = vmatpush1.bf16.msra.mxu0 %v3188
        %3531 = vmatprep.subr.bf16.mxu0 %v3187
        %3532 = vmatpush1.bf16.msra.mxu0 %v3186
        %3533 = vmatprep.subr.bf16.mxu0 %v3217
        %3534 = vmatpush2.bf16.msra.mxu0 %v3216
        %3535 = vmatprep.subr.bf16.mxu0 %v3215
        %3536 = vmatpush2.bf16.msra.mxu0 %v3214
        %3537 = vmatprep.subr.bf16.mxu0 %v3213
        %3538 = vmatpush2.bf16.msra.mxu0 %v3212
        %3539 = vmatprep.subr.bf16.mxu0 %v3211
        %3540 = vmatpush2.bf16.msra.mxu0 %v3210
        %3541 = vmatprep.subr.bf16.mxu0 %v3209
        %3542 = vmatpush2.bf16.msra.mxu0 %v3208
        %3543 = vmatprep.subr.bf16.mxu0 %v3207
        %3544 = vmatpush2.bf16.msra.mxu0 %v3206
        %3545 = vmatprep.subr.bf16.mxu0 %v3205
        %3546 = vmatpush2.bf16.msra.mxu0 %v3204
        %3547 = vmatprep.subr.bf16.mxu0 %v3203
        %3548 = vmatpush2.bf16.msra.mxu0 %v3202
        %3549 = vmatprep.mubr.bf16.mxu0 %v2507
        %3550 = vmatmul.mubr.bf16.gmra.mxu0 %v2506
        %v3551 = vpop.f32.mrf.mxu0
        %v3552 = vadd.f32 %v3509, %v3551
        %v3553 = vpop.f32.mrf.mxu0
        %v3554 = vadd.f32 %v3511, %v3553
        %v3555 = vpop.f32.mrf.mxu0
        %v3556 = vadd.f32 %v3513, %v3555
        %v3557 = vpop.f32.mrf.mxu0
        %v3558 = vadd.f32 %v3515, %v3557
        %3559 = vdwg.mxu0
        %3560 = vmatprep.subr.bf16.mxu0 %v3233
        %3561 = vmatpush1.bf16.msra.mxu0 %v3232
        %3562 = vmatprep.subr.bf16.mxu0 %v3231
        %3563 = vmatpush1.bf16.msra.mxu0 %v3230
        %3564 = vmatprep.subr.bf16.mxu0 %v3229
        %3565 = vmatpush1.bf16.msra.mxu0 %v3228
        %3566 = vmatprep.subr.bf16.mxu0 %v3227
        %3567 = vmatpush1.bf16.msra.mxu0 %v3226
        %3568 = vmatprep.subr.bf16.mxu0 %v3225
        %3569 = vmatpush1.bf16.msra.mxu0 %v3224
        %3570 = vmatprep.subr.bf16.mxu0 %v3223
        %3571 = vmatpush1.bf16.msra.mxu0 %v3222
        %3572 = vmatprep.subr.bf16.mxu0 %v3221
        %3573 = vmatpush1.bf16.msra.mxu0 %v3220
        %3574 = vmatprep.subr.bf16.mxu0 %v3219
        %3575 = vmatpush1.bf16.msra.mxu0 %v3218
        %3576 = vmatprep.subr.bf16.mxu0 %v3249
        %3577 = vmatpush2.bf16.msra.mxu0 %v3248
        %3578 = vmatprep.subr.bf16.mxu0 %v3247
        %3579 = vmatpush2.bf16.msra.mxu0 %v3246
        %3580 = vmatprep.subr.bf16.mxu0 %v3245
        %3581 = vmatpush2.bf16.msra.mxu0 %v3244
        %3582 = vmatprep.subr.bf16.mxu0 %v3243
        %3583 = vmatpush2.bf16.msra.mxu0 %v3242
        %3584 = vmatprep.subr.bf16.mxu0 %v3241
        %3585 = vmatpush2.bf16.msra.mxu0 %v3240
        %3586 = vmatprep.subr.bf16.mxu0 %v3239
        %3587 = vmatpush2.bf16.msra.mxu0 %v3238
        %3588 = vmatprep.subr.bf16.mxu0 %v3237
        %3589 = vmatpush2.bf16.msra.mxu0 %v3236
        %3590 = vmatprep.subr.bf16.mxu0 %v3235
        %3591 = vmatpush2.bf16.msra.mxu0 %v3234
        %3592 = vmatprep.mubr.bf16.mxu0 %v2509
        %3593 = vmatmul.mubr.bf16.gmra.mxu0 %v2508
        %v3594 = vpop.f32.mrf.mxu0
        %v3595 = vadd.f32 %v3552, %v3594
        %v3596 = vpop.f32.mrf.mxu0
        %v3597 = vadd.f32 %v3554, %v3596
        %v3598 = vpop.f32.mrf.mxu0
        %v3599 = vadd.f32 %v3556, %v3598
        %v3600 = vpop.f32.mrf.mxu0
        %v3601 = vadd.f32 %v3558, %v3600
        %3602 = vdwg.mxu0
        %3603 = vmatprep.subr.bf16.mxu0 %v3265
        %3604 = vmatpush1.bf16.msra.mxu0 %v3264
        %3605 = vmatprep.subr.bf16.mxu0 %v3263
        %3606 = vmatpush1.bf16.msra.mxu0 %v3262
        %3607 = vmatprep.subr.bf16.mxu0 %v3261
        %3608 = vmatpush1.bf16.msra.mxu0 %v3260
        %3609 = vmatprep.subr.bf16.mxu0 %v3259
        %3610 = vmatpush1.bf16.msra.mxu0 %v3258
        %3611 = vmatprep.subr.bf16.mxu0 %v3257
        %3612 = vmatpush1.bf16.msra.mxu0 %v3256
        %3613 = vmatprep.subr.bf16.mxu0 %v3255
        %3614 = vmatpush1.bf16.msra.mxu0 %v3254
        %3615 = vmatprep.subr.bf16.mxu0 %v3253
        %3616 = vmatpush1.bf16.msra.mxu0 %v3252
        %3617 = vmatprep.subr.bf16.mxu0 %v3251
        %3618 = vmatpush1.bf16.msra.mxu0 %v3250
        %3619 = vmatprep.subr.bf16.mxu0 %v3281
        %3620 = vmatpush2.bf16.msra.mxu0 %v3280
        %3621 = vmatprep.subr.bf16.mxu0 %v3279
        %3622 = vmatpush2.bf16.msra.mxu0 %v3278
        %3623 = vmatprep.subr.bf16.mxu0 %v3277
        %3624 = vmatpush2.bf16.msra.mxu0 %v3276
        %3625 = vmatprep.subr.bf16.mxu0 %v3275
        %3626 = vmatpush2.bf16.msra.mxu0 %v3274
        %3627 = vmatprep.subr.bf16.mxu0 %v3273
        %3628 = vmatpush2.bf16.msra.mxu0 %v3272
        %3629 = vmatprep.subr.bf16.mxu0 %v3271
        %3630 = vmatpush2.bf16.msra.mxu0 %v3270
        %3631 = vmatprep.subr.bf16.mxu0 %v3269
        %3632 = vmatpush2.bf16.msra.mxu0 %v3268
        %3633 = vmatprep.subr.bf16.mxu0 %v3267
        %3634 = vmatpush2.bf16.msra.mxu0 %v3266
        %3635 = vmatprep.mubr.bf16.mxu0 %v2511
        %3636 = vmatmul.mubr.bf16.gmra.mxu0 %v2510
        %v3637 = vpop.f32.mrf.mxu0
        %v3638 = vadd.f32 %v3595, %v3637
        %v3639 = vpop.f32.mrf.mxu0
        %v3640 = vadd.f32 %v3597, %v3639
        %v3641 = vpop.f32.mrf.mxu0
        %v3642 = vadd.f32 %v3599, %v3641
        %v3643 = vpop.f32.mrf.mxu0
        %v3644 = vadd.f32 %v3601, %v3643
        %3645 = vdwg.mxu0
        %3646 = vmatprep.subr.bf16.mxu0 %v3297
        %3647 = vmatpush1.bf16.msra.mxu0 %v3296
        %3648 = vmatprep.subr.bf16.mxu0 %v3295
        %3649 = vmatpush1.bf16.msra.mxu0 %v3294
        %3650 = vmatprep.subr.bf16.mxu0 %v3293
        %3651 = vmatpush1.bf16.msra.mxu0 %v3292
        %3652 = vmatprep.subr.bf16.mxu0 %v3291
        %3653 = vmatpush1.bf16.msra.mxu0 %v3290
        %3654 = vmatprep.subr.bf16.mxu0 %v3289
        %3655 = vmatpush1.bf16.msra.mxu0 %v3288
        %3656 = vmatprep.subr.bf16.mxu0 %v3287
        %3657 = vmatpush1.bf16.msra.mxu0 %v3286
        %3658 = vmatprep.subr.bf16.mxu0 %v3285
        %3659 = vmatpush1.bf16.msra.mxu0 %v3284
        %3660 = vmatprep.subr.bf16.mxu0 %v3283
        %3661 = vmatpush1.bf16.msra.mxu0 %v3282
        %3662 = vmatprep.subr.bf16.mxu0 %v3313
        %3663 = vmatpush2.bf16.msra.mxu0 %v3312
        %3664 = vmatprep.subr.bf16.mxu0 %v3311
        %3665 = vmatpush2.bf16.msra.mxu0 %v3310
        %3666 = vmatprep.subr.bf16.mxu0 %v3309
        %3667 = vmatpush2.bf16.msra.mxu0 %v3308
        %3668 = vmatprep.subr.bf16.mxu0 %v3307
        %3669 = vmatpush2.bf16.msra.mxu0 %v3306
        %3670 = vmatprep.subr.bf16.mxu0 %v3305
        %3671 = vmatpush2.bf16.msra.mxu0 %v3304
        %3672 = vmatprep.subr.bf16.mxu0 %v3303
        %3673 = vmatpush2.bf16.msra.mxu0 %v3302
        %3674 = vmatprep.subr.bf16.mxu0 %v3301
        %3675 = vmatpush2.bf16.msra.mxu0 %v3300
        %3676 = vmatprep.subr.bf16.mxu0 %v3299
        %3677 = vmatpush2.bf16.msra.mxu0 %v3298
        %3678 = vmatprep.mubr.bf16.mxu0 %v2513
        %3679 = vmatmul.mubr.bf16.gmra.mxu0 %v2512
        %v3680 = vpop.f32.mrf.mxu0
        %v3681 = vadd.f32 %v3638, %v3680
        %v3682 = vpop.f32.mrf.mxu0
        %v3683 = vadd.f32 %v3640, %v3682
        %v3684 = vpop.f32.mrf.mxu0
        %v3685 = vadd.f32 %v3642, %v3684
        %v3686 = vpop.f32.mrf.mxu0
        %v3687 = vadd.f32 %v3644, %v3686
        %3688 = vdwg.mxu0
        %v3689 = vmax.f32 %v3681, %v3685
        %v3690 = vmax.f32 %v3683, %v3687
        %v3691 = vmax.f32 %v3689, %v3690
        %v3692 = vld [vmem:[%s4] sm:$0x1]
        %v3694 = vlaneseq
        %v3695 = vshrl.u32 %v3694, 7
        %v3696 = vsub.s32 0, %v3695
        %v3697 = vrot.slane %v3692, %v3696
        %v3699 = vadd.f32 %v3691, %v3697
        %v3700 = vmax.f32 %v3699, 0.0
        %v3701 = vld [vmem:[#allocation2 + $0x8] sm:$0xff]
        %v3702 = vld [vmem:[#allocation2 + $0x10] sm:$0xff]
        %v3703 = vld [vmem:[%s2423 + $0x8] sm:$0xff]
        %v3704 = vld [vmem:[%s2423 + $0x10] sm:$0xff]
        %v3705 = vld [vmem:[#allocation2 + $0x8] sm:$0xfe]
        %v3706 = vld [vmem:[#allocation2 + $0x10] sm:$0xfe]
        %v3707 = vld [vmem:[#allocation2 + $0x30] sm:$0x1]
        %v3708 = vld [vmem:[#allocation2 + $0x38] sm:$0x1]
        %v3709 = vld [vmem:[%s2423 + $0x8] sm:$0xfe]
        %v3710 = vld [vmem:[%s2423 + $0x10] sm:$0xfe]
        %v3711 = vld [vmem:[%s2423 + $0x30] sm:$0x1]
        %v3712 = vld [vmem:[%s2423 + $0x38] sm:$0x1]
        %v3713 = vld [vmem:[#allocation2 + $0x8] sm:$0xfc]
        %v3714 = vld [vmem:[#allocation2 + $0x10] sm:$0xfc]
        %v3715 = vld [vmem:[#allocation2 + $0x30] sm:$0x3]
        %v3716 = vld [vmem:[#allocation2 + $0x38] sm:$0x3]
        %v3717 = vld [vmem:[%s2423 + $0x8] sm:$0xfc]
        %v3718 = vld [vmem:[%s2423 + $0x10] sm:$0xfc]
        %v3719 = vld [vmem:[%s2423 + $0x30] sm:$0x3]
        %v3720 = vld [vmem:[%s2423 + $0x38] sm:$0x3]
        %v3725 = vrot.slane %v3705, 1
        %v3726 = vrot.slane %v3707, 1
        %v3727 = vsel %vm2458, %v3725, %v3726
        %v3728 = vrot.slane %v3706, 1
        %v3729 = vrot.slane %v3708, 1
        %v3730 = vsel %vm2458, %v3728, %v3729
        %v3737 = vrot.slane %v3709, 1
        %v3738 = vrot.slane %v3711, 1
        %v3739 = vsel %vm2458, %v3737, %v3738
        %v3740 = vrot.slane %v3710, 1
        %v3741 = vrot.slane %v3712, 1
        %v3742 = vsel %vm2458, %v3740, %v3741
        %v3749 = vrot.slane %v3713, 2
        %v3750 = vrot.slane %v3715, 2
        %v3751 = vsel %vm2483, %v3749, %v3750
        %v3752 = vrot.slane %v3714, 2
        %v3753 = vrot.slane %v3716, 2
        %v3754 = vsel %vm2483, %v3752, %v3753
        %v3761 = vrot.slane %v3717, 2
        %v3762 = vrot.slane %v3719, 2
        %v3763 = vsel %vm2483, %v3761, %v3762
        %v3764 = vrot.slane %v3718, 2
        %v3765 = vrot.slane %v3720, 2
        %v3766 = vsel %vm2483, %v3764, %v3765
        %v3769 = vpack.c.bf16 %v3703, %v3701
        %v3770 = vpack.c.bf16 %v3704, %v3702
        %v3771 = vpack.c.bf16 %v3727, %v3703
        %v3772 = vpack.c.bf16 %v3730, %v3704
        %v3773 = vpack.c.bf16 %v3739, %v3727
        %v3774 = vpack.c.bf16 %v3742, %v3730
        %v3775 = vpack.c.bf16 %v3751, %v3739
        %v3776 = vpack.c.bf16 %v3754, %v3742
        %v3777 = vpack.c.bf16 %v3763, %v3751
        %v3778 = vpack.c.bf16 %v3766, %v3754
        %3779 = vmatprep.subr.bf16.mxu0 %v3169
        %3780 = vmatpush1.bf16.msra.mxu0 %v3168
        %3781 = vmatprep.subr.bf16.mxu0 %v3167
        %3782 = vmatpush1.bf16.msra.mxu0 %v3166
        %3783 = vmatprep.subr.bf16.mxu0 %v3165
        %3784 = vmatpush1.bf16.msra.mxu0 %v3164
        %3785 = vmatprep.subr.bf16.mxu0 %v3163
        %3786 = vmatpush1.bf16.msra.mxu0 %v3162
        %3787 = vmatprep.subr.bf16.mxu0 %v3161
        %3788 = vmatpush1.bf16.msra.mxu0 %v3160
        %3789 = vmatprep.subr.bf16.mxu0 %v3159
        %3790 = vmatpush1.bf16.msra.mxu0 %v3158
        %3791 = vmatprep.subr.bf16.mxu0 %v3157
        %3792 = vmatpush1.bf16.msra.mxu0 %v3156
        %3793 = vmatprep.subr.bf16.mxu0 %v3155
        %3794 = vmatpush1.bf16.msra.mxu0 %v3154
        %3795 = vmatprep.subr.bf16.mxu0 %v3185
        %3796 = vmatpush2.bf16.msra.mxu0 %v3184
        %3797 = vmatprep.subr.bf16.mxu0 %v3183
        %3798 = vmatpush2.bf16.msra.mxu0 %v3182
        %3799 = vmatprep.subr.bf16.mxu0 %v3181
        %3800 = vmatpush2.bf16.msra.mxu0 %v3180
        %3801 = vmatprep.subr.bf16.mxu0 %v3179
        %3802 = vmatpush2.bf16.msra.mxu0 %v3178
        %3803 = vmatprep.subr.bf16.mxu0 %v3177
        %3804 = vmatpush2.bf16.msra.mxu0 %v3176
        %3805 = vmatprep.subr.bf16.mxu0 %v3175
        %3806 = vmatpush2.bf16.msra.mxu0 %v3174
        %3807 = vmatprep.subr.bf16.mxu0 %v3173
        %3808 = vmatpush2.bf16.msra.mxu0 %v3172
        %3809 = vmatprep.subr.bf16.mxu0 %v3171
        %3810 = vmatpush2.bf16.msra.mxu0 %v3170
        %3811 = vmatprep.mubr.bf16.mxu0 %v3770
        %3812 = vmatmul.mubr.bf16.gmra.mxu0 %v3769
        %v3813 = vpop.f32.mrf.mxu0
        %v3814 = vadd.f32 0.0, %v3813
        %v3815 = vpop.f32.mrf.mxu0
        %v3816 = vadd.f32 0.0, %v3815
        %v3817 = vpop.f32.mrf.mxu0
        %v3818 = vadd.f32 0.0, %v3817
        %v3819 = vpop.f32.mrf.mxu0
        %v3820 = vadd.f32 0.0, %v3819
        %3821 = vdwg.mxu0
        %3822 = vmatprep.subr.bf16.mxu0 %v3201
        %3823 = vmatpush1.bf16.msra.mxu0 %v3200
        %3824 = vmatprep.subr.bf16.mxu0 %v3199
        %3825 = vmatpush1.bf16.msra.mxu0 %v3198
        %3826 = vmatprep.subr.bf16.mxu0 %v3197
        %3827 = vmatpush1.bf16.msra.mxu0 %v3196
        %3828 = vmatprep.subr.bf16.mxu0 %v3195
        %3829 = vmatpush1.bf16.msra.mxu0 %v3194
        %3830 = vmatprep.subr.bf16.mxu0 %v3193
        %3831 = vmatpush1.bf16.msra.mxu0 %v3192
        %3832 = vmatprep.subr.bf16.mxu0 %v3191
        %3833 = vmatpush1.bf16.msra.mxu0 %v3190
        %3834 = vmatprep.subr.bf16.mxu0 %v3189
        %3835 = vmatpush1.bf16.msra.mxu0 %v3188
        %3836 = vmatprep.subr.bf16.mxu0 %v3187
        %3837 = vmatpush1.bf16.msra.mxu0 %v3186
        %3838 = vmatprep.subr.bf16.mxu0 %v3217
        %3839 = vmatpush2.bf16.msra.mxu0 %v3216
        %3840 = vmatprep.subr.bf16.mxu0 %v3215
        %3841 = vmatpush2.bf16.msra.mxu0 %v3214
        %3842 = vmatprep.subr.bf16.mxu0 %v3213
        %3843 = vmatpush2.bf16.msra.mxu0 %v3212
        %3844 = vmatprep.subr.bf16.mxu0 %v3211
        %3845 = vmatpush2.bf16.msra.mxu0 %v3210
        %3846 = vmatprep.subr.bf16.mxu0 %v3209
        %3847 = vmatpush2.bf16.msra.mxu0 %v3208
        %3848 = vmatprep.subr.bf16.mxu0 %v3207
        %3849 = vmatpush2.bf16.msra.mxu0 %v3206
        %3850 = vmatprep.subr.bf16.mxu0 %v3205
        %3851 = vmatpush2.bf16.msra.mxu0 %v3204
        %3852 = vmatprep.subr.bf16.mxu0 %v3203
        %3853 = vmatpush2.bf16.msra.mxu0 %v3202
        %3854 = vmatprep.mubr.bf16.mxu0 %v3772
        %3855 = vmatmul.mubr.bf16.gmra.mxu0 %v3771
        %v3856 = vpop.f32.mrf.mxu0
        %v3857 = vadd.f32 %v3814, %v3856
        %v3858 = vpop.f32.mrf.mxu0
        %v3859 = vadd.f32 %v3816, %v3858
        %v3860 = vpop.f32.mrf.mxu0
        %v3861 = vadd.f32 %v3818, %v3860
        %v3862 = vpop.f32.mrf.mxu0
        %v3863 = vadd.f32 %v3820, %v3862
        %3864 = vdwg.mxu0
        %3865 = vmatprep.subr.bf16.mxu0 %v3233
        %3866 = vmatpush1.bf16.msra.mxu0 %v3232
        %3867 = vmatprep.subr.bf16.mxu0 %v3231
        %3868 = vmatpush1.bf16.msra.mxu0 %v3230
        %3869 = vmatprep.subr.bf16.mxu0 %v3229
        %3870 = vmatpush1.bf16.msra.mxu0 %v3228
        %3871 = vmatprep.subr.bf16.mxu0 %v3227
        %3872 = vmatpush1.bf16.msra.mxu0 %v3226
        %3873 = vmatprep.subr.bf16.mxu0 %v3225
        %3874 = vmatpush1.bf16.msra.mxu0 %v3224
        %3875 = vmatprep.subr.bf16.mxu0 %v3223
        %3876 = vmatpush1.bf16.msra.mxu0 %v3222
        %3877 = vmatprep.subr.bf16.mxu0 %v3221
        %3878 = vmatpush1.bf16.msra.mxu0 %v3220
        %3879 = vmatprep.subr.bf16.mxu0 %v3219
        %3880 = vmatpush1.bf16.msra.mxu0 %v3218
        %3881 = vmatprep.subr.bf16.mxu0 %v3249
        %3882 = vmatpush2.bf16.msra.mxu0 %v3248
        %3883 = vmatprep.subr.bf16.mxu0 %v3247
        %3884 = vmatpush2.bf16.msra.mxu0 %v3246
        %3885 = vmatprep.subr.bf16.mxu0 %v3245
        %3886 = vmatpush2.bf16.msra.mxu0 %v3244
        %3887 = vmatprep.subr.bf16.mxu0 %v3243
        %3888 = vmatpush2.bf16.msra.mxu0 %v3242
        %3889 = vmatprep.subr.bf16.mxu0 %v3241
        %3890 = vmatpush2.bf16.msra.mxu0 %v3240
        %3891 = vmatprep.subr.bf16.mxu0 %v3239
        %3892 = vmatpush2.bf16.msra.mxu0 %v3238
        %3893 = vmatprep.subr.bf16.mxu0 %v3237
        %3894 = vmatpush2.bf16.msra.mxu0 %v3236
        %3895 = vmatprep.subr.bf16.mxu0 %v3235
        %3896 = vmatpush2.bf16.msra.mxu0 %v3234
        %3897 = vmatprep.mubr.bf16.mxu0 %v3774
        %3898 = vmatmul.mubr.bf16.gmra.mxu0 %v3773
        %v3899 = vpop.f32.mrf.mxu0
        %v3900 = vadd.f32 %v3857, %v3899
        %v3901 = vpop.f32.mrf.mxu0
        %v3902 = vadd.f32 %v3859, %v3901
        %v3903 = vpop.f32.mrf.mxu0
        %v3904 = vadd.f32 %v3861, %v3903
        %v3905 = vpop.f32.mrf.mxu0
        %v3906 = vadd.f32 %v3863, %v3905
        %3907 = vdwg.mxu0
        %3908 = vmatprep.subr.bf16.mxu0 %v3265
        %3909 = vmatpush1.bf16.msra.mxu0 %v3264
        %3910 = vmatprep.subr.bf16.mxu0 %v3263
        %3911 = vmatpush1.bf16.msra.mxu0 %v3262
        %3912 = vmatprep.subr.bf16.mxu0 %v3261
        %3913 = vmatpush1.bf16.msra.mxu0 %v3260
        %3914 = vmatprep.subr.bf16.mxu0 %v3259
        %3915 = vmatpush1.bf16.msra.mxu0 %v3258
        %3916 = vmatprep.subr.bf16.mxu0 %v3257
        %3917 = vmatpush1.bf16.msra.mxu0 %v3256
        %3918 = vmatprep.subr.bf16.mxu0 %v3255
        %3919 = vmatpush1.bf16.msra.mxu0 %v3254
        %3920 = vmatprep.subr.bf16.mxu0 %v3253
        %3921 = vmatpush1.bf16.msra.mxu0 %v3252
        %3922 = vmatprep.subr.bf16.mxu0 %v3251
        %3923 = vmatpush1.bf16.msra.mxu0 %v3250
        %3924 = vmatprep.subr.bf16.mxu0 %v3281
        %3925 = vmatpush2.bf16.msra.mxu0 %v3280
        %3926 = vmatprep.subr.bf16.mxu0 %v3279
        %3927 = vmatpush2.bf16.msra.mxu0 %v3278
        %3928 = vmatprep.subr.bf16.mxu0 %v3277
        %3929 = vmatpush2.bf16.msra.mxu0 %v3276
        %3930 = vmatprep.subr.bf16.mxu0 %v3275
        %3931 = vmatpush2.bf16.msra.mxu0 %v3274
        %3932 = vmatprep.subr.bf16.mxu0 %v3273
        %3933 = vmatpush2.bf16.msra.mxu0 %v3272
        %3934 = vmatprep.subr.bf16.mxu0 %v3271
        %3935 = vmatpush2.bf16.msra.mxu0 %v3270
        %3936 = vmatprep.subr.bf16.mxu0 %v3269
        %3937 = vmatpush2.bf16.msra.mxu0 %v3268
        %3938 = vmatprep.subr.bf16.mxu0 %v3267
        %3939 = vmatpush2.bf16.msra.mxu0 %v3266
        %3940 = vmatprep.mubr.bf16.mxu0 %v3776
        %3941 = vmatmul.mubr.bf16.gmra.mxu0 %v3775
        %v3942 = vpop.f32.mrf.mxu0
        %v3943 = vadd.f32 %v3900, %v3942
        %v3944 = vpop.f32.mrf.mxu0
        %v3945 = vadd.f32 %v3902, %v3944
        %v3946 = vpop.f32.mrf.mxu0
        %v3947 = vadd.f32 %v3904, %v3946
        %v3948 = vpop.f32.mrf.mxu0
        %v3949 = vadd.f32 %v3906, %v3948
        %3950 = vdwg.mxu0
        %3951 = vmatprep.subr.bf16.mxu0 %v3297
        %3952 = vmatpush1.bf16.msra.mxu0 %v3296
        %3953 = vmatprep.subr.bf16.mxu0 %v3295
        %3954 = vmatpush1.bf16.msra.mxu0 %v3294
        %3955 = vmatprep.subr.bf16.mxu0 %v3293
        %3956 = vmatpush1.bf16.msra.mxu0 %v3292
        %3957 = vmatprep.subr.bf16.mxu0 %v3291
        %3958 = vmatpush1.bf16.msra.mxu0 %v3290
        %3959 = vmatprep.subr.bf16.mxu0 %v3289
        %3960 = vmatpush1.bf16.msra.mxu0 %v3288
        %3961 = vmatprep.subr.bf16.mxu0 %v3287
        %3962 = vmatpush1.bf16.msra.mxu0 %v3286
        %3963 = vmatprep.subr.bf16.mxu0 %v3285
        %3964 = vmatpush1.bf16.msra.mxu0 %v3284
        %3965 = vmatprep.subr.bf16.mxu0 %v3283
        %3966 = vmatpush1.bf16.msra.mxu0 %v3282
        %3967 = vmatprep.subr.bf16.mxu0 %v3313
        %3968 = vmatpush2.bf16.msra.mxu0 %v3312
        %3969 = vmatprep.subr.bf16.mxu0 %v3311
        %3970 = vmatpush2.bf16.msra.mxu0 %v3310
        %3971 = vmatprep.subr.bf16.mxu0 %v3309
        %3972 = vmatpush2.bf16.msra.mxu0 %v3308
        %3973 = vmatprep.subr.bf16.mxu0 %v3307
        %3974 = vmatpush2.bf16.msra.mxu0 %v3306
        %3975 = vmatprep.subr.bf16.mxu0 %v3305
        %3976 = vmatpush2.bf16.msra.mxu0 %v3304
        %3977 = vmatprep.subr.bf16.mxu0 %v3303
        %3978 = vmatpush2.bf16.msra.mxu0 %v3302
        %3979 = vmatprep.subr.bf16.mxu0 %v3301
        %3980 = vmatpush2.bf16.msra.mxu0 %v3300
        %3981 = vmatprep.subr.bf16.mxu0 %v3299
        %3982 = vmatpush2.bf16.msra.mxu0 %v3298
        %3983 = vmatprep.mubr.bf16.mxu0 %v3778
        %3984 = vmatmul.mubr.bf16.gmra.mxu0 %v3777
        %v3985 = vpop.f32.mrf.mxu0
        %v3986 = vadd.f32 %v3943, %v3985
        %v3987 = vpop.f32.mrf.mxu0
        %v3988 = vadd.f32 %v3945, %v3987
        %v3989 = vpop.f32.mrf.mxu0
        %v3990 = vadd.f32 %v3947, %v3989
        %v3991 = vpop.f32.mrf.mxu0
        %v3992 = vadd.f32 %v3949, %v3991
        %3993 = vdwg.mxu0
        %v3994 = vmax.f32 %v3986, %v3990
        %v3995 = vmax.f32 %v3988, %v3992
        %v3996 = vmax.f32 %v3994, %v3995
        %v3997 = vadd.f32 %v3996, %v3697
        %v3998 = vmax.f32 %v3997, 0.0
        %v3999 = vld [vmem:[#allocation2 + $0x10] sm:$0xff]
        %v4000 = vld [vmem:[#allocation2 + $0x18] sm:$0xff]
        %v4001 = vld [vmem:[%s2423 + $0x10] sm:$0xff]
        %v4002 = vld [vmem:[%s2423 + $0x18] sm:$0xff]
        %v4003 = vld [vmem:[#allocation2 + $0x10] sm:$0xfe]
        %v4004 = vld [vmem:[#allocation2 + $0x18] sm:$0xfe]
        %v4005 = vld [vmem:[#allocation2 + $0x38] sm:$0x1]
        %v4006 = vld [vmem:[#allocation2 + $0x40] sm:$0x1]
        %v4007 = vld [vmem:[%s2423 + $0x10] sm:$0xfe]
        %v4008 = vld [vmem:[%s2423 + $0x18] sm:$0xfe]
        %v4009 = vld [vmem:[%s2423 + $0x38] sm:$0x1]
        %v4010 = vld [vmem:[%s2423 + $0x40] sm:$0x1]
        %v4011 = vld [vmem:[#allocation2 + $0x10] sm:$0xfc]
        %v4012 = vld [vmem:[#allocation2 + $0x18] sm:$0xfc]
        %v4013 = vld [vmem:[#allocation2 + $0x38] sm:$0x3]
        %v4014 = vld [vmem:[#allocation2 + $0x40] sm:$0x3]
        %v4015 = vld [vmem:[%s2423 + $0x10] sm:$0xfc]
        %v4016 = vld [vmem:[%s2423 + $0x18] sm:$0xfc]
        %v4017 = vld [vmem:[%s2423 + $0x38] sm:$0x3]
        %v4018 = vld [vmem:[%s2423 + $0x40] sm:$0x3]
        %v4023 = vrot.slane %v4003, 1
        %v4024 = vrot.slane %v4005, 1
        %v4025 = vsel %vm2458, %v4023, %v4024
        %v4026 = vrot.slane %v4004, 1
        %v4027 = vrot.slane %v4006, 1
        %v4028 = vsel %vm2458, %v4026, %v4027
        %v4035 = vrot.slane %v4007, 1
        %v4036 = vrot.slane %v4009, 1
        %v4037 = vsel %vm2458, %v4035, %v4036
        %v4038 = vrot.slane %v4008, 1
        %v4039 = vrot.slane %v4010, 1
        %v4040 = vsel %vm2458, %v4038, %v4039
        %v4047 = vrot.slane %v4011, 2
        %v4048 = vrot.slane %v4013, 2
        %v4049 = vsel %vm2483, %v4047, %v4048
        %v4050 = vrot.slane %v4012, 2
        %v4051 = vrot.slane %v4014, 2
        %v4052 = vsel %vm2483, %v4050, %v4051
        %v4059 = vrot.slane %v4015, 2
        %v4060 = vrot.slane %v4017, 2
        %v4061 = vsel %vm2483, %v4059, %v4060
        %v4062 = vrot.slane %v4016, 2
        %v4063 = vrot.slane %v4018, 2
        %v4064 = vsel %vm2483, %v4062, %v4063
        %v4067 = vpack.c.bf16 %v4001, %v3999
        %v4068 = vpack.c.bf16 %v4002, %v4000
        %v4069 = vpack.c.bf16 %v4025, %v4001
        %v4070 = vpack.c.bf16 %v4028, %v4002
        %v4071 = vpack.c.bf16 %v4037, %v4025
        %v4072 = vpack.c.bf16 %v4040, %v4028
        %v4073 = vpack.c.bf16 %v4049, %v4037
        %v4074 = vpack.c.bf16 %v4052, %v4040
        %v4075 = vpack.c.bf16 %v4061, %v4049
        %v4076 = vpack.c.bf16 %v4064, %v4052
        %4077 = vmatprep.subr.bf16.mxu0 %v3169
        %4078 = vmatpush1.bf16.msra.mxu0 %v3168
        %4079 = vmatprep.subr.bf16.mxu0 %v3167
        %4080 = vmatpush1.bf16.msra.mxu0 %v3166
        %4081 = vmatprep.subr.bf16.mxu0 %v3165
        %4082 = vmatpush1.bf16.msra.mxu0 %v3164
        %4083 = vmatprep.subr.bf16.mxu0 %v3163
        %4084 = vmatpush1.bf16.msra.mxu0 %v3162
        %4085 = vmatprep.subr.bf16.mxu0 %v3161
        %4086 = vmatpush1.bf16.msra.mxu0 %v3160
        %4087 = vmatprep.subr.bf16.mxu0 %v3159
        %4088 = vmatpush1.bf16.msra.mxu0 %v3158
        %4089 = vmatprep.subr.bf16.mxu0 %v3157
        %4090 = vmatpush1.bf16.msra.mxu0 %v3156
        %4091 = vmatprep.subr.bf16.mxu0 %v3155
        %4092 = vmatpush1.bf16.msra.mxu0 %v3154
        %4093 = vmatprep.subr.bf16.mxu0 %v3185
        %4094 = vmatpush2.bf16.msra.mxu0 %v3184
        %4095 = vmatprep.subr.bf16.mxu0 %v3183
        %4096 = vmatpush2.bf16.msra.mxu0 %v3182
        %4097 = vmatprep.subr.bf16.mxu0 %v3181
        %4098 = vmatpush2.bf16.msra.mxu0 %v3180
        %4099 = vmatprep.subr.bf16.mxu0 %v3179
        %4100 = vmatpush2.bf16.msra.mxu0 %v3178
        %4101 = vmatprep.subr.bf16.mxu0 %v3177
        %4102 = vmatpush2.bf16.msra.mxu0 %v3176
        %4103 = vmatprep.subr.bf16.mxu0 %v3175
        %4104 = vmatpush2.bf16.msra.mxu0 %v3174
        %4105 = vmatprep.subr.bf16.mxu0 %v3173
        %4106 = vmatpush2.bf16.msra.mxu0 %v3172
        %4107 = vmatprep.subr.bf16.mxu0 %v3171
        %4108 = vmatpush2.bf16.msra.mxu0 %v3170
        %4109 = vmatprep.mubr.bf16.mxu0 %v4068
        %4110 = vmatmul.mubr.bf16.gmra.mxu0 %v4067
        %v4111 = vpop.f32.mrf.mxu0
        %v4112 = vadd.f32 0.0, %v4111
        %v4113 = vpop.f32.mrf.mxu0
        %v4114 = vadd.f32 0.0, %v4113
        %v4115 = vpop.f32.mrf.mxu0
        %v4116 = vadd.f32 0.0, %v4115
        %v4117 = vpop.f32.mrf.mxu0
        %v4118 = vadd.f32 0.0, %v4117
        %4119 = vdwg.mxu0
        %4120 = vmatprep.subr.bf16.mxu0 %v3201
        %4121 = vmatpush1.bf16.msra.mxu0 %v3200
        %4122 = vmatprep.subr.bf16.mxu0 %v3199
        %4123 = vmatpush1.bf16.msra.mxu0 %v3198
        %4124 = vmatprep.subr.bf16.mxu0 %v3197
        %4125 = vmatpush1.bf16.msra.mxu0 %v3196
        %4126 = vmatprep.subr.bf16.mxu0 %v3195
        %4127 = vmatpush1.bf16.msra.mxu0 %v3194
        %4128 = vmatprep.subr.bf16.mxu0 %v3193
        %4129 = vmatpush1.bf16.msra.mxu0 %v3192
        %4130 = vmatprep.subr.bf16.mxu0 %v3191
        %4131 = vmatpush1.bf16.msra.mxu0 %v3190
        %4132 = vmatprep.subr.bf16.mxu0 %v3189
        %4133 = vmatpush1.bf16.msra.mxu0 %v3188
        %4134 = vmatprep.subr.bf16.mxu0 %v3187
        %4135 = vmatpush1.bf16.msra.mxu0 %v3186
        %4136 = vmatprep.subr.bf16.mxu0 %v3217
        %4137 = vmatpush2.bf16.msra.mxu0 %v3216
        %4138 = vmatprep.subr.bf16.mxu0 %v3215
        %4139 = vmatpush2.bf16.msra.mxu0 %v3214
        %4140 = vmatprep.subr.bf16.mxu0 %v3213
        %4141 = vmatpush2.bf16.msra.mxu0 %v3212
        %4142 = vmatprep.subr.bf16.mxu0 %v3211
        %4143 = vmatpush2.bf16.msra.mxu0 %v3210
        %4144 = vmatprep.subr.bf16.mxu0 %v3209
        %4145 = vmatpush2.bf16.msra.mxu0 %v3208
        %4146 = vmatprep.subr.bf16.mxu0 %v3207
        %4147 = vmatpush2.bf16.msra.mxu0 %v3206
        %4148 = vmatprep.subr.bf16.mxu0 %v3205
        %4149 = vmatpush2.bf16.msra.mxu0 %v3204
        %4150 = vmatprep.subr.bf16.mxu0 %v3203
        %4151 = vmatpush2.bf16.msra.mxu0 %v3202
        %4152 = vmatprep.mubr.bf16.mxu0 %v4070
        %4153 = vmatmul.mubr.bf16.gmra.mxu0 %v4069
        %v4154 = vpop.f32.mrf.mxu0
        %v4155 = vadd.f32 %v4112, %v4154
        %v4156 = vpop.f32.mrf.mxu0
        %v4157 = vadd.f32 %v4114, %v4156
        %v4158 = vpop.f32.mrf.mxu0
        %v4159 = vadd.f32 %v4116, %v4158
        %v4160 = vpop.f32.mrf.mxu0
        %v4161 = vadd.f32 %v4118, %v4160
        %4162 = vdwg.mxu0
        %4163 = vmatprep.subr.bf16.mxu0 %v3233
        %4164 = vmatpush1.bf16.msra.mxu0 %v3232
        %4165 = vmatprep.subr.bf16.mxu0 %v3231
        %4166 = vmatpush1.bf16.msra.mxu0 %v3230
        %4167 = vmatprep.subr.bf16.mxu0 %v3229
        %4168 = vmatpush1.bf16.msra.mxu0 %v3228
        %4169 = vmatprep.subr.bf16.mxu0 %v3227
        %4170 = vmatpush1.bf16.msra.mxu0 %v3226
        %4171 = vmatprep.subr.bf16.mxu0 %v3225
        %4172 = vmatpush1.bf16.msra.mxu0 %v3224
        %4173 = vmatprep.subr.bf16.mxu0 %v3223
        %4174 = vmatpush1.bf16.msra.mxu0 %v3222
        %4175 = vmatprep.subr.bf16.mxu0 %v3221
        %4176 = vmatpush1.bf16.msra.mxu0 %v3220
        %4177 = vmatprep.subr.bf16.mxu0 %v3219
        %4178 = vmatpush1.bf16.msra.mxu0 %v3218
        %4179 = vmatprep.subr.bf16.mxu0 %v3249
        %4180 = vmatpush2.bf16.msra.mxu0 %v3248
        %4181 = vmatprep.subr.bf16.mxu0 %v3247
        %4182 = vmatpush2.bf16.msra.mxu0 %v3246
        %4183 = vmatprep.subr.bf16.mxu0 %v3245
        %4184 = vmatpush2.bf16.msra.mxu0 %v3244
        %4185 = vmatprep.subr.bf16.mxu0 %v3243
        %4186 = vmatpush2.bf16.msra.mxu0 %v3242
        %4187 = vmatprep.subr.bf16.mxu0 %v3241
        %4188 = vmatpush2.bf16.msra.mxu0 %v3240
        %4189 = vmatprep.subr.bf16.mxu0 %v3239
        %4190 = vmatpush2.bf16.msra.mxu0 %v3238
        %4191 = vmatprep.subr.bf16.mxu0 %v3237
        %4192 = vmatpush2.bf16.msra.mxu0 %v3236
        %4193 = vmatprep.subr.bf16.mxu0 %v3235
        %4194 = vmatpush2.bf16.msra.mxu0 %v3234
        %4195 = vmatprep.mubr.bf16.mxu0 %v4072
        %4196 = vmatmul.mubr.bf16.gmra.mxu0 %v4071
        %v4197 = vpop.f32.mrf.mxu0
        %v4198 = vadd.f32 %v4155, %v4197
        %v4199 = vpop.f32.mrf.mxu0
        %v4200 = vadd.f32 %v4157, %v4199
        %v4201 = vpop.f32.mrf.mxu0
        %v4202 = vadd.f32 %v4159, %v4201
        %v4203 = vpop.f32.mrf.mxu0
        %v4204 = vadd.f32 %v4161, %v4203
        %4205 = vdwg.mxu0
        %4206 = vmatprep.subr.bf16.mxu0 %v3265
        %4207 = vmatpush1.bf16.msra.mxu0 %v3264
        %4208 = vmatprep.subr.bf16.mxu0 %v3263
        %4209 = vmatpush1.bf16.msra.mxu0 %v3262
        %4210 = vmatprep.subr.bf16.mxu0 %v3261
        %4211 = vmatpush1.bf16.msra.mxu0 %v3260
        %4212 = vmatprep.subr.bf16.mxu0 %v3259
        %4213 = vmatpush1.bf16.msra.mxu0 %v3258
        %4214 = vmatprep.subr.bf16.mxu0 %v3257
        %4215 = vmatpush1.bf16.msra.mxu0 %v3256
        %4216 = vmatprep.subr.bf16.mxu0 %v3255
        %4217 = vmatpush1.bf16.msra.mxu0 %v3254
        %4218 = vmatprep.subr.bf16.mxu0 %v3253
        %4219 = vmatpush1.bf16.msra.mxu0 %v3252
        %4220 = vmatprep.subr.bf16.mxu0 %v3251
        %4221 = vmatpush1.bf16.msra.mxu0 %v3250
        %4222 = vmatprep.subr.bf16.mxu0 %v3281
        %4223 = vmatpush2.bf16.msra.mxu0 %v3280
        %4224 = vmatprep.subr.bf16.mxu0 %v3279
        %4225 = vmatpush2.bf16.msra.mxu0 %v3278
        %4226 = vmatprep.subr.bf16.mxu0 %v3277
        %4227 = vmatpush2.bf16.msra.mxu0 %v3276
        %4228 = vmatprep.subr.bf16.mxu0 %v3275
        %4229 = vmatpush2.bf16.msra.mxu0 %v3274
        %4230 = vmatprep.subr.bf16.mxu0 %v3273
        %4231 = vmatpush2.bf16.msra.mxu0 %v3272
        %4232 = vmatprep.subr.bf16.mxu0 %v3271
        %4233 = vmatpush2.bf16.msra.mxu0 %v3270
        %4234 = vmatprep.subr.bf16.mxu0 %v3269
        %4235 = vmatpush2.bf16.msra.mxu0 %v3268
        %4236 = vmatprep.subr.bf16.mxu0 %v3267
        %4237 = vmatpush2.bf16.msra.mxu0 %v3266
        %4238 = vmatprep.mubr.bf16.mxu0 %v4074
        %4239 = vmatmul.mubr.bf16.gmra.mxu0 %v4073
        %v4240 = vpop.f32.mrf.mxu0
        %v4241 = vadd.f32 %v4198, %v4240
        %v4242 = vpop.f32.mrf.mxu0
        %v4243 = vadd.f32 %v4200, %v4242
        %v4244 = vpop.f32.mrf.mxu0
        %v4245 = vadd.f32 %v4202, %v4244
        %v4246 = vpop.f32.mrf.mxu0
        %v4247 = vadd.f32 %v4204, %v4246
        %4248 = vdwg.mxu0
        %4249 = vmatprep.subr.bf16.mxu0 %v3297
        %4250 = vmatpush1.bf16.msra.mxu0 %v3296
        %4251 = vmatprep.subr.bf16.mxu0 %v3295
        %4252 = vmatpush1.bf16.msra.mxu0 %v3294
        %4253 = vmatprep.subr.bf16.mxu0 %v3293
        %4254 = vmatpush1.bf16.msra.mxu0 %v3292
        %4255 = vmatprep.subr.bf16.mxu0 %v3291
        %4256 = vmatpush1.bf16.msra.mxu0 %v3290
        %4257 = vmatprep.subr.bf16.mxu0 %v3289
        %4258 = vmatpush1.bf16.msra.mxu0 %v3288
        %4259 = vmatprep.subr.bf16.mxu0 %v3287
        %4260 = vmatpush1.bf16.msra.mxu0 %v3286
        %4261 = vmatprep.subr.bf16.mxu0 %v3285
        %4262 = vmatpush1.bf16.msra.mxu0 %v3284
        %4263 = vmatprep.subr.bf16.mxu0 %v3283
        %4264 = vmatpush1.bf16.msra.mxu0 %v3282
        %4265 = vmatprep.subr.bf16.mxu0 %v3313
        %4266 = vmatpush2.bf16.msra.mxu0 %v3312
        %4267 = vmatprep.subr.bf16.mxu0 %v3311
        %4268 = vmatpush2.bf16.msra.mxu0 %v3310
        %4269 = vmatprep.subr.bf16.mxu0 %v3309
        %4270 = vmatpush2.bf16.msra.mxu0 %v3308
        %4271 = vmatprep.subr.bf16.mxu0 %v3307
        %4272 = vmatpush2.bf16.msra.mxu0 %v3306
        %4273 = vmatprep.subr.bf16.mxu0 %v3305
        %4274 = vmatpush2.bf16.msra.mxu0 %v3304
        %4275 = vmatprep.subr.bf16.mxu0 %v3303
        %4276 = vmatpush2.bf16.msra.mxu0 %v3302
        %4277 = vmatprep.subr.bf16.mxu0 %v3301
        %4278 = vmatpush2.bf16.msra.mxu0 %v3300
        %4279 = vmatprep.subr.bf16.mxu0 %v3299
        %4280 = vmatpush2.bf16.msra.mxu0 %v3298
        %4281 = vmatprep.mubr.bf16.mxu0 %v4076
        %4282 = vmatmul.mubr.bf16.gmra.mxu0 %v4075
        %v4283 = vpop.f32.mrf.mxu0
        %v4284 = vadd.f32 %v4241, %v4283
        %v4285 = vpop.f32.mrf.mxu0
        %v4286 = vadd.f32 %v4243, %v4285
        %v4287 = vpop.f32.mrf.mxu0
        %v4288 = vadd.f32 %v4245, %v4287
        %v4289 = vpop.f32.mrf.mxu0
        %v4290 = vadd.f32 %v4247, %v4289
        %4291 = vdwg.mxu0
        %v4292 = vmax.f32 %v4284, %v4288
        %v4293 = vmax.f32 %v4286, %v4290
        %v4294 = vmax.f32 %v4292, %v4293
        %v4295 = vadd.f32 %v4294, %v3697
        %v4296 = vmax.f32 %v4295, 0.0
        %v4297 = vld [vmem:[#allocation2 + $0x18] sm:$0xff]
        %v4298 = vld [vmem:[#allocation2 + $0x20] sm:$0xff]
        %v4299 = vld [vmem:[%s2423 + $0x18] sm:$0xff]
        %v4300 = vld [vmem:[%s2423 + $0x20] sm:$0xff]
        %v4301 = vld [vmem:[#allocation2 + $0x18] sm:$0xfe]
        %v4302 = vld [vmem:[#allocation2 + $0x20] sm:$0xfe]
        %v4303 = vld [vmem:[#allocation2 + $0x40] sm:$0x1]
        %v4304 = vld [vmem:[#allocation2 + $0x48] sm:$0x1]
        %v4305 = vld [vmem:[%s2423 + $0x18] sm:$0xfe]
        %v4306 = vld [vmem:[%s2423 + $0x20] sm:$0xfe]
        %v4307 = vld [vmem:[%s2423 + $0x40] sm:$0x1]
        %v4308 = vld [vmem:[%s2423 + $0x48] sm:$0x1]
        %v4309 = vld [vmem:[#allocation2 + $0x18] sm:$0xfc]
        %v4310 = vld [vmem:[#allocation2 + $0x20] sm:$0xfc]
        %v4311 = vld [vmem:[#allocation2 + $0x40] sm:$0x3]
        %v4312 = vld [vmem:[#allocation2 + $0x48] sm:$0x3]
        %v4313 = vld [vmem:[%s2423 + $0x18] sm:$0xfc]
        %v4314 = vld [vmem:[%s2423 + $0x20] sm:$0xfc]
        %v4315 = vld [vmem:[%s2423 + $0x40] sm:$0x3]
        %v4316 = vld [vmem:[%s2423 + $0x48] sm:$0x3]
        %v4321 = vrot.slane %v4301, 1
        %v4322 = vrot.slane %v4303, 1
        %v4323 = vsel %vm2458, %v4321, %v4322
        %v4324 = vrot.slane %v4302, 1
        %v4325 = vrot.slane %v4304, 1
        %v4326 = vsel %vm2458, %v4324, %v4325
        %v4333 = vrot.slane %v4305, 1
        %v4334 = vrot.slane %v4307, 1
        %v4335 = vsel %vm2458, %v4333, %v4334
        %v4336 = vrot.slane %v4306, 1
        %v4337 = vrot.slane %v4308, 1
        %v4338 = vsel %vm2458, %v4336, %v4337
        %v4345 = vrot.slane %v4309, 2
        %v4346 = vrot.slane %v4311, 2
        %v4347 = vsel %vm2483, %v4345, %v4346
        %v4348 = vrot.slane %v4310, 2
        %v4349 = vrot.slane %v4312, 2
        %v4350 = vsel %vm2483, %v4348, %v4349
        %v4357 = vrot.slane %v4313, 2
        %v4358 = vrot.slane %v4315, 2
        %v4359 = vsel %vm2483, %v4357, %v4358
        %v4360 = vrot.slane %v4314, 2
        %v4361 = vrot.slane %v4316, 2
        %v4362 = vsel %vm2483, %v4360, %v4361
        %v4365 = vpack.c.bf16 %v4299, %v4297
        %v4366 = vpack.c.bf16 %v4300, %v4298
        %v4367 = vpack.c.bf16 %v4323, %v4299
        %v4368 = vpack.c.bf16 %v4326, %v4300
        %v4369 = vpack.c.bf16 %v4335, %v4323
        %v4370 = vpack.c.bf16 %v4338, %v4326
        %v4371 = vpack.c.bf16 %v4347, %v4335
        %v4372 = vpack.c.bf16 %v4350, %v4338
        %v4373 = vpack.c.bf16 %v4359, %v4347
        %v4374 = vpack.c.bf16 %v4362, %v4350
        %4375 = vmatprep.subr.bf16.mxu0 %v3169
        %4376 = vmatpush1.bf16.msra.mxu0 %v3168
        %4377 = vmatprep.subr.bf16.mxu0 %v3167
        %4378 = vmatpush1.bf16.msra.mxu0 %v3166
        %4379 = vmatprep.subr.bf16.mxu0 %v3165
        %4380 = vmatpush1.bf16.msra.mxu0 %v3164
        %4381 = vmatprep.subr.bf16.mxu0 %v3163
        %4382 = vmatpush1.bf16.msra.mxu0 %v3162
        %4383 = vmatprep.subr.bf16.mxu0 %v3161
        %4384 = vmatpush1.bf16.msra.mxu0 %v3160
        %4385 = vmatprep.subr.bf16.mxu0 %v3159
        %4386 = vmatpush1.bf16.msra.mxu0 %v3158
        %4387 = vmatprep.subr.bf16.mxu0 %v3157
        %4388 = vmatpush1.bf16.msra.mxu0 %v3156
        %4389 = vmatprep.subr.bf16.mxu0 %v3155
        %4390 = vmatpush1.bf16.msra.mxu0 %v3154
        %4391 = vmatprep.subr.bf16.mxu0 %v3185
        %4392 = vmatpush2.bf16.msra.mxu0 %v3184
        %4393 = vmatprep.subr.bf16.mxu0 %v3183
        %4394 = vmatpush2.bf16.msra.mxu0 %v3182
        %4395 = vmatprep.subr.bf16.mxu0 %v3181
        %4396 = vmatpush2.bf16.msra.mxu0 %v3180
        %4397 = vmatprep.subr.bf16.mxu0 %v3179
        %4398 = vmatpush2.bf16.msra.mxu0 %v3178
        %4399 = vmatprep.subr.bf16.mxu0 %v3177
        %4400 = vmatpush2.bf16.msra.mxu0 %v3176
        %4401 = vmatprep.subr.bf16.mxu0 %v3175
        %4402 = vmatpush2.bf16.msra.mxu0 %v3174
        %4403 = vmatprep.subr.bf16.mxu0 %v3173
        %4404 = vmatpush2.bf16.msra.mxu0 %v3172
        %4405 = vmatprep.subr.bf16.mxu0 %v3171
        %4406 = vmatpush2.bf16.msra.mxu0 %v3170
        %4407 = vmatprep.mubr.bf16.mxu0 %v4366
        %4408 = vmatmul.mubr.bf16.gmra.mxu0 %v4365
        %v4409 = vpop.f32.mrf.mxu0
        %v4410 = vadd.f32 0.0, %v4409
        %v4411 = vpop.f32.mrf.mxu0
        %v4412 = vadd.f32 0.0, %v4411
        %v4413 = vpop.f32.mrf.mxu0
        %v4414 = vadd.f32 0.0, %v4413
        %v4415 = vpop.f32.mrf.mxu0
        %v4416 = vadd.f32 0.0, %v4415
        %4417 = vdwg.mxu0
        %4418 = vmatprep.subr.bf16.mxu0 %v3201
        %4419 = vmatpush1.bf16.msra.mxu0 %v3200
        %4420 = vmatprep.subr.bf16.mxu0 %v3199
        %4421 = vmatpush1.bf16.msra.mxu0 %v3198
        %4422 = vmatprep.subr.bf16.mxu0 %v3197
        %4423 = vmatpush1.bf16.msra.mxu0 %v3196
        %4424 = vmatprep.subr.bf16.mxu0 %v3195
        %4425 = vmatpush1.bf16.msra.mxu0 %v3194
        %4426 = vmatprep.subr.bf16.mxu0 %v3193
        %4427 = vmatpush1.bf16.msra.mxu0 %v3192
        %4428 = vmatprep.subr.bf16.mxu0 %v3191
        %4429 = vmatpush1.bf16.msra.mxu0 %v3190
        %4430 = vmatprep.subr.bf16.mxu0 %v3189
        %4431 = vmatpush1.bf16.msra.mxu0 %v3188
        %4432 = vmatprep.subr.bf16.mxu0 %v3187
        %4433 = vmatpush1.bf16.msra.mxu0 %v3186
        %4434 = vmatprep.subr.bf16.mxu0 %v3217
        %4435 = vmatpush2.bf16.msra.mxu0 %v3216
        %4436 = vmatprep.subr.bf16.mxu0 %v3215
        %4437 = vmatpush2.bf16.msra.mxu0 %v3214
        %4438 = vmatprep.subr.bf16.mxu0 %v3213
        %4439 = vmatpush2.bf16.msra.mxu0 %v3212
        %4440 = vmatprep.subr.bf16.mxu0 %v3211
        %4441 = vmatpush2.bf16.msra.mxu0 %v3210
        %4442 = vmatprep.subr.bf16.mxu0 %v3209
        %4443 = vmatpush2.bf16.msra.mxu0 %v3208
        %4444 = vmatprep.subr.bf16.mxu0 %v3207
        %4445 = vmatpush2.bf16.msra.mxu0 %v3206
        %4446 = vmatprep.subr.bf16.mxu0 %v3205
        %4447 = vmatpush2.bf16.msra.mxu0 %v3204
        %4448 = vmatprep.subr.bf16.mxu0 %v3203
        %4449 = vmatpush2.bf16.msra.mxu0 %v3202
        %4450 = vmatprep.mubr.bf16.mxu0 %v4368
        %4451 = vmatmul.mubr.bf16.gmra.mxu0 %v4367
        %v4452 = vpop.f32.mrf.mxu0
        %v4453 = vadd.f32 %v4410, %v4452
        %v4454 = vpop.f32.mrf.mxu0
        %v4455 = vadd.f32 %v4412, %v4454
        %v4456 = vpop.f32.mrf.mxu0
        %v4457 = vadd.f32 %v4414, %v4456
        %v4458 = vpop.f32.mrf.mxu0
        %v4459 = vadd.f32 %v4416, %v4458
        %4460 = vdwg.mxu0
        %4461 = vmatprep.subr.bf16.mxu0 %v3233
        %4462 = vmatpush1.bf16.msra.mxu0 %v3232
        %4463 = vmatprep.subr.bf16.mxu0 %v3231
        %4464 = vmatpush1.bf16.msra.mxu0 %v3230
        %4465 = vmatprep.subr.bf16.mxu0 %v3229
        %4466 = vmatpush1.bf16.msra.mxu0 %v3228
        %4467 = vmatprep.subr.bf16.mxu0 %v3227
        %4468 = vmatpush1.bf16.msra.mxu0 %v3226
        %4469 = vmatprep.subr.bf16.mxu0 %v3225
        %4470 = vmatpush1.bf16.msra.mxu0 %v3224
        %4471 = vmatprep.subr.bf16.mxu0 %v3223
        %4472 = vmatpush1.bf16.msra.mxu0 %v3222
        %4473 = vmatprep.subr.bf16.mxu0 %v3221
        %4474 = vmatpush1.bf16.msra.mxu0 %v3220
        %4475 = vmatprep.subr.bf16.mxu0 %v3219
        %4476 = vmatpush1.bf16.msra.mxu0 %v3218
        %4477 = vmatprep.subr.bf16.mxu0 %v3249
        %4478 = vmatpush2.bf16.msra.mxu0 %v3248
        %4479 = vmatprep.subr.bf16.mxu0 %v3247
        %4480 = vmatpush2.bf16.msra.mxu0 %v3246
        %4481 = vmatprep.subr.bf16.mxu0 %v3245
        %4482 = vmatpush2.bf16.msra.mxu0 %v3244
        %4483 = vmatprep.subr.bf16.mxu0 %v3243
        %4484 = vmatpush2.bf16.msra.mxu0 %v3242
        %4485 = vmatprep.subr.bf16.mxu0 %v3241
        %4486 = vmatpush2.bf16.msra.mxu0 %v3240
        %4487 = vmatprep.subr.bf16.mxu0 %v3239
        %4488 = vmatpush2.bf16.msra.mxu0 %v3238
        %4489 = vmatprep.subr.bf16.mxu0 %v3237
        %4490 = vmatpush2.bf16.msra.mxu0 %v3236
        %4491 = vmatprep.subr.bf16.mxu0 %v3235
        %4492 = vmatpush2.bf16.msra.mxu0 %v3234
        %4493 = vmatprep.mubr.bf16.mxu0 %v4370
        %4494 = vmatmul.mubr.bf16.gmra.mxu0 %v4369
        %v4495 = vpop.f32.mrf.mxu0
        %v4496 = vadd.f32 %v4453, %v4495
        %v4497 = vpop.f32.mrf.mxu0
        %v4498 = vadd.f32 %v4455, %v4497
        %v4499 = vpop.f32.mrf.mxu0
        %v4500 = vadd.f32 %v4457, %v4499
        %v4501 = vpop.f32.mrf.mxu0
        %v4502 = vadd.f32 %v4459, %v4501
        %4503 = vdwg.mxu0
        %4504 = vmatprep.subr.bf16.mxu0 %v3265
        %4505 = vmatpush1.bf16.msra.mxu0 %v3264
        %4506 = vmatprep.subr.bf16.mxu0 %v3263
        %4507 = vmatpush1.bf16.msra.mxu0 %v3262
        %4508 = vmatprep.subr.bf16.mxu0 %v3261
        %4509 = vmatpush1.bf16.msra.mxu0 %v3260
        %4510 = vmatprep.subr.bf16.mxu0 %v3259
        %4511 = vmatpush1.bf16.msra.mxu0 %v3258
        %4512 = vmatprep.subr.bf16.mxu0 %v3257
        %4513 = vmatpush1.bf16.msra.mxu0 %v3256
        %4514 = vmatprep.subr.bf16.mxu0 %v3255
        %4515 = vmatpush1.bf16.msra.mxu0 %v3254
        %4516 = vmatprep.subr.bf16.mxu0 %v3253
        %4517 = vmatpush1.bf16.msra.mxu0 %v3252
        %4518 = vmatprep.subr.bf16.mxu0 %v3251
        %4519 = vmatpush1.bf16.msra.mxu0 %v3250
        %4520 = vmatprep.subr.bf16.mxu0 %v3281
        %4521 = vmatpush2.bf16.msra.mxu0 %v3280
        %4522 = vmatprep.subr.bf16.mxu0 %v3279
        %4523 = vmatpush2.bf16.msra.mxu0 %v3278
        %4524 = vmatprep.subr.bf16.mxu0 %v3277
        %4525 = vmatpush2.bf16.msra.mxu0 %v3276
        %4526 = vmatprep.subr.bf16.mxu0 %v3275
        %4527 = vmatpush2.bf16.msra.mxu0 %v3274
        %4528 = vmatprep.subr.bf16.mxu0 %v3273
        %4529 = vmatpush2.bf16.msra.mxu0 %v3272
        %4530 = vmatprep.subr.bf16.mxu0 %v3271
        %4531 = vmatpush2.bf16.msra.mxu0 %v3270
        %4532 = vmatprep.subr.bf16.mxu0 %v3269
        %4533 = vmatpush2.bf16.msra.mxu0 %v3268
        %4534 = vmatprep.subr.bf16.mxu0 %v3267
        %4535 = vmatpush2.bf16.msra.mxu0 %v3266
        %4536 = vmatprep.mubr.bf16.mxu0 %v4372
        %4537 = vmatmul.mubr.bf16.gmra.mxu0 %v4371
        %v4538 = vpop.f32.mrf.mxu0
        %v4539 = vadd.f32 %v4496, %v4538
        %v4540 = vpop.f32.mrf.mxu0
        %v4541 = vadd.f32 %v4498, %v4540
        %v4542 = vpop.f32.mrf.mxu0
        %v4543 = vadd.f32 %v4500, %v4542
        %v4544 = vpop.f32.mrf.mxu0
        %v4545 = vadd.f32 %v4502, %v4544
        %4546 = vdwg.mxu0
        %4547 = vmatprep.subr.bf16.mxu0 %v3297
        %4548 = vmatpush1.bf16.msra.mxu0 %v3296
        %4549 = vmatprep.subr.bf16.mxu0 %v3295
        %4550 = vmatpush1.bf16.msra.mxu0 %v3294
        %4551 = vmatprep.subr.bf16.mxu0 %v3293
        %4552 = vmatpush1.bf16.msra.mxu0 %v3292
        %4553 = vmatprep.subr.bf16.mxu0 %v3291
        %4554 = vmatpush1.bf16.msra.mxu0 %v3290
        %4555 = vmatprep.subr.bf16.mxu0 %v3289
        %4556 = vmatpush1.bf16.msra.mxu0 %v3288
        %4557 = vmatprep.subr.bf16.mxu0 %v3287
        %4558 = vmatpush1.bf16.msra.mxu0 %v3286
        %4559 = vmatprep.subr.bf16.mxu0 %v3285
        %4560 = vmatpush1.bf16.msra.mxu0 %v3284
        %4561 = vmatprep.subr.bf16.mxu0 %v3283
        %4562 = vmatpush1.bf16.msra.mxu0 %v3282
        %4563 = vmatprep.subr.bf16.mxu0 %v3313
        %4564 = vmatpush2.bf16.msra.mxu0 %v3312
        %4565 = vmatprep.subr.bf16.mxu0 %v3311
        %4566 = vmatpush2.bf16.msra.mxu0 %v3310
        %4567 = vmatprep.subr.bf16.mxu0 %v3309
        %4568 = vmatpush2.bf16.msra.mxu0 %v3308
        %4569 = vmatprep.subr.bf16.mxu0 %v3307
        %4570 = vmatpush2.bf16.msra.mxu0 %v3306
        %4571 = vmatprep.subr.bf16.mxu0 %v3305
        %4572 = vmatpush2.bf16.msra.mxu0 %v3304
        %4573 = vmatprep.subr.bf16.mxu0 %v3303
        %4574 = vmatpush2.bf16.msra.mxu0 %v3302
        %4575 = vmatprep.subr.bf16.mxu0 %v3301
        %4576 = vmatpush2.bf16.msra.mxu0 %v3300
        %4577 = vmatprep.subr.bf16.mxu0 %v3299
        %4578 = vmatpush2.bf16.msra.mxu0 %v3298
        %4579 = vmatprep.mubr.bf16.mxu0 %v4374
        %4580 = vmatmul.mubr.bf16.gmra.mxu0 %v4373
        %v4581 = vpop.f32.mrf.mxu0
        %v4582 = vadd.f32 %v4539, %v4581
        %v4583 = vpop.f32.mrf.mxu0
        %v4584 = vadd.f32 %v4541, %v4583
        %v4585 = vpop.f32.mrf.mxu0
        %v4586 = vadd.f32 %v4543, %v4585
        %v4587 = vpop.f32.mrf.mxu0
        %v4588 = vadd.f32 %v4545, %v4587
        %4589 = vdwg.mxu0
        %v4590 = vmax.f32 %v4582, %v4586
        %v4591 = vmax.f32 %v4584, %v4588
        %v4592 = vmax.f32 %v4590, %v4591
        %v4593 = vadd.f32 %v4592, %v3697
        %v4594 = vmax.f32 %v4593, 0.0
        %4595 = vst [vmem:[%s359] sm:$0xff] %v3700
        %4596 = vst [vmem:[%s359 + $0x8] sm:$0xff] %v3998
        %4597 = vst [vmem:[%s359 + $0x10] sm:$0xff] %v4296
        %4598 = vst [vmem:[%s359 + $0x18] sm:$0xff] %v4594
        %v4599 = vpack.c.bf16 %v3700, %v3700
        %v4600 = vpack.c.bf16 %v3998, %v3998
        %v4601 = vpack.c.bf16 %v4296, %v4296
        %v4602 = vpack.c.bf16 %v4594, %v4594
        %v4603 = vld [vmem:[%s6] sm:$0x1]
        %v4604 = vld [vmem:[#allocation8] sm:$0xf]
        %v4605 = vld [vmem:[#allocation8 + $0x4] sm:$0xf]
        %v4606 = vld [vmem:[#allocation8 + $0x8] sm:$0xf]
        %v4607 = vld [vmem:[#allocation8 + $0xc] sm:$0xf]
        %v4608 = vld [vmem:[#allocation8 + $0x10] sm:$0xf]
        %v4609 = vld [vmem:[#allocation8 + $0x14] sm:$0xf]
        %v4610 = vld [vmem:[#allocation8 + $0x18] sm:$0xf]
        %v4611 = vld [vmem:[#allocation8 + $0x1c] sm:$0xf]
        %v4612 = vld [vmem:[#allocation8 + $0x20] sm:$0xf]
        %v4613 = vld [vmem:[#allocation8 + $0x24] sm:$0xf]
        %v4614 = vld [vmem:[#allocation8 + $0x28] sm:$0xf]
        %v4615 = vld [vmem:[#allocation8 + $0x2c] sm:$0xf]
        %v4616 = vld [vmem:[#allocation8 + $0x30] sm:$0xf]
        %v4617 = vld [vmem:[#allocation8 + $0x34] sm:$0xf]
        %v4618 = vld [vmem:[#allocation8 + $0x38] sm:$0xf]
        %v4619 = vld [vmem:[#allocation8 + $0x3c] sm:$0xf]
        %v4620 = vld [vmem:[#allocation8 + $0x40] sm:$0xf]
        %v4621 = vld [vmem:[#allocation8 + $0x44] sm:$0xf]
        %v4622 = vld [vmem:[#allocation8 + $0x48] sm:$0xf]
        %v4623 = vld [vmem:[#allocation8 + $0x4c] sm:$0xf]
        %v4624 = vld [vmem:[#allocation8 + $0x50] sm:$0xf]
        %v4625 = vld [vmem:[#allocation8 + $0x54] sm:$0xf]
        %v4626 = vld [vmem:[#allocation8 + $0x58] sm:$0xf]
        %v4627 = vld [vmem:[#allocation8 + $0x5c] sm:$0xf]
        %v4628 = vld [vmem:[#allocation8 + $0x60] sm:$0xf]
        %v4629 = vld [vmem:[#allocation8 + $0x64] sm:$0xf]
        %v4630 = vld [vmem:[#allocation8 + $0x68] sm:$0xf]
        %v4631 = vld [vmem:[#allocation8 + $0x6c] sm:$0xf]
        %v4632 = vld [vmem:[#allocation8 + $0x70] sm:$0xf]
        %v4633 = vld [vmem:[#allocation8 + $0x74] sm:$0xf]
        %v4634 = vld [vmem:[#allocation8 + $0x78] sm:$0xf]
        %v4635 = vld [vmem:[#allocation8 + $0x7c] sm:$0xf]
        %v4636 = vld [vmem:[#allocation8 + $0x80] sm:$0xf]
        %v4637 = vld [vmem:[#allocation8 + $0x84] sm:$0xf]
        %v4638 = vld [vmem:[#allocation8 + $0x88] sm:$0xf]
        %v4639 = vld [vmem:[#allocation8 + $0x8c] sm:$0xf]
        %v4640 = vld [vmem:[#allocation8 + $0x90] sm:$0xf]
        %v4641 = vld [vmem:[#allocation8 + $0x94] sm:$0xf]
        %v4642 = vld [vmem:[#allocation8 + $0x98] sm:$0xf]
        %v4643 = vld [vmem:[#allocation8 + $0x9c] sm:$0xf]
        %v4644 = vld [vmem:[#allocation8 + $0xa0] sm:$0xf]
        %v4645 = vld [vmem:[#allocation8 + $0xa4] sm:$0xf]
        %v4646 = vld [vmem:[#allocation8 + $0xa8] sm:$0xf]
        %v4647 = vld [vmem:[#allocation8 + $0xac] sm:$0xf]
        %v4648 = vld [vmem:[#allocation8 + $0xb0] sm:$0xf]
        %v4649 = vld [vmem:[#allocation8 + $0xb4] sm:$0xf]
        %v4650 = vld [vmem:[#allocation8 + $0xb8] sm:$0xf]
        %v4651 = vld [vmem:[#allocation8 + $0xbc] sm:$0xf]
        %v4652 = vld [vmem:[#allocation8 + $0xc0] sm:$0xf]
        %v4653 = vld [vmem:[#allocation8 + $0xc4] sm:$0xf]
        %v4654 = vld [vmem:[#allocation8 + $0xc8] sm:$0xf]
        %v4655 = vld [vmem:[#allocation8 + $0xcc] sm:$0xf]
        %v4656 = vld [vmem:[#allocation8 + $0xd0] sm:$0xf]
        %v4657 = vld [vmem:[#allocation8 + $0xd4] sm:$0xf]
        %v4658 = vld [vmem:[#allocation8 + $0xd8] sm:$0xf]
        %v4659 = vld [vmem:[#allocation8 + $0xdc] sm:$0xf]
        %v4660 = vld [vmem:[#allocation8 + $0xe0] sm:$0xf]
        %v4661 = vld [vmem:[#allocation8 + $0xe4] sm:$0xf]
        %v4662 = vld [vmem:[#allocation8 + $0xe8] sm:$0xf]
        %v4663 = vld [vmem:[#allocation8 + $0xec] sm:$0xf]
        %v4664 = vld [vmem:[#allocation8 + $0xf0] sm:$0xf]
        %v4665 = vld [vmem:[#allocation8 + $0xf4] sm:$0xf]
        %v4666 = vld [vmem:[#allocation8 + $0xf8] sm:$0xf]
        %v4667 = vld [vmem:[#allocation8 + $0xfc] sm:$0xf]
        %v4732 = vunpack.c.l.b16 %v4604
        %v4733 = vunpack.c.l.b16 %v4605
        %v4734 = vunpack.c.l.b16 %v4606
        %v4735 = vunpack.c.l.b16 %v4607
        %v4736 = vunpack.c.l.b16 %v4608
        %v4737 = vunpack.c.l.b16 %v4609
        %v4738 = vunpack.c.l.b16 %v4610
        %v4739 = vunpack.c.l.b16 %v4611
        %v4740 = vunpack.c.l.b16 %v4612
        %v4741 = vunpack.c.l.b16 %v4613
        %v4742 = vunpack.c.l.b16 %v4614
        %v4743 = vunpack.c.l.b16 %v4615
        %v4744 = vunpack.c.l.b16 %v4616
        %v4745 = vunpack.c.l.b16 %v4617
        %v4746 = vunpack.c.l.b16 %v4618
        %v4747 = vunpack.c.l.b16 %v4619
        %v4748 = vunpack.c.l.b16 %v4620
        %v4749 = vunpack.c.l.b16 %v4621
        %v4750 = vunpack.c.l.b16 %v4622
        %v4751 = vunpack.c.l.b16 %v4623
        %v4752 = vunpack.c.l.b16 %v4624
        %v4753 = vunpack.c.l.b16 %v4625
        %v4754 = vunpack.c.l.b16 %v4626
        %v4755 = vunpack.c.l.b16 %v4627
        %v4756 = vunpack.c.l.b16 %v4628
        %v4757 = vunpack.c.l.b16 %v4629
        %v4758 = vunpack.c.l.b16 %v4630
        %v4759 = vunpack.c.l.b16 %v4631
        %v4760 = vunpack.c.l.b16 %v4632
        %v4761 = vunpack.c.l.b16 %v4633
        %v4762 = vunpack.c.l.b16 %v4634
        %v4763 = vunpack.c.l.b16 %v4635
        %v4764 = vunpack.c.l.b16 %v4636
        %v4765 = vunpack.c.l.b16 %v4637
        %v4766 = vunpack.c.l.b16 %v4638
        %v4767 = vunpack.c.l.b16 %v4639
        %v4768 = vunpack.c.l.b16 %v4640
        %v4769 = vunpack.c.l.b16 %v4641
        %v4770 = vunpack.c.l.b16 %v4642
        %v4771 = vunpack.c.l.b16 %v4643
        %v4772 = vunpack.c.l.b16 %v4644
        %v4773 = vunpack.c.l.b16 %v4645
        %v4774 = vunpack.c.l.b16 %v4646
        %v4775 = vunpack.c.l.b16 %v4647
        %v4776 = vunpack.c.l.b16 %v4648
        %v4777 = vunpack.c.l.b16 %v4649
        %v4778 = vunpack.c.l.b16 %v4650
        %v4779 = vunpack.c.l.b16 %v4651
        %v4780 = vunpack.c.l.b16 %v4652
        %v4781 = vunpack.c.l.b16 %v4653
        %v4782 = vunpack.c.l.b16 %v4654
        %v4783 = vunpack.c.l.b16 %v4655
        %v4784 = vunpack.c.l.b16 %v4656
        %v4785 = vunpack.c.l.b16 %v4657
        %v4786 = vunpack.c.l.b16 %v4658
        %v4787 = vunpack.c.l.b16 %v4659
        %v4788 = vunpack.c.l.b16 %v4660
        %v4789 = vunpack.c.l.b16 %v4661
        %v4790 = vunpack.c.l.b16 %v4662
        %v4791 = vunpack.c.l.b16 %v4663
        %v4792 = vunpack.c.l.b16 %v4664
        %v4793 = vunpack.c.l.b16 %v4665
        %v4794 = vunpack.c.l.b16 %v4666
        %v4795 = vunpack.c.l.b16 %v4667
        %v4796 = vpack.c.b16 %v4733, %v4732
        %v4797 = vpack.c.b16 %v4735, %v4734
        %v4798 = vpack.c.b16 %v4737, %v4736
        %v4799 = vpack.c.b16 %v4739, %v4738
        %v4800 = vpack.c.b16 %v4741, %v4740
        %v4801 = vpack.c.b16 %v4743, %v4742
        %v4802 = vpack.c.b16 %v4745, %v4744
        %v4803 = vpack.c.b16 %v4747, %v4746
        %v4804 = vpack.c.b16 %v4749, %v4748
        %v4805 = vpack.c.b16 %v4751, %v4750
        %v4806 = vpack.c.b16 %v4753, %v4752
        %v4807 = vpack.c.b16 %v4755, %v4754
        %v4808 = vpack.c.b16 %v4757, %v4756
        %v4809 = vpack.c.b16 %v4759, %v4758
        %v4810 = vpack.c.b16 %v4761, %v4760
        %v4811 = vpack.c.b16 %v4763, %v4762
        %v4812 = vpack.c.b16 %v4765, %v4764
        %v4813 = vpack.c.b16 %v4767, %v4766
        %v4814 = vpack.c.b16 %v4769, %v4768
        %v4815 = vpack.c.b16 %v4771, %v4770
        %v4816 = vpack.c.b16 %v4773, %v4772
        %v4817 = vpack.c.b16 %v4775, %v4774
        %v4818 = vpack.c.b16 %v4777, %v4776
        %v4819 = vpack.c.b16 %v4779, %v4778
        %v4820 = vpack.c.b16 %v4781, %v4780
        %v4821 = vpack.c.b16 %v4783, %v4782
        %v4822 = vpack.c.b16 %v4785, %v4784
        %v4823 = vpack.c.b16 %v4787, %v4786
        %v4824 = vpack.c.b16 %v4789, %v4788
        %v4825 = vpack.c.b16 %v4791, %v4790
        %v4826 = vpack.c.b16 %v4793, %v4792
        %v4827 = vpack.c.b16 %v4795, %v4794
        %4860 = vmatprep.subr.bf16.mxu0 0
        %4861 = vmatpush1.bf16.msra.mxu0 %v4803
        %4862 = vmatprep.subr.bf16.mxu0 0
        %4863 = vmatpush1.bf16.msra.mxu0 %v4802
        %4864 = vmatprep.subr.bf16.mxu0 0
        %4865 = vmatpush1.bf16.msra.mxu0 %v4801
        %4866 = vmatprep.subr.bf16.mxu0 0
        %4867 = vmatpush1.bf16.msra.mxu0 %v4800
        %4868 = vmatprep.subr.bf16.mxu0 0
        %4869 = vmatpush1.bf16.msra.mxu0 %v4799
        %4870 = vmatprep.subr.bf16.mxu0 0
        %4871 = vmatpush1.bf16.msra.mxu0 %v4798
        %4872 = vmatprep.subr.bf16.mxu0 0
        %4873 = vmatpush1.bf16.msra.mxu0 %v4797
        %4874 = vmatprep.subr.bf16.mxu0 0
        %4875 = vmatpush1.bf16.msra.mxu0 %v4796
        %4876 = vmatprep.subr.bf16.mxu0 0
        %4877 = vmatpush2.bf16.msra.mxu0 %v4811
        %4878 = vmatprep.subr.bf16.mxu0 0
        %4879 = vmatpush2.bf16.msra.mxu0 %v4810
        %4880 = vmatprep.subr.bf16.mxu0 0
        %4881 = vmatpush2.bf16.msra.mxu0 %v4809
        %4882 = vmatprep.subr.bf16.mxu0 0
        %4883 = vmatpush2.bf16.msra.mxu0 %v4808
        %4884 = vmatprep.subr.bf16.mxu0 0
        %4885 = vmatpush2.bf16.msra.mxu0 %v4807
        %4886 = vmatprep.subr.bf16.mxu0 0
        %4887 = vmatpush2.bf16.msra.mxu0 %v4806
        %4888 = vmatprep.subr.bf16.mxu0 0
        %4889 = vmatpush2.bf16.msra.mxu0 %v4805
        %4890 = vmatprep.subr.bf16.mxu0 0
        %4891 = vmatpush2.bf16.msra.mxu0 %v4804
        %4892 = vmatprep.mubr.bf16.mxu0 %v4600
        %4893 = vmatmul.mubr.bf16.gmra.mxu0 %v4599
        %v4894 = vpop.f32.mrf.mxu0
        %v4895 = vadd.f32 0.0, %v4894
        %v4896 = vpop.f32.mrf.mxu0
        %v4897 = vpop.f32.mrf.mxu0
        %v4898 = vpop.f32.mrf.mxu0
        %4899 = vdwg.mxu0
        %4900 = vmatprep.subr.bf16.mxu0 0
        %4901 = vmatpush1.bf16.msra.mxu0 %v4819
        %4902 = vmatprep.subr.bf16.mxu0 0
        %4903 = vmatpush1.bf16.msra.mxu0 %v4818
        %4904 = vmatprep.subr.bf16.mxu0 0
        %4905 = vmatpush1.bf16.msra.mxu0 %v4817
        %4906 = vmatprep.subr.bf16.mxu0 0
        %4907 = vmatpush1.bf16.msra.mxu0 %v4816
        %4908 = vmatprep.subr.bf16.mxu0 0
        %4909 = vmatpush1.bf16.msra.mxu0 %v4815
        %4910 = vmatprep.subr.bf16.mxu0 0
        %4911 = vmatpush1.bf16.msra.mxu0 %v4814
        %4912 = vmatprep.subr.bf16.mxu0 0
        %4913 = vmatpush1.bf16.msra.mxu0 %v4813
        %4914 = vmatprep.subr.bf16.mxu0 0
        %4915 = vmatpush1.bf16.msra.mxu0 %v4812
        %4916 = vmatprep.subr.bf16.mxu0 0
        %4917 = vmatpush2.bf16.msra.mxu0 %v4827
        %4918 = vmatprep.subr.bf16.mxu0 0
        %4919 = vmatpush2.bf16.msra.mxu0 %v4826
        %4920 = vmatprep.subr.bf16.mxu0 0
        %4921 = vmatpush2.bf16.msra.mxu0 %v4825
        %4922 = vmatprep.subr.bf16.mxu0 0
        %4923 = vmatpush2.bf16.msra.mxu0 %v4824
        %4924 = vmatprep.subr.bf16.mxu0 0
        %4925 = vmatpush2.bf16.msra.mxu0 %v4823
        %4926 = vmatprep.subr.bf16.mxu0 0
        %4927 = vmatpush2.bf16.msra.mxu0 %v4822
        %4928 = vmatprep.subr.bf16.mxu0 0
        %4929 = vmatpush2.bf16.msra.mxu0 %v4821
        %4930 = vmatprep.subr.bf16.mxu0 0
        %4931 = vmatpush2.bf16.msra.mxu0 %v4820
        %4932 = vmatprep.mubr.bf16.mxu0 %v4602
        %4933 = vmatmul.mubr.bf16.gmra.mxu0 %v4601
        %v4934 = vpop.f32.mrf.mxu0
        %v4935 = vadd.f32 %v4895, %v4934
        %v4936 = vpop.f32.mrf.mxu0
        %v4937 = vpop.f32.mrf.mxu0
        %v4938 = vpop.f32.mrf.mxu0
        %4939 = vdwg.mxu0
        %v4940 = vadd.f32 %v4603, %v4935
        %s4941 = scalar_lea.vmem [#allocation8], 256
        %v4942 = vld [vmem:[%s4941] sm:$0xf]
        %v4943 = vld [vmem:[%s4941 + $0x4] sm:$0xf]
        %v4944 = vld [vmem:[%s4941 + $0x8] sm:$0xf]
        %v4945 = vld [vmem:[%s4941 + $0xc] sm:$0xf]
        %v4946 = vld [vmem:[%s4941 + $0x10] sm:$0xf]
        %v4947 = vld [vmem:[%s4941 + $0x14] sm:$0xf]
        %v4948 = vld [vmem:[%s4941 + $0x18] sm:$0xf]
        %v4949 = vld [vmem:[%s4941 + $0x1c] sm:$0xf]
        %v4950 = vld [vmem:[%s4941 + $0x20] sm:$0xf]
        %v4951 = vld [vmem:[%s4941 + $0x24] sm:$0xf]
        %v4952 = vld [vmem:[%s4941 + $0x28] sm:$0xf]
        %v4953 = vld [vmem:[%s4941 + $0x2c] sm:$0xf]
        %v4954 = vld [vmem:[%s4941 + $0x30] sm:$0xf]
        %v4955 = vld [vmem:[%s4941 + $0x34] sm:$0xf]
        %v4956 = vld [vmem:[%s4941 + $0x38] sm:$0xf]
        %v4957 = vld [vmem:[%s4941 + $0x3c] sm:$0xf]
        %v4958 = vld [vmem:[%s4941 + $0x40] sm:$0xf]
        %v4959 = vld [vmem:[%s4941 + $0x44] sm:$0xf]
        %v4960 = vld [vmem:[%s4941 + $0x48] sm:$0xf]
        %v4961 = vld [vmem:[%s4941 + $0x4c] sm:$0xf]
        %v4962 = vld [vmem:[%s4941 + $0x50] sm:$0xf]
        %v4963 = vld [vmem:[%s4941 + $0x54] sm:$0xf]
        %v4964 = vld [vmem:[%s4941 + $0x58] sm:$0xf]
        %v4965 = vld [vmem:[%s4941 + $0x5c] sm:$0xf]
        %v4966 = vld [vmem:[%s4941 + $0x60] sm:$0xf]
        %v4967 = vld [vmem:[%s4941 + $0x64] sm:$0xf]
        %v4968 = vld [vmem:[%s4941 + $0x68] sm:$0xf]
        %v4969 = vld [vmem:[%s4941 + $0x6c] sm:$0xf]
        %v4970 = vld [vmem:[%s4941 + $0x70] sm:$0xf]
        %v4971 = vld [vmem:[%s4941 + $0x74] sm:$0xf]
        %v4972 = vld [vmem:[%s4941 + $0x78] sm:$0xf]
        %v4973 = vld [vmem:[%s4941 + $0x7c] sm:$0xf]
        %v4974 = vld [vmem:[%s4941 + $0x80] sm:$0xf]
        %v4975 = vld [vmem:[%s4941 + $0x84] sm:$0xf]
        %v4976 = vld [vmem:[%s4941 + $0x88] sm:$0xf]
        %v4977 = vld [vmem:[%s4941 + $0x8c] sm:$0xf]
        %v4978 = vld [vmem:[%s4941 + $0x90] sm:$0xf]
        %v4979 = vld [vmem:[%s4941 + $0x94] sm:$0xf]
        %v4980 = vld [vmem:[%s4941 + $0x98] sm:$0xf]
        %v4981 = vld [vmem:[%s4941 + $0x9c] sm:$0xf]
        %v4982 = vld [vmem:[%s4941 + $0xa0] sm:$0xf]
        %v4983 = vld [vmem:[%s4941 + $0xa4] sm:$0xf]
        %v4984 = vld [vmem:[%s4941 + $0xa8] sm:$0xf]
        %v4985 = vld [vmem:[%s4941 + $0xac] sm:$0xf]
        %v4986 = vld [vmem:[%s4941 + $0xb0] sm:$0xf]
        %v4987 = vld [vmem:[%s4941 + $0xb4] sm:$0xf]
        %v4988 = vld [vmem:[%s4941 + $0xb8] sm:$0xf]
        %v4989 = vld [vmem:[%s4941 + $0xbc] sm:$0xf]
        %v4990 = vld [vmem:[%s4941 + $0xc0] sm:$0xf]
        %v4991 = vld [vmem:[%s4941 + $0xc4] sm:$0xf]
        %v4992 = vld [vmem:[%s4941 + $0xc8] sm:$0xf]
        %v4993 = vld [vmem:[%s4941 + $0xcc] sm:$0xf]
        %v4994 = vld [vmem:[%s4941 + $0xd0] sm:$0xf]
        %v4995 = vld [vmem:[%s4941 + $0xd4] sm:$0xf]
        %v4996 = vld [vmem:[%s4941 + $0xd8] sm:$0xf]
        %v4997 = vld [vmem:[%s4941 + $0xdc] sm:$0xf]
        %v4998 = vld [vmem:[%s4941 + $0xe0] sm:$0xf]
        %v4999 = vld [vmem:[%s4941 + $0xe4] sm:$0xf]
        %v5000 = vld [vmem:[%s4941 + $0xe8] sm:$0xf]
        %v5001 = vld [vmem:[%s4941 + $0xec] sm:$0xf]
        %v5002 = vld [vmem:[%s4941 + $0xf0] sm:$0xf]
        %v5003 = vld [vmem:[%s4941 + $0xf4] sm:$0xf]
        %v5004 = vld [vmem:[%s4941 + $0xf8] sm:$0xf]
        %v5005 = vld [vmem:[%s4941 + $0xfc] sm:$0xf]
        %v5007 = vshrl.u32 %v4599, 16
        %v5010 = vshrl.u32 %v4600, 16
        %v5013 = vshrl.u32 %v4601, 16
        %v5016 = vshrl.u32 %v4602, 16
        %v5086 = vunpack.c.l.b16 %v4942
        %v5087 = vunpack.c.l.b16 %v4943
        %v5088 = vunpack.c.l.b16 %v4944
        %v5089 = vunpack.c.l.b16 %v4945
        %v5090 = vunpack.c.l.b16 %v4946
        %v5091 = vunpack.c.l.b16 %v4947
        %v5092 = vunpack.c.l.b16 %v4948
        %v5093 = vunpack.c.l.b16 %v4949
        %v5094 = vunpack.c.l.b16 %v4950
        %v5095 = vunpack.c.l.b16 %v4951
        %v5096 = vunpack.c.l.b16 %v4952
        %v5097 = vunpack.c.l.b16 %v4953
        %v5098 = vunpack.c.l.b16 %v4954
        %v5099 = vunpack.c.l.b16 %v4955
        %v5100 = vunpack.c.l.b16 %v4956
        %v5101 = vunpack.c.l.b16 %v4957
        %v5102 = vunpack.c.l.b16 %v4958
        %v5103 = vunpack.c.l.b16 %v4959
        %v5104 = vunpack.c.l.b16 %v4960
        %v5105 = vunpack.c.l.b16 %v4961
        %v5106 = vunpack.c.l.b16 %v4962
        %v5107 = vunpack.c.l.b16 %v4963
        %v5108 = vunpack.c.l.b16 %v4964
        %v5109 = vunpack.c.l.b16 %v4965
        %v5110 = vunpack.c.l.b16 %v4966
        %v5111 = vunpack.c.l.b16 %v4967
        %v5112 = vunpack.c.l.b16 %v4968
        %v5113 = vunpack.c.l.b16 %v4969
        %v5114 = vunpack.c.l.b16 %v4970
        %v5115 = vunpack.c.l.b16 %v4971
        %v5116 = vunpack.c.l.b16 %v4972
        %v5117 = vunpack.c.l.b16 %v4973
        %v5118 = vunpack.c.l.b16 %v4974
        %v5119 = vunpack.c.l.b16 %v4975
        %v5120 = vunpack.c.l.b16 %v4976
        %v5121 = vunpack.c.l.b16 %v4977
        %v5122 = vunpack.c.l.b16 %v4978
        %v5123 = vunpack.c.l.b16 %v4979
        %v5124 = vunpack.c.l.b16 %v4980
        %v5125 = vunpack.c.l.b16 %v4981
        %v5126 = vunpack.c.l.b16 %v4982
        %v5127 = vunpack.c.l.b16 %v4983
        %v5128 = vunpack.c.l.b16 %v4984
        %v5129 = vunpack.c.l.b16 %v4985
        %v5130 = vunpack.c.l.b16 %v4986
        %v5131 = vunpack.c.l.b16 %v4987
        %v5132 = vunpack.c.l.b16 %v4988
        %v5133 = vunpack.c.l.b16 %v4989
        %v5134 = vunpack.c.l.b16 %v4990
        %v5135 = vunpack.c.l.b16 %v4991
        %v5136 = vunpack.c.l.b16 %v4992
        %v5137 = vunpack.c.l.b16 %v4993
        %v5138 = vunpack.c.l.b16 %v4994
        %v5139 = vunpack.c.l.b16 %v4995
        %v5140 = vunpack.c.l.b16 %v4996
        %v5141 = vunpack.c.l.b16 %v4997
        %v5142 = vunpack.c.l.b16 %v4998
        %v5143 = vunpack.c.l.b16 %v4999
        %v5144 = vunpack.c.l.b16 %v5000
        %v5145 = vunpack.c.l.b16 %v5001
        %v5146 = vunpack.c.l.b16 %v5002
        %v5147 = vunpack.c.l.b16 %v5003
        %v5148 = vunpack.c.l.b16 %v5004
        %v5149 = vunpack.c.l.b16 %v5005
        %v5150 = vpack.c.b16 %v5087, %v5086
        %v5151 = vpack.c.b16 %v5089, %v5088
        %v5152 = vpack.c.b16 %v5091, %v5090
        %v5153 = vpack.c.b16 %v5093, %v5092
        %v5154 = vpack.c.b16 %v5095, %v5094
        %v5155 = vpack.c.b16 %v5097, %v5096
        %v5156 = vpack.c.b16 %v5099, %v5098
        %v5157 = vpack.c.b16 %v5101, %v5100
        %v5158 = vpack.c.b16 %v5103, %v5102
        %v5159 = vpack.c.b16 %v5105, %v5104
        %v5160 = vpack.c.b16 %v5107, %v5106
        %v5161 = vpack.c.b16 %v5109, %v5108
        %v5162 = vpack.c.b16 %v5111, %v5110
        %v5163 = vpack.c.b16 %v5113, %v5112
        %v5164 = vpack.c.b16 %v5115, %v5114
        %v5165 = vpack.c.b16 %v5117, %v5116
        %v5166 = vpack.c.b16 %v5119, %v5118
        %v5167 = vpack.c.b16 %v5121, %v5120
        %v5168 = vpack.c.b16 %v5123, %v5122
        %v5169 = vpack.c.b16 %v5125, %v5124
        %v5170 = vpack.c.b16 %v5127, %v5126
        %v5171 = vpack.c.b16 %v5129, %v5128
        %v5172 = vpack.c.b16 %v5131, %v5130
        %v5173 = vpack.c.b16 %v5133, %v5132
        %v5174 = vpack.c.b16 %v5135, %v5134
        %v5175 = vpack.c.b16 %v5137, %v5136
        %v5176 = vpack.c.b16 %v5139, %v5138
        %v5177 = vpack.c.b16 %v5141, %v5140
        %v5178 = vpack.c.b16 %v5143, %v5142
        %v5179 = vpack.c.b16 %v5145, %v5144
        %v5180 = vpack.c.b16 %v5147, %v5146
        %v5181 = vpack.c.b16 %v5149, %v5148
        %5214 = vmatprep.subr.bf16.mxu0 0
        %5215 = vmatpush1.bf16.msra.mxu0 %v5157
        %5216 = vmatprep.subr.bf16.mxu0 0
        %5217 = vmatpush1.bf16.msra.mxu0 %v5156
        %5218 = vmatprep.subr.bf16.mxu0 0
        %5219 = vmatpush1.bf16.msra.mxu0 %v5155
        %5220 = vmatprep.subr.bf16.mxu0 0
        %5221 = vmatpush1.bf16.msra.mxu0 %v5154
        %5222 = vmatprep.subr.bf16.mxu0 0
        %5223 = vmatpush1.bf16.msra.mxu0 %v5153
        %5224 = vmatprep.subr.bf16.mxu0 0
        %5225 = vmatpush1.bf16.msra.mxu0 %v5152
        %5226 = vmatprep.subr.bf16.mxu0 0
        %5227 = vmatpush1.bf16.msra.mxu0 %v5151
        %5228 = vmatprep.subr.bf16.mxu0 0
        %5229 = vmatpush1.bf16.msra.mxu0 %v5150
        %5230 = vmatprep.subr.bf16.mxu0 0
        %5231 = vmatpush2.bf16.msra.mxu0 %v5165
        %5232 = vmatprep.subr.bf16.mxu0 0
        %5233 = vmatpush2.bf16.msra.mxu0 %v5164
        %5234 = vmatprep.subr.bf16.mxu0 0
        %5235 = vmatpush2.bf16.msra.mxu0 %v5163
        %5236 = vmatprep.subr.bf16.mxu0 0
        %5237 = vmatpush2.bf16.msra.mxu0 %v5162
        %5238 = vmatprep.subr.bf16.mxu0 0
        %5239 = vmatpush2.bf16.msra.mxu0 %v5161
        %5240 = vmatprep.subr.bf16.mxu0 0
        %5241 = vmatpush2.bf16.msra.mxu0 %v5160
        %5242 = vmatprep.subr.bf16.mxu0 0
        %5243 = vmatpush2.bf16.msra.mxu0 %v5159
        %5244 = vmatprep.subr.bf16.mxu0 0
        %5245 = vmatpush2.bf16.msra.mxu0 %v5158
        %5246 = vmatprep.mubr.bf16.mxu0 %v5010
        %5247 = vmatmul.mubr.bf16.gmra.mxu0 %v5007
        %v5248 = vpop.f32.mrf.mxu0
        %v5249 = vadd.f32 0.0, %v5248
        %v5250 = vpop.f32.mrf.mxu0
        %v5251 = vpop.f32.mrf.mxu0
        %v5252 = vpop.f32.mrf.mxu0
        %5253 = vdwg.mxu0
        %5254 = vmatprep.subr.bf16.mxu0 0
        %5255 = vmatpush1.bf16.msra.mxu0 %v5173
        %5256 = vmatprep.subr.bf16.mxu0 0
        %5257 = vmatpush1.bf16.msra.mxu0 %v5172
        %5258 = vmatprep.subr.bf16.mxu0 0
        %5259 = vmatpush1.bf16.msra.mxu0 %v5171
        %5260 = vmatprep.subr.bf16.mxu0 0
        %5261 = vmatpush1.bf16.msra.mxu0 %v5170
        %5262 = vmatprep.subr.bf16.mxu0 0
        %5263 = vmatpush1.bf16.msra.mxu0 %v5169
        %5264 = vmatprep.subr.bf16.mxu0 0
        %5265 = vmatpush1.bf16.msra.mxu0 %v5168
        %5266 = vmatprep.subr.bf16.mxu0 0
        %5267 = vmatpush1.bf16.msra.mxu0 %v5167
        %5268 = vmatprep.subr.bf16.mxu0 0
        %5269 = vmatpush1.bf16.msra.mxu0 %v5166
        %5270 = vmatprep.subr.bf16.mxu0 0
        %5271 = vmatpush2.bf16.msra.mxu0 %v5181
        %5272 = vmatprep.subr.bf16.mxu0 0
        %5273 = vmatpush2.bf16.msra.mxu0 %v5180
        %5274 = vmatprep.subr.bf16.mxu0 0
        %5275 = vmatpush2.bf16.msra.mxu0 %v5179
        %5276 = vmatprep.subr.bf16.mxu0 0
        %5277 = vmatpush2.bf16.msra.mxu0 %v5178
        %5278 = vmatprep.subr.bf16.mxu0 0
        %5279 = vmatpush2.bf16.msra.mxu0 %v5177
        %5280 = vmatprep.subr.bf16.mxu0 0
        %5281 = vmatpush2.bf16.msra.mxu0 %v5176
        %5282 = vmatprep.subr.bf16.mxu0 0
        %5283 = vmatpush2.bf16.msra.mxu0 %v5175
        %5284 = vmatprep.subr.bf16.mxu0 0
        %5285 = vmatpush2.bf16.msra.mxu0 %v5174
        %5286 = vmatprep.mubr.bf16.mxu0 %v5016
        %5287 = vmatmul.mubr.bf16.gmra.mxu0 %v5013
        %v5288 = vpop.f32.mrf.mxu0
        %v5289 = vadd.f32 %v5249, %v5288
        %v5290 = vpop.f32.mrf.mxu0
        %v5291 = vpop.f32.mrf.mxu0
        %v5292 = vpop.f32.mrf.mxu0
        %5293 = vdwg.mxu0
        %v5294 = vadd.f32 %v4940, %v5289
        %s5295 = scalar_lea.vmem [#allocation8], 512
        %v5296 = vld [vmem:[%s5295] sm:$0xf]
        %v5297 = vld [vmem:[%s5295 + $0x4] sm:$0xf]
        %v5298 = vld [vmem:[%s5295 + $0x8] sm:$0xf]
        %v5299 = vld [vmem:[%s5295 + $0xc] sm:$0xf]
        %v5300 = vld [vmem:[%s5295 + $0x10] sm:$0xf]
        %v5301 = vld [vmem:[%s5295 + $0x14] sm:$0xf]
        %v5302 = vld [vmem:[%s5295 + $0x18] sm:$0xf]
        %v5303 = vld [vmem:[%s5295 + $0x1c] sm:$0xf]
        %v5304 = vld [vmem:[%s5295 + $0x20] sm:$0xf]
        %v5305 = vld [vmem:[%s5295 + $0x24] sm:$0xf]
        %v5306 = vld [vmem:[%s5295 + $0x28] sm:$0xf]
        %v5307 = vld [vmem:[%s5295 + $0x2c] sm:$0xf]
        %v5308 = vld [vmem:[%s5295 + $0x30] sm:$0xf]
        %v5309 = vld [vmem:[%s5295 + $0x34] sm:$0xf]
        %v5310 = vld [vmem:[%s5295 + $0x38] sm:$0xf]
        %v5311 = vld [vmem:[%s5295 + $0x3c] sm:$0xf]
        %v5312 = vld [vmem:[%s5295 + $0x40] sm:$0xf]
        %v5313 = vld [vmem:[%s5295 + $0x44] sm:$0xf]
        %v5314 = vld [vmem:[%s5295 + $0x48] sm:$0xf]
        %v5315 = vld [vmem:[%s5295 + $0x4c] sm:$0xf]
        %v5316 = vld [vmem:[%s5295 + $0x50] sm:$0xf]
        %v5317 = vld [vmem:[%s5295 + $0x54] sm:$0xf]
        %v5318 = vld [vmem:[%s5295 + $0x58] sm:$0xf]
        %v5319 = vld [vmem:[%s5295 + $0x5c] sm:$0xf]
        %v5320 = vld [vmem:[%s5295 + $0x60] sm:$0xf]
        %v5321 = vld [vmem:[%s5295 + $0x64] sm:$0xf]
        %v5322 = vld [vmem:[%s5295 + $0x68] sm:$0xf]
        %v5323 = vld [vmem:[%s5295 + $0x6c] sm:$0xf]
        %v5324 = vld [vmem:[%s5295 + $0x70] sm:$0xf]
        %v5325 = vld [vmem:[%s5295 + $0x74] sm:$0xf]
        %v5326 = vld [vmem:[%s5295 + $0x78] sm:$0xf]
        %v5327 = vld [vmem:[%s5295 + $0x7c] sm:$0xf]
        %v5328 = vld [vmem:[%s5295 + $0x80] sm:$0xf]
        %v5329 = vld [vmem:[%s5295 + $0x84] sm:$0xf]
        %v5330 = vld [vmem:[%s5295 + $0x88] sm:$0xf]
        %v5331 = vld [vmem:[%s5295 + $0x8c] sm:$0xf]
        %v5332 = vld [vmem:[%s5295 + $0x90] sm:$0xf]
        %v5333 = vld [vmem:[%s5295 + $0x94] sm:$0xf]
        %v5334 = vld [vmem:[%s5295 + $0x98] sm:$0xf]
        %v5335 = vld [vmem:[%s5295 + $0x9c] sm:$0xf]
        %v5336 = vld [vmem:[%s5295 + $0xa0] sm:$0xf]
        %v5337 = vld [vmem:[%s5295 + $0xa4] sm:$0xf]
        %v5338 = vld [vmem:[%s5295 + $0xa8] sm:$0xf]
        %v5339 = vld [vmem:[%s5295 + $0xac] sm:$0xf]
        %v5340 = vld [vmem:[%s5295 + $0xb0] sm:$0xf]
        %v5341 = vld [vmem:[%s5295 + $0xb4] sm:$0xf]
        %v5342 = vld [vmem:[%s5295 + $0xb8] sm:$0xf]
        %v5343 = vld [vmem:[%s5295 + $0xbc] sm:$0xf]
        %v5344 = vld [vmem:[%s5295 + $0xc0] sm:$0xf]
        %v5345 = vld [vmem:[%s5295 + $0xc4] sm:$0xf]
        %v5346 = vld [vmem:[%s5295 + $0xc8] sm:$0xf]
        %v5347 = vld [vmem:[%s5295 + $0xcc] sm:$0xf]
        %v5348 = vld [vmem:[%s5295 + $0xd0] sm:$0xf]
        %v5349 = vld [vmem:[%s5295 + $0xd4] sm:$0xf]
        %v5350 = vld [vmem:[%s5295 + $0xd8] sm:$0xf]
        %v5351 = vld [vmem:[%s5295 + $0xdc] sm:$0xf]
        %v5352 = vld [vmem:[%s5295 + $0xe0] sm:$0xf]
        %v5353 = vld [vmem:[%s5295 + $0xe4] sm:$0xf]
        %v5354 = vld [vmem:[%s5295 + $0xe8] sm:$0xf]
        %v5355 = vld [vmem:[%s5295 + $0xec] sm:$0xf]
        %v5356 = vld [vmem:[%s5295 + $0xf0] sm:$0xf]
        %v5357 = vld [vmem:[%s5295 + $0xf4] sm:$0xf]
        %v5358 = vld [vmem:[%s5295 + $0xf8] sm:$0xf]
        %v5359 = vld [vmem:[%s5295 + $0xfc] sm:$0xf]
        %v5364 = vrot.slane %v4599, 1
        %v5365 = vrot.slane %v4600, 1
        %v5366 = vrot.slane %v4601, 1
        %v5367 = vrot.slane %v4602, 1
        %v5436 = vunpack.c.l.b16 %v5296
        %v5437 = vunpack.c.l.b16 %v5297
        %v5438 = vunpack.c.l.b16 %v5298
        %v5439 = vunpack.c.l.b16 %v5299
        %v5440 = vunpack.c.l.b16 %v5300
        %v5441 = vunpack.c.l.b16 %v5301
        %v5442 = vunpack.c.l.b16 %v5302
        %v5443 = vunpack.c.l.b16 %v5303
        %v5444 = vunpack.c.l.b16 %v5304
        %v5445 = vunpack.c.l.b16 %v5305
        %v5446 = vunpack.c.l.b16 %v5306
        %v5447 = vunpack.c.l.b16 %v5307
        %v5448 = vunpack.c.l.b16 %v5308
        %v5449 = vunpack.c.l.b16 %v5309
        %v5450 = vunpack.c.l.b16 %v5310
        %v5451 = vunpack.c.l.b16 %v5311
        %v5452 = vunpack.c.l.b16 %v5312
        %v5453 = vunpack.c.l.b16 %v5313
        %v5454 = vunpack.c.l.b16 %v5314
        %v5455 = vunpack.c.l.b16 %v5315
        %v5456 = vunpack.c.l.b16 %v5316
        %v5457 = vunpack.c.l.b16 %v5317
        %v5458 = vunpack.c.l.b16 %v5318
        %v5459 = vunpack.c.l.b16 %v5319
        %v5460 = vunpack.c.l.b16 %v5320
        %v5461 = vunpack.c.l.b16 %v5321
        %v5462 = vunpack.c.l.b16 %v5322
        %v5463 = vunpack.c.l.b16 %v5323
        %v5464 = vunpack.c.l.b16 %v5324
        %v5465 = vunpack.c.l.b16 %v5325
        %v5466 = vunpack.c.l.b16 %v5326
        %v5467 = vunpack.c.l.b16 %v5327
        %v5468 = vunpack.c.l.b16 %v5328
        %v5469 = vunpack.c.l.b16 %v5329
        %v5470 = vunpack.c.l.b16 %v5330
        %v5471 = vunpack.c.l.b16 %v5331
        %v5472 = vunpack.c.l.b16 %v5332
        %v5473 = vunpack.c.l.b16 %v5333
        %v5474 = vunpack.c.l.b16 %v5334
        %v5475 = vunpack.c.l.b16 %v5335
        %v5476 = vunpack.c.l.b16 %v5336
        %v5477 = vunpack.c.l.b16 %v5337
        %v5478 = vunpack.c.l.b16 %v5338
        %v5479 = vunpack.c.l.b16 %v5339
        %v5480 = vunpack.c.l.b16 %v5340
        %v5481 = vunpack.c.l.b16 %v5341
        %v5482 = vunpack.c.l.b16 %v5342
        %v5483 = vunpack.c.l.b16 %v5343
        %v5484 = vunpack.c.l.b16 %v5344
        %v5485 = vunpack.c.l.b16 %v5345
        %v5486 = vunpack.c.l.b16 %v5346
        %v5487 = vunpack.c.l.b16 %v5347
        %v5488 = vunpack.c.l.b16 %v5348
        %v5489 = vunpack.c.l.b16 %v5349
        %v5490 = vunpack.c.l.b16 %v5350
        %v5491 = vunpack.c.l.b16 %v5351
        %v5492 = vunpack.c.l.b16 %v5352
        %v5493 = vunpack.c.l.b16 %v5353
        %v5494 = vunpack.c.l.b16 %v5354
        %v5495 = vunpack.c.l.b16 %v5355
        %v5496 = vunpack.c.l.b16 %v5356
        %v5497 = vunpack.c.l.b16 %v5357
        %v5498 = vunpack.c.l.b16 %v5358
        %v5499 = vunpack.c.l.b16 %v5359
        %v5500 = vpack.c.b16 %v5437, %v5436
        %v5501 = vpack.c.b16 %v5439, %v5438
        %v5502 = vpack.c.b16 %v5441, %v5440
        %v5503 = vpack.c.b16 %v5443, %v5442
        %v5504 = vpack.c.b16 %v5445, %v5444
        %v5505 = vpack.c.b16 %v5447, %v5446
        %v5506 = vpack.c.b16 %v5449, %v5448
        %v5507 = vpack.c.b16 %v5451, %v5450
        %v5508 = vpack.c.b16 %v5453, %v5452
        %v5509 = vpack.c.b16 %v5455, %v5454
        %v5510 = vpack.c.b16 %v5457, %v5456
        %v5511 = vpack.c.b16 %v5459, %v5458
        %v5512 = vpack.c.b16 %v5461, %v5460
        %v5513 = vpack.c.b16 %v5463, %v5462
        %v5514 = vpack.c.b16 %v5465, %v5464
        %v5515 = vpack.c.b16 %v5467, %v5466
        %v5516 = vpack.c.b16 %v5469, %v5468
        %v5517 = vpack.c.b16 %v5471, %v5470
        %v5518 = vpack.c.b16 %v5473, %v5472
        %v5519 = vpack.c.b16 %v5475, %v5474
        %v5520 = vpack.c.b16 %v5477, %v5476
        %v5521 = vpack.c.b16 %v5479, %v5478
        %v5522 = vpack.c.b16 %v5481, %v5480
        %v5523 = vpack.c.b16 %v5483, %v5482
        %v5524 = vpack.c.b16 %v5485, %v5484
        %v5525 = vpack.c.b16 %v5487, %v5486
        %v5526 = vpack.c.b16 %v5489, %v5488
        %v5527 = vpack.c.b16 %v5491, %v5490
        %v5528 = vpack.c.b16 %v5493, %v5492
        %v5529 = vpack.c.b16 %v5495, %v5494
        %v5530 = vpack.c.b16 %v5497, %v5496
        %v5531 = vpack.c.b16 %v5499, %v5498
        %5564 = vmatprep.subr.bf16.mxu0 0
        %5565 = vmatpush1.bf16.msra.mxu0 %v5507
        %5566 = vmatprep.subr.bf16.mxu0 0
        %5567 = vmatpush1.bf16.msra.mxu0 %v5506
        %5568 = vmatprep.subr.bf16.mxu0 0
        %5569 = vmatpush1.bf16.msra.mxu0 %v5505
        %5570 = vmatprep.subr.bf16.mxu0 0
        %5571 = vmatpush1.bf16.msra.mxu0 %v5504
        %5572 = vmatprep.subr.bf16.mxu0 0
        %5573 = vmatpush1.bf16.msra.mxu0 %v5503
        %5574 = vmatprep.subr.bf16.mxu0 0
        %5575 = vmatpush1.bf16.msra.mxu0 %v5502
        %5576 = vmatprep.subr.bf16.mxu0 0
        %5577 = vmatpush1.bf16.msra.mxu0 %v5501
        %5578 = vmatprep.subr.bf16.mxu0 0
        %5579 = vmatpush1.bf16.msra.mxu0 %v5500
        %5580 = vmatprep.subr.bf16.mxu0 0
        %5581 = vmatpush2.bf16.msra.mxu0 %v5515
        %5582 = vmatprep.subr.bf16.mxu0 0
        %5583 = vmatpush2.bf16.msra.mxu0 %v5514
        %5584 = vmatprep.subr.bf16.mxu0 0
        %5585 = vmatpush2.bf16.msra.mxu0 %v5513
        %5586 = vmatprep.subr.bf16.mxu0 0
        %5587 = vmatpush2.bf16.msra.mxu0 %v5512
        %5588 = vmatprep.subr.bf16.mxu0 0
        %5589 = vmatpush2.bf16.msra.mxu0 %v5511
        %5590 = vmatprep.subr.bf16.mxu0 0
        %5591 = vmatpush2.bf16.msra.mxu0 %v5510
        %5592 = vmatprep.subr.bf16.mxu0 0
        %5593 = vmatpush2.bf16.msra.mxu0 %v5509
        %5594 = vmatprep.subr.bf16.mxu0 0
        %5595 = vmatpush2.bf16.msra.mxu0 %v5508
        %5596 = vmatprep.mubr.bf16.mxu0 %v5365
        %5597 = vmatmul.mubr.bf16.gmra.mxu0 %v5364
        %v5598 = vpop.f32.mrf.mxu0
        %v5599 = vadd.f32 0.0, %v5598
        %v5600 = vpop.f32.mrf.mxu0
        %v5601 = vpop.f32.mrf.mxu0
        %v5602 = vpop.f32.mrf.mxu0
        %5603 = vdwg.mxu0
        %5604 = vmatprep.subr.bf16.mxu0 0
        %5605 = vmatpush1.bf16.msra.mxu0 %v5523
        %5606 = vmatprep.subr.bf16.mxu0 0
        %5607 = vmatpush1.bf16.msra.mxu0 %v5522
        %5608 = vmatprep.subr.bf16.mxu0 0
        %5609 = vmatpush1.bf16.msra.mxu0 %v5521
        %5610 = vmatprep.subr.bf16.mxu0 0
        %5611 = vmatpush1.bf16.msra.mxu0 %v5520
        %5612 = vmatprep.subr.bf16.mxu0 0
        %5613 = vmatpush1.bf16.msra.mxu0 %v5519
        %5614 = vmatprep.subr.bf16.mxu0 0
        %5615 = vmatpush1.bf16.msra.mxu0 %v5518
        %5616 = vmatprep.subr.bf16.mxu0 0
        %5617 = vmatpush1.bf16.msra.mxu0 %v5517
        %5618 = vmatprep.subr.bf16.mxu0 0
        %5619 = vmatpush1.bf16.msra.mxu0 %v5516
        %5620 = vmatprep.subr.bf16.mxu0 0
        %5621 = vmatpush2.bf16.msra.mxu0 %v5531
        %5622 = vmatprep.subr.bf16.mxu0 0
        %5623 = vmatpush2.bf16.msra.mxu0 %v5530
        %5624 = vmatprep.subr.bf16.mxu0 0
        %5625 = vmatpush2.bf16.msra.mxu0 %v5529
        %5626 = vmatprep.subr.bf16.mxu0 0
        %5627 = vmatpush2.bf16.msra.mxu0 %v5528
        %5628 = vmatprep.subr.bf16.mxu0 0
        %5629 = vmatpush2.bf16.msra.mxu0 %v5527
        %5630 = vmatprep.subr.bf16.mxu0 0
        %5631 = vmatpush2.bf16.msra.mxu0 %v5526
        %5632 = vmatprep.subr.bf16.mxu0 0
        %5633 = vmatpush2.bf16.msra.mxu0 %v5525
        %5634 = vmatprep.subr.bf16.mxu0 0
        %5635 = vmatpush2.bf16.msra.mxu0 %v5524
        %5636 = vmatprep.mubr.bf16.mxu0 %v5367
        %5637 = vmatmul.mubr.bf16.gmra.mxu0 %v5366
        %v5638 = vpop.f32.mrf.mxu0
        %v5639 = vadd.f32 %v5599, %v5638
        %v5640 = vpop.f32.mrf.mxu0
        %v5641 = vpop.f32.mrf.mxu0
        %v5642 = vpop.f32.mrf.mxu0
        %5643 = vdwg.mxu0
        %v5644 = vadd.f32 %v5294, %v5639
        %s5645 = scalar_lea.vmem [#allocation8], 768
        %v5646 = vld [vmem:[%s5645] sm:$0xf]
        %v5647 = vld [vmem:[%s5645 + $0x4] sm:$0xf]
        %v5648 = vld [vmem:[%s5645 + $0x8] sm:$0xf]
        %v5649 = vld [vmem:[%s5645 + $0xc] sm:$0xf]
        %v5650 = vld [vmem:[%s5645 + $0x10] sm:$0xf]
        %v5651 = vld [vmem:[%s5645 + $0x14] sm:$0xf]
        %v5652 = vld [vmem:[%s5645 + $0x18] sm:$0xf]
        %v5653 = vld [vmem:[%s5645 + $0x1c] sm:$0xf]
        %v5654 = vld [vmem:[%s5645 + $0x20] sm:$0xf]
        %v5655 = vld [vmem:[%s5645 + $0x24] sm:$0xf]
        %v5656 = vld [vmem:[%s5645 + $0x28] sm:$0xf]
        %v5657 = vld [vmem:[%s5645 + $0x2c] sm:$0xf]
        %v5658 = vld [vmem:[%s5645 + $0x30] sm:$0xf]
        %v5659 = vld [vmem:[%s5645 + $0x34] sm:$0xf]
        %v5660 = vld [vmem:[%s5645 + $0x38] sm:$0xf]
        %v5661 = vld [vmem:[%s5645 + $0x3c] sm:$0xf]
        %v5662 = vld [vmem:[%s5645 + $0x40] sm:$0xf]
        %v5663 = vld [vmem:[%s5645 + $0x44] sm:$0xf]
        %v5664 = vld [vmem:[%s5645 + $0x48] sm:$0xf]
        %v5665 = vld [vmem:[%s5645 + $0x4c] sm:$0xf]
        %v5666 = vld [vmem:[%s5645 + $0x50] sm:$0xf]
        %v5667 = vld [vmem:[%s5645 + $0x54] sm:$0xf]
        %v5668 = vld [vmem:[%s5645 + $0x58] sm:$0xf]
        %v5669 = vld [vmem:[%s5645 + $0x5c] sm:$0xf]
        %v5670 = vld [vmem:[%s5645 + $0x60] sm:$0xf]
        %v5671 = vld [vmem:[%s5645 + $0x64] sm:$0xf]
        %v5672 = vld [vmem:[%s5645 + $0x68] sm:$0xf]
        %v5673 = vld [vmem:[%s5645 + $0x6c] sm:$0xf]
        %v5674 = vld [vmem:[%s5645 + $0x70] sm:$0xf]
        %v5675 = vld [vmem:[%s5645 + $0x74] sm:$0xf]
        %v5676 = vld [vmem:[%s5645 + $0x78] sm:$0xf]
        %v5677 = vld [vmem:[%s5645 + $0x7c] sm:$0xf]
        %v5678 = vld [vmem:[%s5645 + $0x80] sm:$0xf]
        %v5679 = vld [vmem:[%s5645 + $0x84] sm:$0xf]
        %v5680 = vld [vmem:[%s5645 + $0x88] sm:$0xf]
        %v5681 = vld [vmem:[%s5645 + $0x8c] sm:$0xf]
        %v5682 = vld [vmem:[%s5645 + $0x90] sm:$0xf]
        %v5683 = vld [vmem:[%s5645 + $0x94] sm:$0xf]
        %v5684 = vld [vmem:[%s5645 + $0x98] sm:$0xf]
        %v5685 = vld [vmem:[%s5645 + $0x9c] sm:$0xf]
        %v5686 = vld [vmem:[%s5645 + $0xa0] sm:$0xf]
        %v5687 = vld [vmem:[%s5645 + $0xa4] sm:$0xf]
        %v5688 = vld [vmem:[%s5645 + $0xa8] sm:$0xf]
        %v5689 = vld [vmem:[%s5645 + $0xac] sm:$0xf]
        %v5690 = vld [vmem:[%s5645 + $0xb0] sm:$0xf]
        %v5691 = vld [vmem:[%s5645 + $0xb4] sm:$0xf]
        %v5692 = vld [vmem:[%s5645 + $0xb8] sm:$0xf]
        %v5693 = vld [vmem:[%s5645 + $0xbc] sm:$0xf]
        %v5694 = vld [vmem:[%s5645 + $0xc0] sm:$0xf]
        %v5695 = vld [vmem:[%s5645 + $0xc4] sm:$0xf]
        %v5696 = vld [vmem:[%s5645 + $0xc8] sm:$0xf]
        %v5697 = vld [vmem:[%s5645 + $0xcc] sm:$0xf]
        %v5698 = vld [vmem:[%s5645 + $0xd0] sm:$0xf]
        %v5699 = vld [vmem:[%s5645 + $0xd4] sm:$0xf]
        %v5700 = vld [vmem:[%s5645 + $0xd8] sm:$0xf]
        %v5701 = vld [vmem:[%s5645 + $0xdc] sm:$0xf]
        %v5702 = vld [vmem:[%s5645 + $0xe0] sm:$0xf]
        %v5703 = vld [vmem:[%s5645 + $0xe4] sm:$0xf]
        %v5704 = vld [vmem:[%s5645 + $0xe8] sm:$0xf]
        %v5705 = vld [vmem:[%s5645 + $0xec] sm:$0xf]
        %v5706 = vld [vmem:[%s5645 + $0xf0] sm:$0xf]
        %v5707 = vld [vmem:[%s5645 + $0xf4] sm:$0xf]
        %v5708 = vld [vmem:[%s5645 + $0xf8] sm:$0xf]
        %v5709 = vld [vmem:[%s5645 + $0xfc] sm:$0xf]
        %v5710 = vrot.slane %v5007, 1
        %v5711 = vrot.slane %v5010, 1
        %v5712 = vrot.slane %v5013, 1
        %v5713 = vrot.slane %v5016, 1
        %v5782 = vunpack.c.l.b16 %v5646
        %v5783 = vunpack.c.l.b16 %v5647
        %v5784 = vunpack.c.l.b16 %v5648
        %v5785 = vunpack.c.l.b16 %v5649
        %v5786 = vunpack.c.l.b16 %v5650
        %v5787 = vunpack.c.l.b16 %v5651
        %v5788 = vunpack.c.l.b16 %v5652
        %v5789 = vunpack.c.l.b16 %v5653
        %v5790 = vunpack.c.l.b16 %v5654
        %v5791 = vunpack.c.l.b16 %v5655
        %v5792 = vunpack.c.l.b16 %v5656
        %v5793 = vunpack.c.l.b16 %v5657
        %v5794 = vunpack.c.l.b16 %v5658
        %v5795 = vunpack.c.l.b16 %v5659
        %v5796 = vunpack.c.l.b16 %v5660
        %v5797 = vunpack.c.l.b16 %v5661
        %v5798 = vunpack.c.l.b16 %v5662
        %v5799 = vunpack.c.l.b16 %v5663
        %v5800 = vunpack.c.l.b16 %v5664
        %v5801 = vunpack.c.l.b16 %v5665
        %v5802 = vunpack.c.l.b16 %v5666
        %v5803 = vunpack.c.l.b16 %v5667
        %v5804 = vunpack.c.l.b16 %v5668
        %v5805 = vunpack.c.l.b16 %v5669
        %v5806 = vunpack.c.l.b16 %v5670
        %v5807 = vunpack.c.l.b16 %v5671
        %v5808 = vunpack.c.l.b16 %v5672
        %v5809 = vunpack.c.l.b16 %v5673
        %v5810 = vunpack.c.l.b16 %v5674
        %v5811 = vunpack.c.l.b16 %v5675
        %v5812 = vunpack.c.l.b16 %v5676
        %v5813 = vunpack.c.l.b16 %v5677
        %v5814 = vunpack.c.l.b16 %v5678
        %v5815 = vunpack.c.l.b16 %v5679
        %v5816 = vunpack.c.l.b16 %v5680
        %v5817 = vunpack.c.l.b16 %v5681
        %v5818 = vunpack.c.l.b16 %v5682
        %v5819 = vunpack.c.l.b16 %v5683
        %v5820 = vunpack.c.l.b16 %v5684
        %v5821 = vunpack.c.l.b16 %v5685
        %v5822 = vunpack.c.l.b16 %v5686
        %v5823 = vunpack.c.l.b16 %v5687
        %v5824 = vunpack.c.l.b16 %v5688
        %v5825 = vunpack.c.l.b16 %v5689
        %v5826 = vunpack.c.l.b16 %v5690
        %v5827 = vunpack.c.l.b16 %v5691
        %v5828 = vunpack.c.l.b16 %v5692
        %v5829 = vunpack.c.l.b16 %v5693
        %v5830 = vunpack.c.l.b16 %v5694
        %v5831 = vunpack.c.l.b16 %v5695
        %v5832 = vunpack.c.l.b16 %v5696
        %v5833 = vunpack.c.l.b16 %v5697
        %v5834 = vunpack.c.l.b16 %v5698
        %v5835 = vunpack.c.l.b16 %v5699
        %v5836 = vunpack.c.l.b16 %v5700
        %v5837 = vunpack.c.l.b16 %v5701
        %v5838 = vunpack.c.l.b16 %v5702
        %v5839 = vunpack.c.l.b16 %v5703
        %v5840 = vunpack.c.l.b16 %v5704
        %v5841 = vunpack.c.l.b16 %v5705
        %v5842 = vunpack.c.l.b16 %v5706
        %v5843 = vunpack.c.l.b16 %v5707
        %v5844 = vunpack.c.l.b16 %v5708
        %v5845 = vunpack.c.l.b16 %v5709
        %v5846 = vpack.c.b16 %v5783, %v5782
        %v5847 = vpack.c.b16 %v5785, %v5784
        %v5848 = vpack.c.b16 %v5787, %v5786
        %v5849 = vpack.c.b16 %v5789, %v5788
        %v5850 = vpack.c.b16 %v5791, %v5790
        %v5851 = vpack.c.b16 %v5793, %v5792
        %v5852 = vpack.c.b16 %v5795, %v5794
        %v5853 = vpack.c.b16 %v5797, %v5796
        %v5854 = vpack.c.b16 %v5799, %v5798
        %v5855 = vpack.c.b16 %v5801, %v5800
        %v5856 = vpack.c.b16 %v5803, %v5802
        %v5857 = vpack.c.b16 %v5805, %v5804
        %v5858 = vpack.c.b16 %v5807, %v5806
        %v5859 = vpack.c.b16 %v5809, %v5808
        %v5860 = vpack.c.b16 %v5811, %v5810
        %v5861 = vpack.c.b16 %v5813, %v5812
        %v5862 = vpack.c.b16 %v5815, %v5814
        %v5863 = vpack.c.b16 %v5817, %v5816
        %v5864 = vpack.c.b16 %v5819, %v5818
        %v5865 = vpack.c.b16 %v5821, %v5820
        %v5866 = vpack.c.b16 %v5823, %v5822
        %v5867 = vpack.c.b16 %v5825, %v5824
        %v5868 = vpack.c.b16 %v5827, %v5826
        %v5869 = vpack.c.b16 %v5829, %v5828
        %v5870 = vpack.c.b16 %v5831, %v5830
        %v5871 = vpack.c.b16 %v5833, %v5832
        %v5872 = vpack.c.b16 %v5835, %v5834
        %v5873 = vpack.c.b16 %v5837, %v5836
        %v5874 = vpack.c.b16 %v5839, %v5838
        %v5875 = vpack.c.b16 %v5841, %v5840
        %v5876 = vpack.c.b16 %v5843, %v5842
        %v5877 = vpack.c.b16 %v5845, %v5844
        %5910 = vmatprep.subr.bf16.mxu0 0
        %5911 = vmatpush1.bf16.msra.mxu0 %v5853
        %5912 = vmatprep.subr.bf16.mxu0 0
        %5913 = vmatpush1.bf16.msra.mxu0 %v5852
        %5914 = vmatprep.subr.bf16.mxu0 0
        %5915 = vmatpush1.bf16.msra.mxu0 %v5851
        %5916 = vmatprep.subr.bf16.mxu0 0
        %5917 = vmatpush1.bf16.msra.mxu0 %v5850
        %5918 = vmatprep.subr.bf16.mxu0 0
        %5919 = vmatpush1.bf16.msra.mxu0 %v5849
        %5920 = vmatprep.subr.bf16.mxu0 0
        %5921 = vmatpush1.bf16.msra.mxu0 %v5848
        %5922 = vmatprep.subr.bf16.mxu0 0
        %5923 = vmatpush1.bf16.msra.mxu0 %v5847
        %5924 = vmatprep.subr.bf16.mxu0 0
        %5925 = vmatpush1.bf16.msra.mxu0 %v5846
        %5926 = vmatprep.subr.bf16.mxu0 0
        %5927 = vmatpush2.bf16.msra.mxu0 %v5861
        %5928 = vmatprep.subr.bf16.mxu0 0
        %5929 = vmatpush2.bf16.msra.mxu0 %v5860
        %5930 = vmatprep.subr.bf16.mxu0 0
        %5931 = vmatpush2.bf16.msra.mxu0 %v5859
        %5932 = vmatprep.subr.bf16.mxu0 0
        %5933 = vmatpush2.bf16.msra.mxu0 %v5858
        %5934 = vmatprep.subr.bf16.mxu0 0
        %5935 = vmatpush2.bf16.msra.mxu0 %v5857
        %5936 = vmatprep.subr.bf16.mxu0 0
        %5937 = vmatpush2.bf16.msra.mxu0 %v5856
        %5938 = vmatprep.subr.bf16.mxu0 0
        %5939 = vmatpush2.bf16.msra.mxu0 %v5855
        %5940 = vmatprep.subr.bf16.mxu0 0
        %5941 = vmatpush2.bf16.msra.mxu0 %v5854
        %5942 = vmatprep.mubr.bf16.mxu0 %v5711
        %5943 = vmatmul.mubr.bf16.gmra.mxu0 %v5710
        %v5944 = vpop.f32.mrf.mxu0
        %v5945 = vadd.f32 0.0, %v5944
        %v5946 = vpop.f32.mrf.mxu0
        %v5947 = vpop.f32.mrf.mxu0
        %v5948 = vpop.f32.mrf.mxu0
        %5949 = vdwg.mxu0
        %5950 = vmatprep.subr.bf16.mxu0 0
        %5951 = vmatpush1.bf16.msra.mxu0 %v5869
        %5952 = vmatprep.subr.bf16.mxu0 0
        %5953 = vmatpush1.bf16.msra.mxu0 %v5868
        %5954 = vmatprep.subr.bf16.mxu0 0
        %5955 = vmatpush1.bf16.msra.mxu0 %v5867
        %5956 = vmatprep.subr.bf16.mxu0 0
        %5957 = vmatpush1.bf16.msra.mxu0 %v5866
        %5958 = vmatprep.subr.bf16.mxu0 0
        %5959 = vmatpush1.bf16.msra.mxu0 %v5865
        %5960 = vmatprep.subr.bf16.mxu0 0
        %5961 = vmatpush1.bf16.msra.mxu0 %v5864
        %5962 = vmatprep.subr.bf16.mxu0 0
        %5963 = vmatpush1.bf16.msra.mxu0 %v5863
        %5964 = vmatprep.subr.bf16.mxu0 0
        %5965 = vmatpush1.bf16.msra.mxu0 %v5862
        %5966 = vmatprep.subr.bf16.mxu0 0
        %5967 = vmatpush2.bf16.msra.mxu0 %v5877
        %5968 = vmatprep.subr.bf16.mxu0 0
        %5969 = vmatpush2.bf16.msra.mxu0 %v5876
        %5970 = vmatprep.subr.bf16.mxu0 0
        %5971 = vmatpush2.bf16.msra.mxu0 %v5875
        %5972 = vmatprep.subr.bf16.mxu0 0
        %5973 = vmatpush2.bf16.msra.mxu0 %v5874
        %5974 = vmatprep.subr.bf16.mxu0 0
        %5975 = vmatpush2.bf16.msra.mxu0 %v5873
        %5976 = vmatprep.subr.bf16.mxu0 0
        %5977 = vmatpush2.bf16.msra.mxu0 %v5872
        %5978 = vmatprep.subr.bf16.mxu0 0
        %5979 = vmatpush2.bf16.msra.mxu0 %v5871
        %5980 = vmatprep.subr.bf16.mxu0 0
        %5981 = vmatpush2.bf16.msra.mxu0 %v5870
        %5982 = vmatprep.mubr.bf16.mxu0 %v5713
        %5983 = vmatmul.mubr.bf16.gmra.mxu0 %v5712
        %v5984 = vpop.f32.mrf.mxu0
        %v5985 = vadd.f32 %v5945, %v5984
        %v5986 = vpop.f32.mrf.mxu0
        %v5987 = vpop.f32.mrf.mxu0
        %v5988 = vpop.f32.mrf.mxu0
        %5989 = vdwg.mxu0
        %v5990 = vadd.f32 %v5644, %v5985
        %s5991 = scalar_lea.vmem [#allocation8], 1024
        %v5992 = vld [vmem:[%s5991] sm:$0xf]
        %v5993 = vld [vmem:[%s5991 + $0x4] sm:$0xf]
        %v5994 = vld [vmem:[%s5991 + $0x8] sm:$0xf]
        %v5995 = vld [vmem:[%s5991 + $0xc] sm:$0xf]
        %v5996 = vld [vmem:[%s5991 + $0x10] sm:$0xf]
        %v5997 = vld [vmem:[%s5991 + $0x14] sm:$0xf]
        %v5998 = vld [vmem:[%s5991 + $0x18] sm:$0xf]
        %v5999 = vld [vmem:[%s5991 + $0x1c] sm:$0xf]
        %v6000 = vld [vmem:[%s5991 + $0x20] sm:$0xf]
        %v6001 = vld [vmem:[%s5991 + $0x24] sm:$0xf]
        %v6002 = vld [vmem:[%s5991 + $0x28] sm:$0xf]
        %v6003 = vld [vmem:[%s5991 + $0x2c] sm:$0xf]
        %v6004 = vld [vmem:[%s5991 + $0x30] sm:$0xf]
        %v6005 = vld [vmem:[%s5991 + $0x34] sm:$0xf]
        %v6006 = vld [vmem:[%s5991 + $0x38] sm:$0xf]
        %v6007 = vld [vmem:[%s5991 + $0x3c] sm:$0xf]
        %v6008 = vld [vmem:[%s5991 + $0x40] sm:$0xf]
        %v6009 = vld [vmem:[%s5991 + $0x44] sm:$0xf]
        %v6010 = vld [vmem:[%s5991 + $0x48] sm:$0xf]
        %v6011 = vld [vmem:[%s5991 + $0x4c] sm:$0xf]
        %v6012 = vld [vmem:[%s5991 + $0x50] sm:$0xf]
        %v6013 = vld [vmem:[%s5991 + $0x54] sm:$0xf]
        %v6014 = vld [vmem:[%s5991 + $0x58] sm:$0xf]
        %v6015 = vld [vmem:[%s5991 + $0x5c] sm:$0xf]
        %v6016 = vld [vmem:[%s5991 + $0x60] sm:$0xf]
        %v6017 = vld [vmem:[%s5991 + $0x64] sm:$0xf]
        %v6018 = vld [vmem:[%s5991 + $0x68] sm:$0xf]
        %v6019 = vld [vmem:[%s5991 + $0x6c] sm:$0xf]
        %v6020 = vld [vmem:[%s5991 + $0x70] sm:$0xf]
        %v6021 = vld [vmem:[%s5991 + $0x74] sm:$0xf]
        %v6022 = vld [vmem:[%s5991 + $0x78] sm:$0xf]
        %v6023 = vld [vmem:[%s5991 + $0x7c] sm:$0xf]
        %v6024 = vld [vmem:[%s5991 + $0x80] sm:$0xf]
        %v6025 = vld [vmem:[%s5991 + $0x84] sm:$0xf]
        %v6026 = vld [vmem:[%s5991 + $0x88] sm:$0xf]
        %v6027 = vld [vmem:[%s5991 + $0x8c] sm:$0xf]
        %v6028 = vld [vmem:[%s5991 + $0x90] sm:$0xf]
        %v6029 = vld [vmem:[%s5991 + $0x94] sm:$0xf]
        %v6030 = vld [vmem:[%s5991 + $0x98] sm:$0xf]
        %v6031 = vld [vmem:[%s5991 + $0x9c] sm:$0xf]
        %v6032 = vld [vmem:[%s5991 + $0xa0] sm:$0xf]
        %v6033 = vld [vmem:[%s5991 + $0xa4] sm:$0xf]
        %v6034 = vld [vmem:[%s5991 + $0xa8] sm:$0xf]
        %v6035 = vld [vmem:[%s5991 + $0xac] sm:$0xf]
        %v6036 = vld [vmem:[%s5991 + $0xb0] sm:$0xf]
        %v6037 = vld [vmem:[%s5991 + $0xb4] sm:$0xf]
        %v6038 = vld [vmem:[%s5991 + $0xb8] sm:$0xf]
        %v6039 = vld [vmem:[%s5991 + $0xbc] sm:$0xf]
        %v6040 = vld [vmem:[%s5991 + $0xc0] sm:$0xf]
        %v6041 = vld [vmem:[%s5991 + $0xc4] sm:$0xf]
        %v6042 = vld [vmem:[%s5991 + $0xc8] sm:$0xf]
        %v6043 = vld [vmem:[%s5991 + $0xcc] sm:$0xf]
        %v6044 = vld [vmem:[%s5991 + $0xd0] sm:$0xf]
        %v6045 = vld [vmem:[%s5991 + $0xd4] sm:$0xf]
        %v6046 = vld [vmem:[%s5991 + $0xd8] sm:$0xf]
        %v6047 = vld [vmem:[%s5991 + $0xdc] sm:$0xf]
        %v6048 = vld [vmem:[%s5991 + $0xe0] sm:$0xf]
        %v6049 = vld [vmem:[%s5991 + $0xe4] sm:$0xf]
        %v6050 = vld [vmem:[%s5991 + $0xe8] sm:$0xf]
        %v6051 = vld [vmem:[%s5991 + $0xec] sm:$0xf]
        %v6052 = vld [vmem:[%s5991 + $0xf0] sm:$0xf]
        %v6053 = vld [vmem:[%s5991 + $0xf4] sm:$0xf]
        %v6054 = vld [vmem:[%s5991 + $0xf8] sm:$0xf]
        %v6055 = vld [vmem:[%s5991 + $0xfc] sm:$0xf]
        %v6056 = vrot.slane %v4599, 2
        %v6057 = vrot.slane %v4600, 2
        %v6058 = vrot.slane %v4601, 2
        %v6059 = vrot.slane %v4602, 2
        %v6128 = vunpack.c.l.b16 %v5992
        %v6129 = vunpack.c.l.b16 %v5993
        %v6130 = vunpack.c.l.b16 %v5994
        %v6131 = vunpack.c.l.b16 %v5995
        %v6132 = vunpack.c.l.b16 %v5996
        %v6133 = vunpack.c.l.b16 %v5997
        %v6134 = vunpack.c.l.b16 %v5998
        %v6135 = vunpack.c.l.b16 %v5999
        %v6136 = vunpack.c.l.b16 %v6000
        %v6137 = vunpack.c.l.b16 %v6001
        %v6138 = vunpack.c.l.b16 %v6002
        %v6139 = vunpack.c.l.b16 %v6003
        %v6140 = vunpack.c.l.b16 %v6004
        %v6141 = vunpack.c.l.b16 %v6005
        %v6142 = vunpack.c.l.b16 %v6006
        %v6143 = vunpack.c.l.b16 %v6007
        %v6144 = vunpack.c.l.b16 %v6008
        %v6145 = vunpack.c.l.b16 %v6009
        %v6146 = vunpack.c.l.b16 %v6010
        %v6147 = vunpack.c.l.b16 %v6011
        %v6148 = vunpack.c.l.b16 %v6012
        %v6149 = vunpack.c.l.b16 %v6013
        %v6150 = vunpack.c.l.b16 %v6014
        %v6151 = vunpack.c.l.b16 %v6015
        %v6152 = vunpack.c.l.b16 %v6016
        %v6153 = vunpack.c.l.b16 %v6017
        %v6154 = vunpack.c.l.b16 %v6018
        %v6155 = vunpack.c.l.b16 %v6019
        %v6156 = vunpack.c.l.b16 %v6020
        %v6157 = vunpack.c.l.b16 %v6021
        %v6158 = vunpack.c.l.b16 %v6022
        %v6159 = vunpack.c.l.b16 %v6023
        %v6160 = vunpack.c.l.b16 %v6024
        %v6161 = vunpack.c.l.b16 %v6025
        %v6162 = vunpack.c.l.b16 %v6026
        %v6163 = vunpack.c.l.b16 %v6027
        %v6164 = vunpack.c.l.b16 %v6028
        %v6165 = vunpack.c.l.b16 %v6029
        %v6166 = vunpack.c.l.b16 %v6030
        %v6167 = vunpack.c.l.b16 %v6031
        %v6168 = vunpack.c.l.b16 %v6032
        %v6169 = vunpack.c.l.b16 %v6033
        %v6170 = vunpack.c.l.b16 %v6034
        %v6171 = vunpack.c.l.b16 %v6035
        %v6172 = vunpack.c.l.b16 %v6036
        %v6173 = vunpack.c.l.b16 %v6037
        %v6174 = vunpack.c.l.b16 %v6038
        %v6175 = vunpack.c.l.b16 %v6039
        %v6176 = vunpack.c.l.b16 %v6040
        %v6177 = vunpack.c.l.b16 %v6041
        %v6178 = vunpack.c.l.b16 %v6042
        %v6179 = vunpack.c.l.b16 %v6043
        %v6180 = vunpack.c.l.b16 %v6044
        %v6181 = vunpack.c.l.b16 %v6045
        %v6182 = vunpack.c.l.b16 %v6046
        %v6183 = vunpack.c.l.b16 %v6047
        %v6184 = vunpack.c.l.b16 %v6048
        %v6185 = vunpack.c.l.b16 %v6049
        %v6186 = vunpack.c.l.b16 %v6050
        %v6187 = vunpack.c.l.b16 %v6051
        %v6188 = vunpack.c.l.b16 %v6052
        %v6189 = vunpack.c.l.b16 %v6053
        %v6190 = vunpack.c.l.b16 %v6054
        %v6191 = vunpack.c.l.b16 %v6055
        %v6192 = vpack.c.b16 %v6129, %v6128
        %v6193 = vpack.c.b16 %v6131, %v6130
        %v6194 = vpack.c.b16 %v6133, %v6132
        %v6195 = vpack.c.b16 %v6135, %v6134
        %v6196 = vpack.c.b16 %v6137, %v6136
        %v6197 = vpack.c.b16 %v6139, %v6138
        %v6198 = vpack.c.b16 %v6141, %v6140
        %v6199 = vpack.c.b16 %v6143, %v6142
        %v6200 = vpack.c.b16 %v6145, %v6144
        %v6201 = vpack.c.b16 %v6147, %v6146
        %v6202 = vpack.c.b16 %v6149, %v6148
        %v6203 = vpack.c.b16 %v6151, %v6150
        %v6204 = vpack.c.b16 %v6153, %v6152
        %v6205 = vpack.c.b16 %v6155, %v6154
        %v6206 = vpack.c.b16 %v6157, %v6156
        %v6207 = vpack.c.b16 %v6159, %v6158
        %v6208 = vpack.c.b16 %v6161, %v6160
        %v6209 = vpack.c.b16 %v6163, %v6162
        %v6210 = vpack.c.b16 %v6165, %v6164
        %v6211 = vpack.c.b16 %v6167, %v6166
        %v6212 = vpack.c.b16 %v6169, %v6168
        %v6213 = vpack.c.b16 %v6171, %v6170
        %v6214 = vpack.c.b16 %v6173, %v6172
        %v6215 = vpack.c.b16 %v6175, %v6174
        %v6216 = vpack.c.b16 %v6177, %v6176
        %v6217 = vpack.c.b16 %v6179, %v6178
        %v6218 = vpack.c.b16 %v6181, %v6180
        %v6219 = vpack.c.b16 %v6183, %v6182
        %v6220 = vpack.c.b16 %v6185, %v6184
        %v6221 = vpack.c.b16 %v6187, %v6186
        %v6222 = vpack.c.b16 %v6189, %v6188
        %v6223 = vpack.c.b16 %v6191, %v6190
        %6256 = vmatprep.subr.bf16.mxu0 0
        %6257 = vmatpush1.bf16.msra.mxu0 %v6199
        %6258 = vmatprep.subr.bf16.mxu0 0
        %6259 = vmatpush1.bf16.msra.mxu0 %v6198
        %6260 = vmatprep.subr.bf16.mxu0 0
        %6261 = vmatpush1.bf16.msra.mxu0 %v6197
        %6262 = vmatprep.subr.bf16.mxu0 0
        %6263 = vmatpush1.bf16.msra.mxu0 %v6196
        %6264 = vmatprep.subr.bf16.mxu0 0
        %6265 = vmatpush1.bf16.msra.mxu0 %v6195
        %6266 = vmatprep.subr.bf16.mxu0 0
        %6267 = vmatpush1.bf16.msra.mxu0 %v6194
        %6268 = vmatprep.subr.bf16.mxu0 0
        %6269 = vmatpush1.bf16.msra.mxu0 %v6193
        %6270 = vmatprep.subr.bf16.mxu0 0
        %6271 = vmatpush1.bf16.msra.mxu0 %v6192
        %6272 = vmatprep.subr.bf16.mxu0 0
        %6273 = vmatpush2.bf16.msra.mxu0 %v6207
        %6274 = vmatprep.subr.bf16.mxu0 0
        %6275 = vmatpush2.bf16.msra.mxu0 %v6206
        %6276 = vmatprep.subr.bf16.mxu0 0
        %6277 = vmatpush2.bf16.msra.mxu0 %v6205
        %6278 = vmatprep.subr.bf16.mxu0 0
        %6279 = vmatpush2.bf16.msra.mxu0 %v6204
        %6280 = vmatprep.subr.bf16.mxu0 0
        %6281 = vmatpush2.bf16.msra.mxu0 %v6203
        %6282 = vmatprep.subr.bf16.mxu0 0
        %6283 = vmatpush2.bf16.msra.mxu0 %v6202
        %6284 = vmatprep.subr.bf16.mxu0 0
        %6285 = vmatpush2.bf16.msra.mxu0 %v6201
        %6286 = vmatprep.subr.bf16.mxu0 0
        %6287 = vmatpush2.bf16.msra.mxu0 %v6200
        %6288 = vmatprep.mubr.bf16.mxu0 %v6057
        %6289 = vmatmul.mubr.bf16.gmra.mxu0 %v6056
        %v6290 = vpop.f32.mrf.mxu0
        %v6291 = vadd.f32 0.0, %v6290
        %v6292 = vpop.f32.mrf.mxu0
        %v6293 = vpop.f32.mrf.mxu0
        %v6294 = vpop.f32.mrf.mxu0
        %6295 = vdwg.mxu0
        %6296 = vmatprep.subr.bf16.mxu0 0
        %6297 = vmatpush1.bf16.msra.mxu0 %v6215
        %6298 = vmatprep.subr.bf16.mxu0 0
        %6299 = vmatpush1.bf16.msra.mxu0 %v6214
        %6300 = vmatprep.subr.bf16.mxu0 0
        %6301 = vmatpush1.bf16.msra.mxu0 %v6213
        %6302 = vmatprep.subr.bf16.mxu0 0
        %6303 = vmatpush1.bf16.msra.mxu0 %v6212
        %6304 = vmatprep.subr.bf16.mxu0 0
        %6305 = vmatpush1.bf16.msra.mxu0 %v6211
        %6306 = vmatprep.subr.bf16.mxu0 0
        %6307 = vmatpush1.bf16.msra.mxu0 %v6210
        %6308 = vmatprep.subr.bf16.mxu0 0
        %6309 = vmatpush1.bf16.msra.mxu0 %v6209
        %6310 = vmatprep.subr.bf16.mxu0 0
        %6311 = vmatpush1.bf16.msra.mxu0 %v6208
        %6312 = vmatprep.subr.bf16.mxu0 0
        %6313 = vmatpush2.bf16.msra.mxu0 %v6223
        %6314 = vmatprep.subr.bf16.mxu0 0
        %6315 = vmatpush2.bf16.msra.mxu0 %v6222
        %6316 = vmatprep.subr.bf16.mxu0 0
        %6317 = vmatpush2.bf16.msra.mxu0 %v6221
        %6318 = vmatprep.subr.bf16.mxu0 0
        %6319 = vmatpush2.bf16.msra.mxu0 %v6220
        %6320 = vmatprep.subr.bf16.mxu0 0
        %6321 = vmatpush2.bf16.msra.mxu0 %v6219
        %6322 = vmatprep.subr.bf16.mxu0 0
        %6323 = vmatpush2.bf16.msra.mxu0 %v6218
        %6324 = vmatprep.subr.bf16.mxu0 0
        %6325 = vmatpush2.bf16.msra.mxu0 %v6217
        %6326 = vmatprep.subr.bf16.mxu0 0
        %6327 = vmatpush2.bf16.msra.mxu0 %v6216
        %6328 = vmatprep.mubr.bf16.mxu0 %v6059
        %6329 = vmatmul.mubr.bf16.gmra.mxu0 %v6058
        %v6330 = vpop.f32.mrf.mxu0
        %v6331 = vadd.f32 %v6291, %v6330
        %v6332 = vpop.f32.mrf.mxu0
        %v6333 = vpop.f32.mrf.mxu0
        %v6334 = vpop.f32.mrf.mxu0
        %6335 = vdwg.mxu0
        %v6336 = vadd.f32 %v5990, %v6331
        %s6337 = scalar_lea.vmem [#allocation8], 1280
        %v6338 = vld [vmem:[%s6337] sm:$0xf]
        %v6339 = vld [vmem:[%s6337 + $0x4] sm:$0xf]
        %v6340 = vld [vmem:[%s6337 + $0x8] sm:$0xf]
        %v6341 = vld [vmem:[%s6337 + $0xc] sm:$0xf]
        %v6342 = vld [vmem:[%s6337 + $0x10] sm:$0xf]
        %v6343 = vld [vmem:[%s6337 + $0x14] sm:$0xf]
        %v6344 = vld [vmem:[%s6337 + $0x18] sm:$0xf]
        %v6345 = vld [vmem:[%s6337 + $0x1c] sm:$0xf]
        %v6346 = vld [vmem:[%s6337 + $0x20] sm:$0xf]
        %v6347 = vld [vmem:[%s6337 + $0x24] sm:$0xf]
        %v6348 = vld [vmem:[%s6337 + $0x28] sm:$0xf]
        %v6349 = vld [vmem:[%s6337 + $0x2c] sm:$0xf]
        %v6350 = vld [vmem:[%s6337 + $0x30] sm:$0xf]
        %v6351 = vld [vmem:[%s6337 + $0x34] sm:$0xf]
        %v6352 = vld [vmem:[%s6337 + $0x38] sm:$0xf]
        %v6353 = vld [vmem:[%s6337 + $0x3c] sm:$0xf]
        %v6354 = vld [vmem:[%s6337 + $0x40] sm:$0xf]
        %v6355 = vld [vmem:[%s6337 + $0x44] sm:$0xf]
        %v6356 = vld [vmem:[%s6337 + $0x48] sm:$0xf]
        %v6357 = vld [vmem:[%s6337 + $0x4c] sm:$0xf]
        %v6358 = vld [vmem:[%s6337 + $0x50] sm:$0xf]
        %v6359 = vld [vmem:[%s6337 + $0x54] sm:$0xf]
        %v6360 = vld [vmem:[%s6337 + $0x58] sm:$0xf]
        %v6361 = vld [vmem:[%s6337 + $0x5c] sm:$0xf]
        %v6362 = vld [vmem:[%s6337 + $0x60] sm:$0xf]
        %v6363 = vld [vmem:[%s6337 + $0x64] sm:$0xf]
        %v6364 = vld [vmem:[%s6337 + $0x68] sm:$0xf]
        %v6365 = vld [vmem:[%s6337 + $0x6c] sm:$0xf]
        %v6366 = vld [vmem:[%s6337 + $0x70] sm:$0xf]
        %v6367 = vld [vmem:[%s6337 + $0x74] sm:$0xf]
        %v6368 = vld [vmem:[%s6337 + $0x78] sm:$0xf]
        %v6369 = vld [vmem:[%s6337 + $0x7c] sm:$0xf]
        %v6370 = vld [vmem:[%s6337 + $0x80] sm:$0xf]
        %v6371 = vld [vmem:[%s6337 + $0x84] sm:$0xf]
        %v6372 = vld [vmem:[%s6337 + $0x88] sm:$0xf]
        %v6373 = vld [vmem:[%s6337 + $0x8c] sm:$0xf]
        %v6374 = vld [vmem:[%s6337 + $0x90] sm:$0xf]
        %v6375 = vld [vmem:[%s6337 + $0x94] sm:$0xf]
        %v6376 = vld [vmem:[%s6337 + $0x98] sm:$0xf]
        %v6377 = vld [vmem:[%s6337 + $0x9c] sm:$0xf]
        %v6378 = vld [vmem:[%s6337 + $0xa0] sm:$0xf]
        %v6379 = vld [vmem:[%s6337 + $0xa4] sm:$0xf]
        %v6380 = vld [vmem:[%s6337 + $0xa8] sm:$0xf]
        %v6381 = vld [vmem:[%s6337 + $0xac] sm:$0xf]
        %v6382 = vld [vmem:[%s6337 + $0xb0] sm:$0xf]
        %v6383 = vld [vmem:[%s6337 + $0xb4] sm:$0xf]
        %v6384 = vld [vmem:[%s6337 + $0xb8] sm:$0xf]
        %v6385 = vld [vmem:[%s6337 + $0xbc] sm:$0xf]
        %v6386 = vld [vmem:[%s6337 + $0xc0] sm:$0xf]
        %v6387 = vld [vmem:[%s6337 + $0xc4] sm:$0xf]
        %v6388 = vld [vmem:[%s6337 + $0xc8] sm:$0xf]
        %v6389 = vld [vmem:[%s6337 + $0xcc] sm:$0xf]
        %v6390 = vld [vmem:[%s6337 + $0xd0] sm:$0xf]
        %v6391 = vld [vmem:[%s6337 + $0xd4] sm:$0xf]
        %v6392 = vld [vmem:[%s6337 + $0xd8] sm:$0xf]
        %v6393 = vld [vmem:[%s6337 + $0xdc] sm:$0xf]
        %v6394 = vld [vmem:[%s6337 + $0xe0] sm:$0xf]
        %v6395 = vld [vmem:[%s6337 + $0xe4] sm:$0xf]
        %v6396 = vld [vmem:[%s6337 + $0xe8] sm:$0xf]
        %v6397 = vld [vmem:[%s6337 + $0xec] sm:$0xf]
        %v6398 = vld [vmem:[%s6337 + $0xf0] sm:$0xf]
        %v6399 = vld [vmem:[%s6337 + $0xf4] sm:$0xf]
        %v6400 = vld [vmem:[%s6337 + $0xf8] sm:$0xf]
        %v6401 = vld [vmem:[%s6337 + $0xfc] sm:$0xf]
        %v6402 = vrot.slane %v5007, 2
        %v6403 = vrot.slane %v5010, 2
        %v6404 = vrot.slane %v5013, 2
        %v6405 = vrot.slane %v5016, 2
        %v6474 = vunpack.c.l.b16 %v6338
        %v6475 = vunpack.c.l.b16 %v6339
        %v6476 = vunpack.c.l.b16 %v6340
        %v6477 = vunpack.c.l.b16 %v6341
        %v6478 = vunpack.c.l.b16 %v6342
        %v6479 = vunpack.c.l.b16 %v6343
        %v6480 = vunpack.c.l.b16 %v6344
        %v6481 = vunpack.c.l.b16 %v6345
        %v6482 = vunpack.c.l.b16 %v6346
        %v6483 = vunpack.c.l.b16 %v6347
        %v6484 = vunpack.c.l.b16 %v6348
        %v6485 = vunpack.c.l.b16 %v6349
        %v6486 = vunpack.c.l.b16 %v6350
        %v6487 = vunpack.c.l.b16 %v6351
        %v6488 = vunpack.c.l.b16 %v6352
        %v6489 = vunpack.c.l.b16 %v6353
        %v6490 = vunpack.c.l.b16 %v6354
        %v6491 = vunpack.c.l.b16 %v6355
        %v6492 = vunpack.c.l.b16 %v6356
        %v6493 = vunpack.c.l.b16 %v6357
        %v6494 = vunpack.c.l.b16 %v6358
        %v6495 = vunpack.c.l.b16 %v6359
        %v6496 = vunpack.c.l.b16 %v6360
        %v6497 = vunpack.c.l.b16 %v6361
        %v6498 = vunpack.c.l.b16 %v6362
        %v6499 = vunpack.c.l.b16 %v6363
        %v6500 = vunpack.c.l.b16 %v6364
        %v6501 = vunpack.c.l.b16 %v6365
        %v6502 = vunpack.c.l.b16 %v6366
        %v6503 = vunpack.c.l.b16 %v6367
        %v6504 = vunpack.c.l.b16 %v6368
        %v6505 = vunpack.c.l.b16 %v6369
        %v6506 = vunpack.c.l.b16 %v6370
        %v6507 = vunpack.c.l.b16 %v6371
        %v6508 = vunpack.c.l.b16 %v6372
        %v6509 = vunpack.c.l.b16 %v6373
        %v6510 = vunpack.c.l.b16 %v6374
        %v6511 = vunpack.c.l.b16 %v6375
        %v6512 = vunpack.c.l.b16 %v6376
        %v6513 = vunpack.c.l.b16 %v6377
        %v6514 = vunpack.c.l.b16 %v6378
        %v6515 = vunpack.c.l.b16 %v6379
        %v6516 = vunpack.c.l.b16 %v6380
        %v6517 = vunpack.c.l.b16 %v6381
        %v6518 = vunpack.c.l.b16 %v6382
        %v6519 = vunpack.c.l.b16 %v6383
        %v6520 = vunpack.c.l.b16 %v6384
        %v6521 = vunpack.c.l.b16 %v6385
        %v6522 = vunpack.c.l.b16 %v6386
        %v6523 = vunpack.c.l.b16 %v6387
        %v6524 = vunpack.c.l.b16 %v6388
        %v6525 = vunpack.c.l.b16 %v6389
        %v6526 = vunpack.c.l.b16 %v6390
        %v6527 = vunpack.c.l.b16 %v6391
        %v6528 = vunpack.c.l.b16 %v6392
        %v6529 = vunpack.c.l.b16 %v6393
        %v6530 = vunpack.c.l.b16 %v6394
        %v6531 = vunpack.c.l.b16 %v6395
        %v6532 = vunpack.c.l.b16 %v6396
        %v6533 = vunpack.c.l.b16 %v6397
        %v6534 = vunpack.c.l.b16 %v6398
        %v6535 = vunpack.c.l.b16 %v6399
        %v6536 = vunpack.c.l.b16 %v6400
        %v6537 = vunpack.c.l.b16 %v6401
        %v6538 = vpack.c.b16 %v6475, %v6474
        %v6539 = vpack.c.b16 %v6477, %v6476
        %v6540 = vpack.c.b16 %v6479, %v6478
        %v6541 = vpack.c.b16 %v6481, %v6480
        %v6542 = vpack.c.b16 %v6483, %v6482
        %v6543 = vpack.c.b16 %v6485, %v6484
        %v6544 = vpack.c.b16 %v6487, %v6486
        %v6545 = vpack.c.b16 %v6489, %v6488
        %v6546 = vpack.c.b16 %v6491, %v6490
        %v6547 = vpack.c.b16 %v6493, %v6492
        %v6548 = vpack.c.b16 %v6495, %v6494
        %v6549 = vpack.c.b16 %v6497, %v6496
        %v6550 = vpack.c.b16 %v6499, %v6498
        %v6551 = vpack.c.b16 %v6501, %v6500
        %v6552 = vpack.c.b16 %v6503, %v6502
        %v6553 = vpack.c.b16 %v6505, %v6504
        %v6554 = vpack.c.b16 %v6507, %v6506
        %v6555 = vpack.c.b16 %v6509, %v6508
        %v6556 = vpack.c.b16 %v6511, %v6510
        %v6557 = vpack.c.b16 %v6513, %v6512
        %v6558 = vpack.c.b16 %v6515, %v6514
        %v6559 = vpack.c.b16 %v6517, %v6516
        %v6560 = vpack.c.b16 %v6519, %v6518
        %v6561 = vpack.c.b16 %v6521, %v6520
        %v6562 = vpack.c.b16 %v6523, %v6522
        %v6563 = vpack.c.b16 %v6525, %v6524
        %v6564 = vpack.c.b16 %v6527, %v6526
        %v6565 = vpack.c.b16 %v6529, %v6528
        %v6566 = vpack.c.b16 %v6531, %v6530
        %v6567 = vpack.c.b16 %v6533, %v6532
        %v6568 = vpack.c.b16 %v6535, %v6534
        %v6569 = vpack.c.b16 %v6537, %v6536
        %6602 = vmatprep.subr.bf16.mxu0 0
        %6603 = vmatpush1.bf16.msra.mxu0 %v6545
        %6604 = vmatprep.subr.bf16.mxu0 0
        %6605 = vmatpush1.bf16.msra.mxu0 %v6544
        %6606 = vmatprep.subr.bf16.mxu0 0
        %6607 = vmatpush1.bf16.msra.mxu0 %v6543
        %6608 = vmatprep.subr.bf16.mxu0 0
        %6609 = vmatpush1.bf16.msra.mxu0 %v6542
        %6610 = vmatprep.subr.bf16.mxu0 0
        %6611 = vmatpush1.bf16.msra.mxu0 %v6541
        %6612 = vmatprep.subr.bf16.mxu0 0
        %6613 = vmatpush1.bf16.msra.mxu0 %v6540
        %6614 = vmatprep.subr.bf16.mxu0 0
        %6615 = vmatpush1.bf16.msra.mxu0 %v6539
        %6616 = vmatprep.subr.bf16.mxu0 0
        %6617 = vmatpush1.bf16.msra.mxu0 %v6538
        %6618 = vmatprep.subr.bf16.mxu0 0
        %6619 = vmatpush2.bf16.msra.mxu0 %v6553
        %6620 = vmatprep.subr.bf16.mxu0 0
        %6621 = vmatpush2.bf16.msra.mxu0 %v6552
        %6622 = vmatprep.subr.bf16.mxu0 0
        %6623 = vmatpush2.bf16.msra.mxu0 %v6551
        %6624 = vmatprep.subr.bf16.mxu0 0
        %6625 = vmatpush2.bf16.msra.mxu0 %v6550
        %6626 = vmatprep.subr.bf16.mxu0 0
        %6627 = vmatpush2.bf16.msra.mxu0 %v6549
        %6628 = vmatprep.subr.bf16.mxu0 0
        %6629 = vmatpush2.bf16.msra.mxu0 %v6548
        %6630 = vmatprep.subr.bf16.mxu0 0
        %6631 = vmatpush2.bf16.msra.mxu0 %v6547
        %6632 = vmatprep.subr.bf16.mxu0 0
        %6633 = vmatpush2.bf16.msra.mxu0 %v6546
        %6634 = vmatprep.mubr.bf16.mxu0 %v6403
        %6635 = vmatmul.mubr.bf16.gmra.mxu0 %v6402
        %v6636 = vpop.f32.mrf.mxu0
        %v6637 = vadd.f32 0.0, %v6636
        %v6638 = vpop.f32.mrf.mxu0
        %v6639 = vpop.f32.mrf.mxu0
        %v6640 = vpop.f32.mrf.mxu0
        %6641 = vdwg.mxu0
        %6642 = vmatprep.subr.bf16.mxu0 0
        %6643 = vmatpush1.bf16.msra.mxu0 %v6561
        %6644 = vmatprep.subr.bf16.mxu0 0
        %6645 = vmatpush1.bf16.msra.mxu0 %v6560
        %6646 = vmatprep.subr.bf16.mxu0 0
        %6647 = vmatpush1.bf16.msra.mxu0 %v6559
        %6648 = vmatprep.subr.bf16.mxu0 0
        %6649 = vmatpush1.bf16.msra.mxu0 %v6558
        %6650 = vmatprep.subr.bf16.mxu0 0
        %6651 = vmatpush1.bf16.msra.mxu0 %v6557
        %6652 = vmatprep.subr.bf16.mxu0 0
        %6653 = vmatpush1.bf16.msra.mxu0 %v6556
        %6654 = vmatprep.subr.bf16.mxu0 0
        %6655 = vmatpush1.bf16.msra.mxu0 %v6555
        %6656 = vmatprep.subr.bf16.mxu0 0
        %6657 = vmatpush1.bf16.msra.mxu0 %v6554
        %6658 = vmatprep.subr.bf16.mxu0 0
        %6659 = vmatpush2.bf16.msra.mxu0 %v6569
        %6660 = vmatprep.subr.bf16.mxu0 0
        %6661 = vmatpush2.bf16.msra.mxu0 %v6568
        %6662 = vmatprep.subr.bf16.mxu0 0
        %6663 = vmatpush2.bf16.msra.mxu0 %v6567
        %6664 = vmatprep.subr.bf16.mxu0 0
        %6665 = vmatpush2.bf16.msra.mxu0 %v6566
        %6666 = vmatprep.subr.bf16.mxu0 0
        %6667 = vmatpush2.bf16.msra.mxu0 %v6565
        %6668 = vmatprep.subr.bf16.mxu0 0
        %6669 = vmatpush2.bf16.msra.mxu0 %v6564
        %6670 = vmatprep.subr.bf16.mxu0 0
        %6671 = vmatpush2.bf16.msra.mxu0 %v6563
        %6672 = vmatprep.subr.bf16.mxu0 0
        %6673 = vmatpush2.bf16.msra.mxu0 %v6562
        %6674 = vmatprep.mubr.bf16.mxu0 %v6405
        %6675 = vmatmul.mubr.bf16.gmra.mxu0 %v6404
        %v6676 = vpop.f32.mrf.mxu0
        %v6677 = vadd.f32 %v6637, %v6676
        %v6678 = vpop.f32.mrf.mxu0
        %v6679 = vpop.f32.mrf.mxu0
        %v6680 = vpop.f32.mrf.mxu0
        %6681 = vdwg.mxu0
        %v6682 = vadd.f32 %v6336, %v6677
        %s6683 = scalar_lea.vmem [#allocation8], 1536
        %v6684 = vld [vmem:[%s6683] sm:$0xf]
        %v6685 = vld [vmem:[%s6683 + $0x4] sm:$0xf]
        %v6686 = vld [vmem:[%s6683 + $0x8] sm:$0xf]
        %v6687 = vld [vmem:[%s6683 + $0xc] sm:$0xf]
        %v6688 = vld [vmem:[%s6683 + $0x10] sm:$0xf]
        %v6689 = vld [vmem:[%s6683 + $0x14] sm:$0xf]
        %v6690 = vld [vmem:[%s6683 + $0x18] sm:$0xf]
        %v6691 = vld [vmem:[%s6683 + $0x1c] sm:$0xf]
        %v6692 = vld [vmem:[%s6683 + $0x20] sm:$0xf]
        %v6693 = vld [vmem:[%s6683 + $0x24] sm:$0xf]
        %v6694 = vld [vmem:[%s6683 + $0x28] sm:$0xf]
        %v6695 = vld [vmem:[%s6683 + $0x2c] sm:$0xf]
        %v6696 = vld [vmem:[%s6683 + $0x30] sm:$0xf]
        %v6697 = vld [vmem:[%s6683 + $0x34] sm:$0xf]
        %v6698 = vld [vmem:[%s6683 + $0x38] sm:$0xf]
        %v6699 = vld [vmem:[%s6683 + $0x3c] sm:$0xf]
        %v6700 = vld [vmem:[%s6683 + $0x40] sm:$0xf]
        %v6701 = vld [vmem:[%s6683 + $0x44] sm:$0xf]
        %v6702 = vld [vmem:[%s6683 + $0x48] sm:$0xf]
        %v6703 = vld [vmem:[%s6683 + $0x4c] sm:$0xf]
        %v6704 = vld [vmem:[%s6683 + $0x50] sm:$0xf]
        %v6705 = vld [vmem:[%s6683 + $0x54] sm:$0xf]
        %v6706 = vld [vmem:[%s6683 + $0x58] sm:$0xf]
        %v6707 = vld [vmem:[%s6683 + $0x5c] sm:$0xf]
        %v6708 = vld [vmem:[%s6683 + $0x60] sm:$0xf]
        %v6709 = vld [vmem:[%s6683 + $0x64] sm:$0xf]
        %v6710 = vld [vmem:[%s6683 + $0x68] sm:$0xf]
        %v6711 = vld [vmem:[%s6683 + $0x6c] sm:$0xf]
        %v6712 = vld [vmem:[%s6683 + $0x70] sm:$0xf]
        %v6713 = vld [vmem:[%s6683 + $0x74] sm:$0xf]
        %v6714 = vld [vmem:[%s6683 + $0x78] sm:$0xf]
        %v6715 = vld [vmem:[%s6683 + $0x7c] sm:$0xf]
        %v6716 = vld [vmem:[%s6683 + $0x80] sm:$0xf]
        %v6717 = vld [vmem:[%s6683 + $0x84] sm:$0xf]
        %v6718 = vld [vmem:[%s6683 + $0x88] sm:$0xf]
        %v6719 = vld [vmem:[%s6683 + $0x8c] sm:$0xf]
        %v6720 = vld [vmem:[%s6683 + $0x90] sm:$0xf]
        %v6721 = vld [vmem:[%s6683 + $0x94] sm:$0xf]
        %v6722 = vld [vmem:[%s6683 + $0x98] sm:$0xf]
        %v6723 = vld [vmem:[%s6683 + $0x9c] sm:$0xf]
        %v6724 = vld [vmem:[%s6683 + $0xa0] sm:$0xf]
        %v6725 = vld [vmem:[%s6683 + $0xa4] sm:$0xf]
        %v6726 = vld [vmem:[%s6683 + $0xa8] sm:$0xf]
        %v6727 = vld [vmem:[%s6683 + $0xac] sm:$0xf]
        %v6728 = vld [vmem:[%s6683 + $0xb0] sm:$0xf]
        %v6729 = vld [vmem:[%s6683 + $0xb4] sm:$0xf]
        %v6730 = vld [vmem:[%s6683 + $0xb8] sm:$0xf]
        %v6731 = vld [vmem:[%s6683 + $0xbc] sm:$0xf]
        %v6732 = vld [vmem:[%s6683 + $0xc0] sm:$0xf]
        %v6733 = vld [vmem:[%s6683 + $0xc4] sm:$0xf]
        %v6734 = vld [vmem:[%s6683 + $0xc8] sm:$0xf]
        %v6735 = vld [vmem:[%s6683 + $0xcc] sm:$0xf]
        %v6736 = vld [vmem:[%s6683 + $0xd0] sm:$0xf]
        %v6737 = vld [vmem:[%s6683 + $0xd4] sm:$0xf]
        %v6738 = vld [vmem:[%s6683 + $0xd8] sm:$0xf]
        %v6739 = vld [vmem:[%s6683 + $0xdc] sm:$0xf]
        %v6740 = vld [vmem:[%s6683 + $0xe0] sm:$0xf]
        %v6741 = vld [vmem:[%s6683 + $0xe4] sm:$0xf]
        %v6742 = vld [vmem:[%s6683 + $0xe8] sm:$0xf]
        %v6743 = vld [vmem:[%s6683 + $0xec] sm:$0xf]
        %v6744 = vld [vmem:[%s6683 + $0xf0] sm:$0xf]
        %v6745 = vld [vmem:[%s6683 + $0xf4] sm:$0xf]
        %v6746 = vld [vmem:[%s6683 + $0xf8] sm:$0xf]
        %v6747 = vld [vmem:[%s6683 + $0xfc] sm:$0xf]
        %v6748 = vrot.slane %v4599, 3
        %v6749 = vrot.slane %v4600, 3
        %v6750 = vrot.slane %v4601, 3
        %v6751 = vrot.slane %v4602, 3
        %v6820 = vunpack.c.l.b16 %v6684
        %v6821 = vunpack.c.l.b16 %v6685
        %v6822 = vunpack.c.l.b16 %v6686
        %v6823 = vunpack.c.l.b16 %v6687
        %v6824 = vunpack.c.l.b16 %v6688
        %v6825 = vunpack.c.l.b16 %v6689
        %v6826 = vunpack.c.l.b16 %v6690
        %v6827 = vunpack.c.l.b16 %v6691
        %v6828 = vunpack.c.l.b16 %v6692
        %v6829 = vunpack.c.l.b16 %v6693
        %v6830 = vunpack.c.l.b16 %v6694
        %v6831 = vunpack.c.l.b16 %v6695
        %v6832 = vunpack.c.l.b16 %v6696
        %v6833 = vunpack.c.l.b16 %v6697
        %v6834 = vunpack.c.l.b16 %v6698
        %v6835 = vunpack.c.l.b16 %v6699
        %v6836 = vunpack.c.l.b16 %v6700
        %v6837 = vunpack.c.l.b16 %v6701
        %v6838 = vunpack.c.l.b16 %v6702
        %v6839 = vunpack.c.l.b16 %v6703
        %v6840 = vunpack.c.l.b16 %v6704
        %v6841 = vunpack.c.l.b16 %v6705
        %v6842 = vunpack.c.l.b16 %v6706
        %v6843 = vunpack.c.l.b16 %v6707
        %v6844 = vunpack.c.l.b16 %v6708
        %v6845 = vunpack.c.l.b16 %v6709
        %v6846 = vunpack.c.l.b16 %v6710
        %v6847 = vunpack.c.l.b16 %v6711
        %v6848 = vunpack.c.l.b16 %v6712
        %v6849 = vunpack.c.l.b16 %v6713
        %v6850 = vunpack.c.l.b16 %v6714
        %v6851 = vunpack.c.l.b16 %v6715
        %v6852 = vunpack.c.l.b16 %v6716
        %v6853 = vunpack.c.l.b16 %v6717
        %v6854 = vunpack.c.l.b16 %v6718
        %v6855 = vunpack.c.l.b16 %v6719
        %v6856 = vunpack.c.l.b16 %v6720
        %v6857 = vunpack.c.l.b16 %v6721
        %v6858 = vunpack.c.l.b16 %v6722
        %v6859 = vunpack.c.l.b16 %v6723
        %v6860 = vunpack.c.l.b16 %v6724
        %v6861 = vunpack.c.l.b16 %v6725
        %v6862 = vunpack.c.l.b16 %v6726
        %v6863 = vunpack.c.l.b16 %v6727
        %v6864 = vunpack.c.l.b16 %v6728
        %v6865 = vunpack.c.l.b16 %v6729
        %v6866 = vunpack.c.l.b16 %v6730
        %v6867 = vunpack.c.l.b16 %v6731
        %v6868 = vunpack.c.l.b16 %v6732
        %v6869 = vunpack.c.l.b16 %v6733
        %v6870 = vunpack.c.l.b16 %v6734
        %v6871 = vunpack.c.l.b16 %v6735
        %v6872 = vunpack.c.l.b16 %v6736
        %v6873 = vunpack.c.l.b16 %v6737
        %v6874 = vunpack.c.l.b16 %v6738
        %v6875 = vunpack.c.l.b16 %v6739
        %v6876 = vunpack.c.l.b16 %v6740
        %v6877 = vunpack.c.l.b16 %v6741
        %v6878 = vunpack.c.l.b16 %v6742
        %v6879 = vunpack.c.l.b16 %v6743
        %v6880 = vunpack.c.l.b16 %v6744
        %v6881 = vunpack.c.l.b16 %v6745
        %v6882 = vunpack.c.l.b16 %v6746
        %v6883 = vunpack.c.l.b16 %v6747
        %v6884 = vpack.c.b16 %v6821, %v6820
        %v6885 = vpack.c.b16 %v6823, %v6822
        %v6886 = vpack.c.b16 %v6825, %v6824
        %v6887 = vpack.c.b16 %v6827, %v6826
        %v6888 = vpack.c.b16 %v6829, %v6828
        %v6889 = vpack.c.b16 %v6831, %v6830
        %v6890 = vpack.c.b16 %v6833, %v6832
        %v6891 = vpack.c.b16 %v6835, %v6834
        %v6892 = vpack.c.b16 %v6837, %v6836
        %v6893 = vpack.c.b16 %v6839, %v6838
        %v6894 = vpack.c.b16 %v6841, %v6840
        %v6895 = vpack.c.b16 %v6843, %v6842
        %v6896 = vpack.c.b16 %v6845, %v6844
        %v6897 = vpack.c.b16 %v6847, %v6846
        %v6898 = vpack.c.b16 %v6849, %v6848
        %v6899 = vpack.c.b16 %v6851, %v6850
        %v6900 = vpack.c.b16 %v6853, %v6852
        %v6901 = vpack.c.b16 %v6855, %v6854
        %v6902 = vpack.c.b16 %v6857, %v6856
        %v6903 = vpack.c.b16 %v6859, %v6858
        %v6904 = vpack.c.b16 %v6861, %v6860
        %v6905 = vpack.c.b16 %v6863, %v6862
        %v6906 = vpack.c.b16 %v6865, %v6864
        %v6907 = vpack.c.b16 %v6867, %v6866
        %v6908 = vpack.c.b16 %v6869, %v6868
        %v6909 = vpack.c.b16 %v6871, %v6870
        %v6910 = vpack.c.b16 %v6873, %v6872
        %v6911 = vpack.c.b16 %v6875, %v6874
        %v6912 = vpack.c.b16 %v6877, %v6876
        %v6913 = vpack.c.b16 %v6879, %v6878
        %v6914 = vpack.c.b16 %v6881, %v6880
        %v6915 = vpack.c.b16 %v6883, %v6882
        %6948 = vmatprep.subr.bf16.mxu0 0
        %6949 = vmatpush1.bf16.msra.mxu0 %v6891
        %6950 = vmatprep.subr.bf16.mxu0 0
        %6951 = vmatpush1.bf16.msra.mxu0 %v6890
        %6952 = vmatprep.subr.bf16.mxu0 0
        %6953 = vmatpush1.bf16.msra.mxu0 %v6889
        %6954 = vmatprep.subr.bf16.mxu0 0
        %6955 = vmatpush1.bf16.msra.mxu0 %v6888
        %6956 = vmatprep.subr.bf16.mxu0 0
        %6957 = vmatpush1.bf16.msra.mxu0 %v6887
        %6958 = vmatprep.subr.bf16.mxu0 0
        %6959 = vmatpush1.bf16.msra.mxu0 %v6886
        %6960 = vmatprep.subr.bf16.mxu0 0
        %6961 = vmatpush1.bf16.msra.mxu0 %v6885
        %6962 = vmatprep.subr.bf16.mxu0 0
        %6963 = vmatpush1.bf16.msra.mxu0 %v6884
        %6964 = vmatprep.subr.bf16.mxu0 0
        %6965 = vmatpush2.bf16.msra.mxu0 %v6899
        %6966 = vmatprep.subr.bf16.mxu0 0
        %6967 = vmatpush2.bf16.msra.mxu0 %v6898
        %6968 = vmatprep.subr.bf16.mxu0 0
        %6969 = vmatpush2.bf16.msra.mxu0 %v6897
        %6970 = vmatprep.subr.bf16.mxu0 0
        %6971 = vmatpush2.bf16.msra.mxu0 %v6896
        %6972 = vmatprep.subr.bf16.mxu0 0
        %6973 = vmatpush2.bf16.msra.mxu0 %v6895
        %6974 = vmatprep.subr.bf16.mxu0 0
        %6975 = vmatpush2.bf16.msra.mxu0 %v6894
        %6976 = vmatprep.subr.bf16.mxu0 0
        %6977 = vmatpush2.bf16.msra.mxu0 %v6893
        %6978 = vmatprep.subr.bf16.mxu0 0
        %6979 = vmatpush2.bf16.msra.mxu0 %v6892
        %6980 = vmatprep.mubr.bf16.mxu0 %v6749
        %6981 = vmatmul.mubr.bf16.gmra.mxu0 %v6748
        %v6982 = vpop.f32.mrf.mxu0
        %v6983 = vadd.f32 0.0, %v6982
        %v6984 = vpop.f32.mrf.mxu0
        %v6985 = vpop.f32.mrf.mxu0
        %v6986 = vpop.f32.mrf.mxu0
        %6987 = vdwg.mxu0
        %6988 = vmatprep.subr.bf16.mxu0 0
        %6989 = vmatpush1.bf16.msra.mxu0 %v6907
        %6990 = vmatprep.subr.bf16.mxu0 0
        %6991 = vmatpush1.bf16.msra.mxu0 %v6906
        %6992 = vmatprep.subr.bf16.mxu0 0
        %6993 = vmatpush1.bf16.msra.mxu0 %v6905
        %6994 = vmatprep.subr.bf16.mxu0 0
        %6995 = vmatpush1.bf16.msra.mxu0 %v6904
        %6996 = vmatprep.subr.bf16.mxu0 0
        %6997 = vmatpush1.bf16.msra.mxu0 %v6903
        %6998 = vmatprep.subr.bf16.mxu0 0
        %6999 = vmatpush1.bf16.msra.mxu0 %v6902
        %7000 = vmatprep.subr.bf16.mxu0 0
        %7001 = vmatpush1.bf16.msra.mxu0 %v6901
        %7002 = vmatprep.subr.bf16.mxu0 0
        %7003 = vmatpush1.bf16.msra.mxu0 %v6900
        %7004 = vmatprep.subr.bf16.mxu0 0
        %7005 = vmatpush2.bf16.msra.mxu0 %v6915
        %7006 = vmatprep.subr.bf16.mxu0 0
        %7007 = vmatpush2.bf16.msra.mxu0 %v6914
        %7008 = vmatprep.subr.bf16.mxu0 0
        %7009 = vmatpush2.bf16.msra.mxu0 %v6913
        %7010 = vmatprep.subr.bf16.mxu0 0
        %7011 = vmatpush2.bf16.msra.mxu0 %v6912
        %7012 = vmatprep.subr.bf16.mxu0 0
        %7013 = vmatpush2.bf16.msra.mxu0 %v6911
        %7014 = vmatprep.subr.bf16.mxu0 0
        %7015 = vmatpush2.bf16.msra.mxu0 %v6910
        %7016 = vmatprep.subr.bf16.mxu0 0
        %7017 = vmatpush2.bf16.msra.mxu0 %v6909
        %7018 = vmatprep.subr.bf16.mxu0 0
        %7019 = vmatpush2.bf16.msra.mxu0 %v6908
        %7020 = vmatprep.mubr.bf16.mxu0 %v6751
        %7021 = vmatmul.mubr.bf16.gmra.mxu0 %v6750
        %v7022 = vpop.f32.mrf.mxu0
        %v7023 = vadd.f32 %v6983, %v7022
        %v7024 = vpop.f32.mrf.mxu0
        %v7025 = vpop.f32.mrf.mxu0
        %v7026 = vpop.f32.mrf.mxu0
        %7027 = vdwg.mxu0
        %v7028 = vadd.f32 %v6682, %v7023
        %s7029 = scalar_lea.vmem [#allocation8], 1792
        %v7030 = vld [vmem:[%s7029] sm:$0xf]
        %v7031 = vld [vmem:[%s7029 + $0x4] sm:$0xf]
        %v7032 = vld [vmem:[%s7029 + $0x8] sm:$0xf]
        %v7033 = vld [vmem:[%s7029 + $0xc] sm:$0xf]
        %v7034 = vld [vmem:[%s7029 + $0x10] sm:$0xf]
        %v7035 = vld [vmem:[%s7029 + $0x14] sm:$0xf]
        %v7036 = vld [vmem:[%s7029 + $0x18] sm:$0xf]
        %v7037 = vld [vmem:[%s7029 + $0x1c] sm:$0xf]
        %v7038 = vld [vmem:[%s7029 + $0x20] sm:$0xf]
        %v7039 = vld [vmem:[%s7029 + $0x24] sm:$0xf]
        %v7040 = vld [vmem:[%s7029 + $0x28] sm:$0xf]
        %v7041 = vld [vmem:[%s7029 + $0x2c] sm:$0xf]
        %v7042 = vld [vmem:[%s7029 + $0x30] sm:$0xf]
        %v7043 = vld [vmem:[%s7029 + $0x34] sm:$0xf]
        %v7044 = vld [vmem:[%s7029 + $0x38] sm:$0xf]
        %v7045 = vld [vmem:[%s7029 + $0x3c] sm:$0xf]
        %v7046 = vld [vmem:[%s7029 + $0x40] sm:$0xf]
        %v7047 = vld [vmem:[%s7029 + $0x44] sm:$0xf]
        %v7048 = vld [vmem:[%s7029 + $0x48] sm:$0xf]
        %v7049 = vld [vmem:[%s7029 + $0x4c] sm:$0xf]
        %v7050 = vld [vmem:[%s7029 + $0x50] sm:$0xf]
        %v7051 = vld [vmem:[%s7029 + $0x54] sm:$0xf]
        %v7052 = vld [vmem:[%s7029 + $0x58] sm:$0xf]
        %v7053 = vld [vmem:[%s7029 + $0x5c] sm:$0xf]
        %v7054 = vld [vmem:[%s7029 + $0x60] sm:$0xf]
        %v7055 = vld [vmem:[%s7029 + $0x64] sm:$0xf]
        %v7056 = vld [vmem:[%s7029 + $0x68] sm:$0xf]
        %v7057 = vld [vmem:[%s7029 + $0x6c] sm:$0xf]
        %v7058 = vld [vmem:[%s7029 + $0x70] sm:$0xf]
        %v7059 = vld [vmem:[%s7029 + $0x74] sm:$0xf]
        %v7060 = vld [vmem:[%s7029 + $0x78] sm:$0xf]
        %v7061 = vld [vmem:[%s7029 + $0x7c] sm:$0xf]
        %v7062 = vld [vmem:[%s7029 + $0x80] sm:$0xf]
        %v7063 = vld [vmem:[%s7029 + $0x84] sm:$0xf]
        %v7064 = vld [vmem:[%s7029 + $0x88] sm:$0xf]
        %v7065 = vld [vmem:[%s7029 + $0x8c] sm:$0xf]
        %v7066 = vld [vmem:[%s7029 + $0x90] sm:$0xf]
        %v7067 = vld [vmem:[%s7029 + $0x94] sm:$0xf]
        %v7068 = vld [vmem:[%s7029 + $0x98] sm:$0xf]
        %v7069 = vld [vmem:[%s7029 + $0x9c] sm:$0xf]
        %v7070 = vld [vmem:[%s7029 + $0xa0] sm:$0xf]
        %v7071 = vld [vmem:[%s7029 + $0xa4] sm:$0xf]
        %v7072 = vld [vmem:[%s7029 + $0xa8] sm:$0xf]
        %v7073 = vld [vmem:[%s7029 + $0xac] sm:$0xf]
        %v7074 = vld [vmem:[%s7029 + $0xb0] sm:$0xf]
        %v7075 = vld [vmem:[%s7029 + $0xb4] sm:$0xf]
        %v7076 = vld [vmem:[%s7029 + $0xb8] sm:$0xf]
        %v7077 = vld [vmem:[%s7029 + $0xbc] sm:$0xf]
        %v7078 = vld [vmem:[%s7029 + $0xc0] sm:$0xf]
        %v7079 = vld [vmem:[%s7029 + $0xc4] sm:$0xf]
        %v7080 = vld [vmem:[%s7029 + $0xc8] sm:$0xf]
        %v7081 = vld [vmem:[%s7029 + $0xcc] sm:$0xf]
        %v7082 = vld [vmem:[%s7029 + $0xd0] sm:$0xf]
        %v7083 = vld [vmem:[%s7029 + $0xd4] sm:$0xf]
        %v7084 = vld [vmem:[%s7029 + $0xd8] sm:$0xf]
        %v7085 = vld [vmem:[%s7029 + $0xdc] sm:$0xf]
        %v7086 = vld [vmem:[%s7029 + $0xe0] sm:$0xf]
        %v7087 = vld [vmem:[%s7029 + $0xe4] sm:$0xf]
        %v7088 = vld [vmem:[%s7029 + $0xe8] sm:$0xf]
        %v7089 = vld [vmem:[%s7029 + $0xec] sm:$0xf]
        %v7090 = vld [vmem:[%s7029 + $0xf0] sm:$0xf]
        %v7091 = vld [vmem:[%s7029 + $0xf4] sm:$0xf]
        %v7092 = vld [vmem:[%s7029 + $0xf8] sm:$0xf]
        %v7093 = vld [vmem:[%s7029 + $0xfc] sm:$0xf]
        %v7094 = vrot.slane %v5007, 3
        %v7095 = vrot.slane %v5010, 3
        %v7096 = vrot.slane %v5013, 3
        %v7097 = vrot.slane %v5016, 3
        %v7166 = vunpack.c.l.b16 %v7030
        %v7167 = vunpack.c.l.b16 %v7031
        %v7168 = vunpack.c.l.b16 %v7032
        %v7169 = vunpack.c.l.b16 %v7033
        %v7170 = vunpack.c.l.b16 %v7034
        %v7171 = vunpack.c.l.b16 %v7035
        %v7172 = vunpack.c.l.b16 %v7036
        %v7173 = vunpack.c.l.b16 %v7037
        %v7174 = vunpack.c.l.b16 %v7038
        %v7175 = vunpack.c.l.b16 %v7039
        %v7176 = vunpack.c.l.b16 %v7040
        %v7177 = vunpack.c.l.b16 %v7041
        %v7178 = vunpack.c.l.b16 %v7042
        %v7179 = vunpack.c.l.b16 %v7043
        %v7180 = vunpack.c.l.b16 %v7044
        %v7181 = vunpack.c.l.b16 %v7045
        %v7182 = vunpack.c.l.b16 %v7046
        %v7183 = vunpack.c.l.b16 %v7047
        %v7184 = vunpack.c.l.b16 %v7048
        %v7185 = vunpack.c.l.b16 %v7049
        %v7186 = vunpack.c.l.b16 %v7050
        %v7187 = vunpack.c.l.b16 %v7051
        %v7188 = vunpack.c.l.b16 %v7052
        %v7189 = vunpack.c.l.b16 %v7053
        %v7190 = vunpack.c.l.b16 %v7054
        %v7191 = vunpack.c.l.b16 %v7055
        %v7192 = vunpack.c.l.b16 %v7056
        %v7193 = vunpack.c.l.b16 %v7057
        %v7194 = vunpack.c.l.b16 %v7058
        %v7195 = vunpack.c.l.b16 %v7059
        %v7196 = vunpack.c.l.b16 %v7060
        %v7197 = vunpack.c.l.b16 %v7061
        %v7198 = vunpack.c.l.b16 %v7062
        %v7199 = vunpack.c.l.b16 %v7063
        %v7200 = vunpack.c.l.b16 %v7064
        %v7201 = vunpack.c.l.b16 %v7065
        %v7202 = vunpack.c.l.b16 %v7066
        %v7203 = vunpack.c.l.b16 %v7067
        %v7204 = vunpack.c.l.b16 %v7068
        %v7205 = vunpack.c.l.b16 %v7069
        %v7206 = vunpack.c.l.b16 %v7070
        %v7207 = vunpack.c.l.b16 %v7071
        %v7208 = vunpack.c.l.b16 %v7072
        %v7209 = vunpack.c.l.b16 %v7073
        %v7210 = vunpack.c.l.b16 %v7074
        %v7211 = vunpack.c.l.b16 %v7075
        %v7212 = vunpack.c.l.b16 %v7076
        %v7213 = vunpack.c.l.b16 %v7077
        %v7214 = vunpack.c.l.b16 %v7078
        %v7215 = vunpack.c.l.b16 %v7079
        %v7216 = vunpack.c.l.b16 %v7080
        %v7217 = vunpack.c.l.b16 %v7081
        %v7218 = vunpack.c.l.b16 %v7082
        %v7219 = vunpack.c.l.b16 %v7083
        %v7220 = vunpack.c.l.b16 %v7084
        %v7221 = vunpack.c.l.b16 %v7085
        %v7222 = vunpack.c.l.b16 %v7086
        %v7223 = vunpack.c.l.b16 %v7087
        %v7224 = vunpack.c.l.b16 %v7088
        %v7225 = vunpack.c.l.b16 %v7089
        %v7226 = vunpack.c.l.b16 %v7090
        %v7227 = vunpack.c.l.b16 %v7091
        %v7228 = vunpack.c.l.b16 %v7092
        %v7229 = vunpack.c.l.b16 %v7093
        %v7230 = vpack.c.b16 %v7167, %v7166
        %v7231 = vpack.c.b16 %v7169, %v7168
        %v7232 = vpack.c.b16 %v7171, %v7170
        %v7233 = vpack.c.b16 %v7173, %v7172
        %v7234 = vpack.c.b16 %v7175, %v7174
        %v7235 = vpack.c.b16 %v7177, %v7176
        %v7236 = vpack.c.b16 %v7179, %v7178
        %v7237 = vpack.c.b16 %v7181, %v7180
        %v7238 = vpack.c.b16 %v7183, %v7182
        %v7239 = vpack.c.b16 %v7185, %v7184
        %v7240 = vpack.c.b16 %v7187, %v7186
        %v7241 = vpack.c.b16 %v7189, %v7188
        %v7242 = vpack.c.b16 %v7191, %v7190
        %v7243 = vpack.c.b16 %v7193, %v7192
        %v7244 = vpack.c.b16 %v7195, %v7194
        %v7245 = vpack.c.b16 %v7197, %v7196
        %v7246 = vpack.c.b16 %v7199, %v7198
        %v7247 = vpack.c.b16 %v7201, %v7200
        %v7248 = vpack.c.b16 %v7203, %v7202
        %v7249 = vpack.c.b16 %v7205, %v7204
        %v7250 = vpack.c.b16 %v7207, %v7206
        %v7251 = vpack.c.b16 %v7209, %v7208
        %v7252 = vpack.c.b16 %v7211, %v7210
        %v7253 = vpack.c.b16 %v7213, %v7212
        %v7254 = vpack.c.b16 %v7215, %v7214
        %v7255 = vpack.c.b16 %v7217, %v7216
        %v7256 = vpack.c.b16 %v7219, %v7218
        %v7257 = vpack.c.b16 %v7221, %v7220
        %v7258 = vpack.c.b16 %v7223, %v7222
        %v7259 = vpack.c.b16 %v7225, %v7224
        %v7260 = vpack.c.b16 %v7227, %v7226
        %v7261 = vpack.c.b16 %v7229, %v7228
        %7294 = vmatprep.subr.bf16.mxu0 0
        %7295 = vmatpush1.bf16.msra.mxu0 %v7237
        %7296 = vmatprep.subr.bf16.mxu0 0
        %7297 = vmatpush1.bf16.msra.mxu0 %v7236
        %7298 = vmatprep.subr.bf16.mxu0 0
        %7299 = vmatpush1.bf16.msra.mxu0 %v7235
        %7300 = vmatprep.subr.bf16.mxu0 0
        %7301 = vmatpush1.bf16.msra.mxu0 %v7234
        %7302 = vmatprep.subr.bf16.mxu0 0
        %7303 = vmatpush1.bf16.msra.mxu0 %v7233
        %7304 = vmatprep.subr.bf16.mxu0 0
        %7305 = vmatpush1.bf16.msra.mxu0 %v7232
        %7306 = vmatprep.subr.bf16.mxu0 0
        %7307 = vmatpush1.bf16.msra.mxu0 %v7231
        %7308 = vmatprep.subr.bf16.mxu0 0
        %7309 = vmatpush1.bf16.msra.mxu0 %v7230
        %7310 = vmatprep.subr.bf16.mxu0 0
        %7311 = vmatpush2.bf16.msra.mxu0 %v7245
        %7312 = vmatprep.subr.bf16.mxu0 0
        %7313 = vmatpush2.bf16.msra.mxu0 %v7244
        %7314 = vmatprep.subr.bf16.mxu0 0
        %7315 = vmatpush2.bf16.msra.mxu0 %v7243
        %7316 = vmatprep.subr.bf16.mxu0 0
        %7317 = vmatpush2.bf16.msra.mxu0 %v7242
        %7318 = vmatprep.subr.bf16.mxu0 0
        %7319 = vmatpush2.bf16.msra.mxu0 %v7241
        %7320 = vmatprep.subr.bf16.mxu0 0
        %7321 = vmatpush2.bf16.msra.mxu0 %v7240
        %7322 = vmatprep.subr.bf16.mxu0 0
        %7323 = vmatpush2.bf16.msra.mxu0 %v7239
        %7324 = vmatprep.subr.bf16.mxu0 0
        %7325 = vmatpush2.bf16.msra.mxu0 %v7238
        %7326 = vmatprep.mubr.bf16.mxu0 %v7095
        %7327 = vmatmul.mubr.bf16.gmra.mxu0 %v7094
        %v7328 = vpop.f32.mrf.mxu0
        %v7329 = vadd.f32 0.0, %v7328
        %v7330 = vpop.f32.mrf.mxu0
        %v7331 = vpop.f32.mrf.mxu0
        %v7332 = vpop.f32.mrf.mxu0
        %7333 = vdwg.mxu0
        %7334 = vmatprep.subr.bf16.mxu0 0
        %7335 = vmatpush1.bf16.msra.mxu0 %v7253
        %7336 = vmatprep.subr.bf16.mxu0 0
        %7337 = vmatpush1.bf16.msra.mxu0 %v7252
        %7338 = vmatprep.subr.bf16.mxu0 0
        %7339 = vmatpush1.bf16.msra.mxu0 %v7251
        %7340 = vmatprep.subr.bf16.mxu0 0
        %7341 = vmatpush1.bf16.msra.mxu0 %v7250
        %7342 = vmatprep.subr.bf16.mxu0 0
        %7343 = vmatpush1.bf16.msra.mxu0 %v7249
        %7344 = vmatprep.subr.bf16.mxu0 0
        %7345 = vmatpush1.bf16.msra.mxu0 %v7248
        %7346 = vmatprep.subr.bf16.mxu0 0
        %7347 = vmatpush1.bf16.msra.mxu0 %v7247
        %7348 = vmatprep.subr.bf16.mxu0 0
        %7349 = vmatpush1.bf16.msra.mxu0 %v7246
        %7350 = vmatprep.subr.bf16.mxu0 0
        %7351 = vmatpush2.bf16.msra.mxu0 %v7261
        %7352 = vmatprep.subr.bf16.mxu0 0
        %7353 = vmatpush2.bf16.msra.mxu0 %v7260
        %7354 = vmatprep.subr.bf16.mxu0 0
        %7355 = vmatpush2.bf16.msra.mxu0 %v7259
        %7356 = vmatprep.subr.bf16.mxu0 0
        %7357 = vmatpush2.bf16.msra.mxu0 %v7258
        %7358 = vmatprep.subr.bf16.mxu0 0
        %7359 = vmatpush2.bf16.msra.mxu0 %v7257
        %7360 = vmatprep.subr.bf16.mxu0 0
        %7361 = vmatpush2.bf16.msra.mxu0 %v7256
        %7362 = vmatprep.subr.bf16.mxu0 0
        %7363 = vmatpush2.bf16.msra.mxu0 %v7255
        %7364 = vmatprep.subr.bf16.mxu0 0
        %7365 = vmatpush2.bf16.msra.mxu0 %v7254
        %7366 = vmatprep.mubr.bf16.mxu0 %v7097
        %7367 = vmatmul.mubr.bf16.gmra.mxu0 %v7096
        %v7368 = vpop.f32.mrf.mxu0
        %v7369 = vadd.f32 %v7329, %v7368
        %v7370 = vpop.f32.mrf.mxu0
        %v7371 = vpop.f32.mrf.mxu0
        %v7372 = vpop.f32.mrf.mxu0
        %7373 = vdwg.mxu0
        %v7374 = vadd.f32 %v7028, %v7369
        %7375 = vst [vmem:[%s342] sm:$0x1] %v7374
        %s7376 = sand.u32 %s185, 1
        %s7377 = scalar_lea.sflag [#allocation5], %s7376
        %s7378 = sand.u32 %s185, 1
        %s7379 = scalar_lea.vmem [#allocation9], %s7378
        %p7380 = scmp.lt.s32.totalorder %s25, 1
        %s7381 = scalar_select %p7380, %s25, 1
        %s7382 = smul.addr %s7381, 4
        %s7383 = smul.addr %s7382, 8
        %s7384 = scalar_lea.vmem %s8, %s7383
        // Predicated region
        $region61: #{cnn_forward.1} parent=47 // pred_check
          %p7385 = pneg %p195
        $region62: #{cnn_forward.1} parent=47 // pred_check_branch
          %7387 = sbr.rel (%p7385) target = $region64
        $region63: #{cnn_forward.1} parent=47 // pred_region
          %s7389 = ssub.s32 16, 16
          %7390 = vsyncadd %s7377, %s7389
          %s7391 = smul.addr %s25, 16
          %s7392 = scalar_lea.hbm %s7, %s7391
          %s7394 = sshll.u32 %s7379, 4
          %s7395 = int_to_ptr.vmem [resolvable:$true] %s7394
          %7397 = dma.vmem_to_hbm [thread:$0]  %s7395, 16, %s7392, %s7377
        $region64: #{cnn_forward.1} parent=47 // pred_fallthru
          _
        // Predicated region
        $region65: #{cnn_forward.1} parent=47 // pred_check
          %p7398 = pneg %p221
        $region66: #{cnn_forward.1} parent=47 // pred_check_branch
          %7400 = sbr.rel (%p7398) target = $region68
        $region67: #{cnn_forward.1} parent=47 // pred_region
          _
        $region68: #{cnn_forward.1} parent=47 // pred_fallthru
          _
      $region48: #{cnn_forward.1} parent=5 // pred_fallthru
        _
      %p7401 = scmp.le.s32.totalorder 2, %s20
      // Predicated region
      $region69: #{cnn_forward.1} parent=5 // pred_check
        %p7402 = pneg %p7401
      $region70: #{cnn_forward.1} parent=5 // pred_check_branch
        %7404 = sbr.rel (%p7402) target = $region72
      $region71: #{cnn_forward.1} parent=5 // pred_region
        %s7405 = ssub.s32 %s20, 2
        // Predicated region
        $region73: #{cnn_forward.1} parent=71 // pred_check
          %p7406 = pneg %p201
        $region74: #{cnn_forward.1} parent=71 // pred_check_branch
          %7408 = sbr.rel (%p7406) target = $region76
        $region75: #{cnn_forward.1} parent=71 // pred_region
          %s7409 = sand.u32 %s186, 1
          %s7410 = scalar_lea.sflag [#allocation5], %s7409
          %s7411 = sand.u32 %s186, 1
          %s7412 = scalar_lea.vmem [#allocation9], %s7411
          %7413 = dma.done %s7410, 16
        $region76: #{cnn_forward.1} parent=71 // pred_fallthru
          _
        // Predicated region
        $region77: #{cnn_forward.1} parent=71 // pred_check
          %p7414 = pneg %p227
        $region78: #{cnn_forward.1} parent=71 // pred_check_branch
          %7416 = sbr.rel (%p7414) target = $region80
        $region79: #{cnn_forward.1} parent=71 // pred_region
          %p7417 = scmp.lt.s32.totalorder %s26, 1
          %s7418 = scalar_select %p7417, %s26, 1
          %s7419 = smul.addr %s7418, 4
          %s7420 = smul.addr %s7419, 8
          %s7421 = scalar_lea.vmem %s8, %s7420
        $region80: #{cnn_forward.1} parent=71 // pred_fallthru
          _
      $region72: #{cnn_forward.1} parent=5 // pred_fallthru
        _
    $region6: #{cnn_forward.1} parent=1 // loop_footer
      %s24 = sadd.s32 1, %s20
    $region7: #{cnn_forward.1} parent=1 // loop_footer_branch
      %19 = sbr.rel target = $region3
    $region8: #{cnn_forward.1} parent=1 // loop_exit
      _
    %7422 = vsyncpa [#allocation4], 1
    %s7423 = scalar_lea.sflag [#allocation4], 1
    %7424 = vsyncpa %s7423, 1
    %7425 = vsyncpa [#allocation7], 1
    %7426 = vsyncpa [#allocation5], 1
    %s7427 = scalar_lea.sflag [#allocation5], 1
    %7428 = vsyncpa %s7427, 1

</llo_original>
